<compile_context>
chip_gen: v7x
topology: tpu7x:2x2x1
jax: 0.10.0
libtpu: 0.0.40
codegen_flags: <defaults>
</compile_context>

<pallas_src>
import functools

import jax
import jax.numpy as jnp
from jax.experimental import pallas as pl
from jax.experimental.pallas import tpu as pltpu  # noqa: F401  (TPU backend assumed)

_EPS = 1e-5


# ---------------------------------------------------------------------------
# Pallas kernels (gridless: whole arrays resident in VMEM, single invocation)
# ---------------------------------------------------------------------------
def _activate(z, act):
    if act == "leaky":            # F.leaky_relu(x, 0.2)
        return jnp.where(z >= 0, z, 0.2 * z)
    if act == "relu":
        return jnp.maximum(z, 0.0)
    if act == "tanh":
        return jnp.tanh(z)
    return z                      # "none"


def _bn_scale_shift(y_sum, y_sqsum, count, g, b, eps):
    # training-mode BatchNorm: batch mean / biased batch variance
    mean = y_sum * (1.0 / count)
    var = jnp.maximum(y_sqsum * (1.0 / count) - mean * mean, 0.0)
    scale = g * jax.lax.rsqrt(var + eps)
    shift = b - mean * scale
    return scale, shift


def _gemm_bn_act_kernel(w_ref, cols_ref, g_ref, b_ref, o_ref, *, act, eps):
    # (Cout, K)bf16 @ (K, M)bf16 -> (Cout, M)f32, then fused train-mode BN + act.
    y = jnp.dot(w_ref[...], cols_ref[...], preferred_element_type=jnp.float32)
    m = y.shape[1]
    s = jnp.sum(y, axis=1, keepdims=True)
    sq = jnp.sum(y * y, axis=1, keepdims=True)
    scale, shift = _bn_scale_shift(s, sq, m, g_ref[...], b_ref[...], eps)
    o_ref[...] = _activate(y * scale + shift, act)


def _gemm_bn_add_kernel(w_ref, cols_ref, g_ref, b_ref, res_ref, o_ref, *, eps):
    # residual-block tail: x + BN(conv2(h)), fused into one kernel.
    y = jnp.dot(w_ref[...], cols_ref[...], preferred_element_type=jnp.float32)
    m = y.shape[1]
    s = jnp.sum(y, axis=1, keepdims=True)
    sq = jnp.sum(y * y, axis=1, keepdims=True)
    scale, shift = _bn_scale_shift(s, sq, m, g_ref[...], b_ref[...], eps)
    o_ref[...] = res_ref[...] + (y * scale + shift)


def _deconv_bn_act_kernel(w_ref, cols_ref, g_ref, b_ref, o_ref, *, act, eps):
    # Sub-pixel transposed conv: one (Cout, 4*Cin) GEMM per output parity.
    # BN statistics are taken over all 4*M output positions, then BN + act is
    # applied in place on the staged parity results (kept in VMEM via o_ref).
    n_par, _, m = cols_ref.shape
    cout = o_ref.shape[0]
    s = jnp.zeros((cout, 1), jnp.float32)
    sq = jnp.zeros((cout, 1), jnp.float32)
    for p in range(n_par):
        y = jnp.dot(w_ref[p], cols_ref[p], preferred_element_type=jnp.float32)
        s = s + jnp.sum(y, axis=1, keepdims=True)
        sq = sq + jnp.sum(y * y, axis=1, keepdims=True)
        o_ref[:, p * m:(p + 1) * m] = y            # stage raw GEMM result
    scale, shift = _bn_scale_shift(s, sq, n_par * m, g_ref[...], b_ref[...], eps)
    for p in range(n_par):
        z = o_ref[:, p * m:(p + 1) * m] * scale + shift
        o_ref[:, p * m:(p + 1) * m] = _activate(z, act)


# ---------------------------------------------------------------------------
# Pallas wrappers (no grid: each call is a single whole-array invocation)
# ---------------------------------------------------------------------------
def gemm_bn_act(wm, cols, g, b, act):
    cout, m = wm.shape[0], cols.shape[1]
    return pl.pallas_call(
        functools.partial(_gemm_bn_act_kernel, act=act, eps=_EPS),
        out_shape=jax.ShapeDtypeStruct((cout, m), jnp.float32),
    )(wm, cols, g, b)


def gemm_bn_add(wm, cols, g, b, res):
    cout, m = wm.shape[0], cols.shape[1]
    return pl.pallas_call(
        functools.partial(_gemm_bn_add_kernel, eps=_EPS),
        out_shape=jax.ShapeDtypeStruct((cout, m), jnp.float32),
    )(wm, cols, g, b, res)


def deconv_gemm_bn_act(w_par, cols, g, b, act):
    n_par, cout, _ = w_par.shape
    m = cols.shape[2]
    return pl.pallas_call(
        functools.partial(_deconv_bn_act_kernel, act=act, eps=_EPS),
        out_shape=jax.ShapeDtypeStruct((cout, n_par * m), jnp.float32),
    )(w_par, cols, g, b)


# ---------------------------------------------------------------------------
# Plain-JAX layout glue (im2col / sub-pixel tap slicing / parity interleave)
# ---------------------------------------------------------------------------
def im2col_cm(x4, k, s, pad):
    # x4: (C, N, H, W) -> cols (C*k*k, N*oh*ow), K ordered (ci, kh, kw) to match
    # Conv2d weight.reshape(Cout, Cin*k*k).
    c, n, h, w = x4.shape
    xp = jnp.pad(x4, ((0, 0), (0, 0), (pad, pad), (pad, pad)))
    oh = (h + 2 * pad - k) // s + 1
    ow = (w + 2 * pad - k) // s + 1
    pats = []
    for i in range(k):
        for j in range(k):
            pats.append(xp[:, :, i:i + s * oh:s, j:j + s * ow:s])
    cols = jnp.stack(pats, axis=1)                # (c, k*k, n, oh, ow)
    return cols.reshape(c * k * k, n * oh * ow), (n, oh, ow)


# Sub-pixel decomposition of ConvTranspose2d(kernel=4, stride=2, padding=1):
# output row 2*i + a draws from input row i + dh with kernel row kh for the two
# (dh, kh) pairs below (identical table for the column direction).
_DECONV_TAPS = {0: ((0, 1), (-1, 3)), 1: ((1, 0), (0, 2))}


def deconv_parity_cols(x4):
    # x4: (Cin, N, H, W) -> (4, 4*Cin, N*H*W); parity p = a*2 + b, K ordered
    # (tap, ci) to match deconv_weight_mats().
    cin, n, h, w = x4.shape
    xp = jnp.pad(x4, ((0, 0), (0, 0), (1, 1), (1, 1)))
    par = []
    for a in (0, 1):
        for b in (0, 1):
            taps = []
            for dh, _ in _DECONV_TAPS[a]:
                for dw, _ in _DECONV_TAPS[b]:
                    taps.append(xp[:, :, 1 + dh:1 + dh + h, 1 + dw:1 + dw + w])
            par.append(jnp.stack(taps, axis=0).reshape(4 * cin, n * h * w))
    return jnp.stack(par, axis=0)


def deconv_weight_mats(w_t):
    # PyTorch ConvTranspose2d weight (Cin, Cout, 4, 4) -> (4, Cout, 4*Cin):
    # one GEMM matrix per output parity, tap-major / ci-minor.
    cin, cout = w_t.shape[0], w_t.shape[1]
    par = []
    for a in (0, 1):
        for b in (0, 1):
            taps = []
            for _, kh in _DECONV_TAPS[a]:
                for _, kw in _DECONV_TAPS[b]:
                    taps.append(jnp.transpose(w_t[:, :, kh, kw]))   # (Cout, Cin)
            par.append(jnp.stack(taps, axis=1).reshape(cout, 4 * cin))
    return jnp.stack(par, axis=0)


# ---------------------------------------------------------------------------
# Layers
# ---------------------------------------------------------------------------
def conv_bn_act(x4, p, *, k, s, pad, act):
    cols, (n, oh, ow) = im2col_cm(x4.astype(jnp.bfloat16), k, s, pad)
    y = gemm_bn_act(p["wm"], cols, p["g"], p["be"], act)
    return y.reshape(p["wm"].shape[0], n, oh, ow)


def residual_block(x4, p):
    # out1 = relu(BN(conv1(x)));  out2 = x + BN(conv2(out1))
    # NOTE: a further step would fuse the whole block into one kernel with
    # in-kernel shifted-window taps; kept as two fused kernels for robustness.
    c, n, h, w = x4.shape
    cols1, _ = im2col_cm(x4.astype(jnp.bfloat16), 3, 1, 1)
    h1 = gemm_bn_act(p["w1m"], cols1, p["g1"], p["be1"], "relu")
    cols2, _ = im2col_cm(h1.reshape(c, n, h, w).astype(jnp.bfloat16), 3, 1, 1)
    out = gemm_bn_add(p["w2m"], cols2, p["g2"], p["be2"], x4.reshape(c, n * h * w))
    return out.reshape(c, n, h, w)


def deconv_bn_act(x4, p, *, act):
    # ConvTranspose2d(k=4, s=2, p=1, bias=False) via sub-pixel decomposition.
    cin, n, h, w = x4.shape
    cols = deconv_parity_cols(x4.astype(jnp.bfloat16))        # (4, 4*Cin, M)
    cout = p["wm"].shape[1]
    y = deconv_gemm_bn_act(p["wm"], cols, p["g"], p["be"], act)  # (Cout, 4*M)
    y = y.reshape(cout, 2, 2, n, h, w)
    y = jnp.transpose(y, (0, 3, 4, 1, 5, 2)).reshape(cout, n, 2 * h, 2 * w)
    return y


# ---------------------------------------------------------------------------
# Parameters (deterministic, synthetic) + one-time GEMM-layout preparation
# ---------------------------------------------------------------------------
def init_params(key, conv_dim=8, n_res_blocks=2):
    keys = iter(jax.random.split(key, 64))

    def conv_p(cout, cin, k):
        # NOTE: the Conv2d bias is generated to mirror the PyTorch module but is
        # never used: BN(y + b) == BN(y) in training mode, so it has no effect.
        return dict(
            w=0.05 * jax.random.normal(next(keys), (cout, cin, k, k), jnp.float32),
            b=0.05 * jax.random.normal(next(keys), (cout,), jnp.float32),
            g=1.0 + 0.1 * jax.random.normal(next(keys), (cout,), jnp.float32),
            be=0.1 * jax.random.normal(next(keys), (cout,), jnp.float32),
        )

    def deconv_p(cin, cout, k):
        return dict(
            w=0.05 * jax.random.normal(next(keys), (cin, cout, k, k), jnp.float32),
            g=1.0 + 0.1 * jax.random.normal(next(keys), (cout,), jnp.float32),
            be=0.1 * jax.random.normal(next(keys), (cout,), jnp.float32),
        )

    res = []
    for _ in range(n_res_blocks):
        p1 = conv_p(conv_dim * 4, conv_dim * 4, 3)
        p2 = conv_p(conv_dim * 4, conv_dim * 4, 3)
        res.append(dict(w1=p1["w"], g1=p1["g"], be1=p1["be"],
                        w2=p2["w"], g2=p2["g"], be2=p2["be"]))

    return dict(
        conv1=conv_p(conv_dim, 3, 4),
        conv2=conv_p(conv_dim * 2, conv_dim, 4),
        conv3=conv_p(conv_dim * 4, conv_dim * 2, 4),
        res=res,
        deconv1=deconv_p(conv_dim * 4, conv_dim * 2, 4),
        deconv2=deconv_p(conv_dim * 2, conv_dim, 4),
        deconv3=deconv_p(conv_dim, 3, 4),
    )


def prepare_params(params):
    """One-time weight reshuffle into GEMM-ready layouts (hoisted out of fwd)."""
    def conv_mat(p):
        cout = p["w"].shape[0]
        return dict(wm=p["w"].reshape(cout, -1).astype(jnp.bfloat16),
                    g=p["g"].reshape(-1, 1).astype(jnp.float32),
                    be=p["be"].reshape(-1, 1).astype(jnp.float32))

    def res_mat(p):
        c = p["w1"].shape[0]
        return dict(w1m=p["w1"].reshape(c, -1).astype(jnp.bfloat16),
                    g1=p["g1"].reshape(-1, 1).astype(jnp.float32),
                    be1=p["be1"].reshape(-1, 1).astype(jnp.float32),
                    w2m=p["w2"].reshape(c, -1).astype(jnp.bfloat16),
                    g2=p["g2"].reshape(-1, 1).astype(jnp.float32),
                    be2=p["be2"].reshape(-1, 1).astype(jnp.float32))

    def deconv_mat(p):
        return dict(wm=deconv_weight_mats(p["w"]).astype(jnp.bfloat16),
                    g=p["g"].reshape(-1, 1).astype(jnp.float32),
                    be=p["be"].reshape(-1, 1).astype(jnp.float32))

    return dict(
        conv1=conv_mat(params["conv1"]),
        conv2=conv_mat(params["conv2"]),
        conv3=conv_mat(params["conv3"]),
        res=[res_mat(r) for r in params["res"]],
        deconv1=deconv_mat(params["deconv1"]),
        deconv2=deconv_mat(params["deconv2"]),
        deconv3=deconv_mat(params["deconv3"]),
    )


# ---------------------------------------------------------------------------
# Full forward
# ---------------------------------------------------------------------------
def cycle_generator_forward(x, gp):
    # mirrors x.view(-1, 3, 128, 128)
    x = x.reshape(-1, 3, 128, 128).astype(jnp.float32)
    h = jnp.transpose(x, (1, 0, 2, 3))            # channel-major (C, N, H, W)

    h = conv_bn_act(h, gp["conv1"], k=4, s=2, pad=1, act="leaky")
    h = conv_bn_act(h, gp["conv2"], k=4, s=2, pad=1, act="leaky")
    h = conv_bn_act(h, gp["conv3"], k=4, s=2, pad=1, act="leaky")

    for rp in gp["res"]:
        h = residual_block(h, rp)

    h = deconv_bn_act(h, gp["deconv1"], act="leaky")
    h = deconv_bn_act(h, gp["deconv2"], act="leaky")
    h = deconv_bn_act(h, gp["deconv3"], act="tanh")

    return jnp.transpose(h, (1, 0, 2, 3))         # back to NCHW


if __name__ == "__main__":
    key = jax.random.PRNGKey(0)
    k_x, k_p = jax.random.split(key)

    # forward() hard-codes x.view(-1, 3, 128, 128); keep batch=1, conv_dim=8,
    # n_res_blocks=2 to stay small while respecting the required spatial size.
    x = jax.random.normal(k_x, (1, 3, 128, 128), jnp.float32)
    params = init_params(k_p, conv_dim=8, n_res_blocks=2)
    gemm_params = prepare_params(params)          # one-time layout preparation

    fwd = jax.jit(cycle_generator_forward)
    out = jax.block_until_ready(fwd(x, gemm_params))

    assert out.shape == (1, 3, 128, 128), out.shape
    assert bool(jnp.all(jnp.isfinite(out)))
    assert bool(jnp.all(jnp.abs(out) <= 1.0 + 1e-6))  # tanh output range
    print("KERNEL_OK")
</pallas_src>

<mosaic_0001>
module attributes {stable_mosaic.version = 11 : i64} {
  func.func @_gemm_bn_act_kernel(%arg0: memref<8x48xbf16, #tpu.memory_space<vmem>>, %arg1: memref<48x4096xbf16, #tpu.memory_space<vmem>>, %arg2: memref<8x1xf32, #tpu.memory_space<vmem>>, %arg3: memref<8x1xf32, #tpu.memory_space<vmem>>, %arg4: memref<8x4096xf32, #tpu.memory_space<vmem>>) attributes {dimension_semantics = [], scalar_prefetch = 0 : i64, scratch_operands = 0 : i64, tpu.core_type = #tpu.core_type<tc>} {
    %c0 = arith.constant 0 : index
    %c0_0 = arith.constant 0 : index
    %0 = vector.load %arg0[%c0, %c0_0] : memref<8x48xbf16, #tpu.memory_space<vmem>>, vector<8x48xbf16>
    %c0_1 = arith.constant 0 : index
    %c0_2 = arith.constant 0 : index
    %1 = vector.load %arg1[%c0_1, %c0_2] : memref<48x4096xbf16, #tpu.memory_space<vmem>>, vector<48x4096xbf16>
    %cst = arith.constant dense<0.000000e+00> : vector<8x4096xf32>
    %2 = tpu.matmul %0, %1, %cst {dimension_numbers = #tpu.dot_dimension_numbers<[1], [0], [0], [1], [0, 0, 1, 1], [], []>} : vector<8x48xbf16>, vector<48x4096xbf16>, vector<8x4096xf32> -> vector<8x4096xf32>
    %cst_3 = arith.constant dense<0.000000e+00> : vector<8xf32>
    %3 = vector.multi_reduction <add>, %2, %cst_3 [1] : vector<8x4096xf32> to vector<8xf32>
    %4 = vector.shape_cast %3 : vector<8xf32> to vector<8x1xf32>
    %5 = arith.mulf %2, %2 : vector<8x4096xf32>
    %cst_4 = arith.constant dense<0.000000e+00> : vector<8xf32>
    %6 = vector.multi_reduction <add>, %5, %cst_4 [1] : vector<8x4096xf32> to vector<8xf32>
    %7 = vector.shape_cast %6 : vector<8xf32> to vector<8x1xf32>
    %c0_5 = arith.constant 0 : index
    %c0_6 = arith.constant 0 : index
    %8 = vector.load %arg2[%c0_5, %c0_6] : memref<8x1xf32, #tpu.memory_space<vmem>>, vector<8x1xf32>
    %c0_7 = arith.constant 0 : index
    %c0_8 = arith.constant 0 : index
    %9 = vector.load %arg3[%c0_7, %c0_8] : memref<8x1xf32, #tpu.memory_space<vmem>>, vector<8x1xf32>
    %cst_9 = arith.constant 2.44140625E-4 : f32
    %10 = vector.broadcast %cst_9 : f32 to vector<8x1xf32>
    %11 = arith.mulf %4, %10 : vector<8x1xf32>
    %cst_10 = arith.constant 2.44140625E-4 : f32
    %12 = vector.broadcast %cst_10 : f32 to vector<8x1xf32>
    %13 = arith.mulf %7, %12 : vector<8x1xf32>
    %14 = arith.mulf %11, %11 : vector<8x1xf32>
    %15 = arith.subf %13, %14 : vector<8x1xf32>
    %cst_11 = arith.constant 0.000000e+00 : f32
    %16 = vector.broadcast %cst_11 : f32 to vector<8x1xf32>
    %17 = arith.maximumf %15, %16 : vector<8x1xf32>
    %cst_12 = arith.constant 9.99999974E-6 : f32
    %18 = vector.broadcast %cst_12 : f32 to vector<8x1xf32>
    %19 = arith.addf %17, %18 : vector<8x1xf32>
    %20 = math.rsqrt %19 : vector<8x1xf32>
    %21 = arith.mulf %8, %20 : vector<8x1xf32>
    %22 = arith.mulf %11, %21 : vector<8x1xf32>
    %23 = arith.subf %9, %22 : vector<8x1xf32>
    %24 = vector.broadcast %21 : vector<8x1xf32> to vector<8x4096xf32>
    %25 = arith.mulf %2, %24 : vector<8x4096xf32>
    %26 = vector.broadcast %23 : vector<8x1xf32> to vector<8x4096xf32>
    %27 = arith.addf %25, %26 : vector<8x4096xf32>
    %cst_13 = arith.constant 0.000000e+00 : f32
    %28 = vector.broadcast %cst_13 : f32 to vector<8x4096xf32>
    %29 = arith.cmpf oge, %27, %28 : vector<8x4096xf32>
    %cst_14 = arith.constant 2.000000e-01 : f32
    %30 = vector.broadcast %cst_14 : f32 to vector<8x4096xf32>
    %31 = arith.mulf %30, %27 : vector<8x4096xf32>
    %32 = arith.select %29, %27, %31 : vector<8x4096xi1>, vector<8x4096xf32>
    %c0_15 = arith.constant 0 : index
    %c0_16 = arith.constant 0 : index
    %33 = vector.load %arg4[%c0_15, %c0_16] : memref<8x4096xf32, #tpu.memory_space<vmem>>, vector<8x4096xf32>
    tpu.vector_store %arg4[%c0_15, %c0_16], %32 {strides = array<i32>} : memref<8x4096xf32, #tpu.memory_space<vmem>>, vector<8x4096xf32>,
    return
  }
}

module attributes {stable_mosaic.version = 11 : i64} {
  func.func @_gemm_bn_act_kernel(%arg0: memref<16x128xbf16, #tpu.memory_space<vmem>>, %arg1: memref<128x1024xbf16, #tpu.memory_space<vmem>>, %arg2: memref<16x1xf32, #tpu.memory_space<vmem>>, %arg3: memref<16x1xf32, #tpu.memory_space<vmem>>, %arg4: memref<16x1024xf32, #tpu.memory_space<vmem>>) attributes {dimension_semantics = [], scalar_prefetch = 0 : i64, scratch_operands = 0 : i64, tpu.core_type = #tpu.core_type<tc>} {
    %c0 = arith.constant 0 : index
    %c0_0 = arith.constant 0 : index
    %0 = vector.load %arg0[%c0, %c0_0] : memref<16x128xbf16, #tpu.memory_space<vmem>>, vector<16x128xbf16>
    %c0_1 = arith.constant 0 : index
    %c0_2 = arith.constant 0 : index
    %1 = vector.load %arg1[%c0_1, %c0_2] : memref<128x1024xbf16, #tpu.memory_space<vmem>>, vector<128x1024xbf16>
    %cst = arith.constant dense<0.000000e+00> : vector<16x1024xf32>
    %2 = tpu.matmul %0, %1, %cst {dimension_numbers = #tpu.dot_dimension_numbers<[1], [0], [0], [1], [0, 0, 1, 1], [], []>} : vector<16x128xbf16>, vector<128x1024xbf16>, vector<16x1024xf32> -> vector<16x1024xf32>
    %cst_3 = arith.constant dense<0.000000e+00> : vector<16xf32>
    %3 = vector.multi_reduction <add>, %2, %cst_3 [1] : vector<16x1024xf32> to vector<16xf32>
    %4 = vector.shape_cast %3 : vector<16xf32> to vector<16x1xf32>
    %5 = arith.mulf %2, %2 : vector<16x1024xf32>
    %cst_4 = arith.constant dense<0.000000e+00> : vector<16xf32>
    %6 = vector.multi_reduction <add>, %5, %cst_4 [1] : vector<16x1024xf32> to vector<16xf32>
    %7 = vector.shape_cast %6 : vector<16xf32> to vector<16x1xf32>
    %c0_5 = arith.constant 0 : index
    %c0_6 = arith.constant 0 : index
    %8 = vector.load %arg2[%c0_5, %c0_6] : memref<16x1xf32, #tpu.memory_space<vmem>>, vector<16x1xf32>
    %c0_7 = arith.constant 0 : index
    %c0_8 = arith.constant 0 : index
    %9 = vector.load %arg3[%c0_7, %c0_8] : memref<16x1xf32, #tpu.memory_space<vmem>>, vector<16x1xf32>
    %cst_9 = arith.constant 9.765625E-4 : f32
    %10 = vector.broadcast %cst_9 : f32 to vector<16x1xf32>
    %11 = arith.mulf %4, %10 : vector<16x1xf32>
    %cst_10 = arith.constant 9.765625E-4 : f32
    %12 = vector.broadcast %cst_10 : f32 to vector<16x1xf32>
    %13 = arith.mulf %7, %12 : vector<16x1xf32>
    %14 = arith.mulf %11, %11 : vector<16x1xf32>
    %15 = arith.subf %13, %14 : vector<16x1xf32>
    %cst_11 = arith.constant 0.000000e+00 : f32
    %16 = vector.broadcast %cst_11 : f32 to vector<16x1xf32>
    %17 = arith.maximumf %15, %16 : vector<16x1xf32>
    %cst_12 = arith.constant 9.99999974E-6 : f32
    %18 = vector.broadcast %cst_12 : f32 to vector<16x1xf32>
    %19 = arith.addf %17, %18 : vector<16x1xf32>
    %20 = math.rsqrt %19 : vector<16x1xf32>
    %21 = arith.mulf %8, %20 : vector<16x1xf32>
    %22 = arith.mulf %11, %21 : vector<16x1xf32>
    %23 = arith.subf %9, %22 : vector<16x1xf32>
    %24 = vector.broadcast %21 : vector<16x1xf32> to vector<16x1024xf32>
    %25 = arith.mulf %2, %24 : vector<16x1024xf32>
    %26 = vector.broadcast %23 : vector<16x1xf32> to vector<16x1024xf32>
    %27 = arith.addf %25, %26 : vector<16x1024xf32>
    %cst_13 = arith.constant 0.000000e+00 : f32
    %28 = vector.broadcast %cst_13 : f32 to vector<16x1024xf32>
    %29 = arith.cmpf oge, %27, %28 : vector<16x1024xf32>
    %cst_14 = arith.constant 2.000000e-01 : f32
    %30 = vector.broadcast %cst_14 : f32 to vector<16x1024xf32>
    %31 = arith.mulf %30, %27 : vector<16x1024xf32>
    %32 = arith.select %29, %27, %31 : vector<16x1024xi1>, vector<16x1024xf32>
    %c0_15 = arith.constant 0 : index
    %c0_16 = arith.constant 0 : index
    %33 = vector.load %arg4[%c0_15, %c0_16] : memref<16x1024xf32, #tpu.memory_space<vmem>>, vector<16x1024xf32>
    tpu.vector_store %arg4[%c0_15, %c0_16], %32 {strides = array<i32>} : memref<16x1024xf32, #tpu.memory_space<vmem>>, vector<16x1024xf32>,
    return
  }
}

module attributes {stable_mosaic.version = 11 : i64} {
  func.func @_gemm_bn_act_kernel(%arg0: memref<32x256xbf16, #tpu.memory_space<vmem>>, %arg1: memref<256x256xbf16, #tpu.memory_space<vmem>>, %arg2: memref<32x1xf32, #tpu.memory_space<vmem>>, %arg3: memref<32x1xf32, #tpu.memory_space<vmem>>, %arg4: memref<32x256xf32, #tpu.memory_space<vmem>>) attributes {dimension_semantics = [], scalar_prefetch = 0 : i64, scratch_operands = 0 : i64, tpu.core_type = #tpu.core_type<tc>} {
    %c0 = arith.constant 0 : index
    %c0_0 = arith.constant 0 : index
    %0 = vector.load %arg0[%c0, %c0_0] : memref<32x256xbf16, #tpu.memory_space<vmem>>, vector<32x256xbf16>
    %c0_1 = arith.constant 0 : index
    %c0_2 = arith.constant 0 : index
    %1 = vector.load %arg1[%c0_1, %c0_2] : memref<256x256xbf16, #tpu.memory_space<vmem>>, vector<256x256xbf16>
    %cst = arith.constant dense<0.000000e+00> : vector<32x256xf32>
    %2 = tpu.matmul %0, %1, %cst {dimension_numbers = #tpu.dot_dimension_numbers<[1], [0], [0], [1], [0, 0, 1, 1], [], []>} : vector<32x256xbf16>, vector<256x256xbf16>, vector<32x256xf32> -> vector<32x256xf32>
    %cst_3 = arith.constant dense<0.000000e+00> : vector<32xf32>
    %3 = vector.multi_reduction <add>, %2, %cst_3 [1] : vector<32x256xf32> to vector<32xf32>
    %4 = vector.shape_cast %3 : vector<32xf32> to vector<32x1xf32>
    %5 = arith.mulf %2, %2 : vector<32x256xf32>
    %cst_4 = arith.constant dense<0.000000e+00> : vector<32xf32>
    %6 = vector.multi_reduction <add>, %5, %cst_4 [1] : vector<32x256xf32> to vector<32xf32>
    %7 = vector.shape_cast %6 : vector<32xf32> to vector<32x1xf32>
    %c0_5 = arith.constant 0 : index
    %c0_6 = arith.constant 0 : index
    %8 = vector.load %arg2[%c0_5, %c0_6] : memref<32x1xf32, #tpu.memory_space<vmem>>, vector<32x1xf32>
    %c0_7 = arith.constant 0 : index
    %c0_8 = arith.constant 0 : index
    %9 = vector.load %arg3[%c0_7, %c0_8] : memref<32x1xf32, #tpu.memory_space<vmem>>, vector<32x1xf32>
    %cst_9 = arith.constant 3.906250e-03 : f32
    %10 = vector.broadcast %cst_9 : f32 to vector<32x1xf32>
    %11 = arith.mulf %4, %10 : vector<32x1xf32>
    %cst_10 = arith.constant 3.906250e-03 : f32
    %12 = vector.broadcast %cst_10 : f32 to vector<32x1xf32>
    %13 = arith.mulf %7, %12 : vector<32x1xf32>
    %14 = arith.mulf %11, %11 : vector<32x1xf32>
    %15 = arith.subf %13, %14 : vector<32x1xf32>
    %cst_11 = arith.constant 0.000000e+00 : f32
    %16 = vector.broadcast %cst_11 : f32 to vector<32x1xf32>
    %17 = arith.maximumf %15, %16 : vector<32x1xf32>
    %cst_12 = arith.constant 9.99999974E-6 : f32
    %18 = vector.broadcast %cst_12 : f32 to vector<32x1xf32>
    %19 = arith.addf %17, %18 : vector<32x1xf32>
    %20 = math.rsqrt %19 : vector<32x1xf32>
    %21 = arith.mulf %8, %20 : vector<32x1xf32>
    %22 = arith.mulf %11, %21 : vector<32x1xf32>
    %23 = arith.subf %9, %22 : vector<32x1xf32>
    %24 = vector.broadcast %21 : vector<32x1xf32> to vector<32x256xf32>
    %25 = arith.mulf %2, %24 : vector<32x256xf32>
    %26 = vector.broadcast %23 : vector<32x1xf32> to vector<32x256xf32>
    %27 = arith.addf %25, %26 : vector<32x256xf32>
    %cst_13 = arith.constant 0.000000e+00 : f32
    %28 = vector.broadcast %cst_13 : f32 to vector<32x256xf32>
    %29 = arith.cmpf oge, %27, %28 : vector<32x256xf32>
    %cst_14 = arith.constant 2.000000e-01 : f32
    %30 = vector.broadcast %cst_14 : f32 to vector<32x256xf32>
    %31 = arith.mulf %30, %27 : vector<32x256xf32>
    %32 = arith.select %29, %27, %31 : vector<32x256xi1>, vector<32x256xf32>
    %c0_15 = arith.constant 0 : index
    %c0_16 = arith.constant 0 : index
    %33 = vector.load %arg4[%c0_15, %c0_16] : memref<32x256xf32, #tpu.memory_space<vmem>>, vector<32x256xf32>
    tpu.vector_store %arg4[%c0_15, %c0_16], %32 {strides = array<i32>} : memref<32x256xf32, #tpu.memory_space<vmem>>, vector<32x256xf32>,
    return
  }
}

module attributes {stable_mosaic.version = 11 : i64} {
  func.func @_gemm_bn_act_kernel(%arg0: memref<32x288xbf16, #tpu.memory_space<vmem>>, %arg1: memref<288x256xbf16, #tpu.memory_space<vmem>>, %arg2: memref<32x1xf32, #tpu.memory_space<vmem>>, %arg3: memref<32x1xf32, #tpu.memory_space<vmem>>, %arg4: memref<32x256xf32, #tpu.memory_space<vmem>>) attributes {dimension_semantics = [], scalar_prefetch = 0 : i64, scratch_operands = 0 : i64, tpu.core_type = #tpu.core_type<tc>} {
    %c0 = arith.constant 0 : index
    %c0_0 = arith.constant 0 : index
    %0 = vector.load %arg0[%c0, %c0_0] : memref<32x288xbf16, #tpu.memory_space<vmem>>, vector<32x288xbf16>
    %c0_1 = arith.constant 0 : index
    %c0_2 = arith.constant 0 : index
    %1 = vector.load %arg1[%c0_1, %c0_2] : memref<288x256xbf16, #tpu.memory_space<vmem>>, vector<288x256xbf16>
    %cst = arith.constant dense<0.000000e+00> : vector<32x256xf32>
    %2 = tpu.matmul %0, %1, %cst {dimension_numbers = #tpu.dot_dimension_numbers<[1], [0], [0], [1], [0, 0, 1, 1], [], []>} : vector<32x288xbf16>, vector<288x256xbf16>, vector<32x256xf32> -> vector<32x256xf32>
    %cst_3 = arith.constant dense<0.000000e+00> : vector<32xf32>
    %3 = vector.multi_reduction <add>, %2, %cst_3 [1] : vector<32x256xf32> to vector<32xf32>
    %4 = vector.shape_cast %3 : vector<32xf32> to vector<32x1xf32>
    %5 = arith.mulf %2, %2 : vector<32x256xf32>
    %cst_4 = arith.constant dense<0.000000e+00> : vector<32xf32>
    %6 = vector.multi_reduction <add>, %5, %cst_4 [1] : vector<32x256xf32> to vector<32xf32>
    %7 = vector.shape_cast %6 : vector<32xf32> to vector<32x1xf32>
    %c0_5 = arith.constant 0 : index
    %c0_6 = arith.constant 0 : index
    %8 = vector.load %arg2[%c0_5, %c0_6] : memref<32x1xf32, #tpu.memory_space<vmem>>, vector<32x1xf32>
    %c0_7 = arith.constant 0 : index
    %c0_8 = arith.constant 0 : index
    %9 = vector.load %arg3[%c0_7, %c0_8] : memref<32x1xf32, #tpu.memory_space<vmem>>, vector<32x1xf32>
    %cst_9 = arith.constant 3.906250e-03 : f32
    %10 = vector.broadcast %cst_9 : f32 to vector<32x1xf32>
    %11 = arith.mulf %4, %10 : vector<32x1xf32>
    %cst_10 = arith.constant 3.906250e-03 : f32
    %12 = vector.broadcast %cst_10 : f32 to vector<32x1xf32>
    %13 = arith.mulf %7, %12 : vector<32x1xf32>
    %14 = arith.mulf %11, %11 : vector<32x1xf32>
    %15 = arith.subf %13, %14 : vector<32x1xf32>
    %cst_11 = arith.constant 0.000000e+00 : f32
    %16 = vector.broadcast %cst_11 : f32 to vector<32x1xf32>
    %17 = arith.maximumf %15, %16 : vector<32x1xf32>
    %cst_12 = arith.constant 9.99999974E-6 : f32
    %18 = vector.broadcast %cst_12 : f32 to vector<32x1xf32>
    %19 = arith.addf %17, %18 : vector<32x1xf32>
    %20 = math.rsqrt %19 : vector<32x1xf32>
    %21 = arith.mulf %8, %20 : vector<32x1xf32>
    %22 = arith.mulf %11, %21 : vector<32x1xf32>
    %23 = arith.subf %9, %22 : vector<32x1xf32>
    %24 = vector.broadcast %21 : vector<32x1xf32> to vector<32x256xf32>
    %25 = arith.mulf %2, %24 : vector<32x256xf32>
    %26 = vector.broadcast %23 : vector<32x1xf32> to vector<32x256xf32>
    %27 = arith.addf %25, %26 : vector<32x256xf32>
    %cst_13 = arith.constant 0.000000e+00 : f32
    %28 = vector.broadcast %cst_13 : f32 to vector<32x256xf32>
    %29 = arith.maximumf %27, %28 : vector<32x256xf32>
    %c0_14 = arith.constant 0 : index
    %c0_15 = arith.constant 0 : index
    %30 = vector.load %arg4[%c0_14, %c0_15] : memref<32x256xf32, #tpu.memory_space<vmem>>, vector<32x256xf32>
    tpu.vector_store %arg4[%c0_14, %c0_15], %29 {strides = array<i32>} : memref<32x256xf32, #tpu.memory_space<vmem>>, vector<32x256xf32>,
    return
  }
}

module attributes {stable_mosaic.version = 11 : i64} {
  func.func @_gemm_bn_add_kernel(%arg0: memref<32x288xbf16, #tpu.memory_space<vmem>>, %arg1: memref<288x256xbf16, #tpu.memory_space<vmem>>, %arg2: memref<32x1xf32, #tpu.memory_space<vmem>>, %arg3: memref<32x1xf32, #tpu.memory_space<vmem>>, %arg4: memref<32x256xf32, #tpu.memory_space<vmem>>, %arg5: memref<32x256xf32, #tpu.memory_space<vmem>>) attributes {dimension_semantics = [], scalar_prefetch = 0 : i64, scratch_operands = 0 : i64, tpu.core_type = #tpu.core_type<tc>} {
    %c0 = arith.constant 0 : index
    %c0_0 = arith.constant 0 : index
    %0 = vector.load %arg0[%c0, %c0_0] : memref<32x288xbf16, #tpu.memory_space<vmem>>, vector<32x288xbf16>
    %c0_1 = arith.constant 0 : index
    %c0_2 = arith.constant 0 : index
    %1 = vector.load %arg1[%c0_1, %c0_2] : memref<288x256xbf16, #tpu.memory_space<vmem>>, vector<288x256xbf16>
    %cst = arith.constant dense<0.000000e+00> : vector<32x256xf32>
    %2 = tpu.matmul %0, %1, %cst {dimension_numbers = #tpu.dot_dimension_numbers<[1], [0], [0], [1], [0, 0, 1, 1], [], []>} : vector<32x288xbf16>, vector<288x256xbf16>, vector<32x256xf32> -> vector<32x256xf32>
    %cst_3 = arith.constant dense<0.000000e+00> : vector<32xf32>
    %3 = vector.multi_reduction <add>, %2, %cst_3 [1] : vector<32x256xf32> to vector<32xf32>
    %4 = vector.shape_cast %3 : vector<32xf32> to vector<32x1xf32>
    %5 = arith.mulf %2, %2 : vector<32x256xf32>
    %cst_4 = arith.constant dense<0.000000e+00> : vector<32xf32>
    %6 = vector.multi_reduction <add>, %5, %cst_4 [1] : vector<32x256xf32> to vector<32xf32>
    %7 = vector.shape_cast %6 : vector<32xf32> to vector<32x1xf32>
    %c0_5 = arith.constant 0 : index
    %c0_6 = arith.constant 0 : index
    %8 = vector.load %arg2[%c0_5, %c0_6] : memref<32x1xf32, #tpu.memory_space<vmem>>, vector<32x1xf32>
    %c0_7 = arith.constant 0 : index
    %c0_8 = arith.constant 0 : index
    %9 = vector.load %arg3[%c0_7, %c0_8] : memref<32x1xf32, #tpu.memory_space<vmem>>, vector<32x1xf32>
    %cst_9 = arith.constant 3.906250e-03 : f32
    %10 = vector.broadcast %cst_9 : f32 to vector<32x1xf32>
    %11 = arith.mulf %4, %10 : vector<32x1xf32>
    %cst_10 = arith.constant 3.906250e-03 : f32
    %12 = vector.broadcast %cst_10 : f32 to vector<32x1xf32>
    %13 = arith.mulf %7, %12 : vector<32x1xf32>
    %14 = arith.mulf %11, %11 : vector<32x1xf32>
    %15 = arith.subf %13, %14 : vector<32x1xf32>
    %cst_11 = arith.constant 0.000000e+00 : f32
    %16 = vector.broadcast %cst_11 : f32 to vector<32x1xf32>
    %17 = arith.maximumf %15, %16 : vector<32x1xf32>
    %cst_12 = arith.constant 9.99999974E-6 : f32
    %18 = vector.broadcast %cst_12 : f32 to vector<32x1xf32>
    %19 = arith.addf %17, %18 : vector<32x1xf32>
    %20 = math.rsqrt %19 : vector<32x1xf32>
    %21 = arith.mulf %8, %20 : vector<32x1xf32>
    %22 = arith.mulf %11, %21 : vector<32x1xf32>
    %23 = arith.subf %9, %22 : vector<32x1xf32>
    %c0_13 = arith.constant 0 : index
    %c0_14 = arith.constant 0 : index
    %24 = vector.load %arg4[%c0_13, %c0_14] : memref<32x256xf32, #tpu.memory_space<vmem>>, vector<32x256xf32>
    %25 = vector.broadcast %21 : vector<32x1xf32> to vector<32x256xf32>
    %26 = arith.mulf %2, %25 : vector<32x256xf32>
    %27 = vector.broadcast %23 : vector<32x1xf32> to vector<32x256xf32>
    %28 = arith.addf %26, %27 : vector<32x256xf32>
    %29 = arith.addf %24, %28 : vector<32x256xf32>
    %c0_15 = arith.constant 0 : index
    %c0_16 = arith.constant 0 : index
    %30 = vector.load %arg5[%c0_15, %c0_16] : memref<32x256xf32, #tpu.memory_space<vmem>>, vector<32x256xf32>
    tpu.vector_store %arg5[%c0_15, %c0_16], %29 {strides = array<i32>} : memref<32x256xf32, #tpu.memory_space<vmem>>, vector<32x256xf32>,
    return
  }
}

module attributes {stable_mosaic.version = 11 : i64} {
  func.func @_deconv_bn_act_kernel(%arg0: memref<4x16x128xbf16, #tpu.memory_space<vmem>>, %arg1: memref<4x128x256xbf16, #tpu.memory_space<vmem>>, %arg2: memref<16x1xf32, #tpu.memory_space<vmem>>, %arg3: memref<16x1xf32, #tpu.memory_space<vmem>>, %arg4: memref<16x1024xf32, #tpu.memory_space<vmem>>) attributes {dimension_semantics = [], scalar_prefetch = 0 : i64, scratch_operands = 0 : i64, tpu.core_type = #tpu.core_type<tc>} {
    %cst = arith.constant 0.000000e+00 : f32
    %0 = vector.broadcast %cst : f32 to vector<16x1xf32>
    %cst_0 = arith.constant 0.000000e+00 : f32
    %1 = vector.broadcast %cst_0 : f32 to vector<16x1xf32>
    %c0 = arith.constant 0 : index
    %c0_1 = arith.constant 0 : index
    %c0_2 = arith.constant 0 : index
    %2 = vector.load %arg0[%c0, %c0_1, %c0_2] : memref<4x16x128xbf16, #tpu.memory_space<vmem>>, vector<1x16x128xbf16>
    %3 = vector.shape_cast %2 : vector<1x16x128xbf16> to vector<16x128xbf16>
    %c0_3 = arith.constant 0 : index
    %c0_4 = arith.constant 0 : index
    %c0_5 = arith.constant 0 : index
    %4 = vector.load %arg1[%c0_3, %c0_4, %c0_5] : memref<4x128x256xbf16, #tpu.memory_space<vmem>>, vector<1x128x256xbf16>
    %5 = vector.shape_cast %4 : vector<1x128x256xbf16> to vector<128x256xbf16>
    %cst_6 = arith.constant dense<0.000000e+00> : vector<16x256xf32>
    %6 = tpu.matmul %3, %5, %cst_6 {dimension_numbers = #tpu.dot_dimension_numbers<[1], [0], [0], [1], [0, 0, 1, 1], [], []>} : vector<16x128xbf16>, vector<128x256xbf16>, vector<16x256xf32> -> vector<16x256xf32>
    %cst_7 = arith.constant dense<0.000000e+00> : vector<16xf32>
    %7 = vector.multi_reduction <add>, %6, %cst_7 [1] : vector<16x256xf32> to vector<16xf32>
    %8 = vector.shape_cast %7 : vector<16xf32> to vector<16x1xf32>
    %9 = arith.addf %0, %8 : vector<16x1xf32>
    %10 = arith.mulf %6, %6 : vector<16x256xf32>
    %cst_8 = arith.constant dense<0.000000e+00> : vector<16xf32>
    %11 = vector.multi_reduction <add>, %10, %cst_8 [1] : vector<16x256xf32> to vector<16xf32>
    %12 = vector.shape_cast %11 : vector<16xf32> to vector<16x1xf32>
    %13 = arith.addf %1, %12 : vector<16x1xf32>
    %c0_9 = arith.constant 0 : index
    %c0_10 = arith.constant 0 : index
    %14 = vector.load %arg4[%c0_9, %c0_10] : memref<16x1024xf32, #tpu.memory_space<vmem>>, vector<16x256xf32>
    tpu.vector_store %arg4[%c0_9, %c0_10], %6 {strides = array<i32>} : memref<16x1024xf32, #tpu.memory_space<vmem>>, vector<16x256xf32>,
    %c1 = arith.constant 1 : index
    %c0_11 = arith.constant 0 : index
    %c0_12 = arith.constant 0 : index
    %15 = vector.load %arg0[%c1, %c0_11, %c0_12] : memref<4x16x128xbf16, #tpu.memory_space<vmem>>, vector<1x16x128xbf16>
    %16 = vector.shape_cast %15 : vector<1x16x128xbf16> to vector<16x128xbf16>
    %c1_13 = arith.constant 1 : index
    %c0_14 = arith.constant 0 : index
    %c0_15 = arith.constant 0 : index
    %17 = vector.load %arg1[%c1_13, %c0_14, %c0_15] : memref<4x128x256xbf16, #tpu.memory_space<vmem>>, vector<1x128x256xbf16>
    %18 = vector.shape_cast %17 : vector<1x128x256xbf16> to vector<128x256xbf16>
    %cst_16 = arith.constant dense<0.000000e+00> : vector<16x256xf32>
    %19 = tpu.matmul %16, %18, %cst_16 {dimension_numbers = #tpu.dot_dimension_numbers<[1], [0], [0], [1], [0, 0, 1, 1], [], []>} : vector<16x128xbf16>, vector<128x256xbf16>, vector<16x256xf32> -> vector<16x256xf32>
    %cst_17 = arith.constant dense<0.000000e+00> : vector<16xf32>
    %20 = vector.multi_reduction <add>, %19, %cst_17 [1] : vector<16x256xf32> to vector<16xf32>
    %21 = vector.shape_cast %20 : vector<16xf32> to vector<16x1xf32>
    %22 = arith.addf %9, %21 : vector<16x1xf32>
    %23 = arith.mulf %19, %19 : vector<16x256xf32>
    %cst_18 = arith.constant dense<0.000000e+00> : vector<16xf32>
    %24 = vector.multi_reduction <add>, %23, %cst_18 [1] : vector<16x256xf32> to vector<16xf32>
    %25 = vector.shape_cast %24 : vector<16xf32> to vector<16x1xf32>
    %26 = arith.addf %13, %25 : vector<16x1xf32>
    %c0_19 = arith.constant 0 : index
    %c256 = arith.constant 256 : index
    %27 = vector.load %arg4[%c0_19, %c256] : memref<16x1024xf32, #tpu.memory_space<vmem>>, vector<16x256xf32>
    tpu.vector_store %arg4[%c0_19, %c256], %19 {strides = array<i32>} : memref<16x1024xf32, #tpu.memory_space<vmem>>, vector<16x256xf32>,
    %c2 = arith.constant 2 : index
    %c0_20 = arith.constant 0 : index
    %c0_21 = arith.constant 0 : index
    %28 = vector.load %arg0[%c2, %c0_20, %c0_21] : memref<4x16x128xbf16, #tpu.memory_space<vmem>>, vector<1x16x128xbf16>
    %29 = vector.shape_cast %28 : vector<1x16x128xbf16> to vector<16x128xbf16>
    %c2_22 = arith.constant 2 : index
    %c0_23 = arith.constant 0 : index
    %c0_24 = arith.constant 0 : index
    %30 = vector.load %arg1[%c2_22, %c0_23, %c0_24] : memref<4x128x256xbf16, #tpu.memory_space<vmem>>, vector<1x128x256xbf16>
    %31 = vector.shape_cast %30 : vector<1x128x256xbf16> to vector<128x256xbf16>
    %cst_25 = arith.constant dense<0.000000e+00> : vector<16x256xf32>
    %32 = tpu.matmul %29, %31, %cst_25 {dimension_numbers = #tpu.dot_dimension_numbers<[1], [0], [0], [1], [0, 0, 1, 1], [], []>} : vector<16x128xbf16>, vector<128x256xbf16>, vector<16x256xf32> -> vector<16x256xf32>
    %cst_26 = arith.constant dense<0.000000e+00> : vector<16xf32>
    %33 = vector.multi_reduction <add>, %32, %cst_26 [1] : vector<16x256xf32> to vector<16xf32>
    %34 = vector.shape_cast %33 : vector<16xf32> to vector<16x1xf32>
    %35 = arith.addf %22, %34 : vector<16x1xf32>
    %36 = arith.mulf %32, %32 : vector<16x256xf32>
    %cst_27 = arith.constant dense<0.000000e+00> : vector<16xf32>
    %37 = vector.multi_reduction <add>, %36, %cst_27 [1] : vector<16x256xf32> to vector<16xf32>
    %38 = vector.shape_cast %37 : vector<16xf32> to vector<16x1xf32>
    %39 = arith.addf %26, %38 : vector<16x1xf32>
    %c0_28 = arith.constant 0 : index
    %c512 = arith.constant 512 : index
    %40 = vector.load %arg4[%c0_28, %c512] : memref<16x1024xf32, #tpu.memory_space<vmem>>, vector<16x256xf32>
    tpu.vector_store %arg4[%c0_28, %c512], %32 {strides = array<i32>} : memref<16x1024xf32, #tpu.memory_space<vmem>>, vector<16x256xf32>,
    %c3 = arith.constant 3 : index
    %c0_29 = arith.constant 0 : index
    %c0_30 = arith.constant 0 : index
    %41 = vector.load %arg0[%c3, %c0_29, %c0_30] : memref<4x16x128xbf16, #tpu.memory_space<vmem>>, vector<1x16x128xbf16>
    %42 = vector.shape_cast %41 : vector<1x16x128xbf16> to vector<16x128xbf16>
    %c3_31 = arith.constant 3 : index
    %c0_32 = arith.constant 0 : index
    %c0_33 = arith.constant 0 : index
    %43 = vector.load %arg1[%c3_31, %c0_32, %c0_33] : memref<4x128x256xbf16, #tpu.memory_space<vmem>>, vector<1x128x256xbf16>
    %44 = vector.shape_cast %43 : vector<1x128x256xbf16> to vector<128x256xbf16>
    %cst_34 = arith.constant dense<0.000000e+00> : vector<16x256xf32>
    %45 = tpu.matmul %42, %44, %cst_34 {dimension_numbers = #tpu.dot_dimension_numbers<[1], [0], [0], [1], [0, 0, 1, 1], [], []>} : vector<16x128xbf16>, vector<128x256xbf16>, vector<16x256xf32> -> vector<16x256xf32>
    %cst_35 = arith.constant dense<0.000000e+00> : vector<16xf32>
    %46 = vector.multi_reduction <add>, %45, %cst_35 [1] : vector<16x256xf32> to vector<16xf32>
    %47 = vector.shape_cast %46 : vector<16xf32> to vector<16x1xf32>
    %48 = arith.addf %35, %47 : vector<16x1xf32>
    %49 = arith.mulf %45, %45 : vector<16x256xf32>
    %cst_36 = arith.constant dense<0.000000e+00> : vector<16xf32>
    %50 = vector.multi_reduction <add>, %49, %cst_36 [1] : vector<16x256xf32> to vector<16xf32>
    %51 = vector.shape_cast %50 : vector<16xf32> to vector<16x1xf32>
    %52 = arith.addf %39, %51 : vector<16x1xf32>
    %c0_37 = arith.constant 0 : index
    %c768 = arith.constant 768 : index
    %53 = vector.load %arg4[%c0_37, %c768] : memref<16x1024xf32, #tpu.memory_space<vmem>>, vector<16x256xf32>
    tpu.vector_store %arg4[%c0_37, %c768], %45 {strides = array<i32>} : memref<16x1024xf32, #tpu.memory_space<vmem>>, vector<16x256xf32>,
    %c0_38 = arith.constant 0 : index
    %c0_39 = arith.constant 0 : index
    %54 = vector.load %arg2[%c0_38, %c0_39] : memref<16x1xf32, #tpu.memory_space<vmem>>, vector<16x1xf32>
    %c0_40 = arith.constant 0 : index
    %c0_41 = arith.constant 0 : index
    %55 = vector.load %arg3[%c0_40, %c0_41] : memref<16x1xf32, #tpu.memory_space<vmem>>, vector<16x1xf32>
    %cst_42 = arith.constant 9.765625E-4 : f32
    %56 = vector.broadcast %cst_42 : f32 to vector<16x1xf32>
    %57 = arith.mulf %48, %56 : vector<16x1xf32>
    %cst_43 = arith.constant 9.765625E-4 : f32
    %58 = vector.broadcast %cst_43 : f32 to vector<16x1xf32>
    %59 = arith.mulf %52, %58 : vector<16x1xf32>
    %60 = arith.mulf %57, %57 : vector<16x1xf32>
    %61 = arith.subf %59, %60 : vector<16x1xf32>
    %cst_44 = arith.constant 0.000000e+00 : f32
    %62 = vector.broadcast %cst_44 : f32 to vector<16x1xf32>
    %63 = arith.maximumf %61, %62 : vector<16x1xf32>
    %cst_45 = arith.constant 9.99999974E-6 : f32
    %64 = vector.broadcast %cst_45 : f32 to vector<16x1xf32>
    %65 = arith.addf %63, %64 : vector<16x1xf32>
    %66 = math.rsqrt %65 : vector<16x1xf32>
    %67 = arith.mulf %54, %66 : vector<16x1xf32>
    %68 = arith.mulf %57, %67 : vector<16x1xf32>
    %69 = arith.subf %55, %68 : vector<16x1xf32>
    %c0_46 = arith.constant 0 : index
    %c0_47 = arith.constant 0 : index
    %70 = vector.load %arg4[%c0_46, %c0_47] : memref<16x1024xf32, #tpu.memory_space<vmem>>, vector<16x256xf32>
    %71 = vector.broadcast %67 : vector<16x1xf32> to vector<16x256xf32>
    %72 = arith.mulf %70, %71 : vector<16x256xf32>
    %73 = vector.broadcast %69 : vector<16x1xf32> to vector<16x256xf32>
    %74 = arith.addf %72, %73 : vector<16x256xf32>
    %cst_48 = arith.constant 0.000000e+00 : f32
    %75 = vector.broadcast %cst_48 : f32 to vector<16x256xf32>
    %76 = arith.cmpf oge, %74, %75 : vector<16x256xf32>
    %cst_49 = arith.constant 2.000000e-01 : f32
    %77 = vector.broadcast %cst_49 : f32 to vector<16x256xf32>
    %78 = arith.mulf %77, %74 : vector<16x256xf32>
    %79 = arith.select %76, %74, %78 : vector<16x256xi1>, vector<16x256xf32>
    %c0_50 = arith.constant 0 : index
    %c0_51 = arith.constant 0 : index
    %80 = vector.load %arg4[%c0_50, %c0_51] : memref<16x1024xf32, #tpu.memory_space<vmem>>, vector<16x256xf32>
    tpu.vector_store %arg4[%c0_50, %c0_51], %79 {strides = array<i32>} : memref<16x1024xf32, #tpu.memory_space<vmem>>, vector<16x256xf32>,
    %c0_52 = arith.constant 0 : index
    %c256_53 = arith.constant 256 : index
    %81 = vector.load %arg4[%c0_52, %c256_53] : memref<16x1024xf32, #tpu.memory_space<vmem>>, vector<16x256xf32>
    %82 = vector.broadcast %67 : vector<16x1xf32> to vector<16x256xf32>
    %83 = arith.mulf %81, %82 : vector<16x256xf32>
    %84 = vector.broadcast %69 : vector<16x1xf32> to vector<16x256xf32>
    %85 = arith.addf %83, %84 : vector<16x256xf32>
    %cst_54 = arith.constant 0.000000e+00 : f32
    %86 = vector.broadcast %cst_54 : f32 to vector<16x256xf32>
    %87 = arith.cmpf oge, %85, %86 : vector<16x256xf32>
    %cst_55 = arith.constant 2.000000e-01 : f32
    %88 = vector.broadcast %cst_55 : f32 to vector<16x256xf32>
    %89 = arith.mulf %88, %85 : vector<16x256xf32>
    %90 = arith.select %87, %85, %89 : vector<16x256xi1>, vector<16x256xf32>
    %c0_56 = arith.constant 0 : index
    %c256_57 = arith.constant 256 : index
    %91 = vector.load %arg4[%c0_56, %c256_57] : memref<16x1024xf32, #tpu.memory_space<vmem>>, vector<16x256xf32>
    tpu.vector_store %arg4[%c0_56, %c256_57], %90 {strides = array<i32>} : memref<16x1024xf32, #tpu.memory_space<vmem>>, vector<16x256xf32>,
    %c0_58 = arith.constant 0 : index
    %c512_59 = arith.constant 512 : index
    %92 = vector.load %arg4[%c0_58, %c512_59] : memref<16x1024xf32, #tpu.memory_space<vmem>>, vector<16x256xf32>
    %93 = vector.broadcast %67 : vector<16x1xf32> to vector<16x256xf32>
    %94 = arith.mulf %92, %93 : vector<16x256xf32>
    %95 = vector.broadcast %69 : vector<16x1xf32> to vector<16x256xf32>
    %96 = arith.addf %94, %95 : vector<16x256xf32>
    %cst_60 = arith.constant 0.000000e+00 : f32
    %97 = vector.broadcast %cst_60 : f32 to vector<16x256xf32>
    %98 = arith.cmpf oge, %96, %97 : vector<16x256xf32>
    %cst_61 = arith.constant 2.000000e-01 : f32
    %99 = vector.broadcast %cst_61 : f32 to vector<16x256xf32>
    %100 = arith.mulf %99, %96 : vector<16x256xf32>
    %101 = arith.select %98, %96, %100 : vector<16x256xi1>, vector<16x256xf32>
    %c0_62 = arith.constant 0 : index
    %c512_63 = arith.constant 512 : index
    %102 = vector.load %arg4[%c0_62, %c512_63] : memref<16x1024xf32, #tpu.memory_space<vmem>>, vector<16x256xf32>
    tpu.vector_store %arg4[%c0_62, %c512_63], %101 {strides = array<i32>} : memref<16x1024xf32, #tpu.memory_space<vmem>>, vector<16x256xf32>,
    %c0_64 = arith.constant 0 : index
    %c768_65 = arith.constant 768 : index
    %103 = vector.load %arg4[%c0_64, %c768_65] : memref<16x1024xf32, #tpu.memory_space<vmem>>, vector<16x256xf32>
    %104 = vector.broadcast %67 : vector<16x1xf32> to vector<16x256xf32>
    %105 = arith.mulf %103, %104 : vector<16x256xf32>
    %106 = vector.broadcast %69 : vector<16x1xf32> to vector<16x256xf32>
    %107 = arith.addf %105, %106 : vector<16x256xf32>
    %cst_66 = arith.constant 0.000000e+00 : f32
    %108 = vector.broadcast %cst_66 : f32 to vector<16x256xf32>
    %109 = arith.cmpf oge, %107, %108 : vector<16x256xf32>
    %cst_67 = arith.constant 2.000000e-01 : f32
    %110 = vector.broadcast %cst_67 : f32 to vector<16x256xf32>
    %111 = arith.mulf %110, %107 : vector<16x256xf32>
    %112 = arith.select %109, %107, %111 : vector<16x256xi1>, vector<16x256xf32>
    %c0_68 = arith.constant 0 : index
    %c768_69 = arith.constant 768 : index
    %113 = vector.load %arg4[%c0_68, %c768_69] : memref<16x1024xf32, #tpu.memory_space<vmem>>, vector<16x256xf32>
    tpu.vector_store %arg4[%c0_68, %c768_69], %112 {strides = array<i32>} : memref<16x1024xf32, #tpu.memory_space<vmem>>, vector<16x256xf32>,
    return
  }
}

module attributes {stable_mosaic.version = 11 : i64} {
  func.func @_deconv_bn_act_kernel(%arg0: memref<4x8x64xbf16, #tpu.memory_space<vmem>>, %arg1: memref<4x64x1024xbf16, #tpu.memory_space<vmem>>, %arg2: memref<8x1xf32, #tpu.memory_space<vmem>>, %arg3: memref<8x1xf32, #tpu.memory_space<vmem>>, %arg4: memref<8x4096xf32, #tpu.memory_space<vmem>>) attributes {dimension_semantics = [], scalar_prefetch = 0 : i64, scratch_operands = 0 : i64, tpu.core_type = #tpu.core_type<tc>} {
    %cst = arith.constant 0.000000e+00 : f32
    %0 = vector.broadcast %cst : f32 to vector<8x1xf32>
    %cst_0 = arith.constant 0.000000e+00 : f32
    %1 = vector.broadcast %cst_0 : f32 to vector<8x1xf32>
    %c0 = arith.constant 0 : index
    %c0_1 = arith.constant 0 : index
    %c0_2 = arith.constant 0 : index
    %2 = vector.load %arg0[%c0, %c0_1, %c0_2] : memref<4x8x64xbf16, #tpu.memory_space<vmem>>, vector<1x8x64xbf16>
    %3 = vector.shape_cast %2 : vector<1x8x64xbf16> to vector<8x64xbf16>
    %c0_3 = arith.constant 0 : index
    %c0_4 = arith.constant 0 : index
    %c0_5 = arith.constant 0 : index
    %4 = vector.load %arg1[%c0_3, %c0_4, %c0_5] : memref<4x64x1024xbf16, #tpu.memory_space<vmem>>, vector<1x64x1024xbf16>
    %5 = vector.shape_cast %4 : vector<1x64x1024xbf16> to vector<64x1024xbf16>
    %cst_6 = arith.constant dense<0.000000e+00> : vector<8x1024xf32>
    %6 = tpu.matmul %3, %5, %cst_6 {dimension_numbers = #tpu.dot_dimension_numbers<[1], [0], [0], [1], [0, 0, 1, 1], [], []>} : vector<8x64xbf16>, vector<64x1024xbf16>, vector<8x1024xf32> -> vector<8x1024xf32>
    %cst_7 = arith.constant dense<0.000000e+00> : vector<8xf32>
    %7 = vector.multi_reduction <add>, %6, %cst_7 [1] : vector<8x1024xf32> to vector<8xf32>
    %8 = vector.shape_cast %7 : vector<8xf32> to vector<8x1xf32>
    %9 = arith.addf %0, %8 : vector<8x1xf32>
    %10 = arith.mulf %6, %6 : vector<8x1024xf32>
    %cst_8 = arith.constant dense<0.000000e+00> : vector<8xf32>
    %11 = vector.multi_reduction <add>, %10, %cst_8 [1] : vector<8x1024xf32> to vector<8xf32>
    %12 = vector.shape_cast %11 : vector<8xf32> to vector<8x1xf32>
    %13 = arith.addf %1, %12 : vector<8x1xf32>
    %c0_9 = arith.constant 0 : index
    %c0_10 = arith.constant 0 : index
    %14 = vector.load %arg4[%c0_9, %c0_10] : memref<8x4096xf32, #tpu.memory_space<vmem>>, vector<8x1024xf32>
    tpu.vector_store %arg4[%c0_9, %c0_10], %6 {strides = array<i32>} : memref<8x4096xf32, #tpu.memory_space<vmem>>, vector<8x1024xf32>,
    %c1 = arith.constant 1 : index
    %c0_11 = arith.constant 0 : index
    %c0_12 = arith.constant 0 : index
    %15 = vector.load %arg0[%c1, %c0_11, %c0_12] : memref<4x8x64xbf16, #tpu.memory_space<vmem>>, vector<1x8x64xbf16>
    %16 = vector.shape_cast %15 : vector<1x8x64xbf16> to vector<8x64xbf16>
    %c1_13 = arith.constant 1 : index
    %c0_14 = arith.constant 0 : index
    %c0_15 = arith.constant 0 : index
    %17 = vector.load %arg1[%c1_13, %c0_14, %c0_15] : memref<4x64x1024xbf16, #tpu.memory_space<vmem>>, vector<1x64x1024xbf16>
    %18 = vector.shape_cast %17 : vector<1x64x1024xbf16> to vector<64x1024xbf16>
    %cst_16 = arith.constant dense<0.000000e+00> : vector<8x1024xf32>
    %19 = tpu.matmul %16, %18, %cst_16 {dimension_numbers = #tpu.dot_dimension_numbers<[1], [0], [0], [1], [0, 0, 1, 1], [], []>} : vector<8x64xbf16>, vector<64x1024xbf16>, vector<8x1024xf32> -> vector<8x1024xf32>
    %cst_17 = arith.constant dense<0.000000e+00> : vector<8xf32>
    %20 = vector.multi_reduction <add>, %19, %cst_17 [1] : vector<8x1024xf32> to vector<8xf32>
    %21 = vector.shape_cast %20 : vector<8xf32> to vector<8x1xf32>
    %22 = arith.addf %9, %21 : vector<8x1xf32>
    %23 = arith.mulf %19, %19 : vector<8x1024xf32>
    %cst_18 = arith.constant dense<0.000000e+00> : vector<8xf32>
    %24 = vector.multi_reduction <add>, %23, %cst_18 [1] : vector<8x1024xf32> to vector<8xf32>
    %25 = vector.shape_cast %24 : vector<8xf32> to vector<8x1xf32>
    %26 = arith.addf %13, %25 : vector<8x1xf32>
    %c0_19 = arith.constant 0 : index
    %c1024 = arith.constant 1024 : index
    %27 = vector.load %arg4[%c0_19, %c1024] : memref<8x4096xf32, #tpu.memory_space<vmem>>, vector<8x1024xf32>
    tpu.vector_store %arg4[%c0_19, %c1024], %19 {strides = array<i32>} : memref<8x4096xf32, #tpu.memory_space<vmem>>, vector<8x1024xf32>,
    %c2 = arith.constant 2 : index
    %c0_20 = arith.constant 0 : index
    %c0_21 = arith.constant 0 : index
    %28 = vector.load %arg0[%c2, %c0_20, %c0_21] : memref<4x8x64xbf16, #tpu.memory_space<vmem>>, vector<1x8x64xbf16>
    %29 = vector.shape_cast %28 : vector<1x8x64xbf16> to vector<8x64xbf16>
    %c2_22 = arith.constant 2 : index
    %c0_23 = arith.constant 0 : index
    %c0_24 = arith.constant 0 : index
    %30 = vector.load %arg1[%c2_22, %c0_23, %c0_24] : memref<4x64x1024xbf16, #tpu.memory_space<vmem>>, vector<1x64x1024xbf16>
    %31 = vector.shape_cast %30 : vector<1x64x1024xbf16> to vector<64x1024xbf16>
    %cst_25 = arith.constant dense<0.000000e+00> : vector<8x1024xf32>
    %32 = tpu.matmul %29, %31, %cst_25 {dimension_numbers = #tpu.dot_dimension_numbers<[1], [0], [0], [1], [0, 0, 1, 1], [], []>} : vector<8x64xbf16>, vector<64x1024xbf16>, vector<8x1024xf32> -> vector<8x1024xf32>
    %cst_26 = arith.constant dense<0.000000e+00> : vector<8xf32>
    %33 = vector.multi_reduction <add>, %32, %cst_26 [1] : vector<8x1024xf32> to vector<8xf32>
    %34 = vector.shape_cast %33 : vector<8xf32> to vector<8x1xf32>
    %35 = arith.addf %22, %34 : vector<8x1xf32>
    %36 = arith.mulf %32, %32 : vector<8x1024xf32>
    %cst_27 = arith.constant dense<0.000000e+00> : vector<8xf32>
    %37 = vector.multi_reduction <add>, %36, %cst_27 [1] : vector<8x1024xf32> to vector<8xf32>
    %38 = vector.shape_cast %37 : vector<8xf32> to vector<8x1xf32>
    %39 = arith.addf %26, %38 : vector<8x1xf32>
    %c0_28 = arith.constant 0 : index
    %c2048 = arith.constant 2048 : index
    %40 = vector.load %arg4[%c0_28, %c2048] : memref<8x4096xf32, #tpu.memory_space<vmem>>, vector<8x1024xf32>
    tpu.vector_store %arg4[%c0_28, %c2048], %32 {strides = array<i32>} : memref<8x4096xf32, #tpu.memory_space<vmem>>, vector<8x1024xf32>,
    %c3 = arith.constant 3 : index
    %c0_29 = arith.constant 0 : index
    %c0_30 = arith.constant 0 : index
    %41 = vector.load %arg0[%c3, %c0_29, %c0_30] : memref<4x8x64xbf16, #tpu.memory_space<vmem>>, vector<1x8x64xbf16>
    %42 = vector.shape_cast %41 : vector<1x8x64xbf16> to vector<8x64xbf16>
    %c3_31 = arith.constant 3 : index
    %c0_32 = arith.constant 0 : index
    %c0_33 = arith.constant 0 : index
    %43 = vector.load %arg1[%c3_31, %c0_32, %c0_33] : memref<4x64x1024xbf16, #tpu.memory_space<vmem>>, vector<1x64x1024xbf16>
    %44 = vector.shape_cast %43 : vector<1x64x1024xbf16> to vector<64x1024xbf16>
    %cst_34 = arith.constant dense<0.000000e+00> : vector<8x1024xf32>
    %45 = tpu.matmul %42, %44, %cst_34 {dimension_numbers = #tpu.dot_dimension_numbers<[1], [0], [0], [1], [0, 0, 1, 1], [], []>} : vector<8x64xbf16>, vector<64x1024xbf16>, vector<8x1024xf32> -> vector<8x1024xf32>
    %cst_35 = arith.constant dense<0.000000e+00> : vector<8xf32>
    %46 = vector.multi_reduction <add>, %45, %cst_35 [1] : vector<8x1024xf32> to vector<8xf32>
    %47 = vector.shape_cast %46 : vector<8xf32> to vector<8x1xf32>
    %48 = arith.addf %35, %47 : vector<8x1xf32>
    %49 = arith.mulf %45, %45 : vector<8x1024xf32>
    %cst_36 = arith.constant dense<0.000000e+00> : vector<8xf32>
    %50 = vector.multi_reduction <add>, %49, %cst_36 [1] : vector<8x1024xf32> to vector<8xf32>
    %51 = vector.shape_cast %50 : vector<8xf32> to vector<8x1xf32>
    %52 = arith.addf %39, %51 : vector<8x1xf32>
    %c0_37 = arith.constant 0 : index
    %c3072 = arith.constant 3072 : index
    %53 = vector.load %arg4[%c0_37, %c3072] : memref<8x4096xf32, #tpu.memory_space<vmem>>, vector<8x1024xf32>
    tpu.vector_store %arg4[%c0_37, %c3072], %45 {strides = array<i32>} : memref<8x4096xf32, #tpu.memory_space<vmem>>, vector<8x1024xf32>,
    %c0_38 = arith.constant 0 : index
    %c0_39 = arith.constant 0 : index
    %54 = vector.load %arg2[%c0_38, %c0_39] : memref<8x1xf32, #tpu.memory_space<vmem>>, vector<8x1xf32>
    %c0_40 = arith.constant 0 : index
    %c0_41 = arith.constant 0 : index
    %55 = vector.load %arg3[%c0_40, %c0_41] : memref<8x1xf32, #tpu.memory_space<vmem>>, vector<8x1xf32>
    %cst_42 = arith.constant 2.44140625E-4 : f32
    %56 = vector.broadcast %cst_42 : f32 to vector<8x1xf32>
    %57 = arith.mulf %48, %56 : vector<8x1xf32>
    %cst_43 = arith.constant 2.44140625E-4 : f32
    %58 = vector.broadcast %cst_43 : f32 to vector<8x1xf32>
    %59 = arith.mulf %52, %58 : vector<8x1xf32>
    %60 = arith.mulf %57, %57 : vector<8x1xf32>
    %61 = arith.subf %59, %60 : vector<8x1xf32>
    %cst_44 = arith.constant 0.000000e+00 : f32
    %62 = vector.broadcast %cst_44 : f32 to vector<8x1xf32>
    %63 = arith.maximumf %61, %62 : vector<8x1xf32>
    %cst_45 = arith.constant 9.99999974E-6 : f32
    %64 = vector.broadcast %cst_45 : f32 to vector<8x1xf32>
    %65 = arith.addf %63, %64 : vector<8x1xf32>
    %66 = math.rsqrt %65 : vector<8x1xf32>
    %67 = arith.mulf %54, %66 : vector<8x1xf32>
    %68 = arith.mulf %57, %67 : vector<8x1xf32>
    %69 = arith.subf %55, %68 : vector<8x1xf32>
    %c0_46 = arith.constant 0 : index
    %c0_47 = arith.constant 0 : index
    %70 = vector.load %arg4[%c0_46, %c0_47] : memref<8x4096xf32, #tpu.memory_space<vmem>>, vector<8x1024xf32>
    %71 = vector.broadcast %67 : vector<8x1xf32> to vector<8x1024xf32>
    %72 = arith.mulf %70, %71 : vector<8x1024xf32>
    %73 = vector.broadcast %69 : vector<8x1xf32> to vector<8x1024xf32>
    %74 = arith.addf %72, %73 : vector<8x1024xf32>
    %cst_48 = arith.constant 0.000000e+00 : f32
    %75 = vector.broadcast %cst_48 : f32 to vector<8x1024xf32>
    %76 = arith.cmpf oge, %74, %75 : vector<8x1024xf32>
    %cst_49 = arith.constant 2.000000e-01 : f32
    %77 = vector.broadcast %cst_49 : f32 to vector<8x1024xf32>
    %78 = arith.mulf %77, %74 : vector<8x1024xf32>
    %79 = arith.select %76, %74, %78 : vector<8x1024xi1>, vector<8x1024xf32>
    %c0_50 = arith.constant 0 : index
    %c0_51 = arith.constant 0 : index
    %80 = vector.load %arg4[%c0_50, %c0_51] : memref<8x4096xf32, #tpu.memory_space<vmem>>, vector<8x1024xf32>
    tpu.vector_store %arg4[%c0_50, %c0_51], %79 {strides = array<i32>} : memref<8x4096xf32, #tpu.memory_space<vmem>>, vector<8x1024xf32>,
    %c0_52 = arith.constant 0 : index
    %c1024_53 = arith.constant 1024 : index
    %81 = vector.load %arg4[%c0_52, %c1024_53] : memref<8x4096xf32, #tpu.memory_space<vmem>>, vector<8x1024xf32>
    %82 = vector.broadcast %67 : vector<8x1xf32> to vector<8x1024xf32>
    %83 = arith.mulf %81, %82 : vector<8x1024xf32>
    %84 = vector.broadcast %69 : vector<8x1xf32> to vector<8x1024xf32>
    %85 = arith.addf %83, %84 : vector<8x1024xf32>
    %cst_54 = arith.constant 0.000000e+00 : f32
    %86 = vector.broadcast %cst_54 : f32 to vector<8x1024xf32>
    %87 = arith.cmpf oge, %85, %86 : vector<8x1024xf32>
    %cst_55 = arith.constant 2.000000e-01 : f32
    %88 = vector.broadcast %cst_55 : f32 to vector<8x1024xf32>
    %89 = arith.mulf %88, %85 : vector<8x1024xf32>
    %90 = arith.select %87, %85, %89 : vector<8x1024xi1>, vector<8x1024xf32>
    %c0_56 = arith.constant 0 : index
    %c1024_57 = arith.constant 1024 : index
    %91 = vector.load %arg4[%c0_56, %c1024_57] : memref<8x4096xf32, #tpu.memory_space<vmem>>, vector<8x1024xf32>
    tpu.vector_store %arg4[%c0_56, %c1024_57], %90 {strides = array<i32>} : memref<8x4096xf32, #tpu.memory_space<vmem>>, vector<8x1024xf32>,
    %c0_58 = arith.constant 0 : index
    %c2048_59 = arith.constant 2048 : index
    %92 = vector.load %arg4[%c0_58, %c2048_59] : memref<8x4096xf32, #tpu.memory_space<vmem>>, vector<8x1024xf32>
    %93 = vector.broadcast %67 : vector<8x1xf32> to vector<8x1024xf32>
    %94 = arith.mulf %92, %93 : vector<8x1024xf32>
    %95 = vector.broadcast %69 : vector<8x1xf32> to vector<8x1024xf32>
    %96 = arith.addf %94, %95 : vector<8x1024xf32>
    %cst_60 = arith.constant 0.000000e+00 : f32
    %97 = vector.broadcast %cst_60 : f32 to vector<8x1024xf32>
    %98 = arith.cmpf oge, %96, %97 : vector<8x1024xf32>
    %cst_61 = arith.constant 2.000000e-01 : f32
    %99 = vector.broadcast %cst_61 : f32 to vector<8x1024xf32>
    %100 = arith.mulf %99, %96 : vector<8x1024xf32>
    %101 = arith.select %98, %96, %100 : vector<8x1024xi1>, vector<8x1024xf32>
    %c0_62 = arith.constant 0 : index
    %c2048_63 = arith.constant 2048 : index
    %102 = vector.load %arg4[%c0_62, %c2048_63] : memref<8x4096xf32, #tpu.memory_space<vmem>>, vector<8x1024xf32>
    tpu.vector_store %arg4[%c0_62, %c2048_63], %101 {strides = array<i32>} : memref<8x4096xf32, #tpu.memory_space<vmem>>, vector<8x1024xf32>,
    %c0_64 = arith.constant 0 : index
    %c3072_65 = arith.constant 3072 : index
    %103 = vector.load %arg4[%c0_64, %c3072_65] : memref<8x4096xf32, #tpu.memory_space<vmem>>, vector<8x1024xf32>
    %104 = vector.broadcast %67 : vector<8x1xf32> to vector<8x1024xf32>
    %105 = arith.mulf %103, %104 : vector<8x1024xf32>
    %106 = vector.broadcast %69 : vector<8x1xf32> to vector<8x1024xf32>
    %107 = arith.addf %105, %106 : vector<8x1024xf32>
    %cst_66 = arith.constant 0.000000e+00 : f32
    %108 = vector.broadcast %cst_66 : f32 to vector<8x1024xf32>
    %109 = arith.cmpf oge, %107, %108 : vector<8x1024xf32>
    %cst_67 = arith.constant 2.000000e-01 : f32
    %110 = vector.broadcast %cst_67 : f32 to vector<8x1024xf32>
    %111 = arith.mulf %110, %107 : vector<8x1024xf32>
    %112 = arith.select %109, %107, %111 : vector<8x1024xi1>, vector<8x1024xf32>
    %c0_68 = arith.constant 0 : index
    %c3072_69 = arith.constant 3072 : index
    %113 = vector.load %arg4[%c0_68, %c3072_69] : memref<8x4096xf32, #tpu.memory_space<vmem>>, vector<8x1024xf32>
    tpu.vector_store %arg4[%c0_68, %c3072_69], %112 {strides = array<i32>} : memref<8x4096xf32, #tpu.memory_space<vmem>>, vector<8x1024xf32>,
    return
  }
}

module attributes {stable_mosaic.version = 11 : i64} {
  func.func @_deconv_bn_act_kernel(%arg0: memref<4x3x32xbf16, #tpu.memory_space<vmem>>, %arg1: memref<4x32x4096xbf16, #tpu.memory_space<vmem>>, %arg2: memref<3x1xf32, #tpu.memory_space<vmem>>, %arg3: memref<3x1xf32, #tpu.memory_space<vmem>>, %arg4: memref<3x16384xf32, #tpu.memory_space<vmem>>) attributes {dimension_semantics = [], scalar_prefetch = 0 : i64, scratch_operands = 0 : i64, tpu.core_type = #tpu.core_type<tc>} {
    %cst = arith.constant 0.000000e+00 : f32
    %0 = vector.broadcast %cst : f32 to vector<3x1xf32>
    %cst_0 = arith.constant 0.000000e+00 : f32
    %1 = vector.broadcast %cst_0 : f32 to vector<3x1xf32>
    %c0 = arith.constant 0 : index
    %c0_1 = arith.constant 0 : index
    %c0_2 = arith.constant 0 : index
    %2 = vector.load %arg0[%c0, %c0_1, %c0_2] : memref<4x3x32xbf16, #tpu.memory_space<vmem>>, vector<1x3x32xbf16>
    %3 = vector.shape_cast %2 : vector<1x3x32xbf16> to vector<3x32xbf16>
    %c0_3 = arith.constant 0 : index
    %c0_4 = arith.constant 0 : index
    %c0_5 = arith.constant 0 : index
    %4 = vector.load %arg1[%c0_3, %c0_4, %c0_5] : memref<4x32x4096xbf16, #tpu.memory_space<vmem>>, vector<1x32x4096xbf16>
    %5 = vector.shape_cast %4 : vector<1x32x4096xbf16> to vector<32x4096xbf16>
    %cst_6 = arith.constant dense<0.000000e+00> : vector<3x4096xf32>
    %6 = tpu.matmul %3, %5, %cst_6 {dimension_numbers = #tpu.dot_dimension_numbers<[1], [0], [0], [1], [0, 0, 1, 1], [], []>} : vector<3x32xbf16>, vector<32x4096xbf16>, vector<3x4096xf32> -> vector<3x4096xf32>
    %cst_7 = arith.constant dense<0.000000e+00> : vector<3xf32>
    %7 = vector.multi_reduction <add>, %6, %cst_7 [1] : vector<3x4096xf32> to vector<3xf32>
    %8 = vector.shape_cast %7 : vector<3xf32> to vector<3x1xf32>
    %9 = arith.addf %0, %8 : vector<3x1xf32>
    %10 = arith.mulf %6, %6 : vector<3x4096xf32>
    %cst_8 = arith.constant dense<0.000000e+00> : vector<3xf32>
    %11 = vector.multi_reduction <add>, %10, %cst_8 [1] : vector<3x4096xf32> to vector<3xf32>
    %12 = vector.shape_cast %11 : vector<3xf32> to vector<3x1xf32>
    %13 = arith.addf %1, %12 : vector<3x1xf32>
    %c0_9 = arith.constant 0 : index
    %c0_10 = arith.constant 0 : index
    %14 = vector.load %arg4[%c0_9, %c0_10] : memref<3x16384xf32, #tpu.memory_space<vmem>>, vector<3x4096xf32>
    tpu.vector_store %arg4[%c0_9, %c0_10], %6 {strides = array<i32>} : memref<3x16384xf32, #tpu.memory_space<vmem>>, vector<3x4096xf32>,
    %c1 = arith.constant 1 : index
    %c0_11 = arith.constant 0 : index
    %c0_12 = arith.constant 0 : index
    %15 = vector.load %arg0[%c1, %c0_11, %c0_12] : memref<4x3x32xbf16, #tpu.memory_space<vmem>>, vector<1x3x32xbf16>
    %16 = vector.shape_cast %15 : vector<1x3x32xbf16> to vector<3x32xbf16>
    %c1_13 = arith.constant 1 : index
    %c0_14 = arith.constant 0 : index
    %c0_15 = arith.constant 0 : index
    %17 = vector.load %arg1[%c1_13, %c0_14, %c0_15] : memref<4x32x4096xbf16, #tpu.memory_space<vmem>>, vector<1x32x4096xbf16>
    %18 = vector.shape_cast %17 : vector<1x32x4096xbf16> to vector<32x4096xbf16>
    %cst_16 = arith.constant dense<0.000000e+00> : vector<3x4096xf32>
    %19 = tpu.matmul %16, %18, %cst_16 {dimension_numbers = #tpu.dot_dimension_numbers<[1], [0], [0], [1], [0, 0, 1, 1], [], []>} : vector<3x32xbf16>, vector<32x4096xbf16>, vector<3x4096xf32> -> vector<3x4096xf32>
    %cst_17 = arith.constant dense<0.000000e+00> : vector<3xf32>
    %20 = vector.multi_reduction <add>, %19, %cst_17 [1] : vector<3x4096xf32> to vector<3xf32>
    %21 = vector.shape_cast %20 : vector<3xf32> to vector<3x1xf32>
    %22 = arith.addf %9, %21 : vector<3x1xf32>
    %23 = arith.mulf %19, %19 : vector<3x4096xf32>
    %cst_18 = arith.constant dense<0.000000e+00> : vector<3xf32>
    %24 = vector.multi_reduction <add>, %23, %cst_18 [1] : vector<3x4096xf32> to vector<3xf32>
    %25 = vector.shape_cast %24 : vector<3xf32> to vector<3x1xf32>
    %26 = arith.addf %13, %25 : vector<3x1xf32>
    %c0_19 = arith.constant 0 : index
    %c4096 = arith.constant 4096 : index
    %27 = vector.load %arg4[%c0_19, %c4096] : memref<3x16384xf32, #tpu.memory_space<vmem>>, vector<3x4096xf32>
    tpu.vector_store %arg4[%c0_19, %c4096], %19 {strides = array<i32>} : memref<3x16384xf32, #tpu.memory_space<vmem>>, vector<3x4096xf32>,
    %c2 = arith.constant 2 : index
    %c0_20 = arith.constant 0 : index
    %c0_21 = arith.constant 0 : index
    %28 = vector.load %arg0[%c2, %c0_20, %c0_21] : memref<4x3x32xbf16, #tpu.memory_space<vmem>>, vector<1x3x32xbf16>
    %29 = vector.shape_cast %28 : vector<1x3x32xbf16> to vector<3x32xbf16>
    %c2_22 = arith.constant 2 : index
    %c0_23 = arith.constant 0 : index
    %c0_24 = arith.constant 0 : index
    %30 = vector.load %arg1[%c2_22, %c0_23, %c0_24] : memref<4x32x4096xbf16, #tpu.memory_space<vmem>>, vector<1x32x4096xbf16>
    %31 = vector.shape_cast %30 : vector<1x32x4096xbf16> to vector<32x4096xbf16>
    %cst_25 = arith.constant dense<0.000000e+00> : vector<3x4096xf32>
    %32 = tpu.matmul %29, %31, %cst_25 {dimension_numbers = #tpu.dot_dimension_numbers<[1], [0], [0], [1], [0, 0, 1, 1], [], []>} : vector<3x32xbf16>, vector<32x4096xbf16>, vector<3x4096xf32> -> vector<3x4096xf32>
    %cst_26 = arith.constant dense<0.000000e+00> : vector<3xf32>
    %33 = vector.multi_reduction <add>, %32, %cst_26 [1] : vector<3x4096xf32> to vector<3xf32>
    %34 = vector.shape_cast %33 : vector<3xf32> to vector<3x1xf32>
    %35 = arith.addf %22, %34 : vector<3x1xf32>
    %36 = arith.mulf %32, %32 : vector<3x4096xf32>
    %cst_27 = arith.constant dense<0.000000e+00> : vector<3xf32>
    %37 = vector.multi_reduction <add>, %36, %cst_27 [1] : vector<3x4096xf32> to vector<3xf32>
    %38 = vector.shape_cast %37 : vector<3xf32> to vector<3x1xf32>
    %39 = arith.addf %26, %38 : vector<3x1xf32>
    %c0_28 = arith.constant 0 : index
    %c8192 = arith.constant 8192 : index
    %40 = vector.load %arg4[%c0_28, %c8192] : memref<3x16384xf32, #tpu.memory_space<vmem>>, vector<3x4096xf32>
    tpu.vector_store %arg4[%c0_28, %c8192], %32 {strides = array<i32>} : memref<3x16384xf32, #tpu.memory_space<vmem>>, vector<3x4096xf32>,
    %c3 = arith.constant 3 : index
    %c0_29 = arith.constant 0 : index
    %c0_30 = arith.constant 0 : index
    %41 = vector.load %arg0[%c3, %c0_29, %c0_30] : memref<4x3x32xbf16, #tpu.memory_space<vmem>>, vector<1x3x32xbf16>
    %42 = vector.shape_cast %41 : vector<1x3x32xbf16> to vector<3x32xbf16>
    %c3_31 = arith.constant 3 : index
    %c0_32 = arith.constant 0 : index
    %c0_33 = arith.constant 0 : index
    %43 = vector.load %arg1[%c3_31, %c0_32, %c0_33] : memref<4x32x4096xbf16, #tpu.memory_space<vmem>>, vector<1x32x4096xbf16>
    %44 = vector.shape_cast %43 : vector<1x32x4096xbf16> to vector<32x4096xbf16>
    %cst_34 = arith.constant dense<0.000000e+00> : vector<3x4096xf32>
    %45 = tpu.matmul %42, %44, %cst_34 {dimension_numbers = #tpu.dot_dimension_numbers<[1], [0], [0], [1], [0, 0, 1, 1], [], []>} : vector<3x32xbf16>, vector<32x4096xbf16>, vector<3x4096xf32> -> vector<3x4096xf32>
    %cst_35 = arith.constant dense<0.000000e+00> : vector<3xf32>
    %46 = vector.multi_reduction <add>, %45, %cst_35 [1] : vector<3x4096xf32> to vector<3xf32>
    %47 = vector.shape_cast %46 : vector<3xf32> to vector<3x1xf32>
    %48 = arith.addf %35, %47 : vector<3x1xf32>
    %49 = arith.mulf %45, %45 : vector<3x4096xf32>
    %cst_36 = arith.constant dense<0.000000e+00> : vector<3xf32>
    %50 = vector.multi_reduction <add>, %49, %cst_36 [1] : vector<3x4096xf32> to vector<3xf32>
    %51 = vector.shape_cast %50 : vector<3xf32> to vector<3x1xf32>
    %52 = arith.addf %39, %51 : vector<3x1xf32>
    %c0_37 = arith.constant 0 : index
    %c12288 = arith.constant 12288 : index
    %53 = vector.load %arg4[%c0_37, %c12288] : memref<3x16384xf32, #tpu.memory_space<vmem>>, vector<3x4096xf32>
    tpu.vector_store %arg4[%c0_37, %c12288], %45 {strides = array<i32>} : memref<3x16384xf32, #tpu.memory_space<vmem>>, vector<3x4096xf32>,
    %c0_38 = arith.constant 0 : index
    %c0_39 = arith.constant 0 : index
    %54 = vector.load %arg2[%c0_38, %c0_39] : memref<3x1xf32, #tpu.memory_space<vmem>>, vector<3x1xf32>
    %c0_40 = arith.constant 0 : index
    %c0_41 = arith.constant 0 : index
    %55 = vector.load %arg3[%c0_40, %c0_41] : memref<3x1xf32, #tpu.memory_space<vmem>>, vector<3x1xf32>
    %cst_42 = arith.constant 6.10351563E-5 : f32
    %56 = vector.broadcast %cst_42 : f32 to vector<3x1xf32>
    %57 = arith.mulf %48, %56 : vector<3x1xf32>
    %cst_43 = arith.constant 6.10351563E-5 : f32
    %58 = vector.broadcast %cst_43 : f32 to vector<3x1xf32>
    %59 = arith.mulf %52, %58 : vector<3x1xf32>
    %60 = arith.mulf %57, %57 : vector<3x1xf32>
    %61 = arith.subf %59, %60 : vector<3x1xf32>
    %cst_44 = arith.constant 0.000000e+00 : f32
    %62 = vector.broadcast %cst_44 : f32 to vector<3x1xf32>
    %63 = arith.maximumf %61, %62 : vector<3x1xf32>
    %cst_45 = arith.constant 9.99999974E-6 : f32
    %64 = vector.broadcast %cst_45 : f32 to vector<3x1xf32>
    %65 = arith.addf %63, %64 : vector<3x1xf32>
    %66 = math.rsqrt %65 : vector<3x1xf32>
    %67 = arith.mulf %54, %66 : vector<3x1xf32>
    %68 = arith.mulf %57, %67 : vector<3x1xf32>
    %69 = arith.subf %55, %68 : vector<3x1xf32>
    %c0_46 = arith.constant 0 : index
    %c0_47 = arith.constant 0 : index
    %70 = vector.load %arg4[%c0_46, %c0_47] : memref<3x16384xf32, #tpu.memory_space<vmem>>, vector<3x4096xf32>
    %71 = vector.broadcast %67 : vector<3x1xf32> to vector<3x4096xf32>
    %72 = arith.mulf %70, %71 : vector<3x4096xf32>
    %73 = vector.broadcast %69 : vector<3x1xf32> to vector<3x4096xf32>
    %74 = arith.addf %72, %73 : vector<3x4096xf32>
    %75 = math.tanh %74 : vector<3x4096xf32>
    %c0_48 = arith.constant 0 : index
    %c0_49 = arith.constant 0 : index
    %76 = vector.load %arg4[%c0_48, %c0_49] : memref<3x16384xf32, #tpu.memory_space<vmem>>, vector<3x4096xf32>
    tpu.vector_store %arg4[%c0_48, %c0_49], %75 {strides = array<i32>} : memref<3x16384xf32, #tpu.memory_space<vmem>>, vector<3x4096xf32>,
    %c0_50 = arith.constant 0 : index
    %c4096_51 = arith.constant 4096 : index
    %77 = vector.load %arg4[%c0_50, %c4096_51] : memref<3x16384xf32, #tpu.memory_space<vmem>>, vector<3x4096xf32>
    %78 = vector.broadcast %67 : vector<3x1xf32> to vector<3x4096xf32>
    %79 = arith.mulf %77, %78 : vector<3x4096xf32>
    %80 = vector.broadcast %69 : vector<3x1xf32> to vector<3x4096xf32>
    %81 = arith.addf %79, %80 : vector<3x4096xf32>
    %82 = math.tanh %81 : vector<3x4096xf32>
    %c0_52 = arith.constant 0 : index
    %c4096_53 = arith.constant 4096 : index
    %83 = vector.load %arg4[%c0_52, %c4096_53] : memref<3x16384xf32, #tpu.memory_space<vmem>>, vector<3x4096xf32>
    tpu.vector_store %arg4[%c0_52, %c4096_53], %82 {strides = array<i32>} : memref<3x16384xf32, #tpu.memory_space<vmem>>, vector<3x4096xf32>,
    %c0_54 = arith.constant 0 : index
    %c8192_55 = arith.constant 8192 : index
    %84 = vector.load %arg4[%c0_54, %c8192_55] : memref<3x16384xf32, #tpu.memory_space<vmem>>, vector<3x4096xf32>
    %85 = vector.broadcast %67 : vector<3x1xf32> to vector<3x4096xf32>
    %86 = arith.mulf %84, %85 : vector<3x4096xf32>
    %87 = vector.broadcast %69 : vector<3x1xf32> to vector<3x4096xf32>
    %88 = arith.addf %86, %87 : vector<3x4096xf32>
    %89 = math.tanh %88 : vector<3x4096xf32>
    %c0_56 = arith.constant 0 : index
    %c8192_57 = arith.constant 8192 : index
    %90 = vector.load %arg4[%c0_56, %c8192_57] : memref<3x16384xf32, #tpu.memory_space<vmem>>, vector<3x4096xf32>
    tpu.vector_store %arg4[%c0_56, %c8192_57], %89 {strides = array<i32>} : memref<3x16384xf32, #tpu.memory_space<vmem>>, vector<3x4096xf32>,
    %c0_58 = arith.constant 0 : index
    %c12288_59 = arith.constant 12288 : index
    %91 = vector.load %arg4[%c0_58, %c12288_59] : memref<3x16384xf32, #tpu.memory_space<vmem>>, vector<3x4096xf32>
    %92 = vector.broadcast %67 : vector<3x1xf32> to vector<3x4096xf32>
    %93 = arith.mulf %91, %92 : vector<3x4096xf32>
    %94 = vector.broadcast %69 : vector<3x1xf32> to vector<3x4096xf32>
    %95 = arith.addf %93, %94 : vector<3x4096xf32>
    %96 = math.tanh %95 : vector<3x4096xf32>
    %c0_60 = arith.constant 0 : index
    %c12288_61 = arith.constant 12288 : index
    %97 = vector.load %arg4[%c0_60, %c12288_61] : memref<3x16384xf32, #tpu.memory_space<vmem>>, vector<3x4096xf32>
    tpu.vector_store %arg4[%c0_60, %c12288_61], %96 {strides = array<i32>} : memref<3x16384xf32, #tpu.memory_space<vmem>>, vector<3x4096xf32>,
    return
  }
}

</mosaic_0001>

<llo_original>
// kernel: cycle_generator_forward.10
$region0: #{cycle_generator_forward.10}
  #allocation0 [shape = 'u32[]', space=smem, size = 0x4, offset = 0x4, fixed_abs, tag = 'smem constant byte address 0x4 - core index']
  #allocation1 [shape = 'u32[144,128]{1,0:T(1,128)}', space=vmem, size = 0x12000, scoped, tag = 'internal scratch']
  %s0 = inlined_call_operand.vmem [shape: bf16[8,48], index: 0, kind: input, shape index: {}]
  %s1 = inlined_call_operand.vmem [shape: bf16[48,4096], index: 1, kind: input, shape index: {}]
  %s2 = inlined_call_operand.vmem [shape: f32[8,1], index: 2, kind: input, shape index: {}]
  %s3 = inlined_call_operand.vmem [shape: f32[8,1], index: 3, kind: input, shape index: {}]
  %s4 = inlined_call_operand.vmem [shape: f32[8,4096], index: 4, kind: output, shape index: {}]
  %s5 = sld [smem:[#allocation0]]
  $region26: #{cycle_generator_forward.10} parent=0
    _
  %s7 = ssub.s32 1, %s5
  %s8 = scalar_select 0, %s7, %s5
  // Predicated region
  $region2: #{cycle_generator_forward.10} parent=0 // pred_check
    _
  $region3: #{cycle_generator_forward.10} parent=0 // pred_check_branch
    %10 = sbr.rel (0) target = $region5
  $region4: #{cycle_generator_forward.10} parent=0 // pred_region
    _
  $region5: #{cycle_generator_forward.10} parent=0 // pred_fallthru
    _
  // Predicated region
  $region6: #{cycle_generator_forward.10} parent=0 // pred_check
    _
  $region7: #{cycle_generator_forward.10} parent=0 // pred_check_branch
    %12 = sbr.rel (0) target = $region9
  $region8: #{cycle_generator_forward.10} parent=0 // pred_region
    _
  $region9: #{cycle_generator_forward.10} parent=0 // pred_fallthru
    _
  // Predicated region
  $region10: #{cycle_generator_forward.10} parent=0 // pred_check
    _
  $region11: #{cycle_generator_forward.10} parent=0 // pred_check_branch
    %14 = sbr.rel (0) target = $region13
  $region12: #{cycle_generator_forward.10} parent=0 // pred_region
    _
  $region13: #{cycle_generator_forward.10} parent=0 // pred_fallthru
    _
  // Predicated region
  $region14: #{cycle_generator_forward.10} parent=0 // pred_check
    _
  $region15: #{cycle_generator_forward.10} parent=0 // pred_check_branch
    %16 = sbr.rel (0) target = $region17
  $region16: #{cycle_generator_forward.10} parent=0 // pred_region
    _
  $region17: #{cycle_generator_forward.10} parent=0 // pred_fallthru
    _
  %v18 = vld [vmem:[%s0] sm:$0xf]
  %v19 = vld [vmem:[%s1] sm:$0xff]
  %v20 = vld [vmem:[%s1 + $0x8] sm:$0xff]
  %v21 = vld [vmem:[%s1 + $0x10] sm:$0xff]
  %v22 = vld [vmem:[%s1 + $0x18] sm:$0xff]
  %v23 = vld [vmem:[%s1 + $0x20] sm:$0xff]
  %v24 = vld [vmem:[%s1 + $0x28] sm:$0xff]
  %v25 = vld [vmem:[%s1 + $0x30] sm:$0xff]
  %v26 = vld [vmem:[%s1 + $0x38] sm:$0xff]
  %v27 = vld [vmem:[%s1 + $0x40] sm:$0xff]
  %v28 = vld [vmem:[%s1 + $0x48] sm:$0xff]
  %v29 = vld [vmem:[%s1 + $0x50] sm:$0xff]
  %v30 = vld [vmem:[%s1 + $0x58] sm:$0xff]
  %v31 = vld [vmem:[%s1 + $0x60] sm:$0xff]
  %v32 = vld [vmem:[%s1 + $0x68] sm:$0xff]
  %v33 = vld [vmem:[%s1 + $0x70] sm:$0xff]
  %v34 = vld [vmem:[%s1 + $0x78] sm:$0xff]
  %v35 = vld [vmem:[%s1 + $0x80] sm:$0xff]
  %v36 = vld [vmem:[%s1 + $0x88] sm:$0xff]
  %v37 = vld [vmem:[%s1 + $0x90] sm:$0xff]
  %v38 = vld [vmem:[%s1 + $0x98] sm:$0xff]
  %v39 = vld [vmem:[%s1 + $0xa0] sm:$0xff]
  %v40 = vld [vmem:[%s1 + $0xa8] sm:$0xff]
  %v41 = vld [vmem:[%s1 + $0xb0] sm:$0xff]
  %v42 = vld [vmem:[%s1 + $0xb8] sm:$0xff]
  %v43 = vld [vmem:[%s1 + $0xc0] sm:$0xff]
  %v44 = vld [vmem:[%s1 + $0xc8] sm:$0xff]
  %v45 = vld [vmem:[%s1 + $0xd0] sm:$0xff]
  %v46 = vld [vmem:[%s1 + $0xd8] sm:$0xff]
  %v47 = vld [vmem:[%s1 + $0xe0] sm:$0xff]
  %v48 = vld [vmem:[%s1 + $0xe8] sm:$0xff]
  %v49 = vld [vmem:[%s1 + $0xf0] sm:$0xff]
  %v50 = vld [vmem:[%s1 + $0xf8] sm:$0xff]
  %v51 = vld [vmem:[%s1 + $0x100] sm:$0xff]
  %v52 = vld [vmem:[%s1 + $0x108] sm:$0xff]
  %v53 = vld [vmem:[%s1 + $0x110] sm:$0xff]
  %v54 = vld [vmem:[%s1 + $0x118] sm:$0xff]
  %v55 = vld [vmem:[%s1 + $0x120] sm:$0xff]
  %v56 = vld [vmem:[%s1 + $0x128] sm:$0xff]
  %v57 = vld [vmem:[%s1 + $0x130] sm:$0xff]
  %v58 = vld [vmem:[%s1 + $0x138] sm:$0xff]
  %v59 = vld [vmem:[%s1 + $0x140] sm:$0xff]
  %v60 = vld [vmem:[%s1 + $0x148] sm:$0xff]
  %v61 = vld [vmem:[%s1 + $0x150] sm:$0xff]
  %v62 = vld [vmem:[%s1 + $0x158] sm:$0xff]
  %v63 = vld [vmem:[%s1 + $0x160] sm:$0xff]
  %v64 = vld [vmem:[%s1 + $0x168] sm:$0xff]
  %v65 = vld [vmem:[%s1 + $0x170] sm:$0xff]
  %v66 = vld [vmem:[%s1 + $0x178] sm:$0xff]
  %v67 = vld [vmem:[%s1 + $0x180] sm:$0xff]
  %v68 = vld [vmem:[%s1 + $0x188] sm:$0xff]
  %v69 = vld [vmem:[%s1 + $0x190] sm:$0xff]
  %v70 = vld [vmem:[%s1 + $0x198] sm:$0xff]
  %v71 = vld [vmem:[%s1 + $0x1a0] sm:$0xff]
  %v72 = vld [vmem:[%s1 + $0x1a8] sm:$0xff]
  %v73 = vld [vmem:[%s1 + $0x1b0] sm:$0xff]
  %v74 = vld [vmem:[%s1 + $0x1b8] sm:$0xff]
  %v75 = vld [vmem:[%s1 + $0x1c0] sm:$0xff]
  %v76 = vld [vmem:[%s1 + $0x1c8] sm:$0xff]
  %v77 = vld [vmem:[%s1 + $0x1d0] sm:$0xff]
  %v78 = vld [vmem:[%s1 + $0x1d8] sm:$0xff]
  %v79 = vld [vmem:[%s1 + $0x1e0] sm:$0xff]
  %v80 = vld [vmem:[%s1 + $0x1e8] sm:$0xff]
  %v81 = vld [vmem:[%s1 + $0x1f0] sm:$0xff]
  %v82 = vld [vmem:[%s1 + $0x1f8] sm:$0xff]
  %v83 = vld [vmem:[%s1 + $0x200] sm:$0xff]
  %v84 = vld [vmem:[%s1 + $0x208] sm:$0xff]
  %v85 = vld [vmem:[%s1 + $0x210] sm:$0xff]
  %v86 = vld [vmem:[%s1 + $0x218] sm:$0xff]
  %v87 = vld [vmem:[%s1 + $0x220] sm:$0xff]
  %v88 = vld [vmem:[%s1 + $0x228] sm:$0xff]
  %v89 = vld [vmem:[%s1 + $0x230] sm:$0xff]
  %v90 = vld [vmem:[%s1 + $0x238] sm:$0xff]
  %v91 = vld [vmem:[%s1 + $0x240] sm:$0xff]
  %v92 = vld [vmem:[%s1 + $0x248] sm:$0xff]
  %v93 = vld [vmem:[%s1 + $0x250] sm:$0xff]
  %v94 = vld [vmem:[%s1 + $0x258] sm:$0xff]
  %v95 = vld [vmem:[%s1 + $0x260] sm:$0xff]
  %v96 = vld [vmem:[%s1 + $0x268] sm:$0xff]
  %v97 = vld [vmem:[%s1 + $0x270] sm:$0xff]
  %v98 = vld [vmem:[%s1 + $0x278] sm:$0xff]
  %v99 = vld [vmem:[%s1 + $0x280] sm:$0xff]
  %v100 = vld [vmem:[%s1 + $0x288] sm:$0xff]
  %v101 = vld [vmem:[%s1 + $0x290] sm:$0xff]
  %v102 = vld [vmem:[%s1 + $0x298] sm:$0xff]
  %v103 = vld [vmem:[%s1 + $0x2a0] sm:$0xff]
  %v104 = vld [vmem:[%s1 + $0x2a8] sm:$0xff]
  %v105 = vld [vmem:[%s1 + $0x2b0] sm:$0xff]
  %v106 = vld [vmem:[%s1 + $0x2b8] sm:$0xff]
  %v107 = vld [vmem:[%s1 + $0x2c0] sm:$0xff]
  %v108 = vld [vmem:[%s1 + $0x2c8] sm:$0xff]
  %v109 = vld [vmem:[%s1 + $0x2d0] sm:$0xff]
  %v110 = vld [vmem:[%s1 + $0x2d8] sm:$0xff]
  %v111 = vld [vmem:[%s1 + $0x2e0] sm:$0xff]
  %v112 = vld [vmem:[%s1 + $0x2e8] sm:$0xff]
  %v113 = vld [vmem:[%s1 + $0x2f0] sm:$0xff]
  %v114 = vld [vmem:[%s1 + $0x2f8] sm:$0xff]
  %v211 = vunpack.c.l.b16 %v19
  %v212 = vunpack.c.h.b16 %v19
  %v213 = vunpack.c.l.b16 %v20
  %v214 = vunpack.c.h.b16 %v20
  %v215 = vunpack.c.l.b16 %v21
  %v216 = vunpack.c.h.b16 %v21
  %v217 = vunpack.c.l.b16 %v22
  %v218 = vunpack.c.h.b16 %v22
  %v219 = vunpack.c.l.b16 %v23
  %v220 = vunpack.c.h.b16 %v23
  %v221 = vunpack.c.l.b16 %v24
  %v222 = vunpack.c.h.b16 %v24
  %v223 = vunpack.c.l.b16 %v25
  %v224 = vunpack.c.h.b16 %v25
  %v225 = vunpack.c.l.b16 %v26
  %v226 = vunpack.c.h.b16 %v26
  %v227 = vunpack.c.l.b16 %v27
  %v228 = vunpack.c.h.b16 %v27
  %v229 = vunpack.c.l.b16 %v28
  %v230 = vunpack.c.h.b16 %v28
  %v231 = vunpack.c.l.b16 %v29
  %v232 = vunpack.c.h.b16 %v29
  %v233 = vunpack.c.l.b16 %v30
  %v234 = vunpack.c.h.b16 %v30
  %v235 = vunpack.c.l.b16 %v31
  %v236 = vunpack.c.h.b16 %v31
  %v237 = vunpack.c.l.b16 %v32
  %v238 = vunpack.c.h.b16 %v32
  %v239 = vunpack.c.l.b16 %v33
  %v240 = vunpack.c.h.b16 %v33
  %v241 = vunpack.c.l.b16 %v34
  %v242 = vunpack.c.h.b16 %v34
  %v243 = vunpack.c.l.b16 %v35
  %v244 = vunpack.c.h.b16 %v35
  %v245 = vunpack.c.l.b16 %v36
  %v246 = vunpack.c.h.b16 %v36
  %v247 = vunpack.c.l.b16 %v37
  %v248 = vunpack.c.h.b16 %v37
  %v249 = vunpack.c.l.b16 %v38
  %v250 = vunpack.c.h.b16 %v38
  %v251 = vunpack.c.l.b16 %v39
  %v252 = vunpack.c.h.b16 %v39
  %v253 = vunpack.c.l.b16 %v40
  %v254 = vunpack.c.h.b16 %v40
  %v255 = vunpack.c.l.b16 %v41
  %v256 = vunpack.c.h.b16 %v41
  %v257 = vunpack.c.l.b16 %v42
  %v258 = vunpack.c.h.b16 %v42
  %v259 = vunpack.c.l.b16 %v43
  %v260 = vunpack.c.h.b16 %v43
  %v261 = vunpack.c.l.b16 %v44
  %v262 = vunpack.c.h.b16 %v44
  %v263 = vunpack.c.l.b16 %v45
  %v264 = vunpack.c.h.b16 %v45
  %v265 = vunpack.c.l.b16 %v46
  %v266 = vunpack.c.h.b16 %v46
  %v267 = vunpack.c.l.b16 %v47
  %v268 = vunpack.c.h.b16 %v47
  %v269 = vunpack.c.l.b16 %v48
  %v270 = vunpack.c.h.b16 %v48
  %v271 = vunpack.c.l.b16 %v49
  %v272 = vunpack.c.h.b16 %v49
  %v273 = vunpack.c.l.b16 %v50
  %v274 = vunpack.c.h.b16 %v50
  %v275 = vunpack.c.l.b16 %v51
  %v276 = vunpack.c.h.b16 %v51
  %v277 = vunpack.c.l.b16 %v52
  %v278 = vunpack.c.h.b16 %v52
  %v279 = vunpack.c.l.b16 %v53
  %v280 = vunpack.c.h.b16 %v53
  %v281 = vunpack.c.l.b16 %v54
  %v282 = vunpack.c.h.b16 %v54
  %v283 = vunpack.c.l.b16 %v55
  %v284 = vunpack.c.h.b16 %v55
  %v285 = vunpack.c.l.b16 %v56
  %v286 = vunpack.c.h.b16 %v56
  %v287 = vunpack.c.l.b16 %v57
  %v288 = vunpack.c.h.b16 %v57
  %v289 = vunpack.c.l.b16 %v58
  %v290 = vunpack.c.h.b16 %v58
  %v291 = vunpack.c.l.b16 %v59
  %v292 = vunpack.c.h.b16 %v59
  %v293 = vunpack.c.l.b16 %v60
  %v294 = vunpack.c.h.b16 %v60
  %v295 = vunpack.c.l.b16 %v61
  %v296 = vunpack.c.h.b16 %v61
  %v297 = vunpack.c.l.b16 %v62
  %v298 = vunpack.c.h.b16 %v62
  %v299 = vunpack.c.l.b16 %v63
  %v300 = vunpack.c.h.b16 %v63
  %v301 = vunpack.c.l.b16 %v64
  %v302 = vunpack.c.h.b16 %v64
  %v303 = vunpack.c.l.b16 %v65
  %v304 = vunpack.c.h.b16 %v65
  %v305 = vunpack.c.l.b16 %v66
  %v306 = vunpack.c.h.b16 %v66
  %v307 = vunpack.c.l.b16 %v67
  %v308 = vunpack.c.h.b16 %v67
  %v309 = vunpack.c.l.b16 %v68
  %v310 = vunpack.c.h.b16 %v68
  %v311 = vunpack.c.l.b16 %v69
  %v312 = vunpack.c.h.b16 %v69
  %v313 = vunpack.c.l.b16 %v70
  %v314 = vunpack.c.h.b16 %v70
  %v315 = vunpack.c.l.b16 %v71
  %v316 = vunpack.c.h.b16 %v71
  %v317 = vunpack.c.l.b16 %v72
  %v318 = vunpack.c.h.b16 %v72
  %v319 = vunpack.c.l.b16 %v73
  %v320 = vunpack.c.h.b16 %v73
  %v321 = vunpack.c.l.b16 %v74
  %v322 = vunpack.c.h.b16 %v74
  %v323 = vunpack.c.l.b16 %v75
  %v324 = vunpack.c.h.b16 %v75
  %v325 = vunpack.c.l.b16 %v76
  %v326 = vunpack.c.h.b16 %v76
  %v327 = vunpack.c.l.b16 %v77
  %v328 = vunpack.c.h.b16 %v77
  %v329 = vunpack.c.l.b16 %v78
  %v330 = vunpack.c.h.b16 %v78
  %v331 = vunpack.c.l.b16 %v79
  %v332 = vunpack.c.h.b16 %v79
  %v333 = vunpack.c.l.b16 %v80
  %v334 = vunpack.c.h.b16 %v80
  %v335 = vunpack.c.l.b16 %v81
  %v336 = vunpack.c.h.b16 %v81
  %v337 = vunpack.c.l.b16 %v82
  %v338 = vunpack.c.h.b16 %v82
  %v339 = vunpack.c.l.b16 %v83
  %v340 = vunpack.c.h.b16 %v83
  %v341 = vunpack.c.l.b16 %v84
  %v342 = vunpack.c.h.b16 %v84
  %v343 = vunpack.c.l.b16 %v85
  %v344 = vunpack.c.h.b16 %v85
  %v345 = vunpack.c.l.b16 %v86
  %v346 = vunpack.c.h.b16 %v86
  %v347 = vunpack.c.l.b16 %v87
  %v348 = vunpack.c.h.b16 %v87
  %v349 = vunpack.c.l.b16 %v88
  %v350 = vunpack.c.h.b16 %v88
  %v351 = vunpack.c.l.b16 %v89
  %v352 = vunpack.c.h.b16 %v89
  %v353 = vunpack.c.l.b16 %v90
  %v354 = vunpack.c.h.b16 %v90
  %v355 = vunpack.c.l.b16 %v91
  %v356 = vunpack.c.h.b16 %v91
  %v357 = vunpack.c.l.b16 %v92
  %v358 = vunpack.c.h.b16 %v92
  %v359 = vunpack.c.l.b16 %v93
  %v360 = vunpack.c.h.b16 %v93
  %v361 = vunpack.c.l.b16 %v94
  %v362 = vunpack.c.h.b16 %v94
  %v363 = vunpack.c.l.b16 %v95
  %v364 = vunpack.c.h.b16 %v95
  %v365 = vunpack.c.l.b16 %v96
  %v366 = vunpack.c.h.b16 %v96
  %v367 = vunpack.c.l.b16 %v97
  %v368 = vunpack.c.h.b16 %v97
  %v369 = vunpack.c.l.b16 %v98
  %v370 = vunpack.c.h.b16 %v98
  %v371 = vunpack.c.l.b16 %v99
  %v372 = vunpack.c.h.b16 %v99
  %v373 = vunpack.c.l.b16 %v100
  %v374 = vunpack.c.h.b16 %v100
  %v375 = vunpack.c.l.b16 %v101
  %v376 = vunpack.c.h.b16 %v101
  %v377 = vunpack.c.l.b16 %v102
  %v378 = vunpack.c.h.b16 %v102
  %v379 = vunpack.c.l.b16 %v103
  %v380 = vunpack.c.h.b16 %v103
  %v381 = vunpack.c.l.b16 %v104
  %v382 = vunpack.c.h.b16 %v104
  %v383 = vunpack.c.l.b16 %v105
  %v384 = vunpack.c.h.b16 %v105
  %v385 = vunpack.c.l.b16 %v106
  %v386 = vunpack.c.h.b16 %v106
  %v387 = vunpack.c.l.b16 %v107
  %v388 = vunpack.c.h.b16 %v107
  %v389 = vunpack.c.l.b16 %v108
  %v390 = vunpack.c.h.b16 %v108
  %v391 = vunpack.c.l.b16 %v109
  %v392 = vunpack.c.h.b16 %v109
  %v393 = vunpack.c.l.b16 %v110
  %v394 = vunpack.c.h.b16 %v110
  %v395 = vunpack.c.l.b16 %v111
  %v396 = vunpack.c.h.b16 %v111
  %v397 = vunpack.c.l.b16 %v112
  %v398 = vunpack.c.h.b16 %v112
  %v399 = vunpack.c.l.b16 %v113
  %v400 = vunpack.c.h.b16 %v113
  %v401 = vunpack.c.l.b16 %v114
  %v402 = vunpack.c.h.b16 %v114
  %v403 = vpack.c.b16 %v243, %v211
  %v404 = vpack.c.b16 %v244, %v212
  %v405 = vpack.c.b16 %v245, %v213
  %v406 = vpack.c.b16 %v246, %v214
  %v407 = vpack.c.b16 %v247, %v215
  %v408 = vpack.c.b16 %v248, %v216
  %v409 = vpack.c.b16 %v249, %v217
  %v410 = vpack.c.b16 %v250, %v218
  %v411 = vpack.c.b16 %v251, %v219
  %v412 = vpack.c.b16 %v252, %v220
  %v413 = vpack.c.b16 %v253, %v221
  %v414 = vpack.c.b16 %v254, %v222
  %v415 = vpack.c.b16 %v255, %v223
  %v416 = vpack.c.b16 %v256, %v224
  %v417 = vpack.c.b16 %v257, %v225
  %v418 = vpack.c.b16 %v258, %v226
  %v419 = vpack.c.b16 %v259, %v227
  %v420 = vpack.c.b16 %v260, %v228
  %v421 = vpack.c.b16 %v261, %v229
  %v422 = vpack.c.b16 %v262, %v230
  %v423 = vpack.c.b16 %v263, %v231
  %v424 = vpack.c.b16 %v264, %v232
  %v425 = vpack.c.b16 %v265, %v233
  %v426 = vpack.c.b16 %v266, %v234
  %v427 = vpack.c.b16 %v267, %v235
  %v428 = vpack.c.b16 %v268, %v236
  %v429 = vpack.c.b16 %v269, %v237
  %v430 = vpack.c.b16 %v270, %v238
  %v431 = vpack.c.b16 %v271, %v239
  %v432 = vpack.c.b16 %v272, %v240
  %v433 = vpack.c.b16 %v273, %v241
  %v434 = vpack.c.b16 %v274, %v242
  %v435 = vpack.c.b16 %v307, %v275
  %v436 = vpack.c.b16 %v308, %v276
  %v437 = vpack.c.b16 %v309, %v277
  %v438 = vpack.c.b16 %v310, %v278
  %v439 = vpack.c.b16 %v311, %v279
  %v440 = vpack.c.b16 %v312, %v280
  %v441 = vpack.c.b16 %v313, %v281
  %v442 = vpack.c.b16 %v314, %v282
  %v443 = vpack.c.b16 %v315, %v283
  %v444 = vpack.c.b16 %v316, %v284
  %v445 = vpack.c.b16 %v317, %v285
  %v446 = vpack.c.b16 %v318, %v286
  %v447 = vpack.c.b16 %v319, %v287
  %v448 = vpack.c.b16 %v320, %v288
  %v449 = vpack.c.b16 %v321, %v289
  %v450 = vpack.c.b16 %v322, %v290
  %v451 = vpack.c.b16 %v323, %v291
  %v452 = vpack.c.b16 %v324, %v292
  %v453 = vpack.c.b16 %v325, %v293
  %v454 = vpack.c.b16 %v326, %v294
  %v455 = vpack.c.b16 %v327, %v295
  %v456 = vpack.c.b16 %v328, %v296
  %v457 = vpack.c.b16 %v329, %v297
  %v458 = vpack.c.b16 %v330, %v298
  %v459 = vpack.c.b16 %v331, %v299
  %v460 = vpack.c.b16 %v332, %v300
  %v461 = vpack.c.b16 %v333, %v301
  %v462 = vpack.c.b16 %v334, %v302
  %v463 = vpack.c.b16 %v335, %v303
  %v464 = vpack.c.b16 %v336, %v304
  %v465 = vpack.c.b16 %v337, %v305
  %v466 = vpack.c.b16 %v338, %v306
  %v467 = vpack.c.b16 %v371, %v339
  %v468 = vpack.c.b16 %v372, %v340
  %v469 = vpack.c.b16 %v373, %v341
  %v470 = vpack.c.b16 %v374, %v342
  %v471 = vpack.c.b16 %v375, %v343
  %v472 = vpack.c.b16 %v376, %v344
  %v473 = vpack.c.b16 %v377, %v345
  %v474 = vpack.c.b16 %v378, %v346
  %v475 = vpack.c.b16 %v379, %v347
  %v476 = vpack.c.b16 %v380, %v348
  %v477 = vpack.c.b16 %v381, %v349
  %v478 = vpack.c.b16 %v382, %v350
  %v479 = vpack.c.b16 %v383, %v351
  %v480 = vpack.c.b16 %v384, %v352
  %v481 = vpack.c.b16 %v385, %v353
  %v482 = vpack.c.b16 %v386, %v354
  %v483 = vpack.c.b16 %v387, %v355
  %v484 = vpack.c.b16 %v388, %v356
  %v485 = vpack.c.b16 %v389, %v357
  %v486 = vpack.c.b16 %v390, %v358
  %v487 = vpack.c.b16 %v391, %v359
  %v488 = vpack.c.b16 %v392, %v360
  %v489 = vpack.c.b16 %v393, %v361
  %v490 = vpack.c.b16 %v394, %v362
  %v491 = vpack.c.b16 %v395, %v363
  %v492 = vpack.c.b16 %v396, %v364
  %v493 = vpack.c.b16 %v397, %v365
  %v494 = vpack.c.b16 %v398, %v366
  %v495 = vpack.c.b16 %v399, %v367
  %v496 = vpack.c.b16 %v400, %v368
  %v497 = vpack.c.b16 %v401, %v369
  %v498 = vpack.c.b16 %v402, %v370
  %vm595 = vcmask 392192
  %v597 = vsel %vm595, %v18, 0
  %599 = vmatprep.subr.bf16.mxu0 %v404
  %600 = vmatpush1.bf16.msra.mxu0 %v403
  %601 = vmatprep.subr.bf16.mxu0 %v436
  %602 = vmatpush1.bf16.msra.mxu0 %v435
  %603 = vmatprep.subr.bf16.mxu0 %v468
  %604 = vmatpush1.bf16.msra.mxu0 %v467
  %605 = vmatprep.subr.bf16.mxu0 0
  %606 = vmatpush1.bf16.msra.mxu0 0
  %607 = vmatprep.subr.bf16.mxu0 0
  %608 = vmatpush1.bf16.msra.mxu0 0
  %609 = vmatprep.subr.bf16.mxu0 0
  %610 = vmatpush1.bf16.msra.mxu0 0
  %611 = vmatprep.subr.bf16.mxu0 0
  %612 = vmatpush1.bf16.msra.mxu0 0
  %613 = vmatprep.subr.bf16.mxu0 0
  %614 = vmatpush1.bf16.msra.mxu0 0
  %615 = vmatprep.subr.bf16.mxu0 0
  %616 = vmatpush1.bf16.msra.mxu0 0
  %617 = vmatprep.subr.bf16.mxu0 0
  %618 = vmatpush1.bf16.msra.mxu0 0
  %619 = vmatprep.subr.bf16.mxu0 0
  %620 = vmatpush1.bf16.msra.mxu0 0
  %621 = vmatprep.subr.bf16.mxu0 0
  %622 = vmatpush1.bf16.msra.mxu0 0
  %623 = vmatprep.subr.bf16.mxu0 0
  %624 = vmatpush1.bf16.msra.mxu0 0
  %625 = vmatprep.subr.bf16.mxu0 0
  %626 = vmatpush1.bf16.msra.mxu0 0
  %627 = vmatprep.subr.bf16.mxu0 0
  %628 = vmatpush1.bf16.msra.mxu0 0
  %629 = vmatprep.subr.bf16.mxu0 0
  %630 = vmatpush1.bf16.msra.mxu0 0
  %631 = vmatprep.mubr.bf16.mxu0 0
  %632 = vmatmul.mubr.bf16.gmra.mrb[0].mxu0 %v597
  %v633 = vpop.f32.mrb[0].mxu0
  %v634 = vadd.f32 0.0, %v633
  %v635 = vpop.f32.mrb[0].mxu0
  %v636 = vadd.f32 0.0, %v635
  %v637 = vpop.f32.mrb[0].mxu0
  %v638 = vpop.f32.mrb[0].mxu0
  %639 = vdwg.mxu0
  %640 = vmatprep.subr.bf16.mxu0 %v406
  %641 = vmatpush1.bf16.msra.mxu0 %v405
  %642 = vmatprep.subr.bf16.mxu0 %v438
  %643 = vmatpush1.bf16.msra.mxu0 %v437
  %644 = vmatprep.subr.bf16.mxu0 %v470
  %645 = vmatpush1.bf16.msra.mxu0 %v469
  %646 = vmatprep.subr.bf16.mxu0 0
  %647 = vmatpush1.bf16.msra.mxu0 0
  %648 = vmatprep.subr.bf16.mxu0 0
  %649 = vmatpush1.bf16.msra.mxu0 0
  %650 = vmatprep.subr.bf16.mxu0 0
  %651 = vmatpush1.bf16.msra.mxu0 0
  %652 = vmatprep.subr.bf16.mxu0 0
  %653 = vmatpush1.bf16.msra.mxu0 0
  %654 = vmatprep.subr.bf16.mxu0 0
  %655 = vmatpush1.bf16.msra.mxu0 0
  %656 = vmatprep.subr.bf16.mxu0 0
  %657 = vmatpush1.bf16.msra.mxu0 0
  %658 = vmatprep.subr.bf16.mxu0 0
  %659 = vmatpush1.bf16.msra.mxu0 0
  %660 = vmatprep.subr.bf16.mxu0 0
  %661 = vmatpush1.bf16.msra.mxu0 0
  %662 = vmatprep.subr.bf16.mxu0 0
  %663 = vmatpush1.bf16.msra.mxu0 0
  %664 = vmatprep.subr.bf16.mxu0 0
  %665 = vmatpush1.bf16.msra.mxu0 0
  %666 = vmatprep.subr.bf16.mxu0 0
  %667 = vmatpush1.bf16.msra.mxu0 0
  %668 = vmatprep.subr.bf16.mxu0 0
  %669 = vmatpush1.bf16.msra.mxu0 0
  %670 = vmatprep.subr.bf16.mxu0 0
  %671 = vmatpush1.bf16.msra.mxu0 0
  %672 = vmatprep.mubr.bf16.mxu0 0
  %673 = vmatmul.mubr.bf16.gmra.mrb[0].mxu0 %v597
  %v674 = vpop.f32.mrb[0].mxu0
  %v675 = vadd.f32 0.0, %v674
  %v676 = vpop.f32.mrb[0].mxu0
  %v677 = vadd.f32 0.0, %v676
  %v678 = vpop.f32.mrb[0].mxu0
  %v679 = vpop.f32.mrb[0].mxu0
  %680 = vdwg.mxu0
  %681 = vmatprep.subr.bf16.mxu0 %v408
  %682 = vmatpush1.bf16.msra.mxu0 %v407
  %683 = vmatprep.subr.bf16.mxu0 %v440
  %684 = vmatpush1.bf16.msra.mxu0 %v439
  %685 = vmatprep.subr.bf16.mxu0 %v472
  %686 = vmatpush1.bf16.msra.mxu0 %v471
  %687 = vmatprep.subr.bf16.mxu0 0
  %688 = vmatpush1.bf16.msra.mxu0 0
  %689 = vmatprep.subr.bf16.mxu0 0
  %690 = vmatpush1.bf16.msra.mxu0 0
  %691 = vmatprep.subr.bf16.mxu0 0
  %692 = vmatpush1.bf16.msra.mxu0 0
  %693 = vmatprep.subr.bf16.mxu0 0
  %694 = vmatpush1.bf16.msra.mxu0 0
  %695 = vmatprep.subr.bf16.mxu0 0
  %696 = vmatpush1.bf16.msra.mxu0 0
  %697 = vmatprep.subr.bf16.mxu0 0
  %698 = vmatpush1.bf16.msra.mxu0 0
  %699 = vmatprep.subr.bf16.mxu0 0
  %700 = vmatpush1.bf16.msra.mxu0 0
  %701 = vmatprep.subr.bf16.mxu0 0
  %702 = vmatpush1.bf16.msra.mxu0 0
  %703 = vmatprep.subr.bf16.mxu0 0
  %704 = vmatpush1.bf16.msra.mxu0 0
  %705 = vmatprep.subr.bf16.mxu0 0
  %706 = vmatpush1.bf16.msra.mxu0 0
  %707 = vmatprep.subr.bf16.mxu0 0
  %708 = vmatpush1.bf16.msra.mxu0 0
  %709 = vmatprep.subr.bf16.mxu0 0
  %710 = vmatpush1.bf16.msra.mxu0 0
  %711 = vmatprep.subr.bf16.mxu0 0
  %712 = vmatpush1.bf16.msra.mxu0 0
  %713 = vmatprep.mubr.bf16.mxu0 0
  %714 = vmatmul.mubr.bf16.gmra.mrb[0].mxu0 %v597
  %v715 = vpop.f32.mrb[0].mxu0
  %v716 = vadd.f32 0.0, %v715
  %v717 = vpop.f32.mrb[0].mxu0
  %v718 = vadd.f32 0.0, %v717
  %v719 = vpop.f32.mrb[0].mxu0
  %v720 = vpop.f32.mrb[0].mxu0
  %721 = vdwg.mxu0
  %722 = vmatprep.subr.bf16.mxu0 %v410
  %723 = vmatpush1.bf16.msra.mxu0 %v409
  %724 = vmatprep.subr.bf16.mxu0 %v442
  %725 = vmatpush1.bf16.msra.mxu0 %v441
  %726 = vmatprep.subr.bf16.mxu0 %v474
  %727 = vmatpush1.bf16.msra.mxu0 %v473
  %728 = vmatprep.subr.bf16.mxu0 0
  %729 = vmatpush1.bf16.msra.mxu0 0
  %730 = vmatprep.subr.bf16.mxu0 0
  %731 = vmatpush1.bf16.msra.mxu0 0
  %732 = vmatprep.subr.bf16.mxu0 0
  %733 = vmatpush1.bf16.msra.mxu0 0
  %734 = vmatprep.subr.bf16.mxu0 0
  %735 = vmatpush1.bf16.msra.mxu0 0
  %736 = vmatprep.subr.bf16.mxu0 0
  %737 = vmatpush1.bf16.msra.mxu0 0
  %738 = vmatprep.subr.bf16.mxu0 0
  %739 = vmatpush1.bf16.msra.mxu0 0
  %740 = vmatprep.subr.bf16.mxu0 0
  %741 = vmatpush1.bf16.msra.mxu0 0
  %742 = vmatprep.subr.bf16.mxu0 0
  %743 = vmatpush1.bf16.msra.mxu0 0
  %744 = vmatprep.subr.bf16.mxu0 0
  %745 = vmatpush1.bf16.msra.mxu0 0
  %746 = vmatprep.subr.bf16.mxu0 0
  %747 = vmatpush1.bf16.msra.mxu0 0
  %748 = vmatprep.subr.bf16.mxu0 0
  %749 = vmatpush1.bf16.msra.mxu0 0
  %750 = vmatprep.subr.bf16.mxu0 0
  %751 = vmatpush1.bf16.msra.mxu0 0
  %752 = vmatprep.subr.bf16.mxu0 0
  %753 = vmatpush1.bf16.msra.mxu0 0
  %754 = vmatprep.mubr.bf16.mxu0 0
  %755 = vmatmul.mubr.bf16.gmra.mrb[0].mxu0 %v597
  %v756 = vpop.f32.mrb[0].mxu0
  %v757 = vadd.f32 0.0, %v756
  %v758 = vpop.f32.mrb[0].mxu0
  %v759 = vadd.f32 0.0, %v758
  %v760 = vpop.f32.mrb[0].mxu0
  %v761 = vpop.f32.mrb[0].mxu0
  %762 = vdwg.mxu0
  %763 = vmatprep.subr.bf16.mxu0 %v412
  %764 = vmatpush1.bf16.msra.mxu0 %v411
  %765 = vmatprep.subr.bf16.mxu0 %v444
  %766 = vmatpush1.bf16.msra.mxu0 %v443
  %767 = vmatprep.subr.bf16.mxu0 %v476
  %768 = vmatpush1.bf16.msra.mxu0 %v475
  %769 = vmatprep.subr.bf16.mxu0 0
  %770 = vmatpush1.bf16.msra.mxu0 0
  %771 = vmatprep.subr.bf16.mxu0 0
  %772 = vmatpush1.bf16.msra.mxu0 0
  %773 = vmatprep.subr.bf16.mxu0 0
  %774 = vmatpush1.bf16.msra.mxu0 0
  %775 = vmatprep.subr.bf16.mxu0 0
  %776 = vmatpush1.bf16.msra.mxu0 0
  %777 = vmatprep.subr.bf16.mxu0 0
  %778 = vmatpush1.bf16.msra.mxu0 0
  %779 = vmatprep.subr.bf16.mxu0 0
  %780 = vmatpush1.bf16.msra.mxu0 0
  %781 = vmatprep.subr.bf16.mxu0 0
  %782 = vmatpush1.bf16.msra.mxu0 0
  %783 = vmatprep.subr.bf16.mxu0 0
  %784 = vmatpush1.bf16.msra.mxu0 0
  %785 = vmatprep.subr.bf16.mxu0 0
  %786 = vmatpush1.bf16.msra.mxu0 0
  %787 = vmatprep.subr.bf16.mxu0 0
  %788 = vmatpush1.bf16.msra.mxu0 0
  %789 = vmatprep.subr.bf16.mxu0 0
  %790 = vmatpush1.bf16.msra.mxu0 0
  %791 = vmatprep.subr.bf16.mxu0 0
  %792 = vmatpush1.bf16.msra.mxu0 0
  %793 = vmatprep.subr.bf16.mxu0 0
  %794 = vmatpush1.bf16.msra.mxu0 0
  %795 = vmatprep.mubr.bf16.mxu0 0
  %796 = vmatmul.mubr.bf16.gmra.mrb[0].mxu0 %v597
  %v797 = vpop.f32.mrb[0].mxu0
  %v798 = vadd.f32 0.0, %v797
  %v799 = vpop.f32.mrb[0].mxu0
  %v800 = vadd.f32 0.0, %v799
  %v801 = vpop.f32.mrb[0].mxu0
  %v802 = vpop.f32.mrb[0].mxu0
  %803 = vdwg.mxu0
  %804 = vmatprep.subr.bf16.mxu0 %v414
  %805 = vmatpush1.bf16.msra.mxu0 %v413
  %806 = vmatprep.subr.bf16.mxu0 %v446
  %807 = vmatpush1.bf16.msra.mxu0 %v445
  %808 = vmatprep.subr.bf16.mxu0 %v478
  %809 = vmatpush1.bf16.msra.mxu0 %v477
  %810 = vmatprep.subr.bf16.mxu0 0
  %811 = vmatpush1.bf16.msra.mxu0 0
  %812 = vmatprep.subr.bf16.mxu0 0
  %813 = vmatpush1.bf16.msra.mxu0 0
  %814 = vmatprep.subr.bf16.mxu0 0
  %815 = vmatpush1.bf16.msra.mxu0 0
  %816 = vmatprep.subr.bf16.mxu0 0
  %817 = vmatpush1.bf16.msra.mxu0 0
  %818 = vmatprep.subr.bf16.mxu0 0
  %819 = vmatpush1.bf16.msra.mxu0 0
  %820 = vmatprep.subr.bf16.mxu0 0
  %821 = vmatpush1.bf16.msra.mxu0 0
  %822 = vmatprep.subr.bf16.mxu0 0
  %823 = vmatpush1.bf16.msra.mxu0 0
  %824 = vmatprep.subr.bf16.mxu0 0
  %825 = vmatpush1.bf16.msra.mxu0 0
  %826 = vmatprep.subr.bf16.mxu0 0
  %827 = vmatpush1.bf16.msra.mxu0 0
  %828 = vmatprep.subr.bf16.mxu0 0
  %829 = vmatpush1.bf16.msra.mxu0 0
  %830 = vmatprep.subr.bf16.mxu0 0
  %831 = vmatpush1.bf16.msra.mxu0 0
  %832 = vmatprep.subr.bf16.mxu0 0
  %833 = vmatpush1.bf16.msra.mxu0 0
  %834 = vmatprep.subr.bf16.mxu0 0
  %835 = vmatpush1.bf16.msra.mxu0 0
  %836 = vmatprep.mubr.bf16.mxu0 0
  %837 = vmatmul.mubr.bf16.gmra.mrb[0].mxu0 %v597
  %v838 = vpop.f32.mrb[0].mxu0
  %v839 = vadd.f32 0.0, %v838
  %v840 = vpop.f32.mrb[0].mxu0
  %v841 = vadd.f32 0.0, %v840
  %v842 = vpop.f32.mrb[0].mxu0
  %v843 = vpop.f32.mrb[0].mxu0
  %844 = vdwg.mxu0
  %845 = vmatprep.subr.bf16.mxu0 %v416
  %846 = vmatpush1.bf16.msra.mxu0 %v415
  %847 = vmatprep.subr.bf16.mxu0 %v448
  %848 = vmatpush1.bf16.msra.mxu0 %v447
  %849 = vmatprep.subr.bf16.mxu0 %v480
  %850 = vmatpush1.bf16.msra.mxu0 %v479
  %851 = vmatprep.subr.bf16.mxu0 0
  %852 = vmatpush1.bf16.msra.mxu0 0
  %853 = vmatprep.subr.bf16.mxu0 0
  %854 = vmatpush1.bf16.msra.mxu0 0
  %855 = vmatprep.subr.bf16.mxu0 0
  %856 = vmatpush1.bf16.msra.mxu0 0
  %857 = vmatprep.subr.bf16.mxu0 0
  %858 = vmatpush1.bf16.msra.mxu0 0
  %859 = vmatprep.subr.bf16.mxu0 0
  %860 = vmatpush1.bf16.msra.mxu0 0
  %861 = vmatprep.subr.bf16.mxu0 0
  %862 = vmatpush1.bf16.msra.mxu0 0
  %863 = vmatprep.subr.bf16.mxu0 0
  %864 = vmatpush1.bf16.msra.mxu0 0
  %865 = vmatprep.subr.bf16.mxu0 0
  %866 = vmatpush1.bf16.msra.mxu0 0
  %867 = vmatprep.subr.bf16.mxu0 0
  %868 = vmatpush1.bf16.msra.mxu0 0
  %869 = vmatprep.subr.bf16.mxu0 0
  %870 = vmatpush1.bf16.msra.mxu0 0
  %871 = vmatprep.subr.bf16.mxu0 0
  %872 = vmatpush1.bf16.msra.mxu0 0
  %873 = vmatprep.subr.bf16.mxu0 0
  %874 = vmatpush1.bf16.msra.mxu0 0
  %875 = vmatprep.subr.bf16.mxu0 0
  %876 = vmatpush1.bf16.msra.mxu0 0
  %877 = vmatprep.mubr.bf16.mxu0 0
  %878 = vmatmul.mubr.bf16.gmra.mrb[0].mxu0 %v597
  %v879 = vpop.f32.mrb[0].mxu0
  %v880 = vadd.f32 0.0, %v879
  %v881 = vpop.f32.mrb[0].mxu0
  %v882 = vadd.f32 0.0, %v881
  %v883 = vpop.f32.mrb[0].mxu0
  %v884 = vpop.f32.mrb[0].mxu0
  %885 = vdwg.mxu0
  %886 = vmatprep.subr.bf16.mxu0 %v418
  %887 = vmatpush1.bf16.msra.mxu0 %v417
  %888 = vmatprep.subr.bf16.mxu0 %v450
  %889 = vmatpush1.bf16.msra.mxu0 %v449
  %890 = vmatprep.subr.bf16.mxu0 %v482
  %891 = vmatpush1.bf16.msra.mxu0 %v481
  %892 = vmatprep.subr.bf16.mxu0 0
  %893 = vmatpush1.bf16.msra.mxu0 0
  %894 = vmatprep.subr.bf16.mxu0 0
  %895 = vmatpush1.bf16.msra.mxu0 0
  %896 = vmatprep.subr.bf16.mxu0 0
  %897 = vmatpush1.bf16.msra.mxu0 0
  %898 = vmatprep.subr.bf16.mxu0 0
  %899 = vmatpush1.bf16.msra.mxu0 0
  %900 = vmatprep.subr.bf16.mxu0 0
  %901 = vmatpush1.bf16.msra.mxu0 0
  %902 = vmatprep.subr.bf16.mxu0 0
  %903 = vmatpush1.bf16.msra.mxu0 0
  %904 = vmatprep.subr.bf16.mxu0 0
  %905 = vmatpush1.bf16.msra.mxu0 0
  %906 = vmatprep.subr.bf16.mxu0 0
  %907 = vmatpush1.bf16.msra.mxu0 0
  %908 = vmatprep.subr.bf16.mxu0 0
  %909 = vmatpush1.bf16.msra.mxu0 0
  %910 = vmatprep.subr.bf16.mxu0 0
  %911 = vmatpush1.bf16.msra.mxu0 0
  %912 = vmatprep.subr.bf16.mxu0 0
  %913 = vmatpush1.bf16.msra.mxu0 0
  %914 = vmatprep.subr.bf16.mxu0 0
  %915 = vmatpush1.bf16.msra.mxu0 0
  %916 = vmatprep.subr.bf16.mxu0 0
  %917 = vmatpush1.bf16.msra.mxu0 0
  %918 = vmatprep.mubr.bf16.mxu0 0
  %919 = vmatmul.mubr.bf16.gmra.mrb[0].mxu0 %v597
  %v920 = vpop.f32.mrb[0].mxu0
  %v921 = vadd.f32 0.0, %v920
  %v922 = vpop.f32.mrb[0].mxu0
  %v923 = vadd.f32 0.0, %v922
  %v924 = vpop.f32.mrb[0].mxu0
  %v925 = vpop.f32.mrb[0].mxu0
  %926 = vdwg.mxu0
  %927 = vmatprep.subr.bf16.mxu0 %v420
  %928 = vmatpush1.bf16.msra.mxu0 %v419
  %929 = vmatprep.subr.bf16.mxu0 %v452
  %930 = vmatpush1.bf16.msra.mxu0 %v451
  %931 = vmatprep.subr.bf16.mxu0 %v484
  %932 = vmatpush1.bf16.msra.mxu0 %v483
  %933 = vmatprep.subr.bf16.mxu0 0
  %934 = vmatpush1.bf16.msra.mxu0 0
  %935 = vmatprep.subr.bf16.mxu0 0
  %936 = vmatpush1.bf16.msra.mxu0 0
  %937 = vmatprep.subr.bf16.mxu0 0
  %938 = vmatpush1.bf16.msra.mxu0 0
  %939 = vmatprep.subr.bf16.mxu0 0
  %940 = vmatpush1.bf16.msra.mxu0 0
  %941 = vmatprep.subr.bf16.mxu0 0
  %942 = vmatpush1.bf16.msra.mxu0 0
  %943 = vmatprep.subr.bf16.mxu0 0
  %944 = vmatpush1.bf16.msra.mxu0 0
  %945 = vmatprep.subr.bf16.mxu0 0
  %946 = vmatpush1.bf16.msra.mxu0 0
  %947 = vmatprep.subr.bf16.mxu0 0
  %948 = vmatpush1.bf16.msra.mxu0 0
  %949 = vmatprep.subr.bf16.mxu0 0
  %950 = vmatpush1.bf16.msra.mxu0 0
  %951 = vmatprep.subr.bf16.mxu0 0
  %952 = vmatpush1.bf16.msra.mxu0 0
  %953 = vmatprep.subr.bf16.mxu0 0
  %954 = vmatpush1.bf16.msra.mxu0 0
  %955 = vmatprep.subr.bf16.mxu0 0
  %956 = vmatpush1.bf16.msra.mxu0 0
  %957 = vmatprep.subr.bf16.mxu0 0
  %958 = vmatpush1.bf16.msra.mxu0 0
  %959 = vmatprep.mubr.bf16.mxu0 0
  %960 = vmatmul.mubr.bf16.gmra.mrb[0].mxu0 %v597
  %v961 = vpop.f32.mrb[0].mxu0
  %v962 = vadd.f32 0.0, %v961
  %v963 = vpop.f32.mrb[0].mxu0
  %v964 = vadd.f32 0.0, %v963
  %v965 = vpop.f32.mrb[0].mxu0
  %v966 = vpop.f32.mrb[0].mxu0
  %967 = vdwg.mxu0
  %968 = vmatprep.subr.bf16.mxu0 %v422
  %969 = vmatpush1.bf16.msra.mxu0 %v421
  %970 = vmatprep.subr.bf16.mxu0 %v454
  %971 = vmatpush1.bf16.msra.mxu0 %v453
  %972 = vmatprep.subr.bf16.mxu0 %v486
  %973 = vmatpush1.bf16.msra.mxu0 %v485
  %974 = vmatprep.subr.bf16.mxu0 0
  %975 = vmatpush1.bf16.msra.mxu0 0
  %976 = vmatprep.subr.bf16.mxu0 0
  %977 = vmatpush1.bf16.msra.mxu0 0
  %978 = vmatprep.subr.bf16.mxu0 0
  %979 = vmatpush1.bf16.msra.mxu0 0
  %980 = vmatprep.subr.bf16.mxu0 0
  %981 = vmatpush1.bf16.msra.mxu0 0
  %982 = vmatprep.subr.bf16.mxu0 0
  %983 = vmatpush1.bf16.msra.mxu0 0
  %984 = vmatprep.subr.bf16.mxu0 0
  %985 = vmatpush1.bf16.msra.mxu0 0
  %986 = vmatprep.subr.bf16.mxu0 0
  %987 = vmatpush1.bf16.msra.mxu0 0
  %988 = vmatprep.subr.bf16.mxu0 0
  %989 = vmatpush1.bf16.msra.mxu0 0
  %990 = vmatprep.subr.bf16.mxu0 0
  %991 = vmatpush1.bf16.msra.mxu0 0
  %992 = vmatprep.subr.bf16.mxu0 0
  %993 = vmatpush1.bf16.msra.mxu0 0
  %994 = vmatprep.subr.bf16.mxu0 0
  %995 = vmatpush1.bf16.msra.mxu0 0
  %996 = vmatprep.subr.bf16.mxu0 0
  %997 = vmatpush1.bf16.msra.mxu0 0
  %998 = vmatprep.subr.bf16.mxu0 0
  %999 = vmatpush1.bf16.msra.mxu0 0
  %1000 = vmatprep.mubr.bf16.mxu0 0
  %1001 = vmatmul.mubr.bf16.gmra.mrb[0].mxu0 %v597
  %v1002 = vpop.f32.mrb[0].mxu0
  %v1003 = vadd.f32 0.0, %v1002
  %v1004 = vpop.f32.mrb[0].mxu0
  %v1005 = vadd.f32 0.0, %v1004
  %v1006 = vpop.f32.mrb[0].mxu0
  %v1007 = vpop.f32.mrb[0].mxu0
  %1008 = vdwg.mxu0
  %1009 = vmatprep.subr.bf16.mxu0 %v424
  %1010 = vmatpush1.bf16.msra.mxu0 %v423
  %1011 = vmatprep.subr.bf16.mxu0 %v456
  %1012 = vmatpush1.bf16.msra.mxu0 %v455
  %1013 = vmatprep.subr.bf16.mxu0 %v488
  %1014 = vmatpush1.bf16.msra.mxu0 %v487
  %1015 = vmatprep.subr.bf16.mxu0 0
  %1016 = vmatpush1.bf16.msra.mxu0 0
  %1017 = vmatprep.subr.bf16.mxu0 0
  %1018 = vmatpush1.bf16.msra.mxu0 0
  %1019 = vmatprep.subr.bf16.mxu0 0
  %1020 = vmatpush1.bf16.msra.mxu0 0
  %1021 = vmatprep.subr.bf16.mxu0 0
  %1022 = vmatpush1.bf16.msra.mxu0 0
  %1023 = vmatprep.subr.bf16.mxu0 0
  %1024 = vmatpush1.bf16.msra.mxu0 0
  %1025 = vmatprep.subr.bf16.mxu0 0
  %1026 = vmatpush1.bf16.msra.mxu0 0
  %1027 = vmatprep.subr.bf16.mxu0 0
  %1028 = vmatpush1.bf16.msra.mxu0 0
  %1029 = vmatprep.subr.bf16.mxu0 0
  %1030 = vmatpush1.bf16.msra.mxu0 0
  %1031 = vmatprep.subr.bf16.mxu0 0
  %1032 = vmatpush1.bf16.msra.mxu0 0
  %1033 = vmatprep.subr.bf16.mxu0 0
  %1034 = vmatpush1.bf16.msra.mxu0 0
  %1035 = vmatprep.subr.bf16.mxu0 0
  %1036 = vmatpush1.bf16.msra.mxu0 0
  %1037 = vmatprep.subr.bf16.mxu0 0
  %1038 = vmatpush1.bf16.msra.mxu0 0
  %1039 = vmatprep.subr.bf16.mxu0 0
  %1040 = vmatpush1.bf16.msra.mxu0 0
  %1041 = vmatprep.mubr.bf16.mxu0 0
  %1042 = vmatmul.mubr.bf16.gmra.mrb[0].mxu0 %v597
  %v1043 = vpop.f32.mrb[0].mxu0
  %v1044 = vadd.f32 0.0, %v1043
  %v1045 = vpop.f32.mrb[0].mxu0
  %v1046 = vadd.f32 0.0, %v1045
  %v1047 = vpop.f32.mrb[0].mxu0
  %v1048 = vpop.f32.mrb[0].mxu0
  %1049 = vdwg.mxu0
  %1050 = vmatprep.subr.bf16.mxu0 %v426
  %1051 = vmatpush1.bf16.msra.mxu0 %v425
  %1052 = vmatprep.subr.bf16.mxu0 %v458
  %1053 = vmatpush1.bf16.msra.mxu0 %v457
  %1054 = vmatprep.subr.bf16.mxu0 %v490
  %1055 = vmatpush1.bf16.msra.mxu0 %v489
  %1056 = vmatprep.subr.bf16.mxu0 0
  %1057 = vmatpush1.bf16.msra.mxu0 0
  %1058 = vmatprep.subr.bf16.mxu0 0
  %1059 = vmatpush1.bf16.msra.mxu0 0
  %1060 = vmatprep.subr.bf16.mxu0 0
  %1061 = vmatpush1.bf16.msra.mxu0 0
  %1062 = vmatprep.subr.bf16.mxu0 0
  %1063 = vmatpush1.bf16.msra.mxu0 0
  %1064 = vmatprep.subr.bf16.mxu0 0
  %1065 = vmatpush1.bf16.msra.mxu0 0
  %1066 = vmatprep.subr.bf16.mxu0 0
  %1067 = vmatpush1.bf16.msra.mxu0 0
  %1068 = vmatprep.subr.bf16.mxu0 0
  %1069 = vmatpush1.bf16.msra.mxu0 0
  %1070 = vmatprep.subr.bf16.mxu0 0
  %1071 = vmatpush1.bf16.msra.mxu0 0
  %1072 = vmatprep.subr.bf16.mxu0 0
  %1073 = vmatpush1.bf16.msra.mxu0 0
  %1074 = vmatprep.subr.bf16.mxu0 0
  %1075 = vmatpush1.bf16.msra.mxu0 0
  %1076 = vmatprep.subr.bf16.mxu0 0
  %1077 = vmatpush1.bf16.msra.mxu0 0
  %1078 = vmatprep.subr.bf16.mxu0 0
  %1079 = vmatpush1.bf16.msra.mxu0 0
  %1080 = vmatprep.subr.bf16.mxu0 0
  %1081 = vmatpush1.bf16.msra.mxu0 0
  %1082 = vmatprep.mubr.bf16.mxu0 0
  %1083 = vmatmul.mubr.bf16.gmra.mrb[0].mxu0 %v597
  %v1084 = vpop.f32.mrb[0].mxu0
  %v1085 = vadd.f32 0.0, %v1084
  %v1086 = vpop.f32.mrb[0].mxu0
  %v1087 = vadd.f32 0.0, %v1086
  %v1088 = vpop.f32.mrb[0].mxu0
  %v1089 = vpop.f32.mrb[0].mxu0
  %1090 = vdwg.mxu0
  %1091 = vmatprep.subr.bf16.mxu0 %v428
  %1092 = vmatpush1.bf16.msra.mxu0 %v427
  %1093 = vmatprep.subr.bf16.mxu0 %v460
  %1094 = vmatpush1.bf16.msra.mxu0 %v459
  %1095 = vmatprep.subr.bf16.mxu0 %v492
  %1096 = vmatpush1.bf16.msra.mxu0 %v491
  %1097 = vmatprep.subr.bf16.mxu0 0
  %1098 = vmatpush1.bf16.msra.mxu0 0
  %1099 = vmatprep.subr.bf16.mxu0 0
  %1100 = vmatpush1.bf16.msra.mxu0 0
  %1101 = vmatprep.subr.bf16.mxu0 0
  %1102 = vmatpush1.bf16.msra.mxu0 0
  %1103 = vmatprep.subr.bf16.mxu0 0
  %1104 = vmatpush1.bf16.msra.mxu0 0
  %1105 = vmatprep.subr.bf16.mxu0 0
  %1106 = vmatpush1.bf16.msra.mxu0 0
  %1107 = vmatprep.subr.bf16.mxu0 0
  %1108 = vmatpush1.bf16.msra.mxu0 0
  %1109 = vmatprep.subr.bf16.mxu0 0
  %1110 = vmatpush1.bf16.msra.mxu0 0
  %1111 = vmatprep.subr.bf16.mxu0 0
  %1112 = vmatpush1.bf16.msra.mxu0 0
  %1113 = vmatprep.subr.bf16.mxu0 0
  %1114 = vmatpush1.bf16.msra.mxu0 0
  %1115 = vmatprep.subr.bf16.mxu0 0
  %1116 = vmatpush1.bf16.msra.mxu0 0
  %1117 = vmatprep.subr.bf16.mxu0 0
  %1118 = vmatpush1.bf16.msra.mxu0 0
  %1119 = vmatprep.subr.bf16.mxu0 0
  %1120 = vmatpush1.bf16.msra.mxu0 0
  %1121 = vmatprep.subr.bf16.mxu0 0
  %1122 = vmatpush1.bf16.msra.mxu0 0
  %1123 = vmatprep.mubr.bf16.mxu0 0
  %1124 = vmatmul.mubr.bf16.gmra.mrb[0].mxu0 %v597
  %v1125 = vpop.f32.mrb[0].mxu0
  %v1126 = vadd.f32 0.0, %v1125
  %v1127 = vpop.f32.mrb[0].mxu0
  %v1128 = vadd.f32 0.0, %v1127
  %v1129 = vpop.f32.mrb[0].mxu0
  %v1130 = vpop.f32.mrb[0].mxu0
  %1131 = vdwg.mxu0
  %1132 = vmatprep.subr.bf16.mxu0 %v430
  %1133 = vmatpush1.bf16.msra.mxu0 %v429
  %1134 = vmatprep.subr.bf16.mxu0 %v462
  %1135 = vmatpush1.bf16.msra.mxu0 %v461
  %1136 = vmatprep.subr.bf16.mxu0 %v494
  %1137 = vmatpush1.bf16.msra.mxu0 %v493
  %1138 = vmatprep.subr.bf16.mxu0 0
  %1139 = vmatpush1.bf16.msra.mxu0 0
  %1140 = vmatprep.subr.bf16.mxu0 0
  %1141 = vmatpush1.bf16.msra.mxu0 0
  %1142 = vmatprep.subr.bf16.mxu0 0
  %1143 = vmatpush1.bf16.msra.mxu0 0
  %1144 = vmatprep.subr.bf16.mxu0 0
  %1145 = vmatpush1.bf16.msra.mxu0 0
  %1146 = vmatprep.subr.bf16.mxu0 0
  %1147 = vmatpush1.bf16.msra.mxu0 0
  %1148 = vmatprep.subr.bf16.mxu0 0
  %1149 = vmatpush1.bf16.msra.mxu0 0
  %1150 = vmatprep.subr.bf16.mxu0 0
  %1151 = vmatpush1.bf16.msra.mxu0 0
  %1152 = vmatprep.subr.bf16.mxu0 0
  %1153 = vmatpush1.bf16.msra.mxu0 0
  %1154 = vmatprep.subr.bf16.mxu0 0
  %1155 = vmatpush1.bf16.msra.mxu0 0
  %1156 = vmatprep.subr.bf16.mxu0 0
  %1157 = vmatpush1.bf16.msra.mxu0 0
  %1158 = vmatprep.subr.bf16.mxu0 0
  %1159 = vmatpush1.bf16.msra.mxu0 0
  %1160 = vmatprep.subr.bf16.mxu0 0
  %1161 = vmatpush1.bf16.msra.mxu0 0
  %1162 = vmatprep.subr.bf16.mxu0 0
  %1163 = vmatpush1.bf16.msra.mxu0 0
  %1164 = vmatprep.mubr.bf16.mxu0 0
  %1165 = vmatmul.mubr.bf16.gmra.mrb[0].mxu0 %v597
  %v1166 = vpop.f32.mrb[0].mxu0
  %v1167 = vadd.f32 0.0, %v1166
  %v1168 = vpop.f32.mrb[0].mxu0
  %v1169 = vadd.f32 0.0, %v1168
  %v1170 = vpop.f32.mrb[0].mxu0
  %v1171 = vpop.f32.mrb[0].mxu0
  %1172 = vdwg.mxu0
  %1173 = vmatprep.subr.bf16.mxu0 %v432
  %1174 = vmatpush1.bf16.msra.mxu0 %v431
  %1175 = vmatprep.subr.bf16.mxu0 %v464
  %1176 = vmatpush1.bf16.msra.mxu0 %v463
  %1177 = vmatprep.subr.bf16.mxu0 %v496
  %1178 = vmatpush1.bf16.msra.mxu0 %v495
  %1179 = vmatprep.subr.bf16.mxu0 0
  %1180 = vmatpush1.bf16.msra.mxu0 0
  %1181 = vmatprep.subr.bf16.mxu0 0
  %1182 = vmatpush1.bf16.msra.mxu0 0
  %1183 = vmatprep.subr.bf16.mxu0 0
  %1184 = vmatpush1.bf16.msra.mxu0 0
  %1185 = vmatprep.subr.bf16.mxu0 0
  %1186 = vmatpush1.bf16.msra.mxu0 0
  %1187 = vmatprep.subr.bf16.mxu0 0
  %1188 = vmatpush1.bf16.msra.mxu0 0
  %1189 = vmatprep.subr.bf16.mxu0 0
  %1190 = vmatpush1.bf16.msra.mxu0 0
  %1191 = vmatprep.subr.bf16.mxu0 0
  %1192 = vmatpush1.bf16.msra.mxu0 0
  %1193 = vmatprep.subr.bf16.mxu0 0
  %1194 = vmatpush1.bf16.msra.mxu0 0
  %1195 = vmatprep.subr.bf16.mxu0 0
  %1196 = vmatpush1.bf16.msra.mxu0 0
  %1197 = vmatprep.subr.bf16.mxu0 0
  %1198 = vmatpush1.bf16.msra.mxu0 0
  %1199 = vmatprep.subr.bf16.mxu0 0
  %1200 = vmatpush1.bf16.msra.mxu0 0
  %1201 = vmatprep.subr.bf16.mxu0 0
  %1202 = vmatpush1.bf16.msra.mxu0 0
  %1203 = vmatprep.subr.bf16.mxu0 0
  %1204 = vmatpush1.bf16.msra.mxu0 0
  %1205 = vmatprep.mubr.bf16.mxu0 0
  %1206 = vmatmul.mubr.bf16.gmra.mrb[0].mxu0 %v597
  %v1207 = vpop.f32.mrb[0].mxu0
  %v1208 = vadd.f32 0.0, %v1207
  %v1209 = vpop.f32.mrb[0].mxu0
  %v1210 = vadd.f32 0.0, %v1209
  %v1211 = vpop.f32.mrb[0].mxu0
  %v1212 = vpop.f32.mrb[0].mxu0
  %1213 = vdwg.mxu0
  %1214 = vmatprep.subr.bf16.mxu0 %v434
  %1215 = vmatpush1.bf16.msra.mxu0 %v433
  %1216 = vmatprep.subr.bf16.mxu0 %v466
  %1217 = vmatpush1.bf16.msra.mxu0 %v465
  %1218 = vmatprep.subr.bf16.mxu0 %v498
  %1219 = vmatpush1.bf16.msra.mxu0 %v497
  %1220 = vmatprep.subr.bf16.mxu0 0
  %1221 = vmatpush1.bf16.msra.mxu0 0
  %1222 = vmatprep.subr.bf16.mxu0 0
  %1223 = vmatpush1.bf16.msra.mxu0 0
  %1224 = vmatprep.subr.bf16.mxu0 0
  %1225 = vmatpush1.bf16.msra.mxu0 0
  %1226 = vmatprep.subr.bf16.mxu0 0
  %1227 = vmatpush1.bf16.msra.mxu0 0
  %1228 = vmatprep.subr.bf16.mxu0 0
  %1229 = vmatpush1.bf16.msra.mxu0 0
  %1230 = vmatprep.subr.bf16.mxu0 0
  %1231 = vmatpush1.bf16.msra.mxu0 0
  %1232 = vmatprep.subr.bf16.mxu0 0
  %1233 = vmatpush1.bf16.msra.mxu0 0
  %1234 = vmatprep.subr.bf16.mxu0 0
  %1235 = vmatpush1.bf16.msra.mxu0 0
  %1236 = vmatprep.subr.bf16.mxu0 0
  %1237 = vmatpush1.bf16.msra.mxu0 0
  %1238 = vmatprep.subr.bf16.mxu0 0
  %1239 = vmatpush1.bf16.msra.mxu0 0
  %1240 = vmatprep.subr.bf16.mxu0 0
  %1241 = vmatpush1.bf16.msra.mxu0 0
  %1242 = vmatprep.subr.bf16.mxu0 0
  %1243 = vmatpush1.bf16.msra.mxu0 0
  %1244 = vmatprep.subr.bf16.mxu0 0
  %1245 = vmatpush1.bf16.msra.mxu0 0
  %1246 = vmatprep.mubr.bf16.mxu0 0
  %1247 = vmatmul.mubr.bf16.gmra.mrb[0].mxu0 %v597
  %v1248 = vpop.f32.mrb[0].mxu0
  %v1249 = vadd.f32 0.0, %v1248
  %v1250 = vpop.f32.mrb[0].mxu0
  %v1251 = vadd.f32 0.0, %v1250
  %v1252 = vpop.f32.mrb[0].mxu0
  %v1253 = vpop.f32.mrb[0].mxu0
  %1254 = vdwg.mxu0
  %v1255 = vadd.f32 %v634, %v636
  %v1256 = vadd.f32 %v1255, %v675
  %v1257 = vadd.f32 %v1256, %v677
  %v1258 = vadd.f32 %v1257, %v716
  %v1259 = vadd.f32 %v1258, %v718
  %v1260 = vadd.f32 %v1259, %v757
  %v1261 = vadd.f32 %v1260, %v759
  %v1262 = vadd.f32 %v1261, %v798
  %v1263 = vadd.f32 %v1262, %v800
  %v1264 = vadd.f32 %v1263, %v839
  %v1265 = vadd.f32 %v1264, %v841
  %v1266 = vadd.f32 %v1265, %v880
  %v1267 = vadd.f32 %v1266, %v882
  %v1268 = vadd.f32 %v1267, %v921
  %v1269 = vadd.f32 %v1268, %v923
  %v1270 = vadd.f32 %v1269, %v962
  %v1271 = vadd.f32 %v1270, %v964
  %v1272 = vadd.f32 %v1271, %v1003
  %v1273 = vadd.f32 %v1272, %v1005
  %v1274 = vadd.f32 %v1273, %v1044
  %v1275 = vadd.f32 %v1274, %v1046
  %v1276 = vadd.f32 %v1275, %v1085
  %v1277 = vadd.f32 %v1276, %v1087
  %v1278 = vadd.f32 %v1277, %v1126
  %v1279 = vadd.f32 %v1278, %v1128
  %v1280 = vadd.f32 %v1279, %v1167
  %v1281 = vadd.f32 %v1280, %v1169
  %v1282 = vadd.f32 %v1281, %v1208
  %v1283 = vadd.f32 %v1282, %v1210
  %v1284 = vadd.f32 %v1283, %v1249
  %v1285 = vadd.f32 %v1284, %v1251
  %1286 = vadd.xlane.f32.xlu0 %v1285
  %v1287 = vpop.xlane.xlu0 %1286
  %v1288 = vmul.f32 %v634, %v634
  %v1289 = vmul.f32 %v636, %v636
  %v1290 = vmul.f32 %v675, %v675
  %v1291 = vmul.f32 %v677, %v677
  %v1292 = vmul.f32 %v716, %v716
  %v1293 = vmul.f32 %v718, %v718
  %v1294 = vmul.f32 %v757, %v757
  %v1295 = vmul.f32 %v759, %v759
  %v1296 = vmul.f32 %v798, %v798
  %v1297 = vmul.f32 %v800, %v800
  %v1298 = vmul.f32 %v839, %v839
  %v1299 = vmul.f32 %v841, %v841
  %v1300 = vmul.f32 %v880, %v880
  %v1301 = vmul.f32 %v882, %v882
  %v1302 = vmul.f32 %v921, %v921
  %v1303 = vmul.f32 %v923, %v923
  %v1304 = vmul.f32 %v962, %v962
  %v1305 = vmul.f32 %v964, %v964
  %v1306 = vmul.f32 %v1003, %v1003
  %v1307 = vmul.f32 %v1005, %v1005
  %v1308 = vmul.f32 %v1044, %v1044
  %v1309 = vmul.f32 %v1046, %v1046
  %v1310 = vmul.f32 %v1085, %v1085
  %v1311 = vmul.f32 %v1087, %v1087
  %v1312 = vmul.f32 %v1126, %v1126
  %v1313 = vmul.f32 %v1128, %v1128
  %v1314 = vmul.f32 %v1167, %v1167
  %v1315 = vmul.f32 %v1169, %v1169
  %v1316 = vmul.f32 %v1208, %v1208
  %v1317 = vmul.f32 %v1210, %v1210
  %v1318 = vmul.f32 %v1249, %v1249
  %v1319 = vmul.f32 %v1251, %v1251
  %v1320 = vadd.f32 %v1288, %v1289
  %v1321 = vadd.f32 %v1320, %v1290
  %v1322 = vadd.f32 %v1321, %v1291
  %v1323 = vadd.f32 %v1322, %v1292
  %v1324 = vadd.f32 %v1323, %v1293
  %v1325 = vadd.f32 %v1324, %v1294
  %v1326 = vadd.f32 %v1325, %v1295
  %v1327 = vadd.f32 %v1326, %v1296
  %v1328 = vadd.f32 %v1327, %v1297
  %v1329 = vadd.f32 %v1328, %v1298
  %v1330 = vadd.f32 %v1329, %v1299
  %v1331 = vadd.f32 %v1330, %v1300
  %v1332 = vadd.f32 %v1331, %v1301
  %v1333 = vadd.f32 %v1332, %v1302
  %v1334 = vadd.f32 %v1333, %v1303
  %v1335 = vadd.f32 %v1334, %v1304
  %v1336 = vadd.f32 %v1335, %v1305
  %v1337 = vadd.f32 %v1336, %v1306
  %v1338 = vadd.f32 %v1337, %v1307
  %v1339 = vadd.f32 %v1338, %v1308
  %v1340 = vadd.f32 %v1339, %v1309
  %v1341 = vadd.f32 %v1340, %v1310
  %v1342 = vadd.f32 %v1341, %v1311
  %v1343 = vadd.f32 %v1342, %v1312
  %v1344 = vadd.f32 %v1343, %v1313
  %v1345 = vadd.f32 %v1344, %v1314
  %v1346 = vadd.f32 %v1345, %v1315
  %v1347 = vadd.f32 %v1346, %v1316
  %v1348 = vadd.f32 %v1347, %v1317
  %v1349 = vadd.f32 %v1348, %v1318
  %v1350 = vadd.f32 %v1349, %v1319
  %1351 = vadd.xlane.f32.xlu0 %v1350
  %v1352 = vpop.xlane.xlu0 %1351
  %v1353 = vld [vmem:[%s2] sm:$0xff]
  %v1354 = vld [vmem:[%s3] sm:$0xff]
  %v1355 = vmul.f32 %v1287, 0.00024414063
  %v1356 = vmul.f32 %v1352, 0.00024414063
  %v1357 = vmul.f32 %v1355, %v1355
  %v1358 = vsub.f32 %v1356, %v1357
  %v1359 = vmax.f32 %v1358, 0.0
  %v1360 = vadd.f32 %v1359, 1e-05
  %v1361 = vrsqrt.pop %v1360
  %v1362 = vmul.f32 %v1353, %v1361
  %v1363 = vmul.f32 %v1355, %v1362
  %v1364 = vsub.f32 %v1354, %v1363
  %1366 = vset.pattern.permute.xlu0 0
  %1367 = vperm.xlu0 %1366, %v1362
  %v1368 = vpop.permute.xlu0 %1367
  %v1370 = vmul.f32 %v634, %v1368
  %v1371 = vmul.f32 %v636, %v1368
  %v1372 = vmul.f32 %v675, %v1368
  %v1373 = vmul.f32 %v677, %v1368
  %v1374 = vmul.f32 %v716, %v1368
  %v1375 = vmul.f32 %v718, %v1368
  %v1376 = vmul.f32 %v757, %v1368
  %v1377 = vmul.f32 %v759, %v1368
  %v1378 = vmul.f32 %v798, %v1368
  %v1379 = vmul.f32 %v800, %v1368
  %v1380 = vmul.f32 %v839, %v1368
  %v1381 = vmul.f32 %v841, %v1368
  %v1382 = vmul.f32 %v880, %v1368
  %v1383 = vmul.f32 %v882, %v1368
  %v1384 = vmul.f32 %v921, %v1368
  %v1385 = vmul.f32 %v923, %v1368
  %v1386 = vmul.f32 %v962, %v1368
  %v1387 = vmul.f32 %v964, %v1368
  %v1388 = vmul.f32 %v1003, %v1368
  %v1389 = vmul.f32 %v1005, %v1368
  %v1390 = vmul.f32 %v1044, %v1368
  %v1391 = vmul.f32 %v1046, %v1368
  %v1392 = vmul.f32 %v1085, %v1368
  %v1393 = vmul.f32 %v1087, %v1368
  %v1394 = vmul.f32 %v1126, %v1368
  %v1395 = vmul.f32 %v1128, %v1368
  %v1396 = vmul.f32 %v1167, %v1368
  %v1397 = vmul.f32 %v1169, %v1368
  %v1398 = vmul.f32 %v1208, %v1368
  %v1399 = vmul.f32 %v1210, %v1368
  %v1400 = vmul.f32 %v1249, %v1368
  %v1401 = vmul.f32 %v1251, %v1368
  %1403 = vset.pattern.permute.xlu0 0
  %1404 = vperm.xlu0 %1403, %v1364
  %v1405 = vpop.permute.xlu0 %1404
  %v1407 = vadd.f32 %v1370, %v1405
  %v1408 = vadd.f32 %v1371, %v1405
  %v1409 = vadd.f32 %v1372, %v1405
  %v1410 = vadd.f32 %v1373, %v1405
  %v1411 = vadd.f32 %v1374, %v1405
  %v1412 = vadd.f32 %v1375, %v1405
  %v1413 = vadd.f32 %v1376, %v1405
  %v1414 = vadd.f32 %v1377, %v1405
  %v1415 = vadd.f32 %v1378, %v1405
  %v1416 = vadd.f32 %v1379, %v1405
  %v1417 = vadd.f32 %v1380, %v1405
  %v1418 = vadd.f32 %v1381, %v1405
  %v1419 = vadd.f32 %v1382, %v1405
  %v1420 = vadd.f32 %v1383, %v1405
  %v1421 = vadd.f32 %v1384, %v1405
  %v1422 = vadd.f32 %v1385, %v1405
  %v1423 = vadd.f32 %v1386, %v1405
  %v1424 = vadd.f32 %v1387, %v1405
  %v1425 = vadd.f32 %v1388, %v1405
  %v1426 = vadd.f32 %v1389, %v1405
  %v1427 = vadd.f32 %v1390, %v1405
  %v1428 = vadd.f32 %v1391, %v1405
  %v1429 = vadd.f32 %v1392, %v1405
  %v1430 = vadd.f32 %v1393, %v1405
  %v1431 = vadd.f32 %v1394, %v1405
  %v1432 = vadd.f32 %v1395, %v1405
  %v1433 = vadd.f32 %v1396, %v1405
  %v1434 = vadd.f32 %v1397, %v1405
  %v1435 = vadd.f32 %v1398, %v1405
  %v1436 = vadd.f32 %v1399, %v1405
  %v1437 = vadd.f32 %v1400, %v1405
  %v1438 = vadd.f32 %v1401, %v1405
  %vm1439 = vcmp.ge.f32.partialorder %v1407, 0.0
  %vm1440 = vcmp.ge.f32.partialorder %v1408, 0.0
  %vm1441 = vcmp.ge.f32.partialorder %v1409, 0.0
  %vm1442 = vcmp.ge.f32.partialorder %v1410, 0.0
  %vm1443 = vcmp.ge.f32.partialorder %v1411, 0.0
  %vm1444 = vcmp.ge.f32.partialorder %v1412, 0.0
  %vm1445 = vcmp.ge.f32.partialorder %v1413, 0.0
  %vm1446 = vcmp.ge.f32.partialorder %v1414, 0.0
  %vm1447 = vcmp.ge.f32.partialorder %v1415, 0.0
  %vm1448 = vcmp.ge.f32.partialorder %v1416, 0.0
  %vm1449 = vcmp.ge.f32.partialorder %v1417, 0.0
  %vm1450 = vcmp.ge.f32.partialorder %v1418, 0.0
  %vm1451 = vcmp.ge.f32.partialorder %v1419, 0.0
  %vm1452 = vcmp.ge.f32.partialorder %v1420, 0.0
  %vm1453 = vcmp.ge.f32.partialorder %v1421, 0.0
  %vm1454 = vcmp.ge.f32.partialorder %v1422, 0.0
  %vm1455 = vcmp.ge.f32.partialorder %v1423, 0.0
  %vm1456 = vcmp.ge.f32.partialorder %v1424, 0.0
  %vm1457 = vcmp.ge.f32.partialorder %v1425, 0.0
  %vm1458 = vcmp.ge.f32.partialorder %v1426, 0.0
  %vm1459 = vcmp.ge.f32.partialorder %v1427, 0.0
  %vm1460 = vcmp.ge.f32.partialorder %v1428, 0.0
  %vm1461 = vcmp.ge.f32.partialorder %v1429, 0.0
  %vm1462 = vcmp.ge.f32.partialorder %v1430, 0.0
  %vm1463 = vcmp.ge.f32.partialorder %v1431, 0.0
  %vm1464 = vcmp.ge.f32.partialorder %v1432, 0.0
  %vm1465 = vcmp.ge.f32.partialorder %v1433, 0.0
  %vm1466 = vcmp.ge.f32.partialorder %v1434, 0.0
  %vm1467 = vcmp.ge.f32.partialorder %v1435, 0.0
  %vm1468 = vcmp.ge.f32.partialorder %v1436, 0.0
  %vm1469 = vcmp.ge.f32.partialorder %v1437, 0.0
  %vm1470 = vcmp.ge.f32.partialorder %v1438, 0.0
  %v1471 = vmul.f32 %v1407, 0.2
  %v1472 = vmul.f32 %v1408, 0.2
  %v1473 = vmul.f32 %v1409, 0.2
  %v1474 = vmul.f32 %v1410, 0.2
  %v1475 = vmul.f32 %v1411, 0.2
  %v1476 = vmul.f32 %v1412, 0.2
  %v1477 = vmul.f32 %v1413, 0.2
  %v1478 = vmul.f32 %v1414, 0.2
  %v1479 = vmul.f32 %v1415, 0.2
  %v1480 = vmul.f32 %v1416, 0.2
  %v1481 = vmul.f32 %v1417, 0.2
  %v1482 = vmul.f32 %v1418, 0.2
  %v1483 = vmul.f32 %v1419, 0.2
  %v1484 = vmul.f32 %v1420, 0.2
  %v1485 = vmul.f32 %v1421, 0.2
  %v1486 = vmul.f32 %v1422, 0.2
  %v1487 = vmul.f32 %v1423, 0.2
  %v1488 = vmul.f32 %v1424, 0.2
  %v1489 = vmul.f32 %v1425, 0.2
  %v1490 = vmul.f32 %v1426, 0.2
  %v1491 = vmul.f32 %v1427, 0.2
  %v1492 = vmul.f32 %v1428, 0.2
  %v1493 = vmul.f32 %v1429, 0.2
  %v1494 = vmul.f32 %v1430, 0.2
  %v1495 = vmul.f32 %v1431, 0.2
  %v1496 = vmul.f32 %v1432, 0.2
  %v1497 = vmul.f32 %v1433, 0.2
  %v1498 = vmul.f32 %v1434, 0.2
  %v1499 = vmul.f32 %v1435, 0.2
  %v1500 = vmul.f32 %v1436, 0.2
  %v1501 = vmul.f32 %v1437, 0.2
  %v1502 = vmul.f32 %v1438, 0.2
  %v1503 = vsel %vm1439, %v1407, %v1471
  %v1504 = vsel %vm1440, %v1408, %v1472
  %v1505 = vsel %vm1441, %v1409, %v1473
  %v1506 = vsel %vm1442, %v1410, %v1474
  %v1507 = vsel %vm1443, %v1411, %v1475
  %v1508 = vsel %vm1444, %v1412, %v1476
  %v1509 = vsel %vm1445, %v1413, %v1477
  %v1510 = vsel %vm1446, %v1414, %v1478
  %v1511 = vsel %vm1447, %v1415, %v1479
  %v1512 = vsel %vm1448, %v1416, %v1480
  %v1513 = vsel %vm1449, %v1417, %v1481
  %v1514 = vsel %vm1450, %v1418, %v1482
  %v1515 = vsel %vm1451, %v1419, %v1483
  %v1516 = vsel %vm1452, %v1420, %v1484
  %v1517 = vsel %vm1453, %v1421, %v1485
  %v1518 = vsel %vm1454, %v1422, %v1486
  %v1519 = vsel %vm1455, %v1423, %v1487
  %v1520 = vsel %vm1456, %v1424, %v1488
  %v1521 = vsel %vm1457, %v1425, %v1489
  %v1522 = vsel %vm1458, %v1426, %v1490
  %v1523 = vsel %vm1459, %v1427, %v1491
  %v1524 = vsel %vm1460, %v1428, %v1492
  %v1525 = vsel %vm1461, %v1429, %v1493
  %v1526 = vsel %vm1462, %v1430, %v1494
  %v1527 = vsel %vm1463, %v1431, %v1495
  %v1528 = vsel %vm1464, %v1432, %v1496
  %v1529 = vsel %vm1465, %v1433, %v1497
  %v1530 = vsel %vm1466, %v1434, %v1498
  %v1531 = vsel %vm1467, %v1435, %v1499
  %v1532 = vsel %vm1468, %v1436, %v1500
  %v1533 = vsel %vm1469, %v1437, %v1501
  %v1534 = vsel %vm1470, %v1438, %v1502
  %1535 = vst [vmem:[%s4] sm:$0xff] %v1503
  %1536 = vst [vmem:[%s4 + $0x8] sm:$0xff] %v1504
  %1537 = vst [vmem:[%s4 + $0x10] sm:$0xff] %v1505
  %1538 = vst [vmem:[%s4 + $0x18] sm:$0xff] %v1506
  %1539 = vst [vmem:[%s4 + $0x20] sm:$0xff] %v1507
  %1540 = vst [vmem:[%s4 + $0x28] sm:$0xff] %v1508
  %1541 = vst [vmem:[%s4 + $0x30] sm:$0xff] %v1509
  %1542 = vst [vmem:[%s4 + $0x38] sm:$0xff] %v1510
  %1543 = vst [vmem:[%s4 + $0x40] sm:$0xff] %v1511
  %1544 = vst [vmem:[%s4 + $0x48] sm:$0xff] %v1512
  %1545 = vst [vmem:[%s4 + $0x50] sm:$0xff] %v1513
  %1546 = vst [vmem:[%s4 + $0x58] sm:$0xff] %v1514
  %1547 = vst [vmem:[%s4 + $0x60] sm:$0xff] %v1515
  %1548 = vst [vmem:[%s4 + $0x68] sm:$0xff] %v1516
  %1549 = vst [vmem:[%s4 + $0x70] sm:$0xff] %v1517
  %1550 = vst [vmem:[%s4 + $0x78] sm:$0xff] %v1518
  %1551 = vst [vmem:[%s4 + $0x80] sm:$0xff] %v1519
  %1552 = vst [vmem:[%s4 + $0x88] sm:$0xff] %v1520
  %1553 = vst [vmem:[%s4 + $0x90] sm:$0xff] %v1521
  %1554 = vst [vmem:[%s4 + $0x98] sm:$0xff] %v1522
  %1555 = vst [vmem:[%s4 + $0xa0] sm:$0xff] %v1523
  %1556 = vst [vmem:[%s4 + $0xa8] sm:$0xff] %v1524
  %1557 = vst [vmem:[%s4 + $0xb0] sm:$0xff] %v1525
  %1558 = vst [vmem:[%s4 + $0xb8] sm:$0xff] %v1526
  %1559 = vst [vmem:[%s4 + $0xc0] sm:$0xff] %v1527
  %1560 = vst [vmem:[%s4 + $0xc8] sm:$0xff] %v1528
  %1561 = vst [vmem:[%s4 + $0xd0] sm:$0xff] %v1529
  %1562 = vst [vmem:[%s4 + $0xd8] sm:$0xff] %v1530
  %1563 = vst [vmem:[%s4 + $0xe0] sm:$0xff] %v1531
  %1564 = vst [vmem:[%s4 + $0xe8] sm:$0xff] %v1532
  %1565 = vst [vmem:[%s4 + $0xf0] sm:$0xff] %v1533
  %1566 = vst [vmem:[%s4 + $0xf8] sm:$0xff] %v1534
  // Predicated region
  $region18: #{cycle_generator_forward.10} parent=0 // pred_check
    _
  $region19: #{cycle_generator_forward.10} parent=0 // pred_check_branch
    %1568 = sbr.rel (0) target = $region21
  $region20: #{cycle_generator_forward.10} parent=0 // pred_region
    _
  $region21: #{cycle_generator_forward.10} parent=0 // pred_fallthru
    _
  // Predicated region
  $region22: #{cycle_generator_forward.10} parent=0 // pred_check
    _
  $region23: #{cycle_generator_forward.10} parent=0 // pred_check_branch
    %1570 = sbr.rel (0) target = $region25
  $region24: #{cycle_generator_forward.10} parent=0 // pred_region
    _
  $region25: #{cycle_generator_forward.10} parent=0 // pred_fallthru
    _

// kernel: cycle_generator_forward.11
$region0: #{cycle_generator_forward.11}
  #allocation0 [shape = 'u32[]', space=smem, size = 0x4, offset = 0x4, fixed_abs, tag = 'smem constant byte address 0x4 - core index']
  #allocation1 [shape = 'u32[144,128]{1,0:T(1,128)}', space=vmem, size = 0x12000, scoped, tag = 'internal scratch']
  %s0 = inlined_call_operand.vmem [shape: bf16[16,128], index: 0, kind: input, shape index: {}]
  %s1 = inlined_call_operand.vmem [shape: bf16[128,1024], index: 1, kind: input, shape index: {}]
  %s2 = inlined_call_operand.vmem [shape: f32[16,1], index: 2, kind: input, shape index: {}]
  %s3 = inlined_call_operand.vmem [shape: f32[16,1], index: 3, kind: input, shape index: {}]
  %s4 = inlined_call_operand.vmem [shape: f32[16,1024], index: 4, kind: output, shape index: {}]
  %s5 = sld [smem:[#allocation0]]
  $region26: #{cycle_generator_forward.11} parent=0
    _
  %s7 = ssub.s32 1, %s5
  %s8 = scalar_select 0, %s7, %s5
  // Predicated region
  $region2: #{cycle_generator_forward.11} parent=0 // pred_check
    _
  $region3: #{cycle_generator_forward.11} parent=0 // pred_check_branch
    %10 = sbr.rel (0) target = $region5
  $region4: #{cycle_generator_forward.11} parent=0 // pred_region
    _
  $region5: #{cycle_generator_forward.11} parent=0 // pred_fallthru
    _
  // Predicated region
  $region6: #{cycle_generator_forward.11} parent=0 // pred_check
    _
  $region7: #{cycle_generator_forward.11} parent=0 // pred_check_branch
    %12 = sbr.rel (0) target = $region9
  $region8: #{cycle_generator_forward.11} parent=0 // pred_region
    _
  $region9: #{cycle_generator_forward.11} parent=0 // pred_fallthru
    _
  // Predicated region
  $region10: #{cycle_generator_forward.11} parent=0 // pred_check
    _
  $region11: #{cycle_generator_forward.11} parent=0 // pred_check_branch
    %14 = sbr.rel (0) target = $region13
  $region12: #{cycle_generator_forward.11} parent=0 // pred_region
    _
  $region13: #{cycle_generator_forward.11} parent=0 // pred_fallthru
    _
  // Predicated region
  $region14: #{cycle_generator_forward.11} parent=0 // pred_check
    _
  $region15: #{cycle_generator_forward.11} parent=0 // pred_check_branch
    %16 = sbr.rel (0) target = $region17
  $region16: #{cycle_generator_forward.11} parent=0 // pred_region
    _
  $region17: #{cycle_generator_forward.11} parent=0 // pred_fallthru
    _
  %v18 = vld [vmem:[%s0] sm:$0xf]
  %v19 = vld [vmem:[%s0 + $0x4] sm:$0xf]
  %v20 = vld [vmem:[%s1] sm:$0xff]
  %v21 = vld [vmem:[%s1 + $0x8] sm:$0xff]
  %v22 = vld [vmem:[%s1 + $0x10] sm:$0xff]
  %v23 = vld [vmem:[%s1 + $0x18] sm:$0xff]
  %v24 = vld [vmem:[%s1 + $0x20] sm:$0xff]
  %v25 = vld [vmem:[%s1 + $0x28] sm:$0xff]
  %v26 = vld [vmem:[%s1 + $0x30] sm:$0xff]
  %v27 = vld [vmem:[%s1 + $0x38] sm:$0xff]
  %v28 = vld [vmem:[%s1 + $0x40] sm:$0xff]
  %v29 = vld [vmem:[%s1 + $0x48] sm:$0xff]
  %v30 = vld [vmem:[%s1 + $0x50] sm:$0xff]
  %v31 = vld [vmem:[%s1 + $0x58] sm:$0xff]
  %v32 = vld [vmem:[%s1 + $0x60] sm:$0xff]
  %v33 = vld [vmem:[%s1 + $0x68] sm:$0xff]
  %v34 = vld [vmem:[%s1 + $0x70] sm:$0xff]
  %v35 = vld [vmem:[%s1 + $0x78] sm:$0xff]
  %v36 = vld [vmem:[%s1 + $0x80] sm:$0xff]
  %v37 = vld [vmem:[%s1 + $0x88] sm:$0xff]
  %v38 = vld [vmem:[%s1 + $0x90] sm:$0xff]
  %v39 = vld [vmem:[%s1 + $0x98] sm:$0xff]
  %v40 = vld [vmem:[%s1 + $0xa0] sm:$0xff]
  %v41 = vld [vmem:[%s1 + $0xa8] sm:$0xff]
  %v42 = vld [vmem:[%s1 + $0xb0] sm:$0xff]
  %v43 = vld [vmem:[%s1 + $0xb8] sm:$0xff]
  %v44 = vld [vmem:[%s1 + $0xc0] sm:$0xff]
  %v45 = vld [vmem:[%s1 + $0xc8] sm:$0xff]
  %v46 = vld [vmem:[%s1 + $0xd0] sm:$0xff]
  %v47 = vld [vmem:[%s1 + $0xd8] sm:$0xff]
  %v48 = vld [vmem:[%s1 + $0xe0] sm:$0xff]
  %v49 = vld [vmem:[%s1 + $0xe8] sm:$0xff]
  %v50 = vld [vmem:[%s1 + $0xf0] sm:$0xff]
  %v51 = vld [vmem:[%s1 + $0xf8] sm:$0xff]
  %v52 = vld [vmem:[%s1 + $0x100] sm:$0xff]
  %v53 = vld [vmem:[%s1 + $0x108] sm:$0xff]
  %v54 = vld [vmem:[%s1 + $0x110] sm:$0xff]
  %v55 = vld [vmem:[%s1 + $0x118] sm:$0xff]
  %v56 = vld [vmem:[%s1 + $0x120] sm:$0xff]
  %v57 = vld [vmem:[%s1 + $0x128] sm:$0xff]
  %v58 = vld [vmem:[%s1 + $0x130] sm:$0xff]
  %v59 = vld [vmem:[%s1 + $0x138] sm:$0xff]
  %v60 = vld [vmem:[%s1 + $0x140] sm:$0xff]
  %v61 = vld [vmem:[%s1 + $0x148] sm:$0xff]
  %v62 = vld [vmem:[%s1 + $0x150] sm:$0xff]
  %v63 = vld [vmem:[%s1 + $0x158] sm:$0xff]
  %v64 = vld [vmem:[%s1 + $0x160] sm:$0xff]
  %v65 = vld [vmem:[%s1 + $0x168] sm:$0xff]
  %v66 = vld [vmem:[%s1 + $0x170] sm:$0xff]
  %v67 = vld [vmem:[%s1 + $0x178] sm:$0xff]
  %v68 = vld [vmem:[%s1 + $0x180] sm:$0xff]
  %v69 = vld [vmem:[%s1 + $0x188] sm:$0xff]
  %v70 = vld [vmem:[%s1 + $0x190] sm:$0xff]
  %v71 = vld [vmem:[%s1 + $0x198] sm:$0xff]
  %v72 = vld [vmem:[%s1 + $0x1a0] sm:$0xff]
  %v73 = vld [vmem:[%s1 + $0x1a8] sm:$0xff]
  %v74 = vld [vmem:[%s1 + $0x1b0] sm:$0xff]
  %v75 = vld [vmem:[%s1 + $0x1b8] sm:$0xff]
  %v76 = vld [vmem:[%s1 + $0x1c0] sm:$0xff]
  %v77 = vld [vmem:[%s1 + $0x1c8] sm:$0xff]
  %v78 = vld [vmem:[%s1 + $0x1d0] sm:$0xff]
  %v79 = vld [vmem:[%s1 + $0x1d8] sm:$0xff]
  %v80 = vld [vmem:[%s1 + $0x1e0] sm:$0xff]
  %v81 = vld [vmem:[%s1 + $0x1e8] sm:$0xff]
  %v82 = vld [vmem:[%s1 + $0x1f0] sm:$0xff]
  %v83 = vld [vmem:[%s1 + $0x1f8] sm:$0xff]
  %v86 = vunpack.c.l.b16 %v18
  %v87 = vunpack.c.l.b16 %v19
  %v88 = vpack.c.b16 %v87, %v86
  %v154 = vunpack.c.l.b16 %v20
  %v155 = vunpack.c.h.b16 %v20
  %v156 = vunpack.c.l.b16 %v21
  %v157 = vunpack.c.h.b16 %v21
  %v158 = vunpack.c.l.b16 %v22
  %v159 = vunpack.c.h.b16 %v22
  %v160 = vunpack.c.l.b16 %v23
  %v161 = vunpack.c.h.b16 %v23
  %v162 = vunpack.c.l.b16 %v24
  %v163 = vunpack.c.h.b16 %v24
  %v164 = vunpack.c.l.b16 %v25
  %v165 = vunpack.c.h.b16 %v25
  %v166 = vunpack.c.l.b16 %v26
  %v167 = vunpack.c.h.b16 %v26
  %v168 = vunpack.c.l.b16 %v27
  %v169 = vunpack.c.h.b16 %v27
  %v170 = vunpack.c.l.b16 %v28
  %v171 = vunpack.c.h.b16 %v28
  %v172 = vunpack.c.l.b16 %v29
  %v173 = vunpack.c.h.b16 %v29
  %v174 = vunpack.c.l.b16 %v30
  %v175 = vunpack.c.h.b16 %v30
  %v176 = vunpack.c.l.b16 %v31
  %v177 = vunpack.c.h.b16 %v31
  %v178 = vunpack.c.l.b16 %v32
  %v179 = vunpack.c.h.b16 %v32
  %v180 = vunpack.c.l.b16 %v33
  %v181 = vunpack.c.h.b16 %v33
  %v182 = vunpack.c.l.b16 %v34
  %v183 = vunpack.c.h.b16 %v34
  %v184 = vunpack.c.l.b16 %v35
  %v185 = vunpack.c.h.b16 %v35
  %v186 = vunpack.c.l.b16 %v36
  %v187 = vunpack.c.h.b16 %v36
  %v188 = vunpack.c.l.b16 %v37
  %v189 = vunpack.c.h.b16 %v37
  %v190 = vunpack.c.l.b16 %v38
  %v191 = vunpack.c.h.b16 %v38
  %v192 = vunpack.c.l.b16 %v39
  %v193 = vunpack.c.h.b16 %v39
  %v194 = vunpack.c.l.b16 %v40
  %v195 = vunpack.c.h.b16 %v40
  %v196 = vunpack.c.l.b16 %v41
  %v197 = vunpack.c.h.b16 %v41
  %v198 = vunpack.c.l.b16 %v42
  %v199 = vunpack.c.h.b16 %v42
  %v200 = vunpack.c.l.b16 %v43
  %v201 = vunpack.c.h.b16 %v43
  %v202 = vunpack.c.l.b16 %v44
  %v203 = vunpack.c.h.b16 %v44
  %v204 = vunpack.c.l.b16 %v45
  %v205 = vunpack.c.h.b16 %v45
  %v206 = vunpack.c.l.b16 %v46
  %v207 = vunpack.c.h.b16 %v46
  %v208 = vunpack.c.l.b16 %v47
  %v209 = vunpack.c.h.b16 %v47
  %v210 = vunpack.c.l.b16 %v48
  %v211 = vunpack.c.h.b16 %v48
  %v212 = vunpack.c.l.b16 %v49
  %v213 = vunpack.c.h.b16 %v49
  %v214 = vunpack.c.l.b16 %v50
  %v215 = vunpack.c.h.b16 %v50
  %v216 = vunpack.c.l.b16 %v51
  %v217 = vunpack.c.h.b16 %v51
  %v218 = vunpack.c.l.b16 %v52
  %v219 = vunpack.c.h.b16 %v52
  %v220 = vunpack.c.l.b16 %v53
  %v221 = vunpack.c.h.b16 %v53
  %v222 = vunpack.c.l.b16 %v54
  %v223 = vunpack.c.h.b16 %v54
  %v224 = vunpack.c.l.b16 %v55
  %v225 = vunpack.c.h.b16 %v55
  %v226 = vunpack.c.l.b16 %v56
  %v227 = vunpack.c.h.b16 %v56
  %v228 = vunpack.c.l.b16 %v57
  %v229 = vunpack.c.h.b16 %v57
  %v230 = vunpack.c.l.b16 %v58
  %v231 = vunpack.c.h.b16 %v58
  %v232 = vunpack.c.l.b16 %v59
  %v233 = vunpack.c.h.b16 %v59
  %v234 = vunpack.c.l.b16 %v60
  %v235 = vunpack.c.h.b16 %v60
  %v236 = vunpack.c.l.b16 %v61
  %v237 = vunpack.c.h.b16 %v61
  %v238 = vunpack.c.l.b16 %v62
  %v239 = vunpack.c.h.b16 %v62
  %v240 = vunpack.c.l.b16 %v63
  %v241 = vunpack.c.h.b16 %v63
  %v242 = vunpack.c.l.b16 %v64
  %v243 = vunpack.c.h.b16 %v64
  %v244 = vunpack.c.l.b16 %v65
  %v245 = vunpack.c.h.b16 %v65
  %v246 = vunpack.c.l.b16 %v66
  %v247 = vunpack.c.h.b16 %v66
  %v248 = vunpack.c.l.b16 %v67
  %v249 = vunpack.c.h.b16 %v67
  %v250 = vunpack.c.l.b16 %v68
  %v251 = vunpack.c.h.b16 %v68
  %v252 = vunpack.c.l.b16 %v69
  %v253 = vunpack.c.h.b16 %v69
  %v254 = vunpack.c.l.b16 %v70
  %v255 = vunpack.c.h.b16 %v70
  %v256 = vunpack.c.l.b16 %v71
  %v257 = vunpack.c.h.b16 %v71
  %v258 = vunpack.c.l.b16 %v72
  %v259 = vunpack.c.h.b16 %v72
  %v260 = vunpack.c.l.b16 %v73
  %v261 = vunpack.c.h.b16 %v73
  %v262 = vunpack.c.l.b16 %v74
  %v263 = vunpack.c.h.b16 %v74
  %v264 = vunpack.c.l.b16 %v75
  %v265 = vunpack.c.h.b16 %v75
  %v266 = vunpack.c.l.b16 %v76
  %v267 = vunpack.c.h.b16 %v76
  %v268 = vunpack.c.l.b16 %v77
  %v269 = vunpack.c.h.b16 %v77
  %v270 = vunpack.c.l.b16 %v78
  %v271 = vunpack.c.h.b16 %v78
  %v272 = vunpack.c.l.b16 %v79
  %v273 = vunpack.c.h.b16 %v79
  %v274 = vunpack.c.l.b16 %v80
  %v275 = vunpack.c.h.b16 %v80
  %v276 = vunpack.c.l.b16 %v81
  %v277 = vunpack.c.h.b16 %v81
  %v278 = vunpack.c.l.b16 %v82
  %v279 = vunpack.c.h.b16 %v82
  %v280 = vunpack.c.l.b16 %v83
  %v281 = vunpack.c.h.b16 %v83
  %v282 = vpack.c.b16 %v162, %v154
  %v283 = vpack.c.b16 %v163, %v155
  %v284 = vpack.c.b16 %v164, %v156
  %v285 = vpack.c.b16 %v165, %v157
  %v286 = vpack.c.b16 %v166, %v158
  %v287 = vpack.c.b16 %v167, %v159
  %v288 = vpack.c.b16 %v168, %v160
  %v289 = vpack.c.b16 %v169, %v161
  %v290 = vpack.c.b16 %v178, %v170
  %v291 = vpack.c.b16 %v179, %v171
  %v292 = vpack.c.b16 %v180, %v172
  %v293 = vpack.c.b16 %v181, %v173
  %v294 = vpack.c.b16 %v182, %v174
  %v295 = vpack.c.b16 %v183, %v175
  %v296 = vpack.c.b16 %v184, %v176
  %v297 = vpack.c.b16 %v185, %v177
  %v298 = vpack.c.b16 %v194, %v186
  %v299 = vpack.c.b16 %v195, %v187
  %v300 = vpack.c.b16 %v196, %v188
  %v301 = vpack.c.b16 %v197, %v189
  %v302 = vpack.c.b16 %v198, %v190
  %v303 = vpack.c.b16 %v199, %v191
  %v304 = vpack.c.b16 %v200, %v192
  %v305 = vpack.c.b16 %v201, %v193
  %v306 = vpack.c.b16 %v210, %v202
  %v307 = vpack.c.b16 %v211, %v203
  %v308 = vpack.c.b16 %v212, %v204
  %v309 = vpack.c.b16 %v213, %v205
  %v310 = vpack.c.b16 %v214, %v206
  %v311 = vpack.c.b16 %v215, %v207
  %v312 = vpack.c.b16 %v216, %v208
  %v313 = vpack.c.b16 %v217, %v209
  %v314 = vpack.c.b16 %v226, %v218
  %v315 = vpack.c.b16 %v227, %v219
  %v316 = vpack.c.b16 %v228, %v220
  %v317 = vpack.c.b16 %v229, %v221
  %v318 = vpack.c.b16 %v230, %v222
  %v319 = vpack.c.b16 %v231, %v223
  %v320 = vpack.c.b16 %v232, %v224
  %v321 = vpack.c.b16 %v233, %v225
  %v322 = vpack.c.b16 %v242, %v234
  %v323 = vpack.c.b16 %v243, %v235
  %v324 = vpack.c.b16 %v244, %v236
  %v325 = vpack.c.b16 %v245, %v237
  %v326 = vpack.c.b16 %v246, %v238
  %v327 = vpack.c.b16 %v247, %v239
  %v328 = vpack.c.b16 %v248, %v240
  %v329 = vpack.c.b16 %v249, %v241
  %v330 = vpack.c.b16 %v258, %v250
  %v331 = vpack.c.b16 %v259, %v251
  %v332 = vpack.c.b16 %v260, %v252
  %v333 = vpack.c.b16 %v261, %v253
  %v334 = vpack.c.b16 %v262, %v254
  %v335 = vpack.c.b16 %v263, %v255
  %v336 = vpack.c.b16 %v264, %v256
  %v337 = vpack.c.b16 %v265, %v257
  %v338 = vpack.c.b16 %v274, %v266
  %v339 = vpack.c.b16 %v275, %v267
  %v340 = vpack.c.b16 %v276, %v268
  %v341 = vpack.c.b16 %v277, %v269
  %v342 = vpack.c.b16 %v278, %v270
  %v343 = vpack.c.b16 %v279, %v271
  %v344 = vpack.c.b16 %v280, %v272
  %v345 = vpack.c.b16 %v281, %v273
  %410 = vmatprep.subr.bf16.mxu0 %v283
  %411 = vmatpush1.bf16.msra.mxu0 %v282
  %412 = vmatprep.subr.bf16.mxu0 %v291
  %413 = vmatpush1.bf16.msra.mxu0 %v290
  %414 = vmatprep.subr.bf16.mxu0 %v299
  %415 = vmatpush1.bf16.msra.mxu0 %v298
  %416 = vmatprep.subr.bf16.mxu0 %v307
  %417 = vmatpush1.bf16.msra.mxu0 %v306
  %418 = vmatprep.subr.bf16.mxu0 %v315
  %419 = vmatpush1.bf16.msra.mxu0 %v314
  %420 = vmatprep.subr.bf16.mxu0 %v323
  %421 = vmatpush1.bf16.msra.mxu0 %v322
  %422 = vmatprep.subr.bf16.mxu0 %v331
  %423 = vmatpush1.bf16.msra.mxu0 %v330
  %424 = vmatprep.subr.bf16.mxu0 %v339
  %425 = vmatpush1.bf16.msra.mxu0 %v338
  %426 = vmatprep.subr.bf16.mxu0 0
  %427 = vmatpush1.bf16.msra.mxu0 0
  %428 = vmatprep.subr.bf16.mxu0 0
  %429 = vmatpush1.bf16.msra.mxu0 0
  %430 = vmatprep.subr.bf16.mxu0 0
  %431 = vmatpush1.bf16.msra.mxu0 0
  %432 = vmatprep.subr.bf16.mxu0 0
  %433 = vmatpush1.bf16.msra.mxu0 0
  %434 = vmatprep.subr.bf16.mxu0 0
  %435 = vmatpush1.bf16.msra.mxu0 0
  %436 = vmatprep.subr.bf16.mxu0 0
  %437 = vmatpush1.bf16.msra.mxu0 0
  %438 = vmatprep.subr.bf16.mxu0 0
  %439 = vmatpush1.bf16.msra.mxu0 0
  %440 = vmatprep.subr.bf16.mxu0 0
  %441 = vmatpush1.bf16.msra.mxu0 0
  %442 = vmatprep.mubr.bf16.mxu0 0
  %443 = vmatmul.mubr.bf16.gmra.mrb[0].mxu0 %v88
  %v444 = vpop.f32.mrb[0].mxu0
  %v445 = vadd.f32 0.0, %v444
  %v446 = vpop.f32.mrb[0].mxu0
  %v447 = vadd.f32 0.0, %v446
  %v448 = vpop.f32.mrb[0].mxu0
  %v449 = vadd.f32 0.0, %v448
  %v450 = vpop.f32.mrb[0].mxu0
  %v451 = vadd.f32 0.0, %v450
  %452 = vdwg.mxu0
  %453 = vmatprep.subr.bf16.mxu0 %v285
  %454 = vmatpush1.bf16.msra.mxu0 %v284
  %455 = vmatprep.subr.bf16.mxu0 %v293
  %456 = vmatpush1.bf16.msra.mxu0 %v292
  %457 = vmatprep.subr.bf16.mxu0 %v301
  %458 = vmatpush1.bf16.msra.mxu0 %v300
  %459 = vmatprep.subr.bf16.mxu0 %v309
  %460 = vmatpush1.bf16.msra.mxu0 %v308
  %461 = vmatprep.subr.bf16.mxu0 %v317
  %462 = vmatpush1.bf16.msra.mxu0 %v316
  %463 = vmatprep.subr.bf16.mxu0 %v325
  %464 = vmatpush1.bf16.msra.mxu0 %v324
  %465 = vmatprep.subr.bf16.mxu0 %v333
  %466 = vmatpush1.bf16.msra.mxu0 %v332
  %467 = vmatprep.subr.bf16.mxu0 %v341
  %468 = vmatpush1.bf16.msra.mxu0 %v340
  %469 = vmatprep.subr.bf16.mxu0 0
  %470 = vmatpush1.bf16.msra.mxu0 0
  %471 = vmatprep.subr.bf16.mxu0 0
  %472 = vmatpush1.bf16.msra.mxu0 0
  %473 = vmatprep.subr.bf16.mxu0 0
  %474 = vmatpush1.bf16.msra.mxu0 0
  %475 = vmatprep.subr.bf16.mxu0 0
  %476 = vmatpush1.bf16.msra.mxu0 0
  %477 = vmatprep.subr.bf16.mxu0 0
  %478 = vmatpush1.bf16.msra.mxu0 0
  %479 = vmatprep.subr.bf16.mxu0 0
  %480 = vmatpush1.bf16.msra.mxu0 0
  %481 = vmatprep.subr.bf16.mxu0 0
  %482 = vmatpush1.bf16.msra.mxu0 0
  %483 = vmatprep.subr.bf16.mxu0 0
  %484 = vmatpush1.bf16.msra.mxu0 0
  %485 = vmatprep.mubr.bf16.mxu0 0
  %486 = vmatmul.mubr.bf16.gmra.mrb[0].mxu0 %v88
  %v487 = vpop.f32.mrb[0].mxu0
  %v488 = vadd.f32 0.0, %v487
  %v489 = vpop.f32.mrb[0].mxu0
  %v490 = vadd.f32 0.0, %v489
  %v491 = vpop.f32.mrb[0].mxu0
  %v492 = vadd.f32 0.0, %v491
  %v493 = vpop.f32.mrb[0].mxu0
  %v494 = vadd.f32 0.0, %v493
  %495 = vdwg.mxu0
  %496 = vmatprep.subr.bf16.mxu0 %v287
  %497 = vmatpush1.bf16.msra.mxu0 %v286
  %498 = vmatprep.subr.bf16.mxu0 %v295
  %499 = vmatpush1.bf16.msra.mxu0 %v294
  %500 = vmatprep.subr.bf16.mxu0 %v303
  %501 = vmatpush1.bf16.msra.mxu0 %v302
  %502 = vmatprep.subr.bf16.mxu0 %v311
  %503 = vmatpush1.bf16.msra.mxu0 %v310
  %504 = vmatprep.subr.bf16.mxu0 %v319
  %505 = vmatpush1.bf16.msra.mxu0 %v318
  %506 = vmatprep.subr.bf16.mxu0 %v327
  %507 = vmatpush1.bf16.msra.mxu0 %v326
  %508 = vmatprep.subr.bf16.mxu0 %v335
  %509 = vmatpush1.bf16.msra.mxu0 %v334
  %510 = vmatprep.subr.bf16.mxu0 %v343
  %511 = vmatpush1.bf16.msra.mxu0 %v342
  %512 = vmatprep.subr.bf16.mxu0 0
  %513 = vmatpush1.bf16.msra.mxu0 0
  %514 = vmatprep.subr.bf16.mxu0 0
  %515 = vmatpush1.bf16.msra.mxu0 0
  %516 = vmatprep.subr.bf16.mxu0 0
  %517 = vmatpush1.bf16.msra.mxu0 0
  %518 = vmatprep.subr.bf16.mxu0 0
  %519 = vmatpush1.bf16.msra.mxu0 0
  %520 = vmatprep.subr.bf16.mxu0 0
  %521 = vmatpush1.bf16.msra.mxu0 0
  %522 = vmatprep.subr.bf16.mxu0 0
  %523 = vmatpush1.bf16.msra.mxu0 0
  %524 = vmatprep.subr.bf16.mxu0 0
  %525 = vmatpush1.bf16.msra.mxu0 0
  %526 = vmatprep.subr.bf16.mxu0 0
  %527 = vmatpush1.bf16.msra.mxu0 0
  %528 = vmatprep.mubr.bf16.mxu0 0
  %529 = vmatmul.mubr.bf16.gmra.mrb[0].mxu0 %v88
  %v530 = vpop.f32.mrb[0].mxu0
  %v531 = vadd.f32 0.0, %v530
  %v532 = vpop.f32.mrb[0].mxu0
  %v533 = vadd.f32 0.0, %v532
  %v534 = vpop.f32.mrb[0].mxu0
  %v535 = vadd.f32 0.0, %v534
  %v536 = vpop.f32.mrb[0].mxu0
  %v537 = vadd.f32 0.0, %v536
  %538 = vdwg.mxu0
  %539 = vmatprep.subr.bf16.mxu0 %v289
  %540 = vmatpush1.bf16.msra.mxu0 %v288
  %541 = vmatprep.subr.bf16.mxu0 %v297
  %542 = vmatpush1.bf16.msra.mxu0 %v296
  %543 = vmatprep.subr.bf16.mxu0 %v305
  %544 = vmatpush1.bf16.msra.mxu0 %v304
  %545 = vmatprep.subr.bf16.mxu0 %v313
  %546 = vmatpush1.bf16.msra.mxu0 %v312
  %547 = vmatprep.subr.bf16.mxu0 %v321
  %548 = vmatpush1.bf16.msra.mxu0 %v320
  %549 = vmatprep.subr.bf16.mxu0 %v329
  %550 = vmatpush1.bf16.msra.mxu0 %v328
  %551 = vmatprep.subr.bf16.mxu0 %v337
  %552 = vmatpush1.bf16.msra.mxu0 %v336
  %553 = vmatprep.subr.bf16.mxu0 %v345
  %554 = vmatpush1.bf16.msra.mxu0 %v344
  %555 = vmatprep.subr.bf16.mxu0 0
  %556 = vmatpush1.bf16.msra.mxu0 0
  %557 = vmatprep.subr.bf16.mxu0 0
  %558 = vmatpush1.bf16.msra.mxu0 0
  %559 = vmatprep.subr.bf16.mxu0 0
  %560 = vmatpush1.bf16.msra.mxu0 0
  %561 = vmatprep.subr.bf16.mxu0 0
  %562 = vmatpush1.bf16.msra.mxu0 0
  %563 = vmatprep.subr.bf16.mxu0 0
  %564 = vmatpush1.bf16.msra.mxu0 0
  %565 = vmatprep.subr.bf16.mxu0 0
  %566 = vmatpush1.bf16.msra.mxu0 0
  %567 = vmatprep.subr.bf16.mxu0 0
  %568 = vmatpush1.bf16.msra.mxu0 0
  %569 = vmatprep.subr.bf16.mxu0 0
  %570 = vmatpush1.bf16.msra.mxu0 0
  %571 = vmatprep.mubr.bf16.mxu0 0
  %572 = vmatmul.mubr.bf16.gmra.mrb[0].mxu0 %v88
  %v573 = vpop.f32.mrb[0].mxu0
  %v574 = vadd.f32 0.0, %v573
  %v575 = vpop.f32.mrb[0].mxu0
  %v576 = vadd.f32 0.0, %v575
  %v577 = vpop.f32.mrb[0].mxu0
  %v578 = vadd.f32 0.0, %v577
  %v579 = vpop.f32.mrb[0].mxu0
  %v580 = vadd.f32 0.0, %v579
  %581 = vdwg.mxu0
  %v582 = vadd.f32 %v445, %v447
  %v583 = vadd.f32 %v582, %v488
  %v584 = vadd.f32 %v583, %v490
  %v585 = vadd.f32 %v584, %v531
  %v586 = vadd.f32 %v585, %v533
  %v587 = vadd.f32 %v586, %v574
  %v588 = vadd.f32 %v587, %v576
  %589 = vadd.xlane.f32.xlu0 %v588
  %v590 = vpop.xlane.xlu0 %589
  %v591 = vadd.f32 %v449, %v451
  %v592 = vadd.f32 %v591, %v492
  %v593 = vadd.f32 %v592, %v494
  %v594 = vadd.f32 %v593, %v535
  %v595 = vadd.f32 %v594, %v537
  %v596 = vadd.f32 %v595, %v578
  %v597 = vadd.f32 %v596, %v580
  %598 = vadd.xlane.f32.xlu0 %v597
  %v599 = vpop.xlane.xlu0 %598
  %v600 = vmul.f32 %v445, %v445
  %v601 = vmul.f32 %v447, %v447
  %v602 = vmul.f32 %v488, %v488
  %v603 = vmul.f32 %v490, %v490
  %v604 = vmul.f32 %v531, %v531
  %v605 = vmul.f32 %v533, %v533
  %v606 = vmul.f32 %v574, %v574
  %v607 = vmul.f32 %v576, %v576
  %v608 = vmul.f32 %v449, %v449
  %v609 = vmul.f32 %v451, %v451
  %v610 = vmul.f32 %v492, %v492
  %v611 = vmul.f32 %v494, %v494
  %v612 = vmul.f32 %v535, %v535
  %v613 = vmul.f32 %v537, %v537
  %v614 = vmul.f32 %v578, %v578
  %v615 = vmul.f32 %v580, %v580
  %v616 = vadd.f32 %v600, %v601
  %v617 = vadd.f32 %v616, %v602
  %v618 = vadd.f32 %v617, %v603
  %v619 = vadd.f32 %v618, %v604
  %v620 = vadd.f32 %v619, %v605
  %v621 = vadd.f32 %v620, %v606
  %v622 = vadd.f32 %v621, %v607
  %623 = vadd.xlane.f32.xlu0 %v622
  %v624 = vpop.xlane.xlu0 %623
  %v625 = vadd.f32 %v608, %v609
  %v626 = vadd.f32 %v625, %v610
  %v627 = vadd.f32 %v626, %v611
  %v628 = vadd.f32 %v627, %v612
  %v629 = vadd.f32 %v628, %v613
  %v630 = vadd.f32 %v629, %v614
  %v631 = vadd.f32 %v630, %v615
  %632 = vadd.xlane.f32.xlu0 %v631
  %v633 = vpop.xlane.xlu0 %632
  %v634 = vld [vmem:[%s2] sm:$0xff]
  %v635 = vld [vmem:[%s2 + $0x8] sm:$0xff]
  %v636 = vld [vmem:[%s3] sm:$0xff]
  %v637 = vld [vmem:[%s3 + $0x8] sm:$0xff]
  %v638 = vmul.f32 %v590, 0.0009765625
  %v639 = vmul.f32 %v599, 0.0009765625
  %v640 = vmul.f32 %v624, 0.0009765625
  %v641 = vmul.f32 %v633, 0.0009765625
  %v642 = vmul.f32 %v638, %v638
  %v643 = vmul.f32 %v639, %v639
  %v644 = vsub.f32 %v640, %v642
  %v645 = vsub.f32 %v641, %v643
  %v646 = vmax.f32 %v644, 0.0
  %v647 = vmax.f32 %v645, 0.0
  %v648 = vadd.f32 %v646, 1e-05
  %v649 = vadd.f32 %v647, 1e-05
  %v650 = vrsqrt.pop %v648
  %v651 = vrsqrt.pop %v649
  %v652 = vmul.f32 %v634, %v650
  %v653 = vmul.f32 %v635, %v651
  %v654 = vmul.f32 %v638, %v652
  %v655 = vmul.f32 %v639, %v653
  %v656 = vsub.f32 %v636, %v654
  %v657 = vsub.f32 %v637, %v655
  %659 = vset.pattern.permute.xlu0 0
  %660 = vperm.xlu0 %659, %v652
  %v661 = vpop.permute.xlu0 %660
  %664 = vset.pattern.permute.xlu0 0
  %665 = vperm.xlu0 %664, %v653
  %v666 = vpop.permute.xlu0 %665
  %v668 = vmul.f32 %v445, %v661
  %v669 = vmul.f32 %v447, %v661
  %v670 = vmul.f32 %v488, %v661
  %v671 = vmul.f32 %v490, %v661
  %v672 = vmul.f32 %v531, %v661
  %v673 = vmul.f32 %v533, %v661
  %v674 = vmul.f32 %v574, %v661
  %v675 = vmul.f32 %v576, %v661
  %v676 = vmul.f32 %v449, %v666
  %v677 = vmul.f32 %v451, %v666
  %v678 = vmul.f32 %v492, %v666
  %v679 = vmul.f32 %v494, %v666
  %v680 = vmul.f32 %v535, %v666
  %v681 = vmul.f32 %v537, %v666
  %v682 = vmul.f32 %v578, %v666
  %v683 = vmul.f32 %v580, %v666
  %685 = vset.pattern.permute.xlu0 0
  %686 = vperm.xlu0 %685, %v656
  %v687 = vpop.permute.xlu0 %686
  %690 = vset.pattern.permute.xlu0 0
  %691 = vperm.xlu0 %690, %v657
  %v692 = vpop.permute.xlu0 %691
  %v694 = vadd.f32 %v668, %v687
  %v695 = vadd.f32 %v669, %v687
  %v696 = vadd.f32 %v670, %v687
  %v697 = vadd.f32 %v671, %v687
  %v698 = vadd.f32 %v672, %v687
  %v699 = vadd.f32 %v673, %v687
  %v700 = vadd.f32 %v674, %v687
  %v701 = vadd.f32 %v675, %v687
  %v702 = vadd.f32 %v676, %v692
  %v703 = vadd.f32 %v677, %v692
  %v704 = vadd.f32 %v678, %v692
  %v705 = vadd.f32 %v679, %v692
  %v706 = vadd.f32 %v680, %v692
  %v707 = vadd.f32 %v681, %v692
  %v708 = vadd.f32 %v682, %v692
  %v709 = vadd.f32 %v683, %v692
  %vm710 = vcmp.ge.f32.partialorder %v694, 0.0
  %vm711 = vcmp.ge.f32.partialorder %v695, 0.0
  %vm712 = vcmp.ge.f32.partialorder %v696, 0.0
  %vm713 = vcmp.ge.f32.partialorder %v697, 0.0
  %vm714 = vcmp.ge.f32.partialorder %v698, 0.0
  %vm715 = vcmp.ge.f32.partialorder %v699, 0.0
  %vm716 = vcmp.ge.f32.partialorder %v700, 0.0
  %vm717 = vcmp.ge.f32.partialorder %v701, 0.0
  %vm718 = vcmp.ge.f32.partialorder %v702, 0.0
  %vm719 = vcmp.ge.f32.partialorder %v703, 0.0
  %vm720 = vcmp.ge.f32.partialorder %v704, 0.0
  %vm721 = vcmp.ge.f32.partialorder %v705, 0.0
  %vm722 = vcmp.ge.f32.partialorder %v706, 0.0
  %vm723 = vcmp.ge.f32.partialorder %v707, 0.0
  %vm724 = vcmp.ge.f32.partialorder %v708, 0.0
  %vm725 = vcmp.ge.f32.partialorder %v709, 0.0
  %v726 = vmul.f32 %v694, 0.2
  %v727 = vmul.f32 %v695, 0.2
  %v728 = vmul.f32 %v696, 0.2
  %v729 = vmul.f32 %v697, 0.2
  %v730 = vmul.f32 %v698, 0.2
  %v731 = vmul.f32 %v699, 0.2
  %v732 = vmul.f32 %v700, 0.2
  %v733 = vmul.f32 %v701, 0.2
  %v734 = vmul.f32 %v702, 0.2
  %v735 = vmul.f32 %v703, 0.2
  %v736 = vmul.f32 %v704, 0.2
  %v737 = vmul.f32 %v705, 0.2
  %v738 = vmul.f32 %v706, 0.2
  %v739 = vmul.f32 %v707, 0.2
  %v740 = vmul.f32 %v708, 0.2
  %v741 = vmul.f32 %v709, 0.2
  %v742 = vsel %vm710, %v694, %v726
  %v743 = vsel %vm711, %v695, %v727
  %v744 = vsel %vm712, %v696, %v728
  %v745 = vsel %vm713, %v697, %v729
  %v746 = vsel %vm714, %v698, %v730
  %v747 = vsel %vm715, %v699, %v731
  %v748 = vsel %vm716, %v700, %v732
  %v749 = vsel %vm717, %v701, %v733
  %v750 = vsel %vm718, %v702, %v734
  %v751 = vsel %vm719, %v703, %v735
  %v752 = vsel %vm720, %v704, %v736
  %v753 = vsel %vm721, %v705, %v737
  %v754 = vsel %vm722, %v706, %v738
  %v755 = vsel %vm723, %v707, %v739
  %v756 = vsel %vm724, %v708, %v740
  %v757 = vsel %vm725, %v709, %v741
  %758 = vst [vmem:[%s4] sm:$0xff] %v742
  %759 = vst [vmem:[%s4 + $0x8] sm:$0xff] %v743
  %760 = vst [vmem:[%s4 + $0x10] sm:$0xff] %v744
  %761 = vst [vmem:[%s4 + $0x18] sm:$0xff] %v745
  %762 = vst [vmem:[%s4 + $0x20] sm:$0xff] %v746
  %763 = vst [vmem:[%s4 + $0x28] sm:$0xff] %v747
  %764 = vst [vmem:[%s4 + $0x30] sm:$0xff] %v748
  %765 = vst [vmem:[%s4 + $0x38] sm:$0xff] %v749
  %766 = vst [vmem:[%s4 + $0x40] sm:$0xff] %v750
  %767 = vst [vmem:[%s4 + $0x48] sm:$0xff] %v751
  %768 = vst [vmem:[%s4 + $0x50] sm:$0xff] %v752
  %769 = vst [vmem:[%s4 + $0x58] sm:$0xff] %v753
  %770 = vst [vmem:[%s4 + $0x60] sm:$0xff] %v754
  %771 = vst [vmem:[%s4 + $0x68] sm:$0xff] %v755
  %772 = vst [vmem:[%s4 + $0x70] sm:$0xff] %v756
  %773 = vst [vmem:[%s4 + $0x78] sm:$0xff] %v757
  // Predicated region
  $region18: #{cycle_generator_forward.11} parent=0 // pred_check
    _
  $region19: #{cycle_generator_forward.11} parent=0 // pred_check_branch
    %775 = sbr.rel (0) target = $region21
  $region20: #{cycle_generator_forward.11} parent=0 // pred_region
    _
  $region21: #{cycle_generator_forward.11} parent=0 // pred_fallthru
    _
  // Predicated region
  $region22: #{cycle_generator_forward.11} parent=0 // pred_check
    _
  $region23: #{cycle_generator_forward.11} parent=0 // pred_check_branch
    %777 = sbr.rel (0) target = $region25
  $region24: #{cycle_generator_forward.11} parent=0 // pred_region
    _
  $region25: #{cycle_generator_forward.11} parent=0 // pred_fallthru
    _

// kernel: cycle_generator_forward.12
$region0: #{cycle_generator_forward.12}
  #allocation0 [shape = 'u32[]', space=smem, size = 0x4, offset = 0x4, fixed_abs, tag = 'smem constant byte address 0x4 - core index']
  #allocation1 [shape = 'u32[144,128]{1,0:T(1,128)}', space=vmem, size = 0x12000, scoped, tag = 'internal scratch']
  %s0 = inlined_call_operand.vmem [shape: bf16[32,256], index: 0, kind: input, shape index: {}]
  %s1 = inlined_call_operand.vmem [shape: bf16[256,256], index: 1, kind: input, shape index: {}]
  %s2 = inlined_call_operand.vmem [shape: f32[32,1], index: 2, kind: input, shape index: {}]
  %s3 = inlined_call_operand.vmem [shape: f32[32,1], index: 3, kind: input, shape index: {}]
  %s4 = inlined_call_operand.vmem [shape: f32[32,256], index: 4, kind: output, shape index: {}]
  %s5 = sld [smem:[#allocation0]]
  $region26: #{cycle_generator_forward.12} parent=0
    _
  %s7 = ssub.s32 1, %s5
  %s8 = scalar_select 0, %s7, %s5
  // Predicated region
  $region2: #{cycle_generator_forward.12} parent=0 // pred_check
    _
  $region3: #{cycle_generator_forward.12} parent=0 // pred_check_branch
    %10 = sbr.rel (0) target = $region5
  $region4: #{cycle_generator_forward.12} parent=0 // pred_region
    _
  $region5: #{cycle_generator_forward.12} parent=0 // pred_fallthru
    _
  // Predicated region
  $region6: #{cycle_generator_forward.12} parent=0 // pred_check
    _
  $region7: #{cycle_generator_forward.12} parent=0 // pred_check_branch
    %12 = sbr.rel (0) target = $region9
  $region8: #{cycle_generator_forward.12} parent=0 // pred_region
    _
  $region9: #{cycle_generator_forward.12} parent=0 // pred_fallthru
    _
  // Predicated region
  $region10: #{cycle_generator_forward.12} parent=0 // pred_check
    _
  $region11: #{cycle_generator_forward.12} parent=0 // pred_check_branch
    %14 = sbr.rel (0) target = $region13
  $region12: #{cycle_generator_forward.12} parent=0 // pred_region
    _
  $region13: #{cycle_generator_forward.12} parent=0 // pred_fallthru
    _
  // Predicated region
  $region14: #{cycle_generator_forward.12} parent=0 // pred_check
    _
  $region15: #{cycle_generator_forward.12} parent=0 // pred_check_branch
    %16 = sbr.rel (0) target = $region17
  $region16: #{cycle_generator_forward.12} parent=0 // pred_region
    _
  $region17: #{cycle_generator_forward.12} parent=0 // pred_fallthru
    _
  %v17 = vld [vmem:[%s0] sm:$0xff]
  %v18 = vld [vmem:[%s0 + $0x8] sm:$0xff]
  %v19 = vld [vmem:[%s0 + $0x10] sm:$0xff]
  %v20 = vld [vmem:[%s0 + $0x18] sm:$0xff]
  %v21 = vld [vmem:[%s1] sm:$0xff]
  %v22 = vld [vmem:[%s1 + $0x8] sm:$0xff]
  %v23 = vld [vmem:[%s1 + $0x10] sm:$0xff]
  %v24 = vld [vmem:[%s1 + $0x18] sm:$0xff]
  %v25 = vld [vmem:[%s1 + $0x20] sm:$0xff]
  %v26 = vld [vmem:[%s1 + $0x28] sm:$0xff]
  %v27 = vld [vmem:[%s1 + $0x30] sm:$0xff]
  %v28 = vld [vmem:[%s1 + $0x38] sm:$0xff]
  %v29 = vld [vmem:[%s1 + $0x40] sm:$0xff]
  %v30 = vld [vmem:[%s1 + $0x48] sm:$0xff]
  %v31 = vld [vmem:[%s1 + $0x50] sm:$0xff]
  %v32 = vld [vmem:[%s1 + $0x58] sm:$0xff]
  %v33 = vld [vmem:[%s1 + $0x60] sm:$0xff]
  %v34 = vld [vmem:[%s1 + $0x68] sm:$0xff]
  %v35 = vld [vmem:[%s1 + $0x70] sm:$0xff]
  %v36 = vld [vmem:[%s1 + $0x78] sm:$0xff]
  %v37 = vld [vmem:[%s1 + $0x80] sm:$0xff]
  %v38 = vld [vmem:[%s1 + $0x88] sm:$0xff]
  %v39 = vld [vmem:[%s1 + $0x90] sm:$0xff]
  %v40 = vld [vmem:[%s1 + $0x98] sm:$0xff]
  %v41 = vld [vmem:[%s1 + $0xa0] sm:$0xff]
  %v42 = vld [vmem:[%s1 + $0xa8] sm:$0xff]
  %v43 = vld [vmem:[%s1 + $0xb0] sm:$0xff]
  %v44 = vld [vmem:[%s1 + $0xb8] sm:$0xff]
  %v45 = vld [vmem:[%s1 + $0xc0] sm:$0xff]
  %v46 = vld [vmem:[%s1 + $0xc8] sm:$0xff]
  %v47 = vld [vmem:[%s1 + $0xd0] sm:$0xff]
  %v48 = vld [vmem:[%s1 + $0xd8] sm:$0xff]
  %v49 = vld [vmem:[%s1 + $0xe0] sm:$0xff]
  %v50 = vld [vmem:[%s1 + $0xe8] sm:$0xff]
  %v51 = vld [vmem:[%s1 + $0xf0] sm:$0xff]
  %v52 = vld [vmem:[%s1 + $0xf8] sm:$0xff]
  %v57 = vunpack.c.l.b16 %v17
  %v58 = vunpack.c.h.b16 %v17
  %v59 = vunpack.c.l.b16 %v18
  %v60 = vunpack.c.h.b16 %v18
  %v61 = vunpack.c.l.b16 %v19
  %v62 = vunpack.c.h.b16 %v19
  %v63 = vunpack.c.l.b16 %v20
  %v64 = vunpack.c.h.b16 %v20
  %v65 = vpack.c.b16 %v59, %v57
  %v66 = vpack.c.b16 %v60, %v58
  %v67 = vpack.c.b16 %v63, %v61
  %v68 = vpack.c.b16 %v64, %v62
  %v105 = vunpack.c.l.b16 %v21
  %v106 = vunpack.c.h.b16 %v21
  %v107 = vunpack.c.l.b16 %v22
  %v108 = vunpack.c.h.b16 %v22
  %v109 = vunpack.c.l.b16 %v23
  %v110 = vunpack.c.h.b16 %v23
  %v111 = vunpack.c.l.b16 %v24
  %v112 = vunpack.c.h.b16 %v24
  %v113 = vunpack.c.l.b16 %v25
  %v114 = vunpack.c.h.b16 %v25
  %v115 = vunpack.c.l.b16 %v26
  %v116 = vunpack.c.h.b16 %v26
  %v117 = vunpack.c.l.b16 %v27
  %v118 = vunpack.c.h.b16 %v27
  %v119 = vunpack.c.l.b16 %v28
  %v120 = vunpack.c.h.b16 %v28
  %v121 = vunpack.c.l.b16 %v29
  %v122 = vunpack.c.h.b16 %v29
  %v123 = vunpack.c.l.b16 %v30
  %v124 = vunpack.c.h.b16 %v30
  %v125 = vunpack.c.l.b16 %v31
  %v126 = vunpack.c.h.b16 %v31
  %v127 = vunpack.c.l.b16 %v32
  %v128 = vunpack.c.h.b16 %v32
  %v129 = vunpack.c.l.b16 %v33
  %v130 = vunpack.c.h.b16 %v33
  %v131 = vunpack.c.l.b16 %v34
  %v132 = vunpack.c.h.b16 %v34
  %v133 = vunpack.c.l.b16 %v35
  %v134 = vunpack.c.h.b16 %v35
  %v135 = vunpack.c.l.b16 %v36
  %v136 = vunpack.c.h.b16 %v36
  %v137 = vunpack.c.l.b16 %v37
  %v138 = vunpack.c.h.b16 %v37
  %v139 = vunpack.c.l.b16 %v38
  %v140 = vunpack.c.h.b16 %v38
  %v141 = vunpack.c.l.b16 %v39
  %v142 = vunpack.c.h.b16 %v39
  %v143 = vunpack.c.l.b16 %v40
  %v144 = vunpack.c.h.b16 %v40
  %v145 = vunpack.c.l.b16 %v41
  %v146 = vunpack.c.h.b16 %v41
  %v147 = vunpack.c.l.b16 %v42
  %v148 = vunpack.c.h.b16 %v42
  %v149 = vunpack.c.l.b16 %v43
  %v150 = vunpack.c.h.b16 %v43
  %v151 = vunpack.c.l.b16 %v44
  %v152 = vunpack.c.h.b16 %v44
  %v153 = vunpack.c.l.b16 %v45
  %v154 = vunpack.c.h.b16 %v45
  %v155 = vunpack.c.l.b16 %v46
  %v156 = vunpack.c.h.b16 %v46
  %v157 = vunpack.c.l.b16 %v47
  %v158 = vunpack.c.h.b16 %v47
  %v159 = vunpack.c.l.b16 %v48
  %v160 = vunpack.c.h.b16 %v48
  %v161 = vunpack.c.l.b16 %v49
  %v162 = vunpack.c.h.b16 %v49
  %v163 = vunpack.c.l.b16 %v50
  %v164 = vunpack.c.h.b16 %v50
  %v165 = vunpack.c.l.b16 %v51
  %v166 = vunpack.c.h.b16 %v51
  %v167 = vunpack.c.l.b16 %v52
  %v168 = vunpack.c.h.b16 %v52
  %v169 = vpack.c.b16 %v107, %v105
  %v170 = vpack.c.b16 %v108, %v106
  %v171 = vpack.c.b16 %v111, %v109
  %v172 = vpack.c.b16 %v112, %v110
  %v173 = vpack.c.b16 %v115, %v113
  %v174 = vpack.c.b16 %v116, %v114
  %v175 = vpack.c.b16 %v119, %v117
  %v176 = vpack.c.b16 %v120, %v118
  %v177 = vpack.c.b16 %v123, %v121
  %v178 = vpack.c.b16 %v124, %v122
  %v179 = vpack.c.b16 %v127, %v125
  %v180 = vpack.c.b16 %v128, %v126
  %v181 = vpack.c.b16 %v131, %v129
  %v182 = vpack.c.b16 %v132, %v130
  %v183 = vpack.c.b16 %v135, %v133
  %v184 = vpack.c.b16 %v136, %v134
  %v185 = vpack.c.b16 %v139, %v137
  %v186 = vpack.c.b16 %v140, %v138
  %v187 = vpack.c.b16 %v143, %v141
  %v188 = vpack.c.b16 %v144, %v142
  %v189 = vpack.c.b16 %v147, %v145
  %v190 = vpack.c.b16 %v148, %v146
  %v191 = vpack.c.b16 %v151, %v149
  %v192 = vpack.c.b16 %v152, %v150
  %v193 = vpack.c.b16 %v155, %v153
  %v194 = vpack.c.b16 %v156, %v154
  %v195 = vpack.c.b16 %v159, %v157
  %v196 = vpack.c.b16 %v160, %v158
  %v197 = vpack.c.b16 %v163, %v161
  %v198 = vpack.c.b16 %v164, %v162
  %v199 = vpack.c.b16 %v167, %v165
  %v200 = vpack.c.b16 %v168, %v166
  %233 = vmatprep.subr.bf16.mxu0 %v170
  %234 = vmatpush1.bf16.msra.mxu0 %v169
  %235 = vmatprep.subr.bf16.mxu0 %v172
  %236 = vmatpush1.bf16.msra.mxu0 %v171
  %237 = vmatprep.subr.bf16.mxu0 %v174
  %238 = vmatpush1.bf16.msra.mxu0 %v173
  %239 = vmatprep.subr.bf16.mxu0 %v176
  %240 = vmatpush1.bf16.msra.mxu0 %v175
  %241 = vmatprep.subr.bf16.mxu0 %v178
  %242 = vmatpush1.bf16.msra.mxu0 %v177
  %243 = vmatprep.subr.bf16.mxu0 %v180
  %244 = vmatpush1.bf16.msra.mxu0 %v179
  %245 = vmatprep.subr.bf16.mxu0 %v182
  %246 = vmatpush1.bf16.msra.mxu0 %v181
  %247 = vmatprep.subr.bf16.mxu0 %v184
  %248 = vmatpush1.bf16.msra.mxu0 %v183
  %249 = vmatprep.subr.bf16.mxu0 %v186
  %250 = vmatpush1.bf16.msra.mxu0 %v185
  %251 = vmatprep.subr.bf16.mxu0 %v188
  %252 = vmatpush1.bf16.msra.mxu0 %v187
  %253 = vmatprep.subr.bf16.mxu0 %v190
  %254 = vmatpush1.bf16.msra.mxu0 %v189
  %255 = vmatprep.subr.bf16.mxu0 %v192
  %256 = vmatpush1.bf16.msra.mxu0 %v191
  %257 = vmatprep.subr.bf16.mxu0 %v194
  %258 = vmatpush1.bf16.msra.mxu0 %v193
  %259 = vmatprep.subr.bf16.mxu0 %v196
  %260 = vmatpush1.bf16.msra.mxu0 %v195
  %261 = vmatprep.subr.bf16.mxu0 %v198
  %262 = vmatpush1.bf16.msra.mxu0 %v197
  %263 = vmatprep.subr.bf16.mxu0 %v200
  %264 = vmatpush1.bf16.msra.mxu0 %v199
  %265 = vmatprep.mubr.bf16.mxu0 %v66
  %266 = vmatmul.mubr.bf16.gmra.mrb[0].mxu0 %v65
  %v267 = vpop.f32.mrb[0].mxu0
  %v268 = vadd.f32 0.0, %v267
  %v269 = vpop.f32.mrb[0].mxu0
  %v270 = vadd.f32 0.0, %v269
  %v271 = vpop.f32.mrb[0].mxu0
  %v272 = vadd.f32 0.0, %v271
  %v273 = vpop.f32.mrb[0].mxu0
  %v274 = vadd.f32 0.0, %v273
  %275 = vmatprep.mubr.bf16.mxu0 %v68
  %276 = vmatmul.mubr.bf16.gmra.mrb[0].mxu0 %v67
  %v277 = vpop.f32.mrb[0].mxu0
  %v278 = vadd.f32 0.0, %v277
  %v279 = vpop.f32.mrb[0].mxu0
  %v280 = vadd.f32 0.0, %v279
  %v281 = vpop.f32.mrb[0].mxu0
  %v282 = vadd.f32 0.0, %v281
  %v283 = vpop.f32.mrb[0].mxu0
  %v284 = vadd.f32 0.0, %v283
  %285 = vdwg.mxu0
  %v286 = vadd.f32 %v268, %v270
  %287 = vadd.xlane.f32.xlu0 %v286
  %v288 = vpop.xlane.xlu0 %287
  %v289 = vadd.f32 %v272, %v274
  %290 = vadd.xlane.f32.xlu0 %v289
  %v291 = vpop.xlane.xlu0 %290
  %v292 = vadd.f32 %v278, %v280
  %293 = vadd.xlane.f32.xlu0 %v292
  %v294 = vpop.xlane.xlu0 %293
  %v295 = vadd.f32 %v282, %v284
  %296 = vadd.xlane.f32.xlu0 %v295
  %v297 = vpop.xlane.xlu0 %296
  %v298 = vmul.f32 %v268, %v268
  %v299 = vmul.f32 %v270, %v270
  %v300 = vmul.f32 %v272, %v272
  %v301 = vmul.f32 %v274, %v274
  %v302 = vmul.f32 %v278, %v278
  %v303 = vmul.f32 %v280, %v280
  %v304 = vmul.f32 %v282, %v282
  %v305 = vmul.f32 %v284, %v284
  %v306 = vadd.f32 %v298, %v299
  %307 = vadd.xlane.f32.xlu0 %v306
  %v308 = vpop.xlane.xlu0 %307
  %v309 = vadd.f32 %v300, %v301
  %310 = vadd.xlane.f32.xlu0 %v309
  %v311 = vpop.xlane.xlu0 %310
  %v312 = vadd.f32 %v302, %v303
  %313 = vadd.xlane.f32.xlu0 %v312
  %v314 = vpop.xlane.xlu0 %313
  %v315 = vadd.f32 %v304, %v305
  %316 = vadd.xlane.f32.xlu0 %v315
  %v317 = vpop.xlane.xlu0 %316
  %v318 = vld [vmem:[%s2] sm:$0xff]
  %v319 = vld [vmem:[%s2 + $0x8] sm:$0xff]
  %v320 = vld [vmem:[%s2 + $0x10] sm:$0xff]
  %v321 = vld [vmem:[%s2 + $0x18] sm:$0xff]
  %v322 = vld [vmem:[%s3] sm:$0xff]
  %v323 = vld [vmem:[%s3 + $0x8] sm:$0xff]
  %v324 = vld [vmem:[%s3 + $0x10] sm:$0xff]
  %v325 = vld [vmem:[%s3 + $0x18] sm:$0xff]
  %v326 = vmul.f32 %v288, 0.00390625
  %v327 = vmul.f32 %v291, 0.00390625
  %v328 = vmul.f32 %v294, 0.00390625
  %v329 = vmul.f32 %v297, 0.00390625
  %v330 = vmul.f32 %v308, 0.00390625
  %v331 = vmul.f32 %v311, 0.00390625
  %v332 = vmul.f32 %v314, 0.00390625
  %v333 = vmul.f32 %v317, 0.00390625
  %v334 = vmul.f32 %v326, %v326
  %v335 = vmul.f32 %v327, %v327
  %v336 = vmul.f32 %v328, %v328
  %v337 = vmul.f32 %v329, %v329
  %v338 = vsub.f32 %v330, %v334
  %v339 = vsub.f32 %v331, %v335
  %v340 = vsub.f32 %v332, %v336
  %v341 = vsub.f32 %v333, %v337
  %v342 = vmax.f32 %v338, 0.0
  %v343 = vmax.f32 %v339, 0.0
  %v344 = vmax.f32 %v340, 0.0
  %v345 = vmax.f32 %v341, 0.0
  %v346 = vadd.f32 %v342, 1e-05
  %v347 = vadd.f32 %v343, 1e-05
  %v348 = vadd.f32 %v344, 1e-05
  %v349 = vadd.f32 %v345, 1e-05
  %v350 = vrsqrt.pop %v346
  %v351 = vrsqrt.pop %v347
  %v352 = vrsqrt.pop %v348
  %v353 = vrsqrt.pop %v349
  %v354 = vmul.f32 %v318, %v350
  %v355 = vmul.f32 %v319, %v351
  %v356 = vmul.f32 %v320, %v352
  %v357 = vmul.f32 %v321, %v353
  %v358 = vmul.f32 %v326, %v354
  %v359 = vmul.f32 %v327, %v355
  %v360 = vmul.f32 %v328, %v356
  %v361 = vmul.f32 %v329, %v357
  %v362 = vsub.f32 %v322, %v358
  %v363 = vsub.f32 %v323, %v359
  %v364 = vsub.f32 %v324, %v360
  %v365 = vsub.f32 %v325, %v361
  %367 = vset.pattern.permute.xlu0 0
  %368 = vperm.xlu0 %367, %v354
  %v369 = vpop.permute.xlu0 %368
  %372 = vset.pattern.permute.xlu0 0
  %373 = vperm.xlu0 %372, %v355
  %v374 = vpop.permute.xlu0 %373
  %377 = vset.pattern.permute.xlu0 0
  %378 = vperm.xlu0 %377, %v356
  %v379 = vpop.permute.xlu0 %378
  %382 = vset.pattern.permute.xlu0 0
  %383 = vperm.xlu0 %382, %v357
  %v384 = vpop.permute.xlu0 %383
  %v386 = vmul.f32 %v268, %v369
  %v387 = vmul.f32 %v270, %v369
  %v388 = vmul.f32 %v272, %v374
  %v389 = vmul.f32 %v274, %v374
  %v390 = vmul.f32 %v278, %v379
  %v391 = vmul.f32 %v280, %v379
  %v392 = vmul.f32 %v282, %v384
  %v393 = vmul.f32 %v284, %v384
  %395 = vset.pattern.permute.xlu0 0
  %396 = vperm.xlu0 %395, %v362
  %v397 = vpop.permute.xlu0 %396
  %400 = vset.pattern.permute.xlu0 0
  %401 = vperm.xlu0 %400, %v363
  %v402 = vpop.permute.xlu0 %401
  %405 = vset.pattern.permute.xlu0 0
  %406 = vperm.xlu0 %405, %v364
  %v407 = vpop.permute.xlu0 %406
  %410 = vset.pattern.permute.xlu0 0
  %411 = vperm.xlu0 %410, %v365
  %v412 = vpop.permute.xlu0 %411
  %v414 = vadd.f32 %v386, %v397
  %v415 = vadd.f32 %v387, %v397
  %v416 = vadd.f32 %v388, %v402
  %v417 = vadd.f32 %v389, %v402
  %v418 = vadd.f32 %v390, %v407
  %v419 = vadd.f32 %v391, %v407
  %v420 = vadd.f32 %v392, %v412
  %v421 = vadd.f32 %v393, %v412
  %vm422 = vcmp.ge.f32.partialorder %v414, 0.0
  %vm423 = vcmp.ge.f32.partialorder %v415, 0.0
  %vm424 = vcmp.ge.f32.partialorder %v416, 0.0
  %vm425 = vcmp.ge.f32.partialorder %v417, 0.0
  %vm426 = vcmp.ge.f32.partialorder %v418, 0.0
  %vm427 = vcmp.ge.f32.partialorder %v419, 0.0
  %vm428 = vcmp.ge.f32.partialorder %v420, 0.0
  %vm429 = vcmp.ge.f32.partialorder %v421, 0.0
  %v430 = vmul.f32 %v414, 0.2
  %v431 = vmul.f32 %v415, 0.2
  %v432 = vmul.f32 %v416, 0.2
  %v433 = vmul.f32 %v417, 0.2
  %v434 = vmul.f32 %v418, 0.2
  %v435 = vmul.f32 %v419, 0.2
  %v436 = vmul.f32 %v420, 0.2
  %v437 = vmul.f32 %v421, 0.2
  %v438 = vsel %vm422, %v414, %v430
  %v439 = vsel %vm423, %v415, %v431
  %v440 = vsel %vm424, %v416, %v432
  %v441 = vsel %vm425, %v417, %v433
  %v442 = vsel %vm426, %v418, %v434
  %v443 = vsel %vm427, %v419, %v435
  %v444 = vsel %vm428, %v420, %v436
  %v445 = vsel %vm429, %v421, %v437
  %446 = vst [vmem:[%s4] sm:$0xff] %v438
  %447 = vst [vmem:[%s4 + $0x8] sm:$0xff] %v439
  %448 = vst [vmem:[%s4 + $0x10] sm:$0xff] %v440
  %449 = vst [vmem:[%s4 + $0x18] sm:$0xff] %v441
  %450 = vst [vmem:[%s4 + $0x20] sm:$0xff] %v442
  %451 = vst [vmem:[%s4 + $0x28] sm:$0xff] %v443
  %452 = vst [vmem:[%s4 + $0x30] sm:$0xff] %v444
  %453 = vst [vmem:[%s4 + $0x38] sm:$0xff] %v445
  // Predicated region
  $region18: #{cycle_generator_forward.12} parent=0 // pred_check
    _
  $region19: #{cycle_generator_forward.12} parent=0 // pred_check_branch
    %455 = sbr.rel (0) target = $region21
  $region20: #{cycle_generator_forward.12} parent=0 // pred_region
    _
  $region21: #{cycle_generator_forward.12} parent=0 // pred_fallthru
    _
  // Predicated region
  $region22: #{cycle_generator_forward.12} parent=0 // pred_check
    _
  $region23: #{cycle_generator_forward.12} parent=0 // pred_check_branch
    %457 = sbr.rel (0) target = $region25
  $region24: #{cycle_generator_forward.12} parent=0 // pred_region
    _
  $region25: #{cycle_generator_forward.12} parent=0 // pred_fallthru
    _

// kernel: cycle_generator_forward.13
$region0: #{cycle_generator_forward.13}
  #allocation0 [shape = 'u32[]', space=smem, size = 0x4, offset = 0x4, fixed_abs, tag = 'smem constant byte address 0x4 - core index']
  #allocation1 [shape = 'u32[144,128]{1,0:T(1,128)}', space=vmem, size = 0x12000, scoped, tag = 'internal scratch']
  %s0 = inlined_call_operand.vmem [shape: bf16[32,288], index: 0, kind: input, shape index: {}]
  %s1 = inlined_call_operand.vmem [shape: bf16[288,256], index: 1, kind: input, shape index: {}]
  %s2 = inlined_call_operand.vmem [shape: f32[32,1], index: 2, kind: input, shape index: {}]
  %s3 = inlined_call_operand.vmem [shape: f32[32,1], index: 3, kind: input, shape index: {}]
  %s4 = inlined_call_operand.vmem [shape: f32[32,256], index: 4, kind: output, shape index: {}]
  %s5 = sld [smem:[#allocation0]]
  $region26: #{cycle_generator_forward.13} parent=0
    _
  %s7 = ssub.s32 1, %s5
  %s8 = scalar_select 0, %s7, %s5
  // Predicated region
  $region2: #{cycle_generator_forward.13} parent=0 // pred_check
    _
  $region3: #{cycle_generator_forward.13} parent=0 // pred_check_branch
    %10 = sbr.rel (0) target = $region5
  $region4: #{cycle_generator_forward.13} parent=0 // pred_region
    _
  $region5: #{cycle_generator_forward.13} parent=0 // pred_fallthru
    _
  // Predicated region
  $region6: #{cycle_generator_forward.13} parent=0 // pred_check
    _
  $region7: #{cycle_generator_forward.13} parent=0 // pred_check_branch
    %12 = sbr.rel (0) target = $region9
  $region8: #{cycle_generator_forward.13} parent=0 // pred_region
    _
  $region9: #{cycle_generator_forward.13} parent=0 // pred_fallthru
    _
  // Predicated region
  $region10: #{cycle_generator_forward.13} parent=0 // pred_check
    _
  $region11: #{cycle_generator_forward.13} parent=0 // pred_check_branch
    %14 = sbr.rel (0) target = $region13
  $region12: #{cycle_generator_forward.13} parent=0 // pred_region
    _
  $region13: #{cycle_generator_forward.13} parent=0 // pred_fallthru
    _
  // Predicated region
  $region14: #{cycle_generator_forward.13} parent=0 // pred_check
    _
  $region15: #{cycle_generator_forward.13} parent=0 // pred_check_branch
    %16 = sbr.rel (0) target = $region17
  $region16: #{cycle_generator_forward.13} parent=0 // pred_region
    _
  $region17: #{cycle_generator_forward.13} parent=0 // pred_fallthru
    _
  %v18 = vld [vmem:[%s0] sm:$0xff]
  %v19 = vld [vmem:[%s0 + $0x8] sm:$0xf]
  %v20 = vld [vmem:[%s0 + $0xc] sm:$0xff]
  %v21 = vld [vmem:[%s0 + $0x14] sm:$0xf]
  %v22 = vld [vmem:[%s0 + $0x18] sm:$0xff]
  %v23 = vld [vmem:[%s0 + $0x20] sm:$0xf]
  %v24 = vld [vmem:[%s0 + $0x24] sm:$0xff]
  %v25 = vld [vmem:[%s0 + $0x2c] sm:$0xf]
  %v26 = vld [vmem:[%s1] sm:$0xff]
  %v27 = vld [vmem:[%s1 + $0x8] sm:$0xff]
  %v28 = vld [vmem:[%s1 + $0x10] sm:$0xff]
  %v29 = vld [vmem:[%s1 + $0x18] sm:$0xff]
  %v30 = vld [vmem:[%s1 + $0x20] sm:$0xff]
  %v31 = vld [vmem:[%s1 + $0x28] sm:$0xff]
  %v32 = vld [vmem:[%s1 + $0x30] sm:$0xff]
  %v33 = vld [vmem:[%s1 + $0x38] sm:$0xff]
  %v34 = vld [vmem:[%s1 + $0x40] sm:$0xff]
  %v35 = vld [vmem:[%s1 + $0x48] sm:$0xff]
  %v36 = vld [vmem:[%s1 + $0x50] sm:$0xff]
  %v37 = vld [vmem:[%s1 + $0x58] sm:$0xff]
  %v38 = vld [vmem:[%s1 + $0x60] sm:$0xff]
  %v39 = vld [vmem:[%s1 + $0x68] sm:$0xff]
  %v40 = vld [vmem:[%s1 + $0x70] sm:$0xff]
  %v41 = vld [vmem:[%s1 + $0x78] sm:$0xff]
  %v42 = vld [vmem:[%s1 + $0x80] sm:$0xff]
  %v43 = vld [vmem:[%s1 + $0x88] sm:$0xff]
  %v44 = vld [vmem:[%s1 + $0x90] sm:$0xff]
  %v45 = vld [vmem:[%s1 + $0x98] sm:$0xff]
  %v46 = vld [vmem:[%s1 + $0xa0] sm:$0xff]
  %v47 = vld [vmem:[%s1 + $0xa8] sm:$0xff]
  %v48 = vld [vmem:[%s1 + $0xb0] sm:$0xff]
  %v49 = vld [vmem:[%s1 + $0xb8] sm:$0xff]
  %v50 = vld [vmem:[%s1 + $0xc0] sm:$0xff]
  %v51 = vld [vmem:[%s1 + $0xc8] sm:$0xff]
  %v52 = vld [vmem:[%s1 + $0xd0] sm:$0xff]
  %v53 = vld [vmem:[%s1 + $0xd8] sm:$0xff]
  %v54 = vld [vmem:[%s1 + $0xe0] sm:$0xff]
  %v55 = vld [vmem:[%s1 + $0xe8] sm:$0xff]
  %v56 = vld [vmem:[%s1 + $0xf0] sm:$0xff]
  %v57 = vld [vmem:[%s1 + $0xf8] sm:$0xff]
  %v58 = vld [vmem:[%s1 + $0x100] sm:$0xff]
  %v59 = vld [vmem:[%s1 + $0x108] sm:$0xff]
  %v60 = vld [vmem:[%s1 + $0x110] sm:$0xff]
  %v61 = vld [vmem:[%s1 + $0x118] sm:$0xff]
  %v70 = vunpack.c.l.b16 %v18
  %v71 = vunpack.c.h.b16 %v18
  %v72 = vunpack.c.l.b16 %v19
  %v73 = vunpack.c.l.b16 %v20
  %v74 = vunpack.c.h.b16 %v20
  %v75 = vunpack.c.l.b16 %v21
  %v76 = vunpack.c.l.b16 %v22
  %v77 = vunpack.c.h.b16 %v22
  %v78 = vunpack.c.l.b16 %v23
  %v79 = vunpack.c.l.b16 %v24
  %v80 = vunpack.c.h.b16 %v24
  %v81 = vunpack.c.l.b16 %v25
  %v82 = vpack.c.b16 %v73, %v70
  %v83 = vpack.c.b16 %v74, %v71
  %v84 = vpack.c.b16 %v75, %v72
  %v85 = vpack.c.b16 %v79, %v76
  %v86 = vpack.c.b16 %v80, %v77
  %v87 = vpack.c.b16 %v81, %v78
  %v128 = vunpack.c.l.b16 %v26
  %v129 = vunpack.c.h.b16 %v26
  %v130 = vunpack.c.l.b16 %v27
  %v131 = vunpack.c.h.b16 %v27
  %v132 = vunpack.c.l.b16 %v28
  %v133 = vunpack.c.h.b16 %v28
  %v134 = vunpack.c.l.b16 %v29
  %v135 = vunpack.c.h.b16 %v29
  %v136 = vunpack.c.l.b16 %v30
  %v137 = vunpack.c.h.b16 %v30
  %v138 = vunpack.c.l.b16 %v31
  %v139 = vunpack.c.h.b16 %v31
  %v140 = vunpack.c.l.b16 %v32
  %v141 = vunpack.c.h.b16 %v32
  %v142 = vunpack.c.l.b16 %v33
  %v143 = vunpack.c.h.b16 %v33
  %v144 = vunpack.c.l.b16 %v34
  %v145 = vunpack.c.h.b16 %v34
  %v146 = vunpack.c.l.b16 %v35
  %v147 = vunpack.c.h.b16 %v35
  %v148 = vunpack.c.l.b16 %v36
  %v149 = vunpack.c.h.b16 %v36
  %v150 = vunpack.c.l.b16 %v37
  %v151 = vunpack.c.h.b16 %v37
  %v152 = vunpack.c.l.b16 %v38
  %v153 = vunpack.c.h.b16 %v38
  %v154 = vunpack.c.l.b16 %v39
  %v155 = vunpack.c.h.b16 %v39
  %v156 = vunpack.c.l.b16 %v40
  %v157 = vunpack.c.h.b16 %v40
  %v158 = vunpack.c.l.b16 %v41
  %v159 = vunpack.c.h.b16 %v41
  %v160 = vunpack.c.l.b16 %v42
  %v161 = vunpack.c.h.b16 %v42
  %v162 = vunpack.c.l.b16 %v43
  %v163 = vunpack.c.h.b16 %v43
  %v164 = vunpack.c.l.b16 %v44
  %v165 = vunpack.c.h.b16 %v44
  %v166 = vunpack.c.l.b16 %v45
  %v167 = vunpack.c.h.b16 %v45
  %v168 = vunpack.c.l.b16 %v46
  %v169 = vunpack.c.h.b16 %v46
  %v170 = vunpack.c.l.b16 %v47
  %v171 = vunpack.c.h.b16 %v47
  %v172 = vunpack.c.l.b16 %v48
  %v173 = vunpack.c.h.b16 %v48
  %v174 = vunpack.c.l.b16 %v49
  %v175 = vunpack.c.h.b16 %v49
  %v176 = vunpack.c.l.b16 %v50
  %v177 = vunpack.c.h.b16 %v50
  %v178 = vunpack.c.l.b16 %v51
  %v179 = vunpack.c.h.b16 %v51
  %v180 = vunpack.c.l.b16 %v52
  %v181 = vunpack.c.h.b16 %v52
  %v182 = vunpack.c.l.b16 %v53
  %v183 = vunpack.c.h.b16 %v53
  %v184 = vunpack.c.l.b16 %v54
  %v185 = vunpack.c.h.b16 %v54
  %v186 = vunpack.c.l.b16 %v55
  %v187 = vunpack.c.h.b16 %v55
  %v188 = vunpack.c.l.b16 %v56
  %v189 = vunpack.c.h.b16 %v56
  %v190 = vunpack.c.l.b16 %v57
  %v191 = vunpack.c.h.b16 %v57
  %v192 = vunpack.c.l.b16 %v58
  %v193 = vunpack.c.h.b16 %v58
  %v194 = vunpack.c.l.b16 %v59
  %v195 = vunpack.c.h.b16 %v59
  %v196 = vunpack.c.l.b16 %v60
  %v197 = vunpack.c.h.b16 %v60
  %v198 = vunpack.c.l.b16 %v61
  %v199 = vunpack.c.h.b16 %v61
  %v200 = vpack.c.b16 %v130, %v128
  %v201 = vpack.c.b16 %v131, %v129
  %v202 = vpack.c.b16 %v134, %v132
  %v203 = vpack.c.b16 %v135, %v133
  %v204 = vpack.c.b16 %v138, %v136
  %v205 = vpack.c.b16 %v139, %v137
  %v206 = vpack.c.b16 %v142, %v140
  %v207 = vpack.c.b16 %v143, %v141
  %v208 = vpack.c.b16 %v146, %v144
  %v209 = vpack.c.b16 %v147, %v145
  %v210 = vpack.c.b16 %v150, %v148
  %v211 = vpack.c.b16 %v151, %v149
  %v212 = vpack.c.b16 %v154, %v152
  %v213 = vpack.c.b16 %v155, %v153
  %v214 = vpack.c.b16 %v158, %v156
  %v215 = vpack.c.b16 %v159, %v157
  %v216 = vpack.c.b16 %v162, %v160
  %v217 = vpack.c.b16 %v163, %v161
  %v218 = vpack.c.b16 %v166, %v164
  %v219 = vpack.c.b16 %v167, %v165
  %v220 = vpack.c.b16 %v170, %v168
  %v221 = vpack.c.b16 %v171, %v169
  %v222 = vpack.c.b16 %v174, %v172
  %v223 = vpack.c.b16 %v175, %v173
  %v224 = vpack.c.b16 %v178, %v176
  %v225 = vpack.c.b16 %v179, %v177
  %v226 = vpack.c.b16 %v182, %v180
  %v227 = vpack.c.b16 %v183, %v181
  %v228 = vpack.c.b16 %v186, %v184
  %v229 = vpack.c.b16 %v187, %v185
  %v230 = vpack.c.b16 %v190, %v188
  %v231 = vpack.c.b16 %v191, %v189
  %v232 = vpack.c.b16 %v194, %v192
  %v233 = vpack.c.b16 %v195, %v193
  %v234 = vpack.c.b16 %v198, %v196
  %v235 = vpack.c.b16 %v199, %v197
  %vm272 = vcmask 261120
  %v274 = vsel %vm272, %v84, 0
  %v277 = vsel %vm272, %v87, 0
  %279 = vmatprep.subr.bf16.mxu0 %v201
  %280 = vmatpush1.bf16.msra.mxu0 %v200
  %281 = vmatprep.subr.bf16.mxu0 %v203
  %282 = vmatpush1.bf16.msra.mxu0 %v202
  %283 = vmatprep.subr.bf16.mxu0 %v205
  %284 = vmatpush1.bf16.msra.mxu0 %v204
  %285 = vmatprep.subr.bf16.mxu0 %v207
  %286 = vmatpush1.bf16.msra.mxu0 %v206
  %287 = vmatprep.subr.bf16.mxu0 %v209
  %288 = vmatpush1.bf16.msra.mxu0 %v208
  %289 = vmatprep.subr.bf16.mxu0 %v211
  %290 = vmatpush1.bf16.msra.mxu0 %v210
  %291 = vmatprep.subr.bf16.mxu0 %v213
  %292 = vmatpush1.bf16.msra.mxu0 %v212
  %293 = vmatprep.subr.bf16.mxu0 %v215
  %294 = vmatpush1.bf16.msra.mxu0 %v214
  %295 = vmatprep.subr.bf16.mxu0 %v217
  %296 = vmatpush1.bf16.msra.mxu0 %v216
  %297 = vmatprep.subr.bf16.mxu0 %v219
  %298 = vmatpush1.bf16.msra.mxu0 %v218
  %299 = vmatprep.subr.bf16.mxu0 %v221
  %300 = vmatpush1.bf16.msra.mxu0 %v220
  %301 = vmatprep.subr.bf16.mxu0 %v223
  %302 = vmatpush1.bf16.msra.mxu0 %v222
  %303 = vmatprep.subr.bf16.mxu0 %v225
  %304 = vmatpush1.bf16.msra.mxu0 %v224
  %305 = vmatprep.subr.bf16.mxu0 %v227
  %306 = vmatpush1.bf16.msra.mxu0 %v226
  %307 = vmatprep.subr.bf16.mxu0 %v229
  %308 = vmatpush1.bf16.msra.mxu0 %v228
  %309 = vmatprep.subr.bf16.mxu0 %v231
  %310 = vmatpush1.bf16.msra.mxu0 %v230
  %311 = vmatprep.mubr.bf16.mxu0 %v83
  %312 = vmatmul.mubr.bf16.gmra.mrb[0].mxu0 %v82
  %v313 = vpop.f32.mrb[0].mxu0
  %v314 = vadd.f32 0.0, %v313
  %v315 = vpop.f32.mrb[0].mxu0
  %v316 = vadd.f32 0.0, %v315
  %v317 = vpop.f32.mrb[0].mxu0
  %v318 = vadd.f32 0.0, %v317
  %v319 = vpop.f32.mrb[0].mxu0
  %v320 = vadd.f32 0.0, %v319
  %321 = vmatprep.mubr.bf16.mxu0 %v86
  %322 = vmatmul.mubr.bf16.gmra.mrb[0].mxu0 %v85
  %v323 = vpop.f32.mrb[0].mxu0
  %v324 = vadd.f32 0.0, %v323
  %v325 = vpop.f32.mrb[0].mxu0
  %v326 = vadd.f32 0.0, %v325
  %v327 = vpop.f32.mrb[0].mxu0
  %v328 = vadd.f32 0.0, %v327
  %v329 = vpop.f32.mrb[0].mxu0
  %v330 = vadd.f32 0.0, %v329
  %331 = vdwg.mxu0
  %332 = vmatprep.subr.bf16.mxu0 %v233
  %333 = vmatpush1.bf16.msra.mxu0 %v232
  %334 = vmatprep.subr.bf16.mxu0 %v235
  %335 = vmatpush1.bf16.msra.mxu0 %v234
  %336 = vmatprep.subr.bf16.mxu0 0
  %337 = vmatpush1.bf16.msra.mxu0 0
  %338 = vmatprep.subr.bf16.mxu0 0
  %339 = vmatpush1.bf16.msra.mxu0 0
  %340 = vmatprep.subr.bf16.mxu0 0
  %341 = vmatpush1.bf16.msra.mxu0 0
  %342 = vmatprep.subr.bf16.mxu0 0
  %343 = vmatpush1.bf16.msra.mxu0 0
  %344 = vmatprep.subr.bf16.mxu0 0
  %345 = vmatpush1.bf16.msra.mxu0 0
  %346 = vmatprep.subr.bf16.mxu0 0
  %347 = vmatpush1.bf16.msra.mxu0 0
  %348 = vmatprep.subr.bf16.mxu0 0
  %349 = vmatpush1.bf16.msra.mxu0 0
  %350 = vmatprep.subr.bf16.mxu0 0
  %351 = vmatpush1.bf16.msra.mxu0 0
  %352 = vmatprep.subr.bf16.mxu0 0
  %353 = vmatpush1.bf16.msra.mxu0 0
  %354 = vmatprep.subr.bf16.mxu0 0
  %355 = vmatpush1.bf16.msra.mxu0 0
  %356 = vmatprep.subr.bf16.mxu0 0
  %357 = vmatpush1.bf16.msra.mxu0 0
  %358 = vmatprep.subr.bf16.mxu0 0
  %359 = vmatpush1.bf16.msra.mxu0 0
  %360 = vmatprep.subr.bf16.mxu0 0
  %361 = vmatpush1.bf16.msra.mxu0 0
  %362 = vmatprep.subr.bf16.mxu0 0
  %363 = vmatpush1.bf16.msra.mxu0 0
  %364 = vmatprep.mubr.bf16.mxu0 0
  %365 = vmatmul.mubr.bf16.gmra.mrb[0].mxu0 %v274
  %v366 = vpop.f32.mrb[0].mxu0
  %v367 = vadd.f32 %v314, %v366
  %v368 = vpop.f32.mrb[0].mxu0
  %v369 = vadd.f32 %v316, %v368
  %v370 = vpop.f32.mrb[0].mxu0
  %v371 = vadd.f32 %v318, %v370
  %v372 = vpop.f32.mrb[0].mxu0
  %v373 = vadd.f32 %v320, %v372
  %374 = vmatprep.mubr.bf16.mxu0 0
  %375 = vmatmul.mubr.bf16.gmra.mrb[0].mxu0 %v277
  %v376 = vpop.f32.mrb[0].mxu0
  %v377 = vadd.f32 %v324, %v376
  %v378 = vpop.f32.mrb[0].mxu0
  %v379 = vadd.f32 %v326, %v378
  %v380 = vpop.f32.mrb[0].mxu0
  %v381 = vadd.f32 %v328, %v380
  %v382 = vpop.f32.mrb[0].mxu0
  %v383 = vadd.f32 %v330, %v382
  %384 = vdwg.mxu0
  %v385 = vadd.f32 %v367, %v369
  %386 = vadd.xlane.f32.xlu0 %v385
  %v387 = vpop.xlane.xlu0 %386
  %v388 = vadd.f32 %v371, %v373
  %389 = vadd.xlane.f32.xlu0 %v388
  %v390 = vpop.xlane.xlu0 %389
  %v391 = vadd.f32 %v377, %v379
  %392 = vadd.xlane.f32.xlu0 %v391
  %v393 = vpop.xlane.xlu0 %392
  %v394 = vadd.f32 %v381, %v383
  %395 = vadd.xlane.f32.xlu0 %v394
  %v396 = vpop.xlane.xlu0 %395
  %v397 = vmul.f32 %v367, %v367
  %v398 = vmul.f32 %v369, %v369
  %v399 = vmul.f32 %v371, %v371
  %v400 = vmul.f32 %v373, %v373
  %v401 = vmul.f32 %v377, %v377
  %v402 = vmul.f32 %v379, %v379
  %v403 = vmul.f32 %v381, %v381
  %v404 = vmul.f32 %v383, %v383
  %v405 = vadd.f32 %v397, %v398
  %406 = vadd.xlane.f32.xlu0 %v405
  %v407 = vpop.xlane.xlu0 %406
  %v408 = vadd.f32 %v399, %v400
  %409 = vadd.xlane.f32.xlu0 %v408
  %v410 = vpop.xlane.xlu0 %409
  %v411 = vadd.f32 %v401, %v402
  %412 = vadd.xlane.f32.xlu0 %v411
  %v413 = vpop.xlane.xlu0 %412
  %v414 = vadd.f32 %v403, %v404
  %415 = vadd.xlane.f32.xlu0 %v414
  %v416 = vpop.xlane.xlu0 %415
  %v417 = vld [vmem:[%s2] sm:$0xff]
  %v418 = vld [vmem:[%s2 + $0x8] sm:$0xff]
  %v419 = vld [vmem:[%s2 + $0x10] sm:$0xff]
  %v420 = vld [vmem:[%s2 + $0x18] sm:$0xff]
  %v421 = vld [vmem:[%s3] sm:$0xff]
  %v422 = vld [vmem:[%s3 + $0x8] sm:$0xff]
  %v423 = vld [vmem:[%s3 + $0x10] sm:$0xff]
  %v424 = vld [vmem:[%s3 + $0x18] sm:$0xff]
  %v425 = vmul.f32 %v387, 0.00390625
  %v426 = vmul.f32 %v390, 0.00390625
  %v427 = vmul.f32 %v393, 0.00390625
  %v428 = vmul.f32 %v396, 0.00390625
  %v429 = vmul.f32 %v407, 0.00390625
  %v430 = vmul.f32 %v410, 0.00390625
  %v431 = vmul.f32 %v413, 0.00390625
  %v432 = vmul.f32 %v416, 0.00390625
  %v433 = vmul.f32 %v425, %v425
  %v434 = vmul.f32 %v426, %v426
  %v435 = vmul.f32 %v427, %v427
  %v436 = vmul.f32 %v428, %v428
  %v437 = vsub.f32 %v429, %v433
  %v438 = vsub.f32 %v430, %v434
  %v439 = vsub.f32 %v431, %v435
  %v440 = vsub.f32 %v432, %v436
  %v441 = vmax.f32 %v437, 0.0
  %v442 = vmax.f32 %v438, 0.0
  %v443 = vmax.f32 %v439, 0.0
  %v444 = vmax.f32 %v440, 0.0
  %v445 = vadd.f32 %v441, 1e-05
  %v446 = vadd.f32 %v442, 1e-05
  %v447 = vadd.f32 %v443, 1e-05
  %v448 = vadd.f32 %v444, 1e-05
  %v449 = vrsqrt.pop %v445
  %v450 = vrsqrt.pop %v446
  %v451 = vrsqrt.pop %v447
  %v452 = vrsqrt.pop %v448
  %v453 = vmul.f32 %v417, %v449
  %v454 = vmul.f32 %v418, %v450
  %v455 = vmul.f32 %v419, %v451
  %v456 = vmul.f32 %v420, %v452
  %v457 = vmul.f32 %v425, %v453
  %v458 = vmul.f32 %v426, %v454
  %v459 = vmul.f32 %v427, %v455
  %v460 = vmul.f32 %v428, %v456
  %v461 = vsub.f32 %v421, %v457
  %v462 = vsub.f32 %v422, %v458
  %v463 = vsub.f32 %v423, %v459
  %v464 = vsub.f32 %v424, %v460
  %466 = vset.pattern.permute.xlu0 0
  %467 = vperm.xlu0 %466, %v453
  %v468 = vpop.permute.xlu0 %467
  %471 = vset.pattern.permute.xlu0 0
  %472 = vperm.xlu0 %471, %v454
  %v473 = vpop.permute.xlu0 %472
  %476 = vset.pattern.permute.xlu0 0
  %477 = vperm.xlu0 %476, %v455
  %v478 = vpop.permute.xlu0 %477
  %481 = vset.pattern.permute.xlu0 0
  %482 = vperm.xlu0 %481, %v456
  %v483 = vpop.permute.xlu0 %482
  %v485 = vmul.f32 %v367, %v468
  %v486 = vmul.f32 %v369, %v468
  %v487 = vmul.f32 %v371, %v473
  %v488 = vmul.f32 %v373, %v473
  %v489 = vmul.f32 %v377, %v478
  %v490 = vmul.f32 %v379, %v478
  %v491 = vmul.f32 %v381, %v483
  %v492 = vmul.f32 %v383, %v483
  %494 = vset.pattern.permute.xlu0 0
  %495 = vperm.xlu0 %494, %v461
  %v496 = vpop.permute.xlu0 %495
  %499 = vset.pattern.permute.xlu0 0
  %500 = vperm.xlu0 %499, %v462
  %v501 = vpop.permute.xlu0 %500
  %504 = vset.pattern.permute.xlu0 0
  %505 = vperm.xlu0 %504, %v463
  %v506 = vpop.permute.xlu0 %505
  %509 = vset.pattern.permute.xlu0 0
  %510 = vperm.xlu0 %509, %v464
  %v511 = vpop.permute.xlu0 %510
  %v513 = vadd.f32 %v485, %v496
  %v514 = vadd.f32 %v486, %v496
  %v515 = vadd.f32 %v487, %v501
  %v516 = vadd.f32 %v488, %v501
  %v517 = vadd.f32 %v489, %v506
  %v518 = vadd.f32 %v490, %v506
  %v519 = vadd.f32 %v491, %v511
  %v520 = vadd.f32 %v492, %v511
  %v521 = vmax.f32 %v513, 0.0
  %v522 = vmax.f32 %v514, 0.0
  %v523 = vmax.f32 %v515, 0.0
  %v524 = vmax.f32 %v516, 0.0
  %v525 = vmax.f32 %v517, 0.0
  %v526 = vmax.f32 %v518, 0.0
  %v527 = vmax.f32 %v519, 0.0
  %v528 = vmax.f32 %v520, 0.0
  %529 = vst [vmem:[%s4] sm:$0xff] %v521
  %530 = vst [vmem:[%s4 + $0x8] sm:$0xff] %v522
  %531 = vst [vmem:[%s4 + $0x10] sm:$0xff] %v523
  %532 = vst [vmem:[%s4 + $0x18] sm:$0xff] %v524
  %533 = vst [vmem:[%s4 + $0x20] sm:$0xff] %v525
  %534 = vst [vmem:[%s4 + $0x28] sm:$0xff] %v526
  %535 = vst [vmem:[%s4 + $0x30] sm:$0xff] %v527
  %536 = vst [vmem:[%s4 + $0x38] sm:$0xff] %v528
  // Predicated region
  $region18: #{cycle_generator_forward.13} parent=0 // pred_check
    _
  $region19: #{cycle_generator_forward.13} parent=0 // pred_check_branch
    %538 = sbr.rel (0) target = $region21
  $region20: #{cycle_generator_forward.13} parent=0 // pred_region
    _
  $region21: #{cycle_generator_forward.13} parent=0 // pred_fallthru
    _
  // Predicated region
  $region22: #{cycle_generator_forward.13} parent=0 // pred_check
    _
  $region23: #{cycle_generator_forward.13} parent=0 // pred_check_branch
    %540 = sbr.rel (0) target = $region25
  $region24: #{cycle_generator_forward.13} parent=0 // pred_region
    _
  $region25: #{cycle_generator_forward.13} parent=0 // pred_fallthru
    _

// kernel: cycle_generator_forward.14
$region0: #{cycle_generator_forward.14}
  #allocation0 [shape = 'u32[]', space=smem, size = 0x4, offset = 0x4, fixed_abs, tag = 'smem constant byte address 0x4 - core index']
  #allocation1 [shape = 'u32[144,128]{1,0:T(1,128)}', space=vmem, size = 0x12000, scoped, tag = 'internal scratch']
  %s0 = inlined_call_operand.vmem [shape: bf16[32,288], index: 0, kind: input, shape index: {}]
  %s1 = inlined_call_operand.vmem [shape: bf16[288,256], index: 1, kind: input, shape index: {}]
  %s2 = inlined_call_operand.vmem [shape: f32[32,1], index: 2, kind: input, shape index: {}]
  %s3 = inlined_call_operand.vmem [shape: f32[32,1], index: 3, kind: input, shape index: {}]
  %s4 = inlined_call_operand.vmem [shape: f32[32,256], index: 4, kind: input, shape index: {}]
  %s5 = inlined_call_operand.vmem [shape: f32[32,256], index: 5, kind: output, shape index: {}]
  %s6 = sld [smem:[#allocation0]]
  $region30: #{cycle_generator_forward.14} parent=0
    _
  %s8 = ssub.s32 1, %s6
  %s9 = scalar_select 0, %s8, %s6
  // Predicated region
  $region2: #{cycle_generator_forward.14} parent=0 // pred_check
    _
  $region3: #{cycle_generator_forward.14} parent=0 // pred_check_branch
    %11 = sbr.rel (0) target = $region5
  $region4: #{cycle_generator_forward.14} parent=0 // pred_region
    _
  $region5: #{cycle_generator_forward.14} parent=0 // pred_fallthru
    _
  // Predicated region
  $region6: #{cycle_generator_forward.14} parent=0 // pred_check
    _
  $region7: #{cycle_generator_forward.14} parent=0 // pred_check_branch
    %13 = sbr.rel (0) target = $region9
  $region8: #{cycle_generator_forward.14} parent=0 // pred_region
    _
  $region9: #{cycle_generator_forward.14} parent=0 // pred_fallthru
    _
  // Predicated region
  $region10: #{cycle_generator_forward.14} parent=0 // pred_check
    _
  $region11: #{cycle_generator_forward.14} parent=0 // pred_check_branch
    %15 = sbr.rel (0) target = $region13
  $region12: #{cycle_generator_forward.14} parent=0 // pred_region
    _
  $region13: #{cycle_generator_forward.14} parent=0 // pred_fallthru
    _
  // Predicated region
  $region14: #{cycle_generator_forward.14} parent=0 // pred_check
    _
  $region15: #{cycle_generator_forward.14} parent=0 // pred_check_branch
    %17 = sbr.rel (0) target = $region17
  $region16: #{cycle_generator_forward.14} parent=0 // pred_region
    _
  $region17: #{cycle_generator_forward.14} parent=0 // pred_fallthru
    _
  // Predicated region
  $region18: #{cycle_generator_forward.14} parent=0 // pred_check
    _
  $region19: #{cycle_generator_forward.14} parent=0 // pred_check_branch
    %19 = sbr.rel (0) target = $region21
  $region20: #{cycle_generator_forward.14} parent=0 // pred_region
    _
  $region21: #{cycle_generator_forward.14} parent=0 // pred_fallthru
    _
  %v21 = vld [vmem:[%s0] sm:$0xff]
  %v22 = vld [vmem:[%s0 + $0x8] sm:$0xf]
  %v23 = vld [vmem:[%s0 + $0xc] sm:$0xff]
  %v24 = vld [vmem:[%s0 + $0x14] sm:$0xf]
  %v25 = vld [vmem:[%s0 + $0x18] sm:$0xff]
  %v26 = vld [vmem:[%s0 + $0x20] sm:$0xf]
  %v27 = vld [vmem:[%s0 + $0x24] sm:$0xff]
  %v28 = vld [vmem:[%s0 + $0x2c] sm:$0xf]
  %v29 = vld [vmem:[%s1] sm:$0xff]
  %v30 = vld [vmem:[%s1 + $0x8] sm:$0xff]
  %v31 = vld [vmem:[%s1 + $0x10] sm:$0xff]
  %v32 = vld [vmem:[%s1 + $0x18] sm:$0xff]
  %v33 = vld [vmem:[%s1 + $0x20] sm:$0xff]
  %v34 = vld [vmem:[%s1 + $0x28] sm:$0xff]
  %v35 = vld [vmem:[%s1 + $0x30] sm:$0xff]
  %v36 = vld [vmem:[%s1 + $0x38] sm:$0xff]
  %v37 = vld [vmem:[%s1 + $0x40] sm:$0xff]
  %v38 = vld [vmem:[%s1 + $0x48] sm:$0xff]
  %v39 = vld [vmem:[%s1 + $0x50] sm:$0xff]
  %v40 = vld [vmem:[%s1 + $0x58] sm:$0xff]
  %v41 = vld [vmem:[%s1 + $0x60] sm:$0xff]
  %v42 = vld [vmem:[%s1 + $0x68] sm:$0xff]
  %v43 = vld [vmem:[%s1 + $0x70] sm:$0xff]
  %v44 = vld [vmem:[%s1 + $0x78] sm:$0xff]
  %v45 = vld [vmem:[%s1 + $0x80] sm:$0xff]
  %v46 = vld [vmem:[%s1 + $0x88] sm:$0xff]
  %v47 = vld [vmem:[%s1 + $0x90] sm:$0xff]
  %v48 = vld [vmem:[%s1 + $0x98] sm:$0xff]
  %v49 = vld [vmem:[%s1 + $0xa0] sm:$0xff]
  %v50 = vld [vmem:[%s1 + $0xa8] sm:$0xff]
  %v51 = vld [vmem:[%s1 + $0xb0] sm:$0xff]
  %v52 = vld [vmem:[%s1 + $0xb8] sm:$0xff]
  %v53 = vld [vmem:[%s1 + $0xc0] sm:$0xff]
  %v54 = vld [vmem:[%s1 + $0xc8] sm:$0xff]
  %v55 = vld [vmem:[%s1 + $0xd0] sm:$0xff]
  %v56 = vld [vmem:[%s1 + $0xd8] sm:$0xff]
  %v57 = vld [vmem:[%s1 + $0xe0] sm:$0xff]
  %v58 = vld [vmem:[%s1 + $0xe8] sm:$0xff]
  %v59 = vld [vmem:[%s1 + $0xf0] sm:$0xff]
  %v60 = vld [vmem:[%s1 + $0xf8] sm:$0xff]
  %v61 = vld [vmem:[%s1 + $0x100] sm:$0xff]
  %v62 = vld [vmem:[%s1 + $0x108] sm:$0xff]
  %v63 = vld [vmem:[%s1 + $0x110] sm:$0xff]
  %v64 = vld [vmem:[%s1 + $0x118] sm:$0xff]
  %v73 = vunpack.c.l.b16 %v21
  %v74 = vunpack.c.h.b16 %v21
  %v75 = vunpack.c.l.b16 %v22
  %v76 = vunpack.c.l.b16 %v23
  %v77 = vunpack.c.h.b16 %v23
  %v78 = vunpack.c.l.b16 %v24
  %v79 = vunpack.c.l.b16 %v25
  %v80 = vunpack.c.h.b16 %v25
  %v81 = vunpack.c.l.b16 %v26
  %v82 = vunpack.c.l.b16 %v27
  %v83 = vunpack.c.h.b16 %v27
  %v84 = vunpack.c.l.b16 %v28
  %v85 = vpack.c.b16 %v76, %v73
  %v86 = vpack.c.b16 %v77, %v74
  %v87 = vpack.c.b16 %v78, %v75
  %v88 = vpack.c.b16 %v82, %v79
  %v89 = vpack.c.b16 %v83, %v80
  %v90 = vpack.c.b16 %v84, %v81
  %v131 = vunpack.c.l.b16 %v29
  %v132 = vunpack.c.h.b16 %v29
  %v133 = vunpack.c.l.b16 %v30
  %v134 = vunpack.c.h.b16 %v30
  %v135 = vunpack.c.l.b16 %v31
  %v136 = vunpack.c.h.b16 %v31
  %v137 = vunpack.c.l.b16 %v32
  %v138 = vunpack.c.h.b16 %v32
  %v139 = vunpack.c.l.b16 %v33
  %v140 = vunpack.c.h.b16 %v33
  %v141 = vunpack.c.l.b16 %v34
  %v142 = vunpack.c.h.b16 %v34
  %v143 = vunpack.c.l.b16 %v35
  %v144 = vunpack.c.h.b16 %v35
  %v145 = vunpack.c.l.b16 %v36
  %v146 = vunpack.c.h.b16 %v36
  %v147 = vunpack.c.l.b16 %v37
  %v148 = vunpack.c.h.b16 %v37
  %v149 = vunpack.c.l.b16 %v38
  %v150 = vunpack.c.h.b16 %v38
  %v151 = vunpack.c.l.b16 %v39
  %v152 = vunpack.c.h.b16 %v39
  %v153 = vunpack.c.l.b16 %v40
  %v154 = vunpack.c.h.b16 %v40
  %v155 = vunpack.c.l.b16 %v41
  %v156 = vunpack.c.h.b16 %v41
  %v157 = vunpack.c.l.b16 %v42
  %v158 = vunpack.c.h.b16 %v42
  %v159 = vunpack.c.l.b16 %v43
  %v160 = vunpack.c.h.b16 %v43
  %v161 = vunpack.c.l.b16 %v44
  %v162 = vunpack.c.h.b16 %v44
  %v163 = vunpack.c.l.b16 %v45
  %v164 = vunpack.c.h.b16 %v45
  %v165 = vunpack.c.l.b16 %v46
  %v166 = vunpack.c.h.b16 %v46
  %v167 = vunpack.c.l.b16 %v47
  %v168 = vunpack.c.h.b16 %v47
  %v169 = vunpack.c.l.b16 %v48
  %v170 = vunpack.c.h.b16 %v48
  %v171 = vunpack.c.l.b16 %v49
  %v172 = vunpack.c.h.b16 %v49
  %v173 = vunpack.c.l.b16 %v50
  %v174 = vunpack.c.h.b16 %v50
  %v175 = vunpack.c.l.b16 %v51
  %v176 = vunpack.c.h.b16 %v51
  %v177 = vunpack.c.l.b16 %v52
  %v178 = vunpack.c.h.b16 %v52
  %v179 = vunpack.c.l.b16 %v53
  %v180 = vunpack.c.h.b16 %v53
  %v181 = vunpack.c.l.b16 %v54
  %v182 = vunpack.c.h.b16 %v54
  %v183 = vunpack.c.l.b16 %v55
  %v184 = vunpack.c.h.b16 %v55
  %v185 = vunpack.c.l.b16 %v56
  %v186 = vunpack.c.h.b16 %v56
  %v187 = vunpack.c.l.b16 %v57
  %v188 = vunpack.c.h.b16 %v57
  %v189 = vunpack.c.l.b16 %v58
  %v190 = vunpack.c.h.b16 %v58
  %v191 = vunpack.c.l.b16 %v59
  %v192 = vunpack.c.h.b16 %v59
  %v193 = vunpack.c.l.b16 %v60
  %v194 = vunpack.c.h.b16 %v60
  %v195 = vunpack.c.l.b16 %v61
  %v196 = vunpack.c.h.b16 %v61
  %v197 = vunpack.c.l.b16 %v62
  %v198 = vunpack.c.h.b16 %v62
  %v199 = vunpack.c.l.b16 %v63
  %v200 = vunpack.c.h.b16 %v63
  %v201 = vunpack.c.l.b16 %v64
  %v202 = vunpack.c.h.b16 %v64
  %v203 = vpack.c.b16 %v133, %v131
  %v204 = vpack.c.b16 %v134, %v132
  %v205 = vpack.c.b16 %v137, %v135
  %v206 = vpack.c.b16 %v138, %v136
  %v207 = vpack.c.b16 %v141, %v139
  %v208 = vpack.c.b16 %v142, %v140
  %v209 = vpack.c.b16 %v145, %v143
  %v210 = vpack.c.b16 %v146, %v144
  %v211 = vpack.c.b16 %v149, %v147
  %v212 = vpack.c.b16 %v150, %v148
  %v213 = vpack.c.b16 %v153, %v151
  %v214 = vpack.c.b16 %v154, %v152
  %v215 = vpack.c.b16 %v157, %v155
  %v216 = vpack.c.b16 %v158, %v156
  %v217 = vpack.c.b16 %v161, %v159
  %v218 = vpack.c.b16 %v162, %v160
  %v219 = vpack.c.b16 %v165, %v163
  %v220 = vpack.c.b16 %v166, %v164
  %v221 = vpack.c.b16 %v169, %v167
  %v222 = vpack.c.b16 %v170, %v168
  %v223 = vpack.c.b16 %v173, %v171
  %v224 = vpack.c.b16 %v174, %v172
  %v225 = vpack.c.b16 %v177, %v175
  %v226 = vpack.c.b16 %v178, %v176
  %v227 = vpack.c.b16 %v181, %v179
  %v228 = vpack.c.b16 %v182, %v180
  %v229 = vpack.c.b16 %v185, %v183
  %v230 = vpack.c.b16 %v186, %v184
  %v231 = vpack.c.b16 %v189, %v187
  %v232 = vpack.c.b16 %v190, %v188
  %v233 = vpack.c.b16 %v193, %v191
  %v234 = vpack.c.b16 %v194, %v192
  %v235 = vpack.c.b16 %v197, %v195
  %v236 = vpack.c.b16 %v198, %v196
  %v237 = vpack.c.b16 %v201, %v199
  %v238 = vpack.c.b16 %v202, %v200
  %vm275 = vcmask 261120
  %v277 = vsel %vm275, %v87, 0
  %v280 = vsel %vm275, %v90, 0
  %282 = vmatprep.subr.bf16.mxu0 %v204
  %283 = vmatpush1.bf16.msra.mxu0 %v203
  %284 = vmatprep.subr.bf16.mxu0 %v206
  %285 = vmatpush1.bf16.msra.mxu0 %v205
  %286 = vmatprep.subr.bf16.mxu0 %v208
  %287 = vmatpush1.bf16.msra.mxu0 %v207
  %288 = vmatprep.subr.bf16.mxu0 %v210
  %289 = vmatpush1.bf16.msra.mxu0 %v209
  %290 = vmatprep.subr.bf16.mxu0 %v212
  %291 = vmatpush1.bf16.msra.mxu0 %v211
  %292 = vmatprep.subr.bf16.mxu0 %v214
  %293 = vmatpush1.bf16.msra.mxu0 %v213
  %294 = vmatprep.subr.bf16.mxu0 %v216
  %295 = vmatpush1.bf16.msra.mxu0 %v215
  %296 = vmatprep.subr.bf16.mxu0 %v218
  %297 = vmatpush1.bf16.msra.mxu0 %v217
  %298 = vmatprep.subr.bf16.mxu0 %v220
  %299 = vmatpush1.bf16.msra.mxu0 %v219
  %300 = vmatprep.subr.bf16.mxu0 %v222
  %301 = vmatpush1.bf16.msra.mxu0 %v221
  %302 = vmatprep.subr.bf16.mxu0 %v224
  %303 = vmatpush1.bf16.msra.mxu0 %v223
  %304 = vmatprep.subr.bf16.mxu0 %v226
  %305 = vmatpush1.bf16.msra.mxu0 %v225
  %306 = vmatprep.subr.bf16.mxu0 %v228
  %307 = vmatpush1.bf16.msra.mxu0 %v227
  %308 = vmatprep.subr.bf16.mxu0 %v230
  %309 = vmatpush1.bf16.msra.mxu0 %v229
  %310 = vmatprep.subr.bf16.mxu0 %v232
  %311 = vmatpush1.bf16.msra.mxu0 %v231
  %312 = vmatprep.subr.bf16.mxu0 %v234
  %313 = vmatpush1.bf16.msra.mxu0 %v233
  %314 = vmatprep.mubr.bf16.mxu0 %v86
  %315 = vmatmul.mubr.bf16.gmra.mrb[0].mxu0 %v85
  %v316 = vpop.f32.mrb[0].mxu0
  %v317 = vadd.f32 0.0, %v316
  %v318 = vpop.f32.mrb[0].mxu0
  %v319 = vadd.f32 0.0, %v318
  %v320 = vpop.f32.mrb[0].mxu0
  %v321 = vadd.f32 0.0, %v320
  %v322 = vpop.f32.mrb[0].mxu0
  %v323 = vadd.f32 0.0, %v322
  %324 = vmatprep.mubr.bf16.mxu0 %v89
  %325 = vmatmul.mubr.bf16.gmra.mrb[0].mxu0 %v88
  %v326 = vpop.f32.mrb[0].mxu0
  %v327 = vadd.f32 0.0, %v326
  %v328 = vpop.f32.mrb[0].mxu0
  %v329 = vadd.f32 0.0, %v328
  %v330 = vpop.f32.mrb[0].mxu0
  %v331 = vadd.f32 0.0, %v330
  %v332 = vpop.f32.mrb[0].mxu0
  %v333 = vadd.f32 0.0, %v332
  %334 = vdwg.mxu0
  %335 = vmatprep.subr.bf16.mxu0 %v236
  %336 = vmatpush1.bf16.msra.mxu0 %v235
  %337 = vmatprep.subr.bf16.mxu0 %v238
  %338 = vmatpush1.bf16.msra.mxu0 %v237
  %339 = vmatprep.subr.bf16.mxu0 0
  %340 = vmatpush1.bf16.msra.mxu0 0
  %341 = vmatprep.subr.bf16.mxu0 0
  %342 = vmatpush1.bf16.msra.mxu0 0
  %343 = vmatprep.subr.bf16.mxu0 0
  %344 = vmatpush1.bf16.msra.mxu0 0
  %345 = vmatprep.subr.bf16.mxu0 0
  %346 = vmatpush1.bf16.msra.mxu0 0
  %347 = vmatprep.subr.bf16.mxu0 0
  %348 = vmatpush1.bf16.msra.mxu0 0
  %349 = vmatprep.subr.bf16.mxu0 0
  %350 = vmatpush1.bf16.msra.mxu0 0
  %351 = vmatprep.subr.bf16.mxu0 0
  %352 = vmatpush1.bf16.msra.mxu0 0
  %353 = vmatprep.subr.bf16.mxu0 0
  %354 = vmatpush1.bf16.msra.mxu0 0
  %355 = vmatprep.subr.bf16.mxu0 0
  %356 = vmatpush1.bf16.msra.mxu0 0
  %357 = vmatprep.subr.bf16.mxu0 0
  %358 = vmatpush1.bf16.msra.mxu0 0
  %359 = vmatprep.subr.bf16.mxu0 0
  %360 = vmatpush1.bf16.msra.mxu0 0
  %361 = vmatprep.subr.bf16.mxu0 0
  %362 = vmatpush1.bf16.msra.mxu0 0
  %363 = vmatprep.subr.bf16.mxu0 0
  %364 = vmatpush1.bf16.msra.mxu0 0
  %365 = vmatprep.subr.bf16.mxu0 0
  %366 = vmatpush1.bf16.msra.mxu0 0
  %367 = vmatprep.mubr.bf16.mxu0 0
  %368 = vmatmul.mubr.bf16.gmra.mrb[0].mxu0 %v277
  %v369 = vpop.f32.mrb[0].mxu0
  %v370 = vadd.f32 %v317, %v369
  %v371 = vpop.f32.mrb[0].mxu0
  %v372 = vadd.f32 %v319, %v371
  %v373 = vpop.f32.mrb[0].mxu0
  %v374 = vadd.f32 %v321, %v373
  %v375 = vpop.f32.mrb[0].mxu0
  %v376 = vadd.f32 %v323, %v375
  %377 = vmatprep.mubr.bf16.mxu0 0
  %378 = vmatmul.mubr.bf16.gmra.mrb[0].mxu0 %v280
  %v379 = vpop.f32.mrb[0].mxu0
  %v380 = vadd.f32 %v327, %v379
  %v381 = vpop.f32.mrb[0].mxu0
  %v382 = vadd.f32 %v329, %v381
  %v383 = vpop.f32.mrb[0].mxu0
  %v384 = vadd.f32 %v331, %v383
  %v385 = vpop.f32.mrb[0].mxu0
  %v386 = vadd.f32 %v333, %v385
  %387 = vdwg.mxu0
  %v388 = vadd.f32 %v370, %v372
  %389 = vadd.xlane.f32.xlu0 %v388
  %v390 = vpop.xlane.xlu0 %389
  %v391 = vadd.f32 %v374, %v376
  %392 = vadd.xlane.f32.xlu0 %v391
  %v393 = vpop.xlane.xlu0 %392
  %v394 = vadd.f32 %v380, %v382
  %395 = vadd.xlane.f32.xlu0 %v394
  %v396 = vpop.xlane.xlu0 %395
  %v397 = vadd.f32 %v384, %v386
  %398 = vadd.xlane.f32.xlu0 %v397
  %v399 = vpop.xlane.xlu0 %398
  %v400 = vmul.f32 %v370, %v370
  %v401 = vmul.f32 %v372, %v372
  %v402 = vmul.f32 %v374, %v374
  %v403 = vmul.f32 %v376, %v376
  %v404 = vmul.f32 %v380, %v380
  %v405 = vmul.f32 %v382, %v382
  %v406 = vmul.f32 %v384, %v384
  %v407 = vmul.f32 %v386, %v386
  %v408 = vadd.f32 %v400, %v401
  %409 = vadd.xlane.f32.xlu0 %v408
  %v410 = vpop.xlane.xlu0 %409
  %v411 = vadd.f32 %v402, %v403
  %412 = vadd.xlane.f32.xlu0 %v411
  %v413 = vpop.xlane.xlu0 %412
  %v414 = vadd.f32 %v404, %v405
  %415 = vadd.xlane.f32.xlu0 %v414
  %v416 = vpop.xlane.xlu0 %415
  %v417 = vadd.f32 %v406, %v407
  %418 = vadd.xlane.f32.xlu0 %v417
  %v419 = vpop.xlane.xlu0 %418
  %v420 = vld [vmem:[%s2] sm:$0xff]
  %v421 = vld [vmem:[%s2 + $0x8] sm:$0xff]
  %v422 = vld [vmem:[%s2 + $0x10] sm:$0xff]
  %v423 = vld [vmem:[%s2 + $0x18] sm:$0xff]
  %v424 = vld [vmem:[%s3] sm:$0xff]
  %v425 = vld [vmem:[%s3 + $0x8] sm:$0xff]
  %v426 = vld [vmem:[%s3 + $0x10] sm:$0xff]
  %v427 = vld [vmem:[%s3 + $0x18] sm:$0xff]
  %v428 = vmul.f32 %v390, 0.00390625
  %v429 = vmul.f32 %v393, 0.00390625
  %v430 = vmul.f32 %v396, 0.00390625
  %v431 = vmul.f32 %v399, 0.00390625
  %v432 = vmul.f32 %v410, 0.00390625
  %v433 = vmul.f32 %v413, 0.00390625
  %v434 = vmul.f32 %v416, 0.00390625
  %v435 = vmul.f32 %v419, 0.00390625
  %v436 = vmul.f32 %v428, %v428
  %v437 = vmul.f32 %v429, %v429
  %v438 = vmul.f32 %v430, %v430
  %v439 = vmul.f32 %v431, %v431
  %v440 = vsub.f32 %v432, %v436
  %v441 = vsub.f32 %v433, %v437
  %v442 = vsub.f32 %v434, %v438
  %v443 = vsub.f32 %v435, %v439
  %v444 = vmax.f32 %v440, 0.0
  %v445 = vmax.f32 %v441, 0.0
  %v446 = vmax.f32 %v442, 0.0
  %v447 = vmax.f32 %v443, 0.0
  %v448 = vadd.f32 %v444, 1e-05
  %v449 = vadd.f32 %v445, 1e-05
  %v450 = vadd.f32 %v446, 1e-05
  %v451 = vadd.f32 %v447, 1e-05
  %v452 = vrsqrt.pop %v448
  %v453 = vrsqrt.pop %v449
  %v454 = vrsqrt.pop %v450
  %v455 = vrsqrt.pop %v451
  %v456 = vmul.f32 %v420, %v452
  %v457 = vmul.f32 %v421, %v453
  %v458 = vmul.f32 %v422, %v454
  %v459 = vmul.f32 %v423, %v455
  %v460 = vmul.f32 %v428, %v456
  %v461 = vmul.f32 %v429, %v457
  %v462 = vmul.f32 %v430, %v458
  %v463 = vmul.f32 %v431, %v459
  %v464 = vsub.f32 %v424, %v460
  %v465 = vsub.f32 %v425, %v461
  %v466 = vsub.f32 %v426, %v462
  %v467 = vsub.f32 %v427, %v463
  %v468 = vld [vmem:[%s4] sm:$0xff]
  %v469 = vld [vmem:[%s4 + $0x8] sm:$0xff]
  %v470 = vld [vmem:[%s4 + $0x10] sm:$0xff]
  %v471 = vld [vmem:[%s4 + $0x18] sm:$0xff]
  %v472 = vld [vmem:[%s4 + $0x20] sm:$0xff]
  %v473 = vld [vmem:[%s4 + $0x28] sm:$0xff]
  %v474 = vld [vmem:[%s4 + $0x30] sm:$0xff]
  %v475 = vld [vmem:[%s4 + $0x38] sm:$0xff]
  %477 = vset.pattern.permute.xlu0 0
  %478 = vperm.xlu0 %477, %v456
  %v479 = vpop.permute.xlu0 %478
  %482 = vset.pattern.permute.xlu0 0
  %483 = vperm.xlu0 %482, %v457
  %v484 = vpop.permute.xlu0 %483
  %487 = vset.pattern.permute.xlu0 0
  %488 = vperm.xlu0 %487, %v458
  %v489 = vpop.permute.xlu0 %488
  %492 = vset.pattern.permute.xlu0 0
  %493 = vperm.xlu0 %492, %v459
  %v494 = vpop.permute.xlu0 %493
  %v496 = vmul.f32 %v370, %v479
  %v497 = vmul.f32 %v372, %v479
  %v498 = vmul.f32 %v374, %v484
  %v499 = vmul.f32 %v376, %v484
  %v500 = vmul.f32 %v380, %v489
  %v501 = vmul.f32 %v382, %v489
  %v502 = vmul.f32 %v384, %v494
  %v503 = vmul.f32 %v386, %v494
  %505 = vset.pattern.permute.xlu0 0
  %506 = vperm.xlu0 %505, %v464
  %v507 = vpop.permute.xlu0 %506
  %510 = vset.pattern.permute.xlu0 0
  %511 = vperm.xlu0 %510, %v465
  %v512 = vpop.permute.xlu0 %511
  %515 = vset.pattern.permute.xlu0 0
  %516 = vperm.xlu0 %515, %v466
  %v517 = vpop.permute.xlu0 %516
  %520 = vset.pattern.permute.xlu0 0
  %521 = vperm.xlu0 %520, %v467
  %v522 = vpop.permute.xlu0 %521
  %v524 = vadd.f32 %v496, %v507
  %v525 = vadd.f32 %v497, %v507
  %v526 = vadd.f32 %v498, %v512
  %v527 = vadd.f32 %v499, %v512
  %v528 = vadd.f32 %v500, %v517
  %v529 = vadd.f32 %v501, %v517
  %v530 = vadd.f32 %v502, %v522
  %v531 = vadd.f32 %v503, %v522
  %v532 = vadd.f32 %v468, %v524
  %v533 = vadd.f32 %v469, %v525
  %v534 = vadd.f32 %v470, %v526
  %v535 = vadd.f32 %v471, %v527
  %v536 = vadd.f32 %v472, %v528
  %v537 = vadd.f32 %v473, %v529
  %v538 = vadd.f32 %v474, %v530
  %v539 = vadd.f32 %v475, %v531
  %540 = vst [vmem:[%s5] sm:$0xff] %v532
  %541 = vst [vmem:[%s5 + $0x8] sm:$0xff] %v533
  %542 = vst [vmem:[%s5 + $0x10] sm:$0xff] %v534
  %543 = vst [vmem:[%s5 + $0x18] sm:$0xff] %v535
  %544 = vst [vmem:[%s5 + $0x20] sm:$0xff] %v536
  %545 = vst [vmem:[%s5 + $0x28] sm:$0xff] %v537
  %546 = vst [vmem:[%s5 + $0x30] sm:$0xff] %v538
  %547 = vst [vmem:[%s5 + $0x38] sm:$0xff] %v539
  // Predicated region
  $region22: #{cycle_generator_forward.14} parent=0 // pred_check
    _
  $region23: #{cycle_generator_forward.14} parent=0 // pred_check_branch
    %549 = sbr.rel (0) target = $region25
  $region24: #{cycle_generator_forward.14} parent=0 // pred_region
    _
  $region25: #{cycle_generator_forward.14} parent=0 // pred_fallthru
    _
  // Predicated region
  $region26: #{cycle_generator_forward.14} parent=0 // pred_check
    _
  $region27: #{cycle_generator_forward.14} parent=0 // pred_check_branch
    %551 = sbr.rel (0) target = $region29
  $region28: #{cycle_generator_forward.14} parent=0 // pred_region
    _
  $region29: #{cycle_generator_forward.14} parent=0 // pred_fallthru
    _

// kernel: cycle_generator_forward.17
$region0: #{cycle_generator_forward.17}
  #allocation0 [shape = 'u32[]', space=smem, size = 0x4, offset = 0x4, fixed_abs, tag = 'smem constant byte address 0x4 - core index']
  #allocation1 [shape = 'u32[144,128]{1,0:T(1,128)}', space=vmem, size = 0x12000, scoped, tag = 'internal scratch']
  %s0 = inlined_call_operand.vmem [shape: bf16[4,16,128], index: 0, kind: input, shape index: {}]
  %s1 = inlined_call_operand.vmem [shape: bf16[4,128,256], index: 1, kind: input, shape index: {}]
  %s2 = inlined_call_operand.vmem [shape: f32[16,1], index: 2, kind: input, shape index: {}]
  %s3 = inlined_call_operand.vmem [shape: f32[16,1], index: 3, kind: input, shape index: {}]
  %s4 = inlined_call_operand.vmem [shape: f32[16,1024], index: 4, kind: output, shape index: {}]
  %s5 = sld [smem:[#allocation0]]
  $region26: #{cycle_generator_forward.17} parent=0
    _
  %s7 = ssub.s32 1, %s5
  %s8 = scalar_select 0, %s7, %s5
  // Predicated region
  $region2: #{cycle_generator_forward.17} parent=0 // pred_check
    _
  $region3: #{cycle_generator_forward.17} parent=0 // pred_check_branch
    %10 = sbr.rel (0) target = $region5
  $region4: #{cycle_generator_forward.17} parent=0 // pred_region
    _
  $region5: #{cycle_generator_forward.17} parent=0 // pred_fallthru
    _
  // Predicated region
  $region6: #{cycle_generator_forward.17} parent=0 // pred_check
    _
  $region7: #{cycle_generator_forward.17} parent=0 // pred_check_branch
    %12 = sbr.rel (0) target = $region9
  $region8: #{cycle_generator_forward.17} parent=0 // pred_region
    _
  $region9: #{cycle_generator_forward.17} parent=0 // pred_fallthru
    _
  // Predicated region
  $region10: #{cycle_generator_forward.17} parent=0 // pred_check
    _
  $region11: #{cycle_generator_forward.17} parent=0 // pred_check_branch
    %14 = sbr.rel (0) target = $region13
  $region12: #{cycle_generator_forward.17} parent=0 // pred_region
    _
  $region13: #{cycle_generator_forward.17} parent=0 // pred_fallthru
    _
  // Predicated region
  $region14: #{cycle_generator_forward.17} parent=0 // pred_check
    _
  $region15: #{cycle_generator_forward.17} parent=0 // pred_check_branch
    %16 = sbr.rel (0) target = $region17
  $region16: #{cycle_generator_forward.17} parent=0 // pred_region
    _
  $region17: #{cycle_generator_forward.17} parent=0 // pred_fallthru
    _
  %v18 = vld [vmem:[%s0] sm:$0xf]
  %v19 = vld [vmem:[%s0 + $0x4] sm:$0xf]
  %v20 = vld [vmem:[%s1] sm:$0xff]
  %v21 = vld [vmem:[%s1 + $0x8] sm:$0xff]
  %v22 = vld [vmem:[%s1 + $0x10] sm:$0xff]
  %v23 = vld [vmem:[%s1 + $0x18] sm:$0xff]
  %v24 = vld [vmem:[%s1 + $0x20] sm:$0xff]
  %v25 = vld [vmem:[%s1 + $0x28] sm:$0xff]
  %v26 = vld [vmem:[%s1 + $0x30] sm:$0xff]
  %v27 = vld [vmem:[%s1 + $0x38] sm:$0xff]
  %v28 = vld [vmem:[%s1 + $0x40] sm:$0xff]
  %v29 = vld [vmem:[%s1 + $0x48] sm:$0xff]
  %v30 = vld [vmem:[%s1 + $0x50] sm:$0xff]
  %v31 = vld [vmem:[%s1 + $0x58] sm:$0xff]
  %v32 = vld [vmem:[%s1 + $0x60] sm:$0xff]
  %v33 = vld [vmem:[%s1 + $0x68] sm:$0xff]
  %v34 = vld [vmem:[%s1 + $0x70] sm:$0xff]
  %v35 = vld [vmem:[%s1 + $0x78] sm:$0xff]
  %v38 = vunpack.c.l.b16 %v18
  %v39 = vunpack.c.l.b16 %v19
  %v40 = vpack.c.b16 %v39, %v38
  %v58 = vunpack.c.l.b16 %v20
  %v59 = vunpack.c.h.b16 %v20
  %v60 = vunpack.c.l.b16 %v21
  %v61 = vunpack.c.h.b16 %v21
  %v62 = vunpack.c.l.b16 %v22
  %v63 = vunpack.c.h.b16 %v22
  %v64 = vunpack.c.l.b16 %v23
  %v65 = vunpack.c.h.b16 %v23
  %v66 = vunpack.c.l.b16 %v24
  %v67 = vunpack.c.h.b16 %v24
  %v68 = vunpack.c.l.b16 %v25
  %v69 = vunpack.c.h.b16 %v25
  %v70 = vunpack.c.l.b16 %v26
  %v71 = vunpack.c.h.b16 %v26
  %v72 = vunpack.c.l.b16 %v27
  %v73 = vunpack.c.h.b16 %v27
  %v74 = vunpack.c.l.b16 %v28
  %v75 = vunpack.c.h.b16 %v28
  %v76 = vunpack.c.l.b16 %v29
  %v77 = vunpack.c.h.b16 %v29
  %v78 = vunpack.c.l.b16 %v30
  %v79 = vunpack.c.h.b16 %v30
  %v80 = vunpack.c.l.b16 %v31
  %v81 = vunpack.c.h.b16 %v31
  %v82 = vunpack.c.l.b16 %v32
  %v83 = vunpack.c.h.b16 %v32
  %v84 = vunpack.c.l.b16 %v33
  %v85 = vunpack.c.h.b16 %v33
  %v86 = vunpack.c.l.b16 %v34
  %v87 = vunpack.c.h.b16 %v34
  %v88 = vunpack.c.l.b16 %v35
  %v89 = vunpack.c.h.b16 %v35
  %v90 = vpack.c.b16 %v60, %v58
  %v91 = vpack.c.b16 %v61, %v59
  %v92 = vpack.c.b16 %v64, %v62
  %v93 = vpack.c.b16 %v65, %v63
  %v94 = vpack.c.b16 %v68, %v66
  %v95 = vpack.c.b16 %v69, %v67
  %v96 = vpack.c.b16 %v72, %v70
  %v97 = vpack.c.b16 %v73, %v71
  %v98 = vpack.c.b16 %v76, %v74
  %v99 = vpack.c.b16 %v77, %v75
  %v100 = vpack.c.b16 %v80, %v78
  %v101 = vpack.c.b16 %v81, %v79
  %v102 = vpack.c.b16 %v84, %v82
  %v103 = vpack.c.b16 %v85, %v83
  %v104 = vpack.c.b16 %v88, %v86
  %v105 = vpack.c.b16 %v89, %v87
  %122 = vmatprep.subr.bf16.mxu0 %v91
  %123 = vmatpush1.bf16.msra.mxu0 %v90
  %124 = vmatprep.subr.bf16.mxu0 %v93
  %125 = vmatpush1.bf16.msra.mxu0 %v92
  %126 = vmatprep.subr.bf16.mxu0 %v95
  %127 = vmatpush1.bf16.msra.mxu0 %v94
  %128 = vmatprep.subr.bf16.mxu0 %v97
  %129 = vmatpush1.bf16.msra.mxu0 %v96
  %130 = vmatprep.subr.bf16.mxu0 %v99
  %131 = vmatpush1.bf16.msra.mxu0 %v98
  %132 = vmatprep.subr.bf16.mxu0 %v101
  %133 = vmatpush1.bf16.msra.mxu0 %v100
  %134 = vmatprep.subr.bf16.mxu0 %v103
  %135 = vmatpush1.bf16.msra.mxu0 %v102
  %136 = vmatprep.subr.bf16.mxu0 %v105
  %137 = vmatpush1.bf16.msra.mxu0 %v104
  %138 = vmatprep.subr.bf16.mxu0 0
  %139 = vmatpush1.bf16.msra.mxu0 0
  %140 = vmatprep.subr.bf16.mxu0 0
  %141 = vmatpush1.bf16.msra.mxu0 0
  %142 = vmatprep.subr.bf16.mxu0 0
  %143 = vmatpush1.bf16.msra.mxu0 0
  %144 = vmatprep.subr.bf16.mxu0 0
  %145 = vmatpush1.bf16.msra.mxu0 0
  %146 = vmatprep.subr.bf16.mxu0 0
  %147 = vmatpush1.bf16.msra.mxu0 0
  %148 = vmatprep.subr.bf16.mxu0 0
  %149 = vmatpush1.bf16.msra.mxu0 0
  %150 = vmatprep.subr.bf16.mxu0 0
  %151 = vmatpush1.bf16.msra.mxu0 0
  %152 = vmatprep.subr.bf16.mxu0 0
  %153 = vmatpush1.bf16.msra.mxu0 0
  %154 = vmatprep.mubr.bf16.mxu0 0
  %155 = vmatmul.mubr.bf16.gmra.mrb[0].mxu0 %v40
  %v156 = vpop.f32.mrb[0].mxu0
  %v157 = vadd.f32 0.0, %v156
  %v158 = vpop.f32.mrb[0].mxu0
  %v159 = vadd.f32 0.0, %v158
  %v160 = vpop.f32.mrb[0].mxu0
  %v161 = vadd.f32 0.0, %v160
  %v162 = vpop.f32.mrb[0].mxu0
  %v163 = vadd.f32 0.0, %v162
  %164 = vdwg.mxu0
  %v165 = vadd.f32 %v157, %v159
  %166 = vadd.xlane.f32.xlu0 %v165
  %v167 = vpop.xlane.xlu0 %166
  %v168 = vadd.f32 %v161, %v163
  %169 = vadd.xlane.f32.xlu0 %v168
  %v170 = vpop.xlane.xlu0 %169
  %v171 = vadd.f32 %v167, 0.0
  %v172 = vadd.f32 %v170, 0.0
  %v173 = vmul.f32 %v157, %v157
  %v174 = vmul.f32 %v159, %v159
  %v175 = vmul.f32 %v161, %v161
  %v176 = vmul.f32 %v163, %v163
  %v177 = vadd.f32 %v173, %v174
  %178 = vadd.xlane.f32.xlu0 %v177
  %v179 = vpop.xlane.xlu0 %178
  %v180 = vadd.f32 %v175, %v176
  %181 = vadd.xlane.f32.xlu0 %v180
  %v182 = vpop.xlane.xlu0 %181
  %v183 = vadd.f32 %v179, 0.0
  %v184 = vadd.f32 %v182, 0.0
  %185 = vst [vmem:[%s4] sm:$0xff] %v157
  %186 = vst [vmem:[%s4 + $0x8] sm:$0xff] %v159
  %187 = vst [vmem:[%s4 + $0x40] sm:$0xff] %v161
  %188 = vst [vmem:[%s4 + $0x48] sm:$0xff] %v163
  %s189 = scalar_lea.vmem %s0, 8
  %v190 = vld [vmem:[%s189] sm:$0xf]
  %v191 = vld [vmem:[%s189 + $0x4] sm:$0xf]
  %s192 = scalar_lea.vmem %s1, 128
  %v193 = vld [vmem:[%s192] sm:$0xff]
  %v194 = vld [vmem:[%s192 + $0x8] sm:$0xff]
  %v195 = vld [vmem:[%s192 + $0x10] sm:$0xff]
  %v196 = vld [vmem:[%s192 + $0x18] sm:$0xff]
  %v197 = vld [vmem:[%s192 + $0x20] sm:$0xff]
  %v198 = vld [vmem:[%s192 + $0x28] sm:$0xff]
  %v199 = vld [vmem:[%s192 + $0x30] sm:$0xff]
  %v200 = vld [vmem:[%s192 + $0x38] sm:$0xff]
  %v201 = vld [vmem:[%s192 + $0x40] sm:$0xff]
  %v202 = vld [vmem:[%s192 + $0x48] sm:$0xff]
  %v203 = vld [vmem:[%s192 + $0x50] sm:$0xff]
  %v204 = vld [vmem:[%s192 + $0x58] sm:$0xff]
  %v205 = vld [vmem:[%s192 + $0x60] sm:$0xff]
  %v206 = vld [vmem:[%s192 + $0x68] sm:$0xff]
  %v207 = vld [vmem:[%s192 + $0x70] sm:$0xff]
  %v208 = vld [vmem:[%s192 + $0x78] sm:$0xff]
  %v211 = vunpack.c.l.b16 %v190
  %v212 = vunpack.c.l.b16 %v191
  %v213 = vpack.c.b16 %v212, %v211
  %v231 = vunpack.c.l.b16 %v193
  %v232 = vunpack.c.h.b16 %v193
  %v233 = vunpack.c.l.b16 %v194
  %v234 = vunpack.c.h.b16 %v194
  %v235 = vunpack.c.l.b16 %v195
  %v236 = vunpack.c.h.b16 %v195
  %v237 = vunpack.c.l.b16 %v196
  %v238 = vunpack.c.h.b16 %v196
  %v239 = vunpack.c.l.b16 %v197
  %v240 = vunpack.c.h.b16 %v197
  %v241 = vunpack.c.l.b16 %v198
  %v242 = vunpack.c.h.b16 %v198
  %v243 = vunpack.c.l.b16 %v199
  %v244 = vunpack.c.h.b16 %v199
  %v245 = vunpack.c.l.b16 %v200
  %v246 = vunpack.c.h.b16 %v200
  %v247 = vunpack.c.l.b16 %v201
  %v248 = vunpack.c.h.b16 %v201
  %v249 = vunpack.c.l.b16 %v202
  %v250 = vunpack.c.h.b16 %v202
  %v251 = vunpack.c.l.b16 %v203
  %v252 = vunpack.c.h.b16 %v203
  %v253 = vunpack.c.l.b16 %v204
  %v254 = vunpack.c.h.b16 %v204
  %v255 = vunpack.c.l.b16 %v205
  %v256 = vunpack.c.h.b16 %v205
  %v257 = vunpack.c.l.b16 %v206
  %v258 = vunpack.c.h.b16 %v206
  %v259 = vunpack.c.l.b16 %v207
  %v260 = vunpack.c.h.b16 %v207
  %v261 = vunpack.c.l.b16 %v208
  %v262 = vunpack.c.h.b16 %v208
  %v263 = vpack.c.b16 %v233, %v231
  %v264 = vpack.c.b16 %v234, %v232
  %v265 = vpack.c.b16 %v237, %v235
  %v266 = vpack.c.b16 %v238, %v236
  %v267 = vpack.c.b16 %v241, %v239
  %v268 = vpack.c.b16 %v242, %v240
  %v269 = vpack.c.b16 %v245, %v243
  %v270 = vpack.c.b16 %v246, %v244
  %v271 = vpack.c.b16 %v249, %v247
  %v272 = vpack.c.b16 %v250, %v248
  %v273 = vpack.c.b16 %v253, %v251
  %v274 = vpack.c.b16 %v254, %v252
  %v275 = vpack.c.b16 %v257, %v255
  %v276 = vpack.c.b16 %v258, %v256
  %v277 = vpack.c.b16 %v261, %v259
  %v278 = vpack.c.b16 %v262, %v260
  %295 = vmatprep.subr.bf16.mxu0 %v264
  %296 = vmatpush1.bf16.msra.mxu0 %v263
  %297 = vmatprep.subr.bf16.mxu0 %v266
  %298 = vmatpush1.bf16.msra.mxu0 %v265
  %299 = vmatprep.subr.bf16.mxu0 %v268
  %300 = vmatpush1.bf16.msra.mxu0 %v267
  %301 = vmatprep.subr.bf16.mxu0 %v270
  %302 = vmatpush1.bf16.msra.mxu0 %v269
  %303 = vmatprep.subr.bf16.mxu0 %v272
  %304 = vmatpush1.bf16.msra.mxu0 %v271
  %305 = vmatprep.subr.bf16.mxu0 %v274
  %306 = vmatpush1.bf16.msra.mxu0 %v273
  %307 = vmatprep.subr.bf16.mxu0 %v276
  %308 = vmatpush1.bf16.msra.mxu0 %v275
  %309 = vmatprep.subr.bf16.mxu0 %v278
  %310 = vmatpush1.bf16.msra.mxu0 %v277
  %311 = vmatprep.subr.bf16.mxu0 0
  %312 = vmatpush1.bf16.msra.mxu0 0
  %313 = vmatprep.subr.bf16.mxu0 0
  %314 = vmatpush1.bf16.msra.mxu0 0
  %315 = vmatprep.subr.bf16.mxu0 0
  %316 = vmatpush1.bf16.msra.mxu0 0
  %317 = vmatprep.subr.bf16.mxu0 0
  %318 = vmatpush1.bf16.msra.mxu0 0
  %319 = vmatprep.subr.bf16.mxu0 0
  %320 = vmatpush1.bf16.msra.mxu0 0
  %321 = vmatprep.subr.bf16.mxu0 0
  %322 = vmatpush1.bf16.msra.mxu0 0
  %323 = vmatprep.subr.bf16.mxu0 0
  %324 = vmatpush1.bf16.msra.mxu0 0
  %325 = vmatprep.subr.bf16.mxu0 0
  %326 = vmatpush1.bf16.msra.mxu0 0
  %327 = vmatprep.mubr.bf16.mxu0 0
  %328 = vmatmul.mubr.bf16.gmra.mrb[0].mxu0 %v213
  %v329 = vpop.f32.mrb[0].mxu0
  %v330 = vadd.f32 0.0, %v329
  %v331 = vpop.f32.mrb[0].mxu0
  %v332 = vadd.f32 0.0, %v331
  %v333 = vpop.f32.mrb[0].mxu0
  %v334 = vadd.f32 0.0, %v333
  %v335 = vpop.f32.mrb[0].mxu0
  %v336 = vadd.f32 0.0, %v335
  %337 = vdwg.mxu0
  %v338 = vadd.f32 %v330, %v332
  %339 = vadd.xlane.f32.xlu0 %v338
  %v340 = vpop.xlane.xlu0 %339
  %v341 = vadd.f32 %v334, %v336
  %342 = vadd.xlane.f32.xlu0 %v341
  %v343 = vpop.xlane.xlu0 %342
  %v344 = vadd.f32 %v171, %v340
  %v345 = vadd.f32 %v172, %v343
  %v346 = vmul.f32 %v330, %v330
  %v347 = vmul.f32 %v332, %v332
  %v348 = vmul.f32 %v334, %v334
  %v349 = vmul.f32 %v336, %v336
  %v350 = vadd.f32 %v346, %v347
  %351 = vadd.xlane.f32.xlu0 %v350
  %v352 = vpop.xlane.xlu0 %351
  %v353 = vadd.f32 %v348, %v349
  %354 = vadd.xlane.f32.xlu0 %v353
  %v355 = vpop.xlane.xlu0 %354
  %v356 = vadd.f32 %v183, %v352
  %v357 = vadd.f32 %v184, %v355
  %358 = vst [vmem:[%s4 + $0x10] sm:$0xff] %v330
  %359 = vst [vmem:[%s4 + $0x18] sm:$0xff] %v332
  %360 = vst [vmem:[%s4 + $0x50] sm:$0xff] %v334
  %361 = vst [vmem:[%s4 + $0x58] sm:$0xff] %v336
  %s362 = scalar_lea.vmem %s0, 16
  %v363 = vld [vmem:[%s362] sm:$0xf]
  %v364 = vld [vmem:[%s362 + $0x4] sm:$0xf]
  %s365 = scalar_lea.vmem %s1, 256
  %v366 = vld [vmem:[%s365] sm:$0xff]
  %v367 = vld [vmem:[%s365 + $0x8] sm:$0xff]
  %v368 = vld [vmem:[%s365 + $0x10] sm:$0xff]
  %v369 = vld [vmem:[%s365 + $0x18] sm:$0xff]
  %v370 = vld [vmem:[%s365 + $0x20] sm:$0xff]
  %v371 = vld [vmem:[%s365 + $0x28] sm:$0xff]
  %v372 = vld [vmem:[%s365 + $0x30] sm:$0xff]
  %v373 = vld [vmem:[%s365 + $0x38] sm:$0xff]
  %v374 = vld [vmem:[%s365 + $0x40] sm:$0xff]
  %v375 = vld [vmem:[%s365 + $0x48] sm:$0xff]
  %v376 = vld [vmem:[%s365 + $0x50] sm:$0xff]
  %v377 = vld [vmem:[%s365 + $0x58] sm:$0xff]
  %v378 = vld [vmem:[%s365 + $0x60] sm:$0xff]
  %v379 = vld [vmem:[%s365 + $0x68] sm:$0xff]
  %v380 = vld [vmem:[%s365 + $0x70] sm:$0xff]
  %v381 = vld [vmem:[%s365 + $0x78] sm:$0xff]
  %v384 = vunpack.c.l.b16 %v363
  %v385 = vunpack.c.l.b16 %v364
  %v386 = vpack.c.b16 %v385, %v384
  %v404 = vunpack.c.l.b16 %v366
  %v405 = vunpack.c.h.b16 %v366
  %v406 = vunpack.c.l.b16 %v367
  %v407 = vunpack.c.h.b16 %v367
  %v408 = vunpack.c.l.b16 %v368
  %v409 = vunpack.c.h.b16 %v368
  %v410 = vunpack.c.l.b16 %v369
  %v411 = vunpack.c.h.b16 %v369
  %v412 = vunpack.c.l.b16 %v370
  %v413 = vunpack.c.h.b16 %v370
  %v414 = vunpack.c.l.b16 %v371
  %v415 = vunpack.c.h.b16 %v371
  %v416 = vunpack.c.l.b16 %v372
  %v417 = vunpack.c.h.b16 %v372
  %v418 = vunpack.c.l.b16 %v373
  %v419 = vunpack.c.h.b16 %v373
  %v420 = vunpack.c.l.b16 %v374
  %v421 = vunpack.c.h.b16 %v374
  %v422 = vunpack.c.l.b16 %v375
  %v423 = vunpack.c.h.b16 %v375
  %v424 = vunpack.c.l.b16 %v376
  %v425 = vunpack.c.h.b16 %v376
  %v426 = vunpack.c.l.b16 %v377
  %v427 = vunpack.c.h.b16 %v377
  %v428 = vunpack.c.l.b16 %v378
  %v429 = vunpack.c.h.b16 %v378
  %v430 = vunpack.c.l.b16 %v379
  %v431 = vunpack.c.h.b16 %v379
  %v432 = vunpack.c.l.b16 %v380
  %v433 = vunpack.c.h.b16 %v380
  %v434 = vunpack.c.l.b16 %v381
  %v435 = vunpack.c.h.b16 %v381
  %v436 = vpack.c.b16 %v406, %v404
  %v437 = vpack.c.b16 %v407, %v405
  %v438 = vpack.c.b16 %v410, %v408
  %v439 = vpack.c.b16 %v411, %v409
  %v440 = vpack.c.b16 %v414, %v412
  %v441 = vpack.c.b16 %v415, %v413
  %v442 = vpack.c.b16 %v418, %v416
  %v443 = vpack.c.b16 %v419, %v417
  %v444 = vpack.c.b16 %v422, %v420
  %v445 = vpack.c.b16 %v423, %v421
  %v446 = vpack.c.b16 %v426, %v424
  %v447 = vpack.c.b16 %v427, %v425
  %v448 = vpack.c.b16 %v430, %v428
  %v449 = vpack.c.b16 %v431, %v429
  %v450 = vpack.c.b16 %v434, %v432
  %v451 = vpack.c.b16 %v435, %v433
  %468 = vmatprep.subr.bf16.mxu0 %v437
  %469 = vmatpush1.bf16.msra.mxu0 %v436
  %470 = vmatprep.subr.bf16.mxu0 %v439
  %471 = vmatpush1.bf16.msra.mxu0 %v438
  %472 = vmatprep.subr.bf16.mxu0 %v441
  %473 = vmatpush1.bf16.msra.mxu0 %v440
  %474 = vmatprep.subr.bf16.mxu0 %v443
  %475 = vmatpush1.bf16.msra.mxu0 %v442
  %476 = vmatprep.subr.bf16.mxu0 %v445
  %477 = vmatpush1.bf16.msra.mxu0 %v444
  %478 = vmatprep.subr.bf16.mxu0 %v447
  %479 = vmatpush1.bf16.msra.mxu0 %v446
  %480 = vmatprep.subr.bf16.mxu0 %v449
  %481 = vmatpush1.bf16.msra.mxu0 %v448
  %482 = vmatprep.subr.bf16.mxu0 %v451
  %483 = vmatpush1.bf16.msra.mxu0 %v450
  %484 = vmatprep.subr.bf16.mxu0 0
  %485 = vmatpush1.bf16.msra.mxu0 0
  %486 = vmatprep.subr.bf16.mxu0 0
  %487 = vmatpush1.bf16.msra.mxu0 0
  %488 = vmatprep.subr.bf16.mxu0 0
  %489 = vmatpush1.bf16.msra.mxu0 0
  %490 = vmatprep.subr.bf16.mxu0 0
  %491 = vmatpush1.bf16.msra.mxu0 0
  %492 = vmatprep.subr.bf16.mxu0 0
  %493 = vmatpush1.bf16.msra.mxu0 0
  %494 = vmatprep.subr.bf16.mxu0 0
  %495 = vmatpush1.bf16.msra.mxu0 0
  %496 = vmatprep.subr.bf16.mxu0 0
  %497 = vmatpush1.bf16.msra.mxu0 0
  %498 = vmatprep.subr.bf16.mxu0 0
  %499 = vmatpush1.bf16.msra.mxu0 0
  %500 = vmatprep.mubr.bf16.mxu0 0
  %501 = vmatmul.mubr.bf16.gmra.mrb[0].mxu0 %v386
  %v502 = vpop.f32.mrb[0].mxu0
  %v503 = vadd.f32 0.0, %v502
  %v504 = vpop.f32.mrb[0].mxu0
  %v505 = vadd.f32 0.0, %v504
  %v506 = vpop.f32.mrb[0].mxu0
  %v507 = vadd.f32 0.0, %v506
  %v508 = vpop.f32.mrb[0].mxu0
  %v509 = vadd.f32 0.0, %v508
  %510 = vdwg.mxu0
  %v511 = vadd.f32 %v503, %v505
  %512 = vadd.xlane.f32.xlu0 %v511
  %v513 = vpop.xlane.xlu0 %512
  %v514 = vadd.f32 %v507, %v509
  %515 = vadd.xlane.f32.xlu0 %v514
  %v516 = vpop.xlane.xlu0 %515
  %v517 = vadd.f32 %v344, %v513
  %v518 = vadd.f32 %v345, %v516
  %v519 = vmul.f32 %v503, %v503
  %v520 = vmul.f32 %v505, %v505
  %v521 = vmul.f32 %v507, %v507
  %v522 = vmul.f32 %v509, %v509
  %v523 = vadd.f32 %v519, %v520
  %524 = vadd.xlane.f32.xlu0 %v523
  %v525 = vpop.xlane.xlu0 %524
  %v526 = vadd.f32 %v521, %v522
  %527 = vadd.xlane.f32.xlu0 %v526
  %v528 = vpop.xlane.xlu0 %527
  %v529 = vadd.f32 %v356, %v525
  %v530 = vadd.f32 %v357, %v528
  %531 = vst [vmem:[%s4 + $0x20] sm:$0xff] %v503
  %532 = vst [vmem:[%s4 + $0x28] sm:$0xff] %v505
  %533 = vst [vmem:[%s4 + $0x60] sm:$0xff] %v507
  %534 = vst [vmem:[%s4 + $0x68] sm:$0xff] %v509
  %s535 = scalar_lea.vmem %s0, 24
  %v536 = vld [vmem:[%s535] sm:$0xf]
  %v537 = vld [vmem:[%s535 + $0x4] sm:$0xf]
  %s538 = scalar_lea.vmem %s1, 384
  %v539 = vld [vmem:[%s538] sm:$0xff]
  %v540 = vld [vmem:[%s538 + $0x8] sm:$0xff]
  %v541 = vld [vmem:[%s538 + $0x10] sm:$0xff]
  %v542 = vld [vmem:[%s538 + $0x18] sm:$0xff]
  %v543 = vld [vmem:[%s538 + $0x20] sm:$0xff]
  %v544 = vld [vmem:[%s538 + $0x28] sm:$0xff]
  %v545 = vld [vmem:[%s538 + $0x30] sm:$0xff]
  %v546 = vld [vmem:[%s538 + $0x38] sm:$0xff]
  %v547 = vld [vmem:[%s538 + $0x40] sm:$0xff]
  %v548 = vld [vmem:[%s538 + $0x48] sm:$0xff]
  %v549 = vld [vmem:[%s538 + $0x50] sm:$0xff]
  %v550 = vld [vmem:[%s538 + $0x58] sm:$0xff]
  %v551 = vld [vmem:[%s538 + $0x60] sm:$0xff]
  %v552 = vld [vmem:[%s538 + $0x68] sm:$0xff]
  %v553 = vld [vmem:[%s538 + $0x70] sm:$0xff]
  %v554 = vld [vmem:[%s538 + $0x78] sm:$0xff]
  %v557 = vunpack.c.l.b16 %v536
  %v558 = vunpack.c.l.b16 %v537
  %v559 = vpack.c.b16 %v558, %v557
  %v577 = vunpack.c.l.b16 %v539
  %v578 = vunpack.c.h.b16 %v539
  %v579 = vunpack.c.l.b16 %v540
  %v580 = vunpack.c.h.b16 %v540
  %v581 = vunpack.c.l.b16 %v541
  %v582 = vunpack.c.h.b16 %v541
  %v583 = vunpack.c.l.b16 %v542
  %v584 = vunpack.c.h.b16 %v542
  %v585 = vunpack.c.l.b16 %v543
  %v586 = vunpack.c.h.b16 %v543
  %v587 = vunpack.c.l.b16 %v544
  %v588 = vunpack.c.h.b16 %v544
  %v589 = vunpack.c.l.b16 %v545
  %v590 = vunpack.c.h.b16 %v545
  %v591 = vunpack.c.l.b16 %v546
  %v592 = vunpack.c.h.b16 %v546
  %v593 = vunpack.c.l.b16 %v547
  %v594 = vunpack.c.h.b16 %v547
  %v595 = vunpack.c.l.b16 %v548
  %v596 = vunpack.c.h.b16 %v548
  %v597 = vunpack.c.l.b16 %v549
  %v598 = vunpack.c.h.b16 %v549
  %v599 = vunpack.c.l.b16 %v550
  %v600 = vunpack.c.h.b16 %v550
  %v601 = vunpack.c.l.b16 %v551
  %v602 = vunpack.c.h.b16 %v551
  %v603 = vunpack.c.l.b16 %v552
  %v604 = vunpack.c.h.b16 %v552
  %v605 = vunpack.c.l.b16 %v553
  %v606 = vunpack.c.h.b16 %v553
  %v607 = vunpack.c.l.b16 %v554
  %v608 = vunpack.c.h.b16 %v554
  %v609 = vpack.c.b16 %v579, %v577
  %v610 = vpack.c.b16 %v580, %v578
  %v611 = vpack.c.b16 %v583, %v581
  %v612 = vpack.c.b16 %v584, %v582
  %v613 = vpack.c.b16 %v587, %v585
  %v614 = vpack.c.b16 %v588, %v586
  %v615 = vpack.c.b16 %v591, %v589
  %v616 = vpack.c.b16 %v592, %v590
  %v617 = vpack.c.b16 %v595, %v593
  %v618 = vpack.c.b16 %v596, %v594
  %v619 = vpack.c.b16 %v599, %v597
  %v620 = vpack.c.b16 %v600, %v598
  %v621 = vpack.c.b16 %v603, %v601
  %v622 = vpack.c.b16 %v604, %v602
  %v623 = vpack.c.b16 %v607, %v605
  %v624 = vpack.c.b16 %v608, %v606
  %641 = vmatprep.subr.bf16.mxu0 %v610
  %642 = vmatpush1.bf16.msra.mxu0 %v609
  %643 = vmatprep.subr.bf16.mxu0 %v612
  %644 = vmatpush1.bf16.msra.mxu0 %v611
  %645 = vmatprep.subr.bf16.mxu0 %v614
  %646 = vmatpush1.bf16.msra.mxu0 %v613
  %647 = vmatprep.subr.bf16.mxu0 %v616
  %648 = vmatpush1.bf16.msra.mxu0 %v615
  %649 = vmatprep.subr.bf16.mxu0 %v618
  %650 = vmatpush1.bf16.msra.mxu0 %v617
  %651 = vmatprep.subr.bf16.mxu0 %v620
  %652 = vmatpush1.bf16.msra.mxu0 %v619
  %653 = vmatprep.subr.bf16.mxu0 %v622
  %654 = vmatpush1.bf16.msra.mxu0 %v621
  %655 = vmatprep.subr.bf16.mxu0 %v624
  %656 = vmatpush1.bf16.msra.mxu0 %v623
  %657 = vmatprep.subr.bf16.mxu0 0
  %658 = vmatpush1.bf16.msra.mxu0 0
  %659 = vmatprep.subr.bf16.mxu0 0
  %660 = vmatpush1.bf16.msra.mxu0 0
  %661 = vmatprep.subr.bf16.mxu0 0
  %662 = vmatpush1.bf16.msra.mxu0 0
  %663 = vmatprep.subr.bf16.mxu0 0
  %664 = vmatpush1.bf16.msra.mxu0 0
  %665 = vmatprep.subr.bf16.mxu0 0
  %666 = vmatpush1.bf16.msra.mxu0 0
  %667 = vmatprep.subr.bf16.mxu0 0
  %668 = vmatpush1.bf16.msra.mxu0 0
  %669 = vmatprep.subr.bf16.mxu0 0
  %670 = vmatpush1.bf16.msra.mxu0 0
  %671 = vmatprep.subr.bf16.mxu0 0
  %672 = vmatpush1.bf16.msra.mxu0 0
  %673 = vmatprep.mubr.bf16.mxu0 0
  %674 = vmatmul.mubr.bf16.gmra.mrb[0].mxu0 %v559
  %v675 = vpop.f32.mrb[0].mxu0
  %v676 = vadd.f32 0.0, %v675
  %v677 = vpop.f32.mrb[0].mxu0
  %v678 = vadd.f32 0.0, %v677
  %v679 = vpop.f32.mrb[0].mxu0
  %v680 = vadd.f32 0.0, %v679
  %v681 = vpop.f32.mrb[0].mxu0
  %v682 = vadd.f32 0.0, %v681
  %683 = vdwg.mxu0
  %v684 = vadd.f32 %v676, %v678
  %685 = vadd.xlane.f32.xlu0 %v684
  %v686 = vpop.xlane.xlu0 %685
  %v687 = vadd.f32 %v680, %v682
  %688 = vadd.xlane.f32.xlu0 %v687
  %v689 = vpop.xlane.xlu0 %688
  %v690 = vadd.f32 %v517, %v686
  %v691 = vadd.f32 %v518, %v689
  %v692 = vmul.f32 %v676, %v676
  %v693 = vmul.f32 %v678, %v678
  %v694 = vmul.f32 %v680, %v680
  %v695 = vmul.f32 %v682, %v682
  %v696 = vadd.f32 %v692, %v693
  %697 = vadd.xlane.f32.xlu0 %v696
  %v698 = vpop.xlane.xlu0 %697
  %v699 = vadd.f32 %v694, %v695
  %700 = vadd.xlane.f32.xlu0 %v699
  %v701 = vpop.xlane.xlu0 %700
  %v702 = vadd.f32 %v529, %v698
  %v703 = vadd.f32 %v530, %v701
  %704 = vst [vmem:[%s4 + $0x30] sm:$0xff] %v676
  %705 = vst [vmem:[%s4 + $0x38] sm:$0xff] %v678
  %706 = vst [vmem:[%s4 + $0x70] sm:$0xff] %v680
  %707 = vst [vmem:[%s4 + $0x78] sm:$0xff] %v682
  %v708 = vld [vmem:[%s2] sm:$0xff]
  %v709 = vld [vmem:[%s2 + $0x8] sm:$0xff]
  %v710 = vld [vmem:[%s3] sm:$0xff]
  %v711 = vld [vmem:[%s3 + $0x8] sm:$0xff]
  %v712 = vmul.f32 %v690, 0.0009765625
  %v713 = vmul.f32 %v691, 0.0009765625
  %v714 = vmul.f32 %v702, 0.0009765625
  %v715 = vmul.f32 %v703, 0.0009765625
  %v716 = vmul.f32 %v712, %v712
  %v717 = vmul.f32 %v713, %v713
  %v718 = vsub.f32 %v714, %v716
  %v719 = vsub.f32 %v715, %v717
  %v720 = vmax.f32 %v718, 0.0
  %v721 = vmax.f32 %v719, 0.0
  %v722 = vadd.f32 %v720, 1e-05
  %v723 = vadd.f32 %v721, 1e-05
  %v724 = vrsqrt.pop %v722
  %v725 = vrsqrt.pop %v723
  %v726 = vmul.f32 %v708, %v724
  %v727 = vmul.f32 %v709, %v725
  %v728 = vmul.f32 %v712, %v726
  %v729 = vmul.f32 %v713, %v727
  %v730 = vsub.f32 %v710, %v728
  %v731 = vsub.f32 %v711, %v729
  %v732 = vld [vmem:[%s4] sm:$0xff]
  %v733 = vld [vmem:[%s4 + $0x8] sm:$0xff]
  %v734 = vld [vmem:[%s4 + $0x40] sm:$0xff]
  %v735 = vld [vmem:[%s4 + $0x48] sm:$0xff]
  %737 = vset.pattern.permute.xlu0 0
  %738 = vperm.xlu0 %737, %v726
  %v739 = vpop.permute.xlu0 %738
  %742 = vset.pattern.permute.xlu0 0
  %743 = vperm.xlu0 %742, %v727
  %v744 = vpop.permute.xlu0 %743
  %v746 = vmul.f32 %v732, %v739
  %v747 = vmul.f32 %v733, %v739
  %v748 = vmul.f32 %v734, %v744
  %v749 = vmul.f32 %v735, %v744
  %751 = vset.pattern.permute.xlu0 0
  %752 = vperm.xlu0 %751, %v730
  %v753 = vpop.permute.xlu0 %752
  %756 = vset.pattern.permute.xlu0 0
  %757 = vperm.xlu0 %756, %v731
  %v758 = vpop.permute.xlu0 %757
  %v760 = vadd.f32 %v746, %v753
  %v761 = vadd.f32 %v747, %v753
  %v762 = vadd.f32 %v748, %v758
  %v763 = vadd.f32 %v749, %v758
  %vm764 = vcmp.ge.f32.partialorder %v760, 0.0
  %vm765 = vcmp.ge.f32.partialorder %v761, 0.0
  %vm766 = vcmp.ge.f32.partialorder %v762, 0.0
  %vm767 = vcmp.ge.f32.partialorder %v763, 0.0
  %v768 = vmul.f32 %v760, 0.2
  %v769 = vmul.f32 %v761, 0.2
  %v770 = vmul.f32 %v762, 0.2
  %v771 = vmul.f32 %v763, 0.2
  %v772 = vsel %vm764, %v760, %v768
  %v773 = vsel %vm765, %v761, %v769
  %v774 = vsel %vm766, %v762, %v770
  %v775 = vsel %vm767, %v763, %v771
  %776 = vst [vmem:[%s4] sm:$0xff] %v772
  %777 = vst [vmem:[%s4 + $0x8] sm:$0xff] %v773
  %778 = vst [vmem:[%s4 + $0x40] sm:$0xff] %v774
  %779 = vst [vmem:[%s4 + $0x48] sm:$0xff] %v775
  %v780 = vld [vmem:[%s4 + $0x10] sm:$0xff]
  %v781 = vld [vmem:[%s4 + $0x18] sm:$0xff]
  %v782 = vld [vmem:[%s4 + $0x50] sm:$0xff]
  %v783 = vld [vmem:[%s4 + $0x58] sm:$0xff]
  %v784 = vmul.f32 %v780, %v739
  %v785 = vmul.f32 %v781, %v739
  %v786 = vmul.f32 %v782, %v744
  %v787 = vmul.f32 %v783, %v744
  %v788 = vadd.f32 %v784, %v753
  %v789 = vadd.f32 %v785, %v753
  %v790 = vadd.f32 %v786, %v758
  %v791 = vadd.f32 %v787, %v758
  %vm792 = vcmp.ge.f32.partialorder %v788, 0.0
  %vm793 = vcmp.ge.f32.partialorder %v789, 0.0
  %vm794 = vcmp.ge.f32.partialorder %v790, 0.0
  %vm795 = vcmp.ge.f32.partialorder %v791, 0.0
  %v796 = vmul.f32 %v788, 0.2
  %v797 = vmul.f32 %v789, 0.2
  %v798 = vmul.f32 %v790, 0.2
  %v799 = vmul.f32 %v791, 0.2
  %v800 = vsel %vm792, %v788, %v796
  %v801 = vsel %vm793, %v789, %v797
  %v802 = vsel %vm794, %v790, %v798
  %v803 = vsel %vm795, %v791, %v799
  %804 = vst [vmem:[%s4 + $0x10] sm:$0xff] %v800
  %805 = vst [vmem:[%s4 + $0x18] sm:$0xff] %v801
  %806 = vst [vmem:[%s4 + $0x50] sm:$0xff] %v802
  %807 = vst [vmem:[%s4 + $0x58] sm:$0xff] %v803
  %v808 = vld [vmem:[%s4 + $0x20] sm:$0xff]
  %v809 = vld [vmem:[%s4 + $0x28] sm:$0xff]
  %v810 = vld [vmem:[%s4 + $0x60] sm:$0xff]
  %v811 = vld [vmem:[%s4 + $0x68] sm:$0xff]
  %v812 = vmul.f32 %v808, %v739
  %v813 = vmul.f32 %v809, %v739
  %v814 = vmul.f32 %v810, %v744
  %v815 = vmul.f32 %v811, %v744
  %v816 = vadd.f32 %v812, %v753
  %v817 = vadd.f32 %v813, %v753
  %v818 = vadd.f32 %v814, %v758
  %v819 = vadd.f32 %v815, %v758
  %vm820 = vcmp.ge.f32.partialorder %v816, 0.0
  %vm821 = vcmp.ge.f32.partialorder %v817, 0.0
  %vm822 = vcmp.ge.f32.partialorder %v818, 0.0
  %vm823 = vcmp.ge.f32.partialorder %v819, 0.0
  %v824 = vmul.f32 %v816, 0.2
  %v825 = vmul.f32 %v817, 0.2
  %v826 = vmul.f32 %v818, 0.2
  %v827 = vmul.f32 %v819, 0.2
  %v828 = vsel %vm820, %v816, %v824
  %v829 = vsel %vm821, %v817, %v825
  %v830 = vsel %vm822, %v818, %v826
  %v831 = vsel %vm823, %v819, %v827
  %832 = vst [vmem:[%s4 + $0x20] sm:$0xff] %v828
  %833 = vst [vmem:[%s4 + $0x28] sm:$0xff] %v829
  %834 = vst [vmem:[%s4 + $0x60] sm:$0xff] %v830
  %835 = vst [vmem:[%s4 + $0x68] sm:$0xff] %v831
  %v836 = vld [vmem:[%s4 + $0x30] sm:$0xff]
  %v837 = vld [vmem:[%s4 + $0x38] sm:$0xff]
  %v838 = vld [vmem:[%s4 + $0x70] sm:$0xff]
  %v839 = vld [vmem:[%s4 + $0x78] sm:$0xff]
  %v840 = vmul.f32 %v836, %v739
  %v841 = vmul.f32 %v837, %v739
  %v842 = vmul.f32 %v838, %v744
  %v843 = vmul.f32 %v839, %v744
  %v844 = vadd.f32 %v840, %v753
  %v845 = vadd.f32 %v841, %v753
  %v846 = vadd.f32 %v842, %v758
  %v847 = vadd.f32 %v843, %v758
  %vm848 = vcmp.ge.f32.partialorder %v844, 0.0
  %vm849 = vcmp.ge.f32.partialorder %v845, 0.0
  %vm850 = vcmp.ge.f32.partialorder %v846, 0.0
  %vm851 = vcmp.ge.f32.partialorder %v847, 0.0
  %v852 = vmul.f32 %v844, 0.2
  %v853 = vmul.f32 %v845, 0.2
  %v854 = vmul.f32 %v846, 0.2
  %v855 = vmul.f32 %v847, 0.2
  %v856 = vsel %vm848, %v844, %v852
  %v857 = vsel %vm849, %v845, %v853
  %v858 = vsel %vm850, %v846, %v854
  %v859 = vsel %vm851, %v847, %v855
  %860 = vst [vmem:[%s4 + $0x30] sm:$0xff] %v856
  %861 = vst [vmem:[%s4 + $0x38] sm:$0xff] %v857
  %862 = vst [vmem:[%s4 + $0x70] sm:$0xff] %v858
  %863 = vst [vmem:[%s4 + $0x78] sm:$0xff] %v859
  // Predicated region
  $region18: #{cycle_generator_forward.17} parent=0 // pred_check
    _
  $region19: #{cycle_generator_forward.17} parent=0 // pred_check_branch
    %865 = sbr.rel (0) target = $region21
  $region20: #{cycle_generator_forward.17} parent=0 // pred_region
    _
  $region21: #{cycle_generator_forward.17} parent=0 // pred_fallthru
    _
  // Predicated region
  $region22: #{cycle_generator_forward.17} parent=0 // pred_check
    _
  $region23: #{cycle_generator_forward.17} parent=0 // pred_check_branch
    %867 = sbr.rel (0) target = $region25
  $region24: #{cycle_generator_forward.17} parent=0 // pred_region
    _
  $region25: #{cycle_generator_forward.17} parent=0 // pred_fallthru
    _

// kernel: cycle_generator_forward.18
$region0: #{cycle_generator_forward.18}
  #allocation0 [shape = 'u32[]', space=smem, size = 0x4, offset = 0x4, fixed_abs, tag = 'smem constant byte address 0x4 - core index']
  #allocation1 [shape = 'u32[144,128]{1,0:T(1,128)}', space=vmem, size = 0x12000, scoped, tag = 'internal scratch']
  %s0 = inlined_call_operand.vmem [shape: bf16[4,8,64], index: 0, kind: input, shape index: {}]
  %s1 = inlined_call_operand.vmem [shape: bf16[4,64,1024], index: 1, kind: input, shape index: {}]
  %s2 = inlined_call_operand.vmem [shape: f32[8,1], index: 2, kind: input, shape index: {}]
  %s3 = inlined_call_operand.vmem [shape: f32[8,1], index: 3, kind: input, shape index: {}]
  %s4 = inlined_call_operand.vmem [shape: f32[8,4096], index: 4, kind: output, shape index: {}]
  %s5 = sld [smem:[#allocation0]]
  $region26: #{cycle_generator_forward.18} parent=0
    _
  %s7 = ssub.s32 1, %s5
  %s8 = scalar_select 0, %s7, %s5
  // Predicated region
  $region2: #{cycle_generator_forward.18} parent=0 // pred_check
    _
  $region3: #{cycle_generator_forward.18} parent=0 // pred_check_branch
    %10 = sbr.rel (0) target = $region5
  $region4: #{cycle_generator_forward.18} parent=0 // pred_region
    _
  $region5: #{cycle_generator_forward.18} parent=0 // pred_fallthru
    _
  // Predicated region
  $region6: #{cycle_generator_forward.18} parent=0 // pred_check
    _
  $region7: #{cycle_generator_forward.18} parent=0 // pred_check_branch
    %12 = sbr.rel (0) target = $region9
  $region8: #{cycle_generator_forward.18} parent=0 // pred_region
    _
  $region9: #{cycle_generator_forward.18} parent=0 // pred_fallthru
    _
  // Predicated region
  $region10: #{cycle_generator_forward.18} parent=0 // pred_check
    _
  $region11: #{cycle_generator_forward.18} parent=0 // pred_check_branch
    %14 = sbr.rel (0) target = $region13
  $region12: #{cycle_generator_forward.18} parent=0 // pred_region
    _
  $region13: #{cycle_generator_forward.18} parent=0 // pred_fallthru
    _
  // Predicated region
  $region14: #{cycle_generator_forward.18} parent=0 // pred_check
    _
  $region15: #{cycle_generator_forward.18} parent=0 // pred_check_branch
    %16 = sbr.rel (0) target = $region17
  $region16: #{cycle_generator_forward.18} parent=0 // pred_region
    _
  $region17: #{cycle_generator_forward.18} parent=0 // pred_fallthru
    _
  %v18 = vld [vmem:[%s0] sm:$0xf]
  %v19 = vld [vmem:[%s1] sm:$0xff]
  %v20 = vld [vmem:[%s1 + $0x8] sm:$0xff]
  %v21 = vld [vmem:[%s1 + $0x10] sm:$0xff]
  %v22 = vld [vmem:[%s1 + $0x18] sm:$0xff]
  %v23 = vld [vmem:[%s1 + $0x20] sm:$0xff]
  %v24 = vld [vmem:[%s1 + $0x28] sm:$0xff]
  %v25 = vld [vmem:[%s1 + $0x30] sm:$0xff]
  %v26 = vld [vmem:[%s1 + $0x38] sm:$0xff]
  %v27 = vld [vmem:[%s1 + $0x40] sm:$0xff]
  %v28 = vld [vmem:[%s1 + $0x48] sm:$0xff]
  %v29 = vld [vmem:[%s1 + $0x50] sm:$0xff]
  %v30 = vld [vmem:[%s1 + $0x58] sm:$0xff]
  %v31 = vld [vmem:[%s1 + $0x60] sm:$0xff]
  %v32 = vld [vmem:[%s1 + $0x68] sm:$0xff]
  %v33 = vld [vmem:[%s1 + $0x70] sm:$0xff]
  %v34 = vld [vmem:[%s1 + $0x78] sm:$0xff]
  %v35 = vld [vmem:[%s1 + $0x80] sm:$0xff]
  %v36 = vld [vmem:[%s1 + $0x88] sm:$0xff]
  %v37 = vld [vmem:[%s1 + $0x90] sm:$0xff]
  %v38 = vld [vmem:[%s1 + $0x98] sm:$0xff]
  %v39 = vld [vmem:[%s1 + $0xa0] sm:$0xff]
  %v40 = vld [vmem:[%s1 + $0xa8] sm:$0xff]
  %v41 = vld [vmem:[%s1 + $0xb0] sm:$0xff]
  %v42 = vld [vmem:[%s1 + $0xb8] sm:$0xff]
  %v43 = vld [vmem:[%s1 + $0xc0] sm:$0xff]
  %v44 = vld [vmem:[%s1 + $0xc8] sm:$0xff]
  %v45 = vld [vmem:[%s1 + $0xd0] sm:$0xff]
  %v46 = vld [vmem:[%s1 + $0xd8] sm:$0xff]
  %v47 = vld [vmem:[%s1 + $0xe0] sm:$0xff]
  %v48 = vld [vmem:[%s1 + $0xe8] sm:$0xff]
  %v49 = vld [vmem:[%s1 + $0xf0] sm:$0xff]
  %v50 = vld [vmem:[%s1 + $0xf8] sm:$0xff]
  %v83 = vunpack.c.l.b16 %v19
  %v84 = vunpack.c.h.b16 %v19
  %v85 = vunpack.c.l.b16 %v20
  %v86 = vunpack.c.h.b16 %v20
  %v87 = vunpack.c.l.b16 %v21
  %v88 = vunpack.c.h.b16 %v21
  %v89 = vunpack.c.l.b16 %v22
  %v90 = vunpack.c.h.b16 %v22
  %v91 = vunpack.c.l.b16 %v23
  %v92 = vunpack.c.h.b16 %v23
  %v93 = vunpack.c.l.b16 %v24
  %v94 = vunpack.c.h.b16 %v24
  %v95 = vunpack.c.l.b16 %v25
  %v96 = vunpack.c.h.b16 %v25
  %v97 = vunpack.c.l.b16 %v26
  %v98 = vunpack.c.h.b16 %v26
  %v99 = vunpack.c.l.b16 %v27
  %v100 = vunpack.c.h.b16 %v27
  %v101 = vunpack.c.l.b16 %v28
  %v102 = vunpack.c.h.b16 %v28
  %v103 = vunpack.c.l.b16 %v29
  %v104 = vunpack.c.h.b16 %v29
  %v105 = vunpack.c.l.b16 %v30
  %v106 = vunpack.c.h.b16 %v30
  %v107 = vunpack.c.l.b16 %v31
  %v108 = vunpack.c.h.b16 %v31
  %v109 = vunpack.c.l.b16 %v32
  %v110 = vunpack.c.h.b16 %v32
  %v111 = vunpack.c.l.b16 %v33
  %v112 = vunpack.c.h.b16 %v33
  %v113 = vunpack.c.l.b16 %v34
  %v114 = vunpack.c.h.b16 %v34
  %v115 = vunpack.c.l.b16 %v35
  %v116 = vunpack.c.h.b16 %v35
  %v117 = vunpack.c.l.b16 %v36
  %v118 = vunpack.c.h.b16 %v36
  %v119 = vunpack.c.l.b16 %v37
  %v120 = vunpack.c.h.b16 %v37
  %v121 = vunpack.c.l.b16 %v38
  %v122 = vunpack.c.h.b16 %v38
  %v123 = vunpack.c.l.b16 %v39
  %v124 = vunpack.c.h.b16 %v39
  %v125 = vunpack.c.l.b16 %v40
  %v126 = vunpack.c.h.b16 %v40
  %v127 = vunpack.c.l.b16 %v41
  %v128 = vunpack.c.h.b16 %v41
  %v129 = vunpack.c.l.b16 %v42
  %v130 = vunpack.c.h.b16 %v42
  %v131 = vunpack.c.l.b16 %v43
  %v132 = vunpack.c.h.b16 %v43
  %v133 = vunpack.c.l.b16 %v44
  %v134 = vunpack.c.h.b16 %v44
  %v135 = vunpack.c.l.b16 %v45
  %v136 = vunpack.c.h.b16 %v45
  %v137 = vunpack.c.l.b16 %v46
  %v138 = vunpack.c.h.b16 %v46
  %v139 = vunpack.c.l.b16 %v47
  %v140 = vunpack.c.h.b16 %v47
  %v141 = vunpack.c.l.b16 %v48
  %v142 = vunpack.c.h.b16 %v48
  %v143 = vunpack.c.l.b16 %v49
  %v144 = vunpack.c.h.b16 %v49
  %v145 = vunpack.c.l.b16 %v50
  %v146 = vunpack.c.h.b16 %v50
  %v147 = vpack.c.b16 %v91, %v83
  %v148 = vpack.c.b16 %v92, %v84
  %v149 = vpack.c.b16 %v93, %v85
  %v150 = vpack.c.b16 %v94, %v86
  %v151 = vpack.c.b16 %v95, %v87
  %v152 = vpack.c.b16 %v96, %v88
  %v153 = vpack.c.b16 %v97, %v89
  %v154 = vpack.c.b16 %v98, %v90
  %v155 = vpack.c.b16 %v107, %v99
  %v156 = vpack.c.b16 %v108, %v100
  %v157 = vpack.c.b16 %v109, %v101
  %v158 = vpack.c.b16 %v110, %v102
  %v159 = vpack.c.b16 %v111, %v103
  %v160 = vpack.c.b16 %v112, %v104
  %v161 = vpack.c.b16 %v113, %v105
  %v162 = vpack.c.b16 %v114, %v106
  %v163 = vpack.c.b16 %v123, %v115
  %v164 = vpack.c.b16 %v124, %v116
  %v165 = vpack.c.b16 %v125, %v117
  %v166 = vpack.c.b16 %v126, %v118
  %v167 = vpack.c.b16 %v127, %v119
  %v168 = vpack.c.b16 %v128, %v120
  %v169 = vpack.c.b16 %v129, %v121
  %v170 = vpack.c.b16 %v130, %v122
  %v171 = vpack.c.b16 %v139, %v131
  %v172 = vpack.c.b16 %v140, %v132
  %v173 = vpack.c.b16 %v141, %v133
  %v174 = vpack.c.b16 %v142, %v134
  %v175 = vpack.c.b16 %v143, %v135
  %v176 = vpack.c.b16 %v144, %v136
  %v177 = vpack.c.b16 %v145, %v137
  %v178 = vpack.c.b16 %v146, %v138
  %vm211 = vcmask 523264
  %v213 = vsel %vm211, %v18, 0
  %215 = vmatprep.subr.bf16.mxu0 %v148
  %216 = vmatpush1.bf16.msra.mxu0 %v147
  %217 = vmatprep.subr.bf16.mxu0 %v156
  %218 = vmatpush1.bf16.msra.mxu0 %v155
  %219 = vmatprep.subr.bf16.mxu0 %v164
  %220 = vmatpush1.bf16.msra.mxu0 %v163
  %221 = vmatprep.subr.bf16.mxu0 %v172
  %222 = vmatpush1.bf16.msra.mxu0 %v171
  %223 = vmatprep.subr.bf16.mxu0 0
  %224 = vmatpush1.bf16.msra.mxu0 0
  %225 = vmatprep.subr.bf16.mxu0 0
  %226 = vmatpush1.bf16.msra.mxu0 0
  %227 = vmatprep.subr.bf16.mxu0 0
  %228 = vmatpush1.bf16.msra.mxu0 0
  %229 = vmatprep.subr.bf16.mxu0 0
  %230 = vmatpush1.bf16.msra.mxu0 0
  %231 = vmatprep.subr.bf16.mxu0 0
  %232 = vmatpush1.bf16.msra.mxu0 0
  %233 = vmatprep.subr.bf16.mxu0 0
  %234 = vmatpush1.bf16.msra.mxu0 0
  %235 = vmatprep.subr.bf16.mxu0 0
  %236 = vmatpush1.bf16.msra.mxu0 0
  %237 = vmatprep.subr.bf16.mxu0 0
  %238 = vmatpush1.bf16.msra.mxu0 0
  %239 = vmatprep.subr.bf16.mxu0 0
  %240 = vmatpush1.bf16.msra.mxu0 0
  %241 = vmatprep.subr.bf16.mxu0 0
  %242 = vmatpush1.bf16.msra.mxu0 0
  %243 = vmatprep.subr.bf16.mxu0 0
  %244 = vmatpush1.bf16.msra.mxu0 0
  %245 = vmatprep.subr.bf16.mxu0 0
  %246 = vmatpush1.bf16.msra.mxu0 0
  %247 = vmatprep.mubr.bf16.mxu0 0
  %248 = vmatmul.mubr.bf16.gmra.mrb[0].mxu0 %v213
  %v249 = vpop.f32.mrb[0].mxu0
  %v250 = vadd.f32 0.0, %v249
  %v251 = vpop.f32.mrb[0].mxu0
  %v252 = vadd.f32 0.0, %v251
  %v253 = vpop.f32.mrb[0].mxu0
  %v254 = vpop.f32.mrb[0].mxu0
  %255 = vdwg.mxu0
  %256 = vmatprep.subr.bf16.mxu0 %v150
  %257 = vmatpush1.bf16.msra.mxu0 %v149
  %258 = vmatprep.subr.bf16.mxu0 %v158
  %259 = vmatpush1.bf16.msra.mxu0 %v157
  %260 = vmatprep.subr.bf16.mxu0 %v166
  %261 = vmatpush1.bf16.msra.mxu0 %v165
  %262 = vmatprep.subr.bf16.mxu0 %v174
  %263 = vmatpush1.bf16.msra.mxu0 %v173
  %264 = vmatprep.subr.bf16.mxu0 0
  %265 = vmatpush1.bf16.msra.mxu0 0
  %266 = vmatprep.subr.bf16.mxu0 0
  %267 = vmatpush1.bf16.msra.mxu0 0
  %268 = vmatprep.subr.bf16.mxu0 0
  %269 = vmatpush1.bf16.msra.mxu0 0
  %270 = vmatprep.subr.bf16.mxu0 0
  %271 = vmatpush1.bf16.msra.mxu0 0
  %272 = vmatprep.subr.bf16.mxu0 0
  %273 = vmatpush1.bf16.msra.mxu0 0
  %274 = vmatprep.subr.bf16.mxu0 0
  %275 = vmatpush1.bf16.msra.mxu0 0
  %276 = vmatprep.subr.bf16.mxu0 0
  %277 = vmatpush1.bf16.msra.mxu0 0
  %278 = vmatprep.subr.bf16.mxu0 0
  %279 = vmatpush1.bf16.msra.mxu0 0
  %280 = vmatprep.subr.bf16.mxu0 0
  %281 = vmatpush1.bf16.msra.mxu0 0
  %282 = vmatprep.subr.bf16.mxu0 0
  %283 = vmatpush1.bf16.msra.mxu0 0
  %284 = vmatprep.subr.bf16.mxu0 0
  %285 = vmatpush1.bf16.msra.mxu0 0
  %286 = vmatprep.subr.bf16.mxu0 0
  %287 = vmatpush1.bf16.msra.mxu0 0
  %288 = vmatprep.mubr.bf16.mxu0 0
  %289 = vmatmul.mubr.bf16.gmra.mrb[0].mxu0 %v213
  %v290 = vpop.f32.mrb[0].mxu0
  %v291 = vadd.f32 0.0, %v290
  %v292 = vpop.f32.mrb[0].mxu0
  %v293 = vadd.f32 0.0, %v292
  %v294 = vpop.f32.mrb[0].mxu0
  %v295 = vpop.f32.mrb[0].mxu0
  %296 = vdwg.mxu0
  %297 = vmatprep.subr.bf16.mxu0 %v152
  %298 = vmatpush1.bf16.msra.mxu0 %v151
  %299 = vmatprep.subr.bf16.mxu0 %v160
  %300 = vmatpush1.bf16.msra.mxu0 %v159
  %301 = vmatprep.subr.bf16.mxu0 %v168
  %302 = vmatpush1.bf16.msra.mxu0 %v167
  %303 = vmatprep.subr.bf16.mxu0 %v176
  %304 = vmatpush1.bf16.msra.mxu0 %v175
  %305 = vmatprep.subr.bf16.mxu0 0
  %306 = vmatpush1.bf16.msra.mxu0 0
  %307 = vmatprep.subr.bf16.mxu0 0
  %308 = vmatpush1.bf16.msra.mxu0 0
  %309 = vmatprep.subr.bf16.mxu0 0
  %310 = vmatpush1.bf16.msra.mxu0 0
  %311 = vmatprep.subr.bf16.mxu0 0
  %312 = vmatpush1.bf16.msra.mxu0 0
  %313 = vmatprep.subr.bf16.mxu0 0
  %314 = vmatpush1.bf16.msra.mxu0 0
  %315 = vmatprep.subr.bf16.mxu0 0
  %316 = vmatpush1.bf16.msra.mxu0 0
  %317 = vmatprep.subr.bf16.mxu0 0
  %318 = vmatpush1.bf16.msra.mxu0 0
  %319 = vmatprep.subr.bf16.mxu0 0
  %320 = vmatpush1.bf16.msra.mxu0 0
  %321 = vmatprep.subr.bf16.mxu0 0
  %322 = vmatpush1.bf16.msra.mxu0 0
  %323 = vmatprep.subr.bf16.mxu0 0
  %324 = vmatpush1.bf16.msra.mxu0 0
  %325 = vmatprep.subr.bf16.mxu0 0
  %326 = vmatpush1.bf16.msra.mxu0 0
  %327 = vmatprep.subr.bf16.mxu0 0
  %328 = vmatpush1.bf16.msra.mxu0 0
  %329 = vmatprep.mubr.bf16.mxu0 0
  %330 = vmatmul.mubr.bf16.gmra.mrb[0].mxu0 %v213
  %v331 = vpop.f32.mrb[0].mxu0
  %v332 = vadd.f32 0.0, %v331
  %v333 = vpop.f32.mrb[0].mxu0
  %v334 = vadd.f32 0.0, %v333
  %v335 = vpop.f32.mrb[0].mxu0
  %v336 = vpop.f32.mrb[0].mxu0
  %337 = vdwg.mxu0
  %338 = vmatprep.subr.bf16.mxu0 %v154
  %339 = vmatpush1.bf16.msra.mxu0 %v153
  %340 = vmatprep.subr.bf16.mxu0 %v162
  %341 = vmatpush1.bf16.msra.mxu0 %v161
  %342 = vmatprep.subr.bf16.mxu0 %v170
  %343 = vmatpush1.bf16.msra.mxu0 %v169
  %344 = vmatprep.subr.bf16.mxu0 %v178
  %345 = vmatpush1.bf16.msra.mxu0 %v177
  %346 = vmatprep.subr.bf16.mxu0 0
  %347 = vmatpush1.bf16.msra.mxu0 0
  %348 = vmatprep.subr.bf16.mxu0 0
  %349 = vmatpush1.bf16.msra.mxu0 0
  %350 = vmatprep.subr.bf16.mxu0 0
  %351 = vmatpush1.bf16.msra.mxu0 0
  %352 = vmatprep.subr.bf16.mxu0 0
  %353 = vmatpush1.bf16.msra.mxu0 0
  %354 = vmatprep.subr.bf16.mxu0 0
  %355 = vmatpush1.bf16.msra.mxu0 0
  %356 = vmatprep.subr.bf16.mxu0 0
  %357 = vmatpush1.bf16.msra.mxu0 0
  %358 = vmatprep.subr.bf16.mxu0 0
  %359 = vmatpush1.bf16.msra.mxu0 0
  %360 = vmatprep.subr.bf16.mxu0 0
  %361 = vmatpush1.bf16.msra.mxu0 0
  %362 = vmatprep.subr.bf16.mxu0 0
  %363 = vmatpush1.bf16.msra.mxu0 0
  %364 = vmatprep.subr.bf16.mxu0 0
  %365 = vmatpush1.bf16.msra.mxu0 0
  %366 = vmatprep.subr.bf16.mxu0 0
  %367 = vmatpush1.bf16.msra.mxu0 0
  %368 = vmatprep.subr.bf16.mxu0 0
  %369 = vmatpush1.bf16.msra.mxu0 0
  %370 = vmatprep.mubr.bf16.mxu0 0
  %371 = vmatmul.mubr.bf16.gmra.mrb[0].mxu0 %v213
  %v372 = vpop.f32.mrb[0].mxu0
  %v373 = vadd.f32 0.0, %v372
  %v374 = vpop.f32.mrb[0].mxu0
  %v375 = vadd.f32 0.0, %v374
  %v376 = vpop.f32.mrb[0].mxu0
  %v377 = vpop.f32.mrb[0].mxu0
  %378 = vdwg.mxu0
  %v379 = vadd.f32 %v250, %v252
  %v380 = vadd.f32 %v379, %v291
  %v381 = vadd.f32 %v380, %v293
  %v382 = vadd.f32 %v381, %v332
  %v383 = vadd.f32 %v382, %v334
  %v384 = vadd.f32 %v383, %v373
  %v385 = vadd.f32 %v384, %v375
  %386 = vadd.xlane.f32.xlu0 %v385
  %v387 = vpop.xlane.xlu0 %386
  %v388 = vadd.f32 %v387, 0.0
  %v389 = vmul.f32 %v250, %v250
  %v390 = vmul.f32 %v252, %v252
  %v391 = vmul.f32 %v291, %v291
  %v392 = vmul.f32 %v293, %v293
  %v393 = vmul.f32 %v332, %v332
  %v394 = vmul.f32 %v334, %v334
  %v395 = vmul.f32 %v373, %v373
  %v396 = vmul.f32 %v375, %v375
  %v397 = vadd.f32 %v389, %v390
  %v398 = vadd.f32 %v397, %v391
  %v399 = vadd.f32 %v398, %v392
  %v400 = vadd.f32 %v399, %v393
  %v401 = vadd.f32 %v400, %v394
  %v402 = vadd.f32 %v401, %v395
  %v403 = vadd.f32 %v402, %v396
  %404 = vadd.xlane.f32.xlu0 %v403
  %v405 = vpop.xlane.xlu0 %404
  %v406 = vadd.f32 %v405, 0.0
  %407 = vst [vmem:[%s4] sm:$0xff] %v250
  %408 = vst [vmem:[%s4 + $0x8] sm:$0xff] %v252
  %409 = vst [vmem:[%s4 + $0x10] sm:$0xff] %v291
  %410 = vst [vmem:[%s4 + $0x18] sm:$0xff] %v293
  %411 = vst [vmem:[%s4 + $0x20] sm:$0xff] %v332
  %412 = vst [vmem:[%s4 + $0x28] sm:$0xff] %v334
  %413 = vst [vmem:[%s4 + $0x30] sm:$0xff] %v373
  %414 = vst [vmem:[%s4 + $0x38] sm:$0xff] %v375
  %s415 = scalar_lea.vmem %s0, 4
  %v416 = vld [vmem:[%s415] sm:$0xf]
  %s417 = scalar_lea.vmem %s1, 256
  %v418 = vld [vmem:[%s417] sm:$0xff]
  %v419 = vld [vmem:[%s417 + $0x8] sm:$0xff]
  %v420 = vld [vmem:[%s417 + $0x10] sm:$0xff]
  %v421 = vld [vmem:[%s417 + $0x18] sm:$0xff]
  %v422 = vld [vmem:[%s417 + $0x20] sm:$0xff]
  %v423 = vld [vmem:[%s417 + $0x28] sm:$0xff]
  %v424 = vld [vmem:[%s417 + $0x30] sm:$0xff]
  %v425 = vld [vmem:[%s417 + $0x38] sm:$0xff]
  %v426 = vld [vmem:[%s417 + $0x40] sm:$0xff]
  %v427 = vld [vmem:[%s417 + $0x48] sm:$0xff]
  %v428 = vld [vmem:[%s417 + $0x50] sm:$0xff]
  %v429 = vld [vmem:[%s417 + $0x58] sm:$0xff]
  %v430 = vld [vmem:[%s417 + $0x60] sm:$0xff]
  %v431 = vld [vmem:[%s417 + $0x68] sm:$0xff]
  %v432 = vld [vmem:[%s417 + $0x70] sm:$0xff]
  %v433 = vld [vmem:[%s417 + $0x78] sm:$0xff]
  %v434 = vld [vmem:[%s417 + $0x80] sm:$0xff]
  %v435 = vld [vmem:[%s417 + $0x88] sm:$0xff]
  %v436 = vld [vmem:[%s417 + $0x90] sm:$0xff]
  %v437 = vld [vmem:[%s417 + $0x98] sm:$0xff]
  %v438 = vld [vmem:[%s417 + $0xa0] sm:$0xff]
  %v439 = vld [vmem:[%s417 + $0xa8] sm:$0xff]
  %v440 = vld [vmem:[%s417 + $0xb0] sm:$0xff]
  %v441 = vld [vmem:[%s417 + $0xb8] sm:$0xff]
  %v442 = vld [vmem:[%s417 + $0xc0] sm:$0xff]
  %v443 = vld [vmem:[%s417 + $0xc8] sm:$0xff]
  %v444 = vld [vmem:[%s417 + $0xd0] sm:$0xff]
  %v445 = vld [vmem:[%s417 + $0xd8] sm:$0xff]
  %v446 = vld [vmem:[%s417 + $0xe0] sm:$0xff]
  %v447 = vld [vmem:[%s417 + $0xe8] sm:$0xff]
  %v448 = vld [vmem:[%s417 + $0xf0] sm:$0xff]
  %v449 = vld [vmem:[%s417 + $0xf8] sm:$0xff]
  %v482 = vunpack.c.l.b16 %v418
  %v483 = vunpack.c.h.b16 %v418
  %v484 = vunpack.c.l.b16 %v419
  %v485 = vunpack.c.h.b16 %v419
  %v486 = vunpack.c.l.b16 %v420
  %v487 = vunpack.c.h.b16 %v420
  %v488 = vunpack.c.l.b16 %v421
  %v489 = vunpack.c.h.b16 %v421
  %v490 = vunpack.c.l.b16 %v422
  %v491 = vunpack.c.h.b16 %v422
  %v492 = vunpack.c.l.b16 %v423
  %v493 = vunpack.c.h.b16 %v423
  %v494 = vunpack.c.l.b16 %v424
  %v495 = vunpack.c.h.b16 %v424
  %v496 = vunpack.c.l.b16 %v425
  %v497 = vunpack.c.h.b16 %v425
  %v498 = vunpack.c.l.b16 %v426
  %v499 = vunpack.c.h.b16 %v426
  %v500 = vunpack.c.l.b16 %v427
  %v501 = vunpack.c.h.b16 %v427
  %v502 = vunpack.c.l.b16 %v428
  %v503 = vunpack.c.h.b16 %v428
  %v504 = vunpack.c.l.b16 %v429
  %v505 = vunpack.c.h.b16 %v429
  %v506 = vunpack.c.l.b16 %v430
  %v507 = vunpack.c.h.b16 %v430
  %v508 = vunpack.c.l.b16 %v431
  %v509 = vunpack.c.h.b16 %v431
  %v510 = vunpack.c.l.b16 %v432
  %v511 = vunpack.c.h.b16 %v432
  %v512 = vunpack.c.l.b16 %v433
  %v513 = vunpack.c.h.b16 %v433
  %v514 = vunpack.c.l.b16 %v434
  %v515 = vunpack.c.h.b16 %v434
  %v516 = vunpack.c.l.b16 %v435
  %v517 = vunpack.c.h.b16 %v435
  %v518 = vunpack.c.l.b16 %v436
  %v519 = vunpack.c.h.b16 %v436
  %v520 = vunpack.c.l.b16 %v437
  %v521 = vunpack.c.h.b16 %v437
  %v522 = vunpack.c.l.b16 %v438
  %v523 = vunpack.c.h.b16 %v438
  %v524 = vunpack.c.l.b16 %v439
  %v525 = vunpack.c.h.b16 %v439
  %v526 = vunpack.c.l.b16 %v440
  %v527 = vunpack.c.h.b16 %v440
  %v528 = vunpack.c.l.b16 %v441
  %v529 = vunpack.c.h.b16 %v441
  %v530 = vunpack.c.l.b16 %v442
  %v531 = vunpack.c.h.b16 %v442
  %v532 = vunpack.c.l.b16 %v443
  %v533 = vunpack.c.h.b16 %v443
  %v534 = vunpack.c.l.b16 %v444
  %v535 = vunpack.c.h.b16 %v444
  %v536 = vunpack.c.l.b16 %v445
  %v537 = vunpack.c.h.b16 %v445
  %v538 = vunpack.c.l.b16 %v446
  %v539 = vunpack.c.h.b16 %v446
  %v540 = vunpack.c.l.b16 %v447
  %v541 = vunpack.c.h.b16 %v447
  %v542 = vunpack.c.l.b16 %v448
  %v543 = vunpack.c.h.b16 %v448
  %v544 = vunpack.c.l.b16 %v449
  %v545 = vunpack.c.h.b16 %v449
  %v546 = vpack.c.b16 %v490, %v482
  %v547 = vpack.c.b16 %v491, %v483
  %v548 = vpack.c.b16 %v492, %v484
  %v549 = vpack.c.b16 %v493, %v485
  %v550 = vpack.c.b16 %v494, %v486
  %v551 = vpack.c.b16 %v495, %v487
  %v552 = vpack.c.b16 %v496, %v488
  %v553 = vpack.c.b16 %v497, %v489
  %v554 = vpack.c.b16 %v506, %v498
  %v555 = vpack.c.b16 %v507, %v499
  %v556 = vpack.c.b16 %v508, %v500
  %v557 = vpack.c.b16 %v509, %v501
  %v558 = vpack.c.b16 %v510, %v502
  %v559 = vpack.c.b16 %v511, %v503
  %v560 = vpack.c.b16 %v512, %v504
  %v561 = vpack.c.b16 %v513, %v505
  %v562 = vpack.c.b16 %v522, %v514
  %v563 = vpack.c.b16 %v523, %v515
  %v564 = vpack.c.b16 %v524, %v516
  %v565 = vpack.c.b16 %v525, %v517
  %v566 = vpack.c.b16 %v526, %v518
  %v567 = vpack.c.b16 %v527, %v519
  %v568 = vpack.c.b16 %v528, %v520
  %v569 = vpack.c.b16 %v529, %v521
  %v570 = vpack.c.b16 %v538, %v530
  %v571 = vpack.c.b16 %v539, %v531
  %v572 = vpack.c.b16 %v540, %v532
  %v573 = vpack.c.b16 %v541, %v533
  %v574 = vpack.c.b16 %v542, %v534
  %v575 = vpack.c.b16 %v543, %v535
  %v576 = vpack.c.b16 %v544, %v536
  %v577 = vpack.c.b16 %v545, %v537
  %v611 = vsel %vm211, %v416, 0
  %613 = vmatprep.subr.bf16.mxu0 %v547
  %614 = vmatpush1.bf16.msra.mxu0 %v546
  %615 = vmatprep.subr.bf16.mxu0 %v555
  %616 = vmatpush1.bf16.msra.mxu0 %v554
  %617 = vmatprep.subr.bf16.mxu0 %v563
  %618 = vmatpush1.bf16.msra.mxu0 %v562
  %619 = vmatprep.subr.bf16.mxu0 %v571
  %620 = vmatpush1.bf16.msra.mxu0 %v570
  %621 = vmatprep.subr.bf16.mxu0 0
  %622 = vmatpush1.bf16.msra.mxu0 0
  %623 = vmatprep.subr.bf16.mxu0 0
  %624 = vmatpush1.bf16.msra.mxu0 0
  %625 = vmatprep.subr.bf16.mxu0 0
  %626 = vmatpush1.bf16.msra.mxu0 0
  %627 = vmatprep.subr.bf16.mxu0 0
  %628 = vmatpush1.bf16.msra.mxu0 0
  %629 = vmatprep.subr.bf16.mxu0 0
  %630 = vmatpush1.bf16.msra.mxu0 0
  %631 = vmatprep.subr.bf16.mxu0 0
  %632 = vmatpush1.bf16.msra.mxu0 0
  %633 = vmatprep.subr.bf16.mxu0 0
  %634 = vmatpush1.bf16.msra.mxu0 0
  %635 = vmatprep.subr.bf16.mxu0 0
  %636 = vmatpush1.bf16.msra.mxu0 0
  %637 = vmatprep.subr.bf16.mxu0 0
  %638 = vmatpush1.bf16.msra.mxu0 0
  %639 = vmatprep.subr.bf16.mxu0 0
  %640 = vmatpush1.bf16.msra.mxu0 0
  %641 = vmatprep.subr.bf16.mxu0 0
  %642 = vmatpush1.bf16.msra.mxu0 0
  %643 = vmatprep.subr.bf16.mxu0 0
  %644 = vmatpush1.bf16.msra.mxu0 0
  %645 = vmatprep.mubr.bf16.mxu0 0
  %646 = vmatmul.mubr.bf16.gmra.mrb[0].mxu0 %v611
  %v647 = vpop.f32.mrb[0].mxu0
  %v648 = vadd.f32 0.0, %v647
  %v649 = vpop.f32.mrb[0].mxu0
  %v650 = vadd.f32 0.0, %v649
  %v651 = vpop.f32.mrb[0].mxu0
  %v652 = vpop.f32.mrb[0].mxu0
  %653 = vdwg.mxu0
  %654 = vmatprep.subr.bf16.mxu0 %v549
  %655 = vmatpush1.bf16.msra.mxu0 %v548
  %656 = vmatprep.subr.bf16.mxu0 %v557
  %657 = vmatpush1.bf16.msra.mxu0 %v556
  %658 = vmatprep.subr.bf16.mxu0 %v565
  %659 = vmatpush1.bf16.msra.mxu0 %v564
  %660 = vmatprep.subr.bf16.mxu0 %v573
  %661 = vmatpush1.bf16.msra.mxu0 %v572
  %662 = vmatprep.subr.bf16.mxu0 0
  %663 = vmatpush1.bf16.msra.mxu0 0
  %664 = vmatprep.subr.bf16.mxu0 0
  %665 = vmatpush1.bf16.msra.mxu0 0
  %666 = vmatprep.subr.bf16.mxu0 0
  %667 = vmatpush1.bf16.msra.mxu0 0
  %668 = vmatprep.subr.bf16.mxu0 0
  %669 = vmatpush1.bf16.msra.mxu0 0
  %670 = vmatprep.subr.bf16.mxu0 0
  %671 = vmatpush1.bf16.msra.mxu0 0
  %672 = vmatprep.subr.bf16.mxu0 0
  %673 = vmatpush1.bf16.msra.mxu0 0
  %674 = vmatprep.subr.bf16.mxu0 0
  %675 = vmatpush1.bf16.msra.mxu0 0
  %676 = vmatprep.subr.bf16.mxu0 0
  %677 = vmatpush1.bf16.msra.mxu0 0
  %678 = vmatprep.subr.bf16.mxu0 0
  %679 = vmatpush1.bf16.msra.mxu0 0
  %680 = vmatprep.subr.bf16.mxu0 0
  %681 = vmatpush1.bf16.msra.mxu0 0
  %682 = vmatprep.subr.bf16.mxu0 0
  %683 = vmatpush1.bf16.msra.mxu0 0
  %684 = vmatprep.subr.bf16.mxu0 0
  %685 = vmatpush1.bf16.msra.mxu0 0
  %686 = vmatprep.mubr.bf16.mxu0 0
  %687 = vmatmul.mubr.bf16.gmra.mrb[0].mxu0 %v611
  %v688 = vpop.f32.mrb[0].mxu0
  %v689 = vadd.f32 0.0, %v688
  %v690 = vpop.f32.mrb[0].mxu0
  %v691 = vadd.f32 0.0, %v690
  %v692 = vpop.f32.mrb[0].mxu0
  %v693 = vpop.f32.mrb[0].mxu0
  %694 = vdwg.mxu0
  %695 = vmatprep.subr.bf16.mxu0 %v551
  %696 = vmatpush1.bf16.msra.mxu0 %v550
  %697 = vmatprep.subr.bf16.mxu0 %v559
  %698 = vmatpush1.bf16.msra.mxu0 %v558
  %699 = vmatprep.subr.bf16.mxu0 %v567
  %700 = vmatpush1.bf16.msra.mxu0 %v566
  %701 = vmatprep.subr.bf16.mxu0 %v575
  %702 = vmatpush1.bf16.msra.mxu0 %v574
  %703 = vmatprep.subr.bf16.mxu0 0
  %704 = vmatpush1.bf16.msra.mxu0 0
  %705 = vmatprep.subr.bf16.mxu0 0
  %706 = vmatpush1.bf16.msra.mxu0 0
  %707 = vmatprep.subr.bf16.mxu0 0
  %708 = vmatpush1.bf16.msra.mxu0 0
  %709 = vmatprep.subr.bf16.mxu0 0
  %710 = vmatpush1.bf16.msra.mxu0 0
  %711 = vmatprep.subr.bf16.mxu0 0
  %712 = vmatpush1.bf16.msra.mxu0 0
  %713 = vmatprep.subr.bf16.mxu0 0
  %714 = vmatpush1.bf16.msra.mxu0 0
  %715 = vmatprep.subr.bf16.mxu0 0
  %716 = vmatpush1.bf16.msra.mxu0 0
  %717 = vmatprep.subr.bf16.mxu0 0
  %718 = vmatpush1.bf16.msra.mxu0 0
  %719 = vmatprep.subr.bf16.mxu0 0
  %720 = vmatpush1.bf16.msra.mxu0 0
  %721 = vmatprep.subr.bf16.mxu0 0
  %722 = vmatpush1.bf16.msra.mxu0 0
  %723 = vmatprep.subr.bf16.mxu0 0
  %724 = vmatpush1.bf16.msra.mxu0 0
  %725 = vmatprep.subr.bf16.mxu0 0
  %726 = vmatpush1.bf16.msra.mxu0 0
  %727 = vmatprep.mubr.bf16.mxu0 0
  %728 = vmatmul.mubr.bf16.gmra.mrb[0].mxu0 %v611
  %v729 = vpop.f32.mrb[0].mxu0
  %v730 = vadd.f32 0.0, %v729
  %v731 = vpop.f32.mrb[0].mxu0
  %v732 = vadd.f32 0.0, %v731
  %v733 = vpop.f32.mrb[0].mxu0
  %v734 = vpop.f32.mrb[0].mxu0
  %735 = vdwg.mxu0
  %736 = vmatprep.subr.bf16.mxu0 %v553
  %737 = vmatpush1.bf16.msra.mxu0 %v552
  %738 = vmatprep.subr.bf16.mxu0 %v561
  %739 = vmatpush1.bf16.msra.mxu0 %v560
  %740 = vmatprep.subr.bf16.mxu0 %v569
  %741 = vmatpush1.bf16.msra.mxu0 %v568
  %742 = vmatprep.subr.bf16.mxu0 %v577
  %743 = vmatpush1.bf16.msra.mxu0 %v576
  %744 = vmatprep.subr.bf16.mxu0 0
  %745 = vmatpush1.bf16.msra.mxu0 0
  %746 = vmatprep.subr.bf16.mxu0 0
  %747 = vmatpush1.bf16.msra.mxu0 0
  %748 = vmatprep.subr.bf16.mxu0 0
  %749 = vmatpush1.bf16.msra.mxu0 0
  %750 = vmatprep.subr.bf16.mxu0 0
  %751 = vmatpush1.bf16.msra.mxu0 0
  %752 = vmatprep.subr.bf16.mxu0 0
  %753 = vmatpush1.bf16.msra.mxu0 0
  %754 = vmatprep.subr.bf16.mxu0 0
  %755 = vmatpush1.bf16.msra.mxu0 0
  %756 = vmatprep.subr.bf16.mxu0 0
  %757 = vmatpush1.bf16.msra.mxu0 0
  %758 = vmatprep.subr.bf16.mxu0 0
  %759 = vmatpush1.bf16.msra.mxu0 0
  %760 = vmatprep.subr.bf16.mxu0 0
  %761 = vmatpush1.bf16.msra.mxu0 0
  %762 = vmatprep.subr.bf16.mxu0 0
  %763 = vmatpush1.bf16.msra.mxu0 0
  %764 = vmatprep.subr.bf16.mxu0 0
  %765 = vmatpush1.bf16.msra.mxu0 0
  %766 = vmatprep.subr.bf16.mxu0 0
  %767 = vmatpush1.bf16.msra.mxu0 0
  %768 = vmatprep.mubr.bf16.mxu0 0
  %769 = vmatmul.mubr.bf16.gmra.mrb[0].mxu0 %v611
  %v770 = vpop.f32.mrb[0].mxu0
  %v771 = vadd.f32 0.0, %v770
  %v772 = vpop.f32.mrb[0].mxu0
  %v773 = vadd.f32 0.0, %v772
  %v774 = vpop.f32.mrb[0].mxu0
  %v775 = vpop.f32.mrb[0].mxu0
  %776 = vdwg.mxu0
  %v777 = vadd.f32 %v648, %v650
  %v778 = vadd.f32 %v777, %v689
  %v779 = vadd.f32 %v778, %v691
  %v780 = vadd.f32 %v779, %v730
  %v781 = vadd.f32 %v780, %v732
  %v782 = vadd.f32 %v781, %v771
  %v783 = vadd.f32 %v782, %v773
  %784 = vadd.xlane.f32.xlu0 %v783
  %v785 = vpop.xlane.xlu0 %784
  %v786 = vadd.f32 %v388, %v785
  %v787 = vmul.f32 %v648, %v648
  %v788 = vmul.f32 %v650, %v650
  %v789 = vmul.f32 %v689, %v689
  %v790 = vmul.f32 %v691, %v691
  %v791 = vmul.f32 %v730, %v730
  %v792 = vmul.f32 %v732, %v732
  %v793 = vmul.f32 %v771, %v771
  %v794 = vmul.f32 %v773, %v773
  %v795 = vadd.f32 %v787, %v788
  %v796 = vadd.f32 %v795, %v789
  %v797 = vadd.f32 %v796, %v790
  %v798 = vadd.f32 %v797, %v791
  %v799 = vadd.f32 %v798, %v792
  %v800 = vadd.f32 %v799, %v793
  %v801 = vadd.f32 %v800, %v794
  %802 = vadd.xlane.f32.xlu0 %v801
  %v803 = vpop.xlane.xlu0 %802
  %v804 = vadd.f32 %v406, %v803
  %805 = vst [vmem:[%s4 + $0x40] sm:$0xff] %v648
  %806 = vst [vmem:[%s4 + $0x48] sm:$0xff] %v650
  %807 = vst [vmem:[%s4 + $0x50] sm:$0xff] %v689
  %808 = vst [vmem:[%s4 + $0x58] sm:$0xff] %v691
  %809 = vst [vmem:[%s4 + $0x60] sm:$0xff] %v730
  %810 = vst [vmem:[%s4 + $0x68] sm:$0xff] %v732
  %811 = vst [vmem:[%s4 + $0x70] sm:$0xff] %v771
  %812 = vst [vmem:[%s4 + $0x78] sm:$0xff] %v773
  %s813 = scalar_lea.vmem %s0, 8
  %v814 = vld [vmem:[%s813] sm:$0xf]
  %s815 = scalar_lea.vmem %s1, 512
  %v816 = vld [vmem:[%s815] sm:$0xff]
  %v817 = vld [vmem:[%s815 + $0x8] sm:$0xff]
  %v818 = vld [vmem:[%s815 + $0x10] sm:$0xff]
  %v819 = vld [vmem:[%s815 + $0x18] sm:$0xff]
  %v820 = vld [vmem:[%s815 + $0x20] sm:$0xff]
  %v821 = vld [vmem:[%s815 + $0x28] sm:$0xff]
  %v822 = vld [vmem:[%s815 + $0x30] sm:$0xff]
  %v823 = vld [vmem:[%s815 + $0x38] sm:$0xff]
  %v824 = vld [vmem:[%s815 + $0x40] sm:$0xff]
  %v825 = vld [vmem:[%s815 + $0x48] sm:$0xff]
  %v826 = vld [vmem:[%s815 + $0x50] sm:$0xff]
  %v827 = vld [vmem:[%s815 + $0x58] sm:$0xff]
  %v828 = vld [vmem:[%s815 + $0x60] sm:$0xff]
  %v829 = vld [vmem:[%s815 + $0x68] sm:$0xff]
  %v830 = vld [vmem:[%s815 + $0x70] sm:$0xff]
  %v831 = vld [vmem:[%s815 + $0x78] sm:$0xff]
  %v832 = vld [vmem:[%s815 + $0x80] sm:$0xff]
  %v833 = vld [vmem:[%s815 + $0x88] sm:$0xff]
  %v834 = vld [vmem:[%s815 + $0x90] sm:$0xff]
  %v835 = vld [vmem:[%s815 + $0x98] sm:$0xff]
  %v836 = vld [vmem:[%s815 + $0xa0] sm:$0xff]
  %v837 = vld [vmem:[%s815 + $0xa8] sm:$0xff]
  %v838 = vld [vmem:[%s815 + $0xb0] sm:$0xff]
  %v839 = vld [vmem:[%s815 + $0xb8] sm:$0xff]
  %v840 = vld [vmem:[%s815 + $0xc0] sm:$0xff]
  %v841 = vld [vmem:[%s815 + $0xc8] sm:$0xff]
  %v842 = vld [vmem:[%s815 + $0xd0] sm:$0xff]
  %v843 = vld [vmem:[%s815 + $0xd8] sm:$0xff]
  %v844 = vld [vmem:[%s815 + $0xe0] sm:$0xff]
  %v845 = vld [vmem:[%s815 + $0xe8] sm:$0xff]
  %v846 = vld [vmem:[%s815 + $0xf0] sm:$0xff]
  %v847 = vld [vmem:[%s815 + $0xf8] sm:$0xff]
  %v880 = vunpack.c.l.b16 %v816
  %v881 = vunpack.c.h.b16 %v816
  %v882 = vunpack.c.l.b16 %v817
  %v883 = vunpack.c.h.b16 %v817
  %v884 = vunpack.c.l.b16 %v818
  %v885 = vunpack.c.h.b16 %v818
  %v886 = vunpack.c.l.b16 %v819
  %v887 = vunpack.c.h.b16 %v819
  %v888 = vunpack.c.l.b16 %v820
  %v889 = vunpack.c.h.b16 %v820
  %v890 = vunpack.c.l.b16 %v821
  %v891 = vunpack.c.h.b16 %v821
  %v892 = vunpack.c.l.b16 %v822
  %v893 = vunpack.c.h.b16 %v822
  %v894 = vunpack.c.l.b16 %v823
  %v895 = vunpack.c.h.b16 %v823
  %v896 = vunpack.c.l.b16 %v824
  %v897 = vunpack.c.h.b16 %v824
  %v898 = vunpack.c.l.b16 %v825
  %v899 = vunpack.c.h.b16 %v825
  %v900 = vunpack.c.l.b16 %v826
  %v901 = vunpack.c.h.b16 %v826
  %v902 = vunpack.c.l.b16 %v827
  %v903 = vunpack.c.h.b16 %v827
  %v904 = vunpack.c.l.b16 %v828
  %v905 = vunpack.c.h.b16 %v828
  %v906 = vunpack.c.l.b16 %v829
  %v907 = vunpack.c.h.b16 %v829
  %v908 = vunpack.c.l.b16 %v830
  %v909 = vunpack.c.h.b16 %v830
  %v910 = vunpack.c.l.b16 %v831
  %v911 = vunpack.c.h.b16 %v831
  %v912 = vunpack.c.l.b16 %v832
  %v913 = vunpack.c.h.b16 %v832
  %v914 = vunpack.c.l.b16 %v833
  %v915 = vunpack.c.h.b16 %v833
  %v916 = vunpack.c.l.b16 %v834
  %v917 = vunpack.c.h.b16 %v834
  %v918 = vunpack.c.l.b16 %v835
  %v919 = vunpack.c.h.b16 %v835
  %v920 = vunpack.c.l.b16 %v836
  %v921 = vunpack.c.h.b16 %v836
  %v922 = vunpack.c.l.b16 %v837
  %v923 = vunpack.c.h.b16 %v837
  %v924 = vunpack.c.l.b16 %v838
  %v925 = vunpack.c.h.b16 %v838
  %v926 = vunpack.c.l.b16 %v839
  %v927 = vunpack.c.h.b16 %v839
  %v928 = vunpack.c.l.b16 %v840
  %v929 = vunpack.c.h.b16 %v840
  %v930 = vunpack.c.l.b16 %v841
  %v931 = vunpack.c.h.b16 %v841
  %v932 = vunpack.c.l.b16 %v842
  %v933 = vunpack.c.h.b16 %v842
  %v934 = vunpack.c.l.b16 %v843
  %v935 = vunpack.c.h.b16 %v843
  %v936 = vunpack.c.l.b16 %v844
  %v937 = vunpack.c.h.b16 %v844
  %v938 = vunpack.c.l.b16 %v845
  %v939 = vunpack.c.h.b16 %v845
  %v940 = vunpack.c.l.b16 %v846
  %v941 = vunpack.c.h.b16 %v846
  %v942 = vunpack.c.l.b16 %v847
  %v943 = vunpack.c.h.b16 %v847
  %v944 = vpack.c.b16 %v888, %v880
  %v945 = vpack.c.b16 %v889, %v881
  %v946 = vpack.c.b16 %v890, %v882
  %v947 = vpack.c.b16 %v891, %v883
  %v948 = vpack.c.b16 %v892, %v884
  %v949 = vpack.c.b16 %v893, %v885
  %v950 = vpack.c.b16 %v894, %v886
  %v951 = vpack.c.b16 %v895, %v887
  %v952 = vpack.c.b16 %v904, %v896
  %v953 = vpack.c.b16 %v905, %v897
  %v954 = vpack.c.b16 %v906, %v898
  %v955 = vpack.c.b16 %v907, %v899
  %v956 = vpack.c.b16 %v908, %v900
  %v957 = vpack.c.b16 %v909, %v901
  %v958 = vpack.c.b16 %v910, %v902
  %v959 = vpack.c.b16 %v911, %v903
  %v960 = vpack.c.b16 %v920, %v912
  %v961 = vpack.c.b16 %v921, %v913
  %v962 = vpack.c.b16 %v922, %v914
  %v963 = vpack.c.b16 %v923, %v915
  %v964 = vpack.c.b16 %v924, %v916
  %v965 = vpack.c.b16 %v925, %v917
  %v966 = vpack.c.b16 %v926, %v918
  %v967 = vpack.c.b16 %v927, %v919
  %v968 = vpack.c.b16 %v936, %v928
  %v969 = vpack.c.b16 %v937, %v929
  %v970 = vpack.c.b16 %v938, %v930
  %v971 = vpack.c.b16 %v939, %v931
  %v972 = vpack.c.b16 %v940, %v932
  %v973 = vpack.c.b16 %v941, %v933
  %v974 = vpack.c.b16 %v942, %v934
  %v975 = vpack.c.b16 %v943, %v935
  %v1009 = vsel %vm211, %v814, 0
  %1011 = vmatprep.subr.bf16.mxu0 %v945
  %1012 = vmatpush1.bf16.msra.mxu0 %v944
  %1013 = vmatprep.subr.bf16.mxu0 %v953
  %1014 = vmatpush1.bf16.msra.mxu0 %v952
  %1015 = vmatprep.subr.bf16.mxu0 %v961
  %1016 = vmatpush1.bf16.msra.mxu0 %v960
  %1017 = vmatprep.subr.bf16.mxu0 %v969
  %1018 = vmatpush1.bf16.msra.mxu0 %v968
  %1019 = vmatprep.subr.bf16.mxu0 0
  %1020 = vmatpush1.bf16.msra.mxu0 0
  %1021 = vmatprep.subr.bf16.mxu0 0
  %1022 = vmatpush1.bf16.msra.mxu0 0
  %1023 = vmatprep.subr.bf16.mxu0 0
  %1024 = vmatpush1.bf16.msra.mxu0 0
  %1025 = vmatprep.subr.bf16.mxu0 0
  %1026 = vmatpush1.bf16.msra.mxu0 0
  %1027 = vmatprep.subr.bf16.mxu0 0
  %1028 = vmatpush1.bf16.msra.mxu0 0
  %1029 = vmatprep.subr.bf16.mxu0 0
  %1030 = vmatpush1.bf16.msra.mxu0 0
  %1031 = vmatprep.subr.bf16.mxu0 0
  %1032 = vmatpush1.bf16.msra.mxu0 0
  %1033 = vmatprep.subr.bf16.mxu0 0
  %1034 = vmatpush1.bf16.msra.mxu0 0
  %1035 = vmatprep.subr.bf16.mxu0 0
  %1036 = vmatpush1.bf16.msra.mxu0 0
  %1037 = vmatprep.subr.bf16.mxu0 0
  %1038 = vmatpush1.bf16.msra.mxu0 0
  %1039 = vmatprep.subr.bf16.mxu0 0
  %1040 = vmatpush1.bf16.msra.mxu0 0
  %1041 = vmatprep.subr.bf16.mxu0 0
  %1042 = vmatpush1.bf16.msra.mxu0 0
  %1043 = vmatprep.mubr.bf16.mxu0 0
  %1044 = vmatmul.mubr.bf16.gmra.mrb[0].mxu0 %v1009
  %v1045 = vpop.f32.mrb[0].mxu0
  %v1046 = vadd.f32 0.0, %v1045
  %v1047 = vpop.f32.mrb[0].mxu0
  %v1048 = vadd.f32 0.0, %v1047
  %v1049 = vpop.f32.mrb[0].mxu0
  %v1050 = vpop.f32.mrb[0].mxu0
  %1051 = vdwg.mxu0
  %1052 = vmatprep.subr.bf16.mxu0 %v947
  %1053 = vmatpush1.bf16.msra.mxu0 %v946
  %1054 = vmatprep.subr.bf16.mxu0 %v955
  %1055 = vmatpush1.bf16.msra.mxu0 %v954
  %1056 = vmatprep.subr.bf16.mxu0 %v963
  %1057 = vmatpush1.bf16.msra.mxu0 %v962
  %1058 = vmatprep.subr.bf16.mxu0 %v971
  %1059 = vmatpush1.bf16.msra.mxu0 %v970
  %1060 = vmatprep.subr.bf16.mxu0 0
  %1061 = vmatpush1.bf16.msra.mxu0 0
  %1062 = vmatprep.subr.bf16.mxu0 0
  %1063 = vmatpush1.bf16.msra.mxu0 0
  %1064 = vmatprep.subr.bf16.mxu0 0
  %1065 = vmatpush1.bf16.msra.mxu0 0
  %1066 = vmatprep.subr.bf16.mxu0 0
  %1067 = vmatpush1.bf16.msra.mxu0 0
  %1068 = vmatprep.subr.bf16.mxu0 0
  %1069 = vmatpush1.bf16.msra.mxu0 0
  %1070 = vmatprep.subr.bf16.mxu0 0
  %1071 = vmatpush1.bf16.msra.mxu0 0
  %1072 = vmatprep.subr.bf16.mxu0 0
  %1073 = vmatpush1.bf16.msra.mxu0 0
  %1074 = vmatprep.subr.bf16.mxu0 0
  %1075 = vmatpush1.bf16.msra.mxu0 0
  %1076 = vmatprep.subr.bf16.mxu0 0
  %1077 = vmatpush1.bf16.msra.mxu0 0
  %1078 = vmatprep.subr.bf16.mxu0 0
  %1079 = vmatpush1.bf16.msra.mxu0 0
  %1080 = vmatprep.subr.bf16.mxu0 0
  %1081 = vmatpush1.bf16.msra.mxu0 0
  %1082 = vmatprep.subr.bf16.mxu0 0
  %1083 = vmatpush1.bf16.msra.mxu0 0
  %1084 = vmatprep.mubr.bf16.mxu0 0
  %1085 = vmatmul.mubr.bf16.gmra.mrb[0].mxu0 %v1009
  %v1086 = vpop.f32.mrb[0].mxu0
  %v1087 = vadd.f32 0.0, %v1086
  %v1088 = vpop.f32.mrb[0].mxu0
  %v1089 = vadd.f32 0.0, %v1088
  %v1090 = vpop.f32.mrb[0].mxu0
  %v1091 = vpop.f32.mrb[0].mxu0
  %1092 = vdwg.mxu0
  %1093 = vmatprep.subr.bf16.mxu0 %v949
  %1094 = vmatpush1.bf16.msra.mxu0 %v948
  %1095 = vmatprep.subr.bf16.mxu0 %v957
  %1096 = vmatpush1.bf16.msra.mxu0 %v956
  %1097 = vmatprep.subr.bf16.mxu0 %v965
  %1098 = vmatpush1.bf16.msra.mxu0 %v964
  %1099 = vmatprep.subr.bf16.mxu0 %v973
  %1100 = vmatpush1.bf16.msra.mxu0 %v972
  %1101 = vmatprep.subr.bf16.mxu0 0
  %1102 = vmatpush1.bf16.msra.mxu0 0
  %1103 = vmatprep.subr.bf16.mxu0 0
  %1104 = vmatpush1.bf16.msra.mxu0 0
  %1105 = vmatprep.subr.bf16.mxu0 0
  %1106 = vmatpush1.bf16.msra.mxu0 0
  %1107 = vmatprep.subr.bf16.mxu0 0
  %1108 = vmatpush1.bf16.msra.mxu0 0
  %1109 = vmatprep.subr.bf16.mxu0 0
  %1110 = vmatpush1.bf16.msra.mxu0 0
  %1111 = vmatprep.subr.bf16.mxu0 0
  %1112 = vmatpush1.bf16.msra.mxu0 0
  %1113 = vmatprep.subr.bf16.mxu0 0
  %1114 = vmatpush1.bf16.msra.mxu0 0
  %1115 = vmatprep.subr.bf16.mxu0 0
  %1116 = vmatpush1.bf16.msra.mxu0 0
  %1117 = vmatprep.subr.bf16.mxu0 0
  %1118 = vmatpush1.bf16.msra.mxu0 0
  %1119 = vmatprep.subr.bf16.mxu0 0
  %1120 = vmatpush1.bf16.msra.mxu0 0
  %1121 = vmatprep.subr.bf16.mxu0 0
  %1122 = vmatpush1.bf16.msra.mxu0 0
  %1123 = vmatprep.subr.bf16.mxu0 0
  %1124 = vmatpush1.bf16.msra.mxu0 0
  %1125 = vmatprep.mubr.bf16.mxu0 0
  %1126 = vmatmul.mubr.bf16.gmra.mrb[0].mxu0 %v1009
  %v1127 = vpop.f32.mrb[0].mxu0
  %v1128 = vadd.f32 0.0, %v1127
  %v1129 = vpop.f32.mrb[0].mxu0
  %v1130 = vadd.f32 0.0, %v1129
  %v1131 = vpop.f32.mrb[0].mxu0
  %v1132 = vpop.f32.mrb[0].mxu0
  %1133 = vdwg.mxu0
  %1134 = vmatprep.subr.bf16.mxu0 %v951
  %1135 = vmatpush1.bf16.msra.mxu0 %v950
  %1136 = vmatprep.subr.bf16.mxu0 %v959
  %1137 = vmatpush1.bf16.msra.mxu0 %v958
  %1138 = vmatprep.subr.bf16.mxu0 %v967
  %1139 = vmatpush1.bf16.msra.mxu0 %v966
  %1140 = vmatprep.subr.bf16.mxu0 %v975
  %1141 = vmatpush1.bf16.msra.mxu0 %v974
  %1142 = vmatprep.subr.bf16.mxu0 0
  %1143 = vmatpush1.bf16.msra.mxu0 0
  %1144 = vmatprep.subr.bf16.mxu0 0
  %1145 = vmatpush1.bf16.msra.mxu0 0
  %1146 = vmatprep.subr.bf16.mxu0 0
  %1147 = vmatpush1.bf16.msra.mxu0 0
  %1148 = vmatprep.subr.bf16.mxu0 0
  %1149 = vmatpush1.bf16.msra.mxu0 0
  %1150 = vmatprep.subr.bf16.mxu0 0
  %1151 = vmatpush1.bf16.msra.mxu0 0
  %1152 = vmatprep.subr.bf16.mxu0 0
  %1153 = vmatpush1.bf16.msra.mxu0 0
  %1154 = vmatprep.subr.bf16.mxu0 0
  %1155 = vmatpush1.bf16.msra.mxu0 0
  %1156 = vmatprep.subr.bf16.mxu0 0
  %1157 = vmatpush1.bf16.msra.mxu0 0
  %1158 = vmatprep.subr.bf16.mxu0 0
  %1159 = vmatpush1.bf16.msra.mxu0 0
  %1160 = vmatprep.subr.bf16.mxu0 0
  %1161 = vmatpush1.bf16.msra.mxu0 0
  %1162 = vmatprep.subr.bf16.mxu0 0
  %1163 = vmatpush1.bf16.msra.mxu0 0
  %1164 = vmatprep.subr.bf16.mxu0 0
  %1165 = vmatpush1.bf16.msra.mxu0 0
  %1166 = vmatprep.mubr.bf16.mxu0 0
  %1167 = vmatmul.mubr.bf16.gmra.mrb[0].mxu0 %v1009
  %v1168 = vpop.f32.mrb[0].mxu0
  %v1169 = vadd.f32 0.0, %v1168
  %v1170 = vpop.f32.mrb[0].mxu0
  %v1171 = vadd.f32 0.0, %v1170
  %v1172 = vpop.f32.mrb[0].mxu0
  %v1173 = vpop.f32.mrb[0].mxu0
  %1174 = vdwg.mxu0
  %v1175 = vadd.f32 %v1046, %v1048
  %v1176 = vadd.f32 %v1175, %v1087
  %v1177 = vadd.f32 %v1176, %v1089
  %v1178 = vadd.f32 %v1177, %v1128
  %v1179 = vadd.f32 %v1178, %v1130
  %v1180 = vadd.f32 %v1179, %v1169
  %v1181 = vadd.f32 %v1180, %v1171
  %1182 = vadd.xlane.f32.xlu0 %v1181
  %v1183 = vpop.xlane.xlu0 %1182
  %v1184 = vadd.f32 %v786, %v1183
  %v1185 = vmul.f32 %v1046, %v1046
  %v1186 = vmul.f32 %v1048, %v1048
  %v1187 = vmul.f32 %v1087, %v1087
  %v1188 = vmul.f32 %v1089, %v1089
  %v1189 = vmul.f32 %v1128, %v1128
  %v1190 = vmul.f32 %v1130, %v1130
  %v1191 = vmul.f32 %v1169, %v1169
  %v1192 = vmul.f32 %v1171, %v1171
  %v1193 = vadd.f32 %v1185, %v1186
  %v1194 = vadd.f32 %v1193, %v1187
  %v1195 = vadd.f32 %v1194, %v1188
  %v1196 = vadd.f32 %v1195, %v1189
  %v1197 = vadd.f32 %v1196, %v1190
  %v1198 = vadd.f32 %v1197, %v1191
  %v1199 = vadd.f32 %v1198, %v1192
  %1200 = vadd.xlane.f32.xlu0 %v1199
  %v1201 = vpop.xlane.xlu0 %1200
  %v1202 = vadd.f32 %v804, %v1201
  %1203 = vst [vmem:[%s4 + $0x80] sm:$0xff] %v1046
  %1204 = vst [vmem:[%s4 + $0x88] sm:$0xff] %v1048
  %1205 = vst [vmem:[%s4 + $0x90] sm:$0xff] %v1087
  %1206 = vst [vmem:[%s4 + $0x98] sm:$0xff] %v1089
  %1207 = vst [vmem:[%s4 + $0xa0] sm:$0xff] %v1128
  %1208 = vst [vmem:[%s4 + $0xa8] sm:$0xff] %v1130
  %1209 = vst [vmem:[%s4 + $0xb0] sm:$0xff] %v1169
  %1210 = vst [vmem:[%s4 + $0xb8] sm:$0xff] %v1171
  %s1211 = scalar_lea.vmem %s0, 12
  %v1212 = vld [vmem:[%s1211] sm:$0xf]
  %s1213 = scalar_lea.vmem %s1, 768
  %v1214 = vld [vmem:[%s1213] sm:$0xff]
  %v1215 = vld [vmem:[%s1213 + $0x8] sm:$0xff]
  %v1216 = vld [vmem:[%s1213 + $0x10] sm:$0xff]
  %v1217 = vld [vmem:[%s1213 + $0x18] sm:$0xff]
  %v1218 = vld [vmem:[%s1213 + $0x20] sm:$0xff]
  %v1219 = vld [vmem:[%s1213 + $0x28] sm:$0xff]
  %v1220 = vld [vmem:[%s1213 + $0x30] sm:$0xff]
  %v1221 = vld [vmem:[%s1213 + $0x38] sm:$0xff]
  %v1222 = vld [vmem:[%s1213 + $0x40] sm:$0xff]
  %v1223 = vld [vmem:[%s1213 + $0x48] sm:$0xff]
  %v1224 = vld [vmem:[%s1213 + $0x50] sm:$0xff]
  %v1225 = vld [vmem:[%s1213 + $0x58] sm:$0xff]
  %v1226 = vld [vmem:[%s1213 + $0x60] sm:$0xff]
  %v1227 = vld [vmem:[%s1213 + $0x68] sm:$0xff]
  %v1228 = vld [vmem:[%s1213 + $0x70] sm:$0xff]
  %v1229 = vld [vmem:[%s1213 + $0x78] sm:$0xff]
  %v1230 = vld [vmem:[%s1213 + $0x80] sm:$0xff]
  %v1231 = vld [vmem:[%s1213 + $0x88] sm:$0xff]
  %v1232 = vld [vmem:[%s1213 + $0x90] sm:$0xff]
  %v1233 = vld [vmem:[%s1213 + $0x98] sm:$0xff]
  %v1234 = vld [vmem:[%s1213 + $0xa0] sm:$0xff]
  %v1235 = vld [vmem:[%s1213 + $0xa8] sm:$0xff]
  %v1236 = vld [vmem:[%s1213 + $0xb0] sm:$0xff]
  %v1237 = vld [vmem:[%s1213 + $0xb8] sm:$0xff]
  %v1238 = vld [vmem:[%s1213 + $0xc0] sm:$0xff]
  %v1239 = vld [vmem:[%s1213 + $0xc8] sm:$0xff]
  %v1240 = vld [vmem:[%s1213 + $0xd0] sm:$0xff]
  %v1241 = vld [vmem:[%s1213 + $0xd8] sm:$0xff]
  %v1242 = vld [vmem:[%s1213 + $0xe0] sm:$0xff]
  %v1243 = vld [vmem:[%s1213 + $0xe8] sm:$0xff]
  %v1244 = vld [vmem:[%s1213 + $0xf0] sm:$0xff]
  %v1245 = vld [vmem:[%s1213 + $0xf8] sm:$0xff]
  %v1278 = vunpack.c.l.b16 %v1214
  %v1279 = vunpack.c.h.b16 %v1214
  %v1280 = vunpack.c.l.b16 %v1215
  %v1281 = vunpack.c.h.b16 %v1215
  %v1282 = vunpack.c.l.b16 %v1216
  %v1283 = vunpack.c.h.b16 %v1216
  %v1284 = vunpack.c.l.b16 %v1217
  %v1285 = vunpack.c.h.b16 %v1217
  %v1286 = vunpack.c.l.b16 %v1218
  %v1287 = vunpack.c.h.b16 %v1218
  %v1288 = vunpack.c.l.b16 %v1219
  %v1289 = vunpack.c.h.b16 %v1219
  %v1290 = vunpack.c.l.b16 %v1220
  %v1291 = vunpack.c.h.b16 %v1220
  %v1292 = vunpack.c.l.b16 %v1221
  %v1293 = vunpack.c.h.b16 %v1221
  %v1294 = vunpack.c.l.b16 %v1222
  %v1295 = vunpack.c.h.b16 %v1222
  %v1296 = vunpack.c.l.b16 %v1223
  %v1297 = vunpack.c.h.b16 %v1223
  %v1298 = vunpack.c.l.b16 %v1224
  %v1299 = vunpack.c.h.b16 %v1224
  %v1300 = vunpack.c.l.b16 %v1225
  %v1301 = vunpack.c.h.b16 %v1225
  %v1302 = vunpack.c.l.b16 %v1226
  %v1303 = vunpack.c.h.b16 %v1226
  %v1304 = vunpack.c.l.b16 %v1227
  %v1305 = vunpack.c.h.b16 %v1227
  %v1306 = vunpack.c.l.b16 %v1228
  %v1307 = vunpack.c.h.b16 %v1228
  %v1308 = vunpack.c.l.b16 %v1229
  %v1309 = vunpack.c.h.b16 %v1229
  %v1310 = vunpack.c.l.b16 %v1230
  %v1311 = vunpack.c.h.b16 %v1230
  %v1312 = vunpack.c.l.b16 %v1231
  %v1313 = vunpack.c.h.b16 %v1231
  %v1314 = vunpack.c.l.b16 %v1232
  %v1315 = vunpack.c.h.b16 %v1232
  %v1316 = vunpack.c.l.b16 %v1233
  %v1317 = vunpack.c.h.b16 %v1233
  %v1318 = vunpack.c.l.b16 %v1234
  %v1319 = vunpack.c.h.b16 %v1234
  %v1320 = vunpack.c.l.b16 %v1235
  %v1321 = vunpack.c.h.b16 %v1235
  %v1322 = vunpack.c.l.b16 %v1236
  %v1323 = vunpack.c.h.b16 %v1236
  %v1324 = vunpack.c.l.b16 %v1237
  %v1325 = vunpack.c.h.b16 %v1237
  %v1326 = vunpack.c.l.b16 %v1238
  %v1327 = vunpack.c.h.b16 %v1238
  %v1328 = vunpack.c.l.b16 %v1239
  %v1329 = vunpack.c.h.b16 %v1239
  %v1330 = vunpack.c.l.b16 %v1240
  %v1331 = vunpack.c.h.b16 %v1240
  %v1332 = vunpack.c.l.b16 %v1241
  %v1333 = vunpack.c.h.b16 %v1241
  %v1334 = vunpack.c.l.b16 %v1242
  %v1335 = vunpack.c.h.b16 %v1242
  %v1336 = vunpack.c.l.b16 %v1243
  %v1337 = vunpack.c.h.b16 %v1243
  %v1338 = vunpack.c.l.b16 %v1244
  %v1339 = vunpack.c.h.b16 %v1244
  %v1340 = vunpack.c.l.b16 %v1245
  %v1341 = vunpack.c.h.b16 %v1245
  %v1342 = vpack.c.b16 %v1286, %v1278
  %v1343 = vpack.c.b16 %v1287, %v1279
  %v1344 = vpack.c.b16 %v1288, %v1280
  %v1345 = vpack.c.b16 %v1289, %v1281
  %v1346 = vpack.c.b16 %v1290, %v1282
  %v1347 = vpack.c.b16 %v1291, %v1283
  %v1348 = vpack.c.b16 %v1292, %v1284
  %v1349 = vpack.c.b16 %v1293, %v1285
  %v1350 = vpack.c.b16 %v1302, %v1294
  %v1351 = vpack.c.b16 %v1303, %v1295
  %v1352 = vpack.c.b16 %v1304, %v1296
  %v1353 = vpack.c.b16 %v1305, %v1297
  %v1354 = vpack.c.b16 %v1306, %v1298
  %v1355 = vpack.c.b16 %v1307, %v1299
  %v1356 = vpack.c.b16 %v1308, %v1300
  %v1357 = vpack.c.b16 %v1309, %v1301
  %v1358 = vpack.c.b16 %v1318, %v1310
  %v1359 = vpack.c.b16 %v1319, %v1311
  %v1360 = vpack.c.b16 %v1320, %v1312
  %v1361 = vpack.c.b16 %v1321, %v1313
  %v1362 = vpack.c.b16 %v1322, %v1314
  %v1363 = vpack.c.b16 %v1323, %v1315
  %v1364 = vpack.c.b16 %v1324, %v1316
  %v1365 = vpack.c.b16 %v1325, %v1317
  %v1366 = vpack.c.b16 %v1334, %v1326
  %v1367 = vpack.c.b16 %v1335, %v1327
  %v1368 = vpack.c.b16 %v1336, %v1328
  %v1369 = vpack.c.b16 %v1337, %v1329
  %v1370 = vpack.c.b16 %v1338, %v1330
  %v1371 = vpack.c.b16 %v1339, %v1331
  %v1372 = vpack.c.b16 %v1340, %v1332
  %v1373 = vpack.c.b16 %v1341, %v1333
  %v1407 = vsel %vm211, %v1212, 0
  %1409 = vmatprep.subr.bf16.mxu0 %v1343
  %1410 = vmatpush1.bf16.msra.mxu0 %v1342
  %1411 = vmatprep.subr.bf16.mxu0 %v1351
  %1412 = vmatpush1.bf16.msra.mxu0 %v1350
  %1413 = vmatprep.subr.bf16.mxu0 %v1359
  %1414 = vmatpush1.bf16.msra.mxu0 %v1358
  %1415 = vmatprep.subr.bf16.mxu0 %v1367
  %1416 = vmatpush1.bf16.msra.mxu0 %v1366
  %1417 = vmatprep.subr.bf16.mxu0 0
  %1418 = vmatpush1.bf16.msra.mxu0 0
  %1419 = vmatprep.subr.bf16.mxu0 0
  %1420 = vmatpush1.bf16.msra.mxu0 0
  %1421 = vmatprep.subr.bf16.mxu0 0
  %1422 = vmatpush1.bf16.msra.mxu0 0
  %1423 = vmatprep.subr.bf16.mxu0 0
  %1424 = vmatpush1.bf16.msra.mxu0 0
  %1425 = vmatprep.subr.bf16.mxu0 0
  %1426 = vmatpush1.bf16.msra.mxu0 0
  %1427 = vmatprep.subr.bf16.mxu0 0
  %1428 = vmatpush1.bf16.msra.mxu0 0
  %1429 = vmatprep.subr.bf16.mxu0 0
  %1430 = vmatpush1.bf16.msra.mxu0 0
  %1431 = vmatprep.subr.bf16.mxu0 0
  %1432 = vmatpush1.bf16.msra.mxu0 0
  %1433 = vmatprep.subr.bf16.mxu0 0
  %1434 = vmatpush1.bf16.msra.mxu0 0
  %1435 = vmatprep.subr.bf16.mxu0 0
  %1436 = vmatpush1.bf16.msra.mxu0 0
  %1437 = vmatprep.subr.bf16.mxu0 0
  %1438 = vmatpush1.bf16.msra.mxu0 0
  %1439 = vmatprep.subr.bf16.mxu0 0
  %1440 = vmatpush1.bf16.msra.mxu0 0
  %1441 = vmatprep.mubr.bf16.mxu0 0
  %1442 = vmatmul.mubr.bf16.gmra.mrb[0].mxu0 %v1407
  %v1443 = vpop.f32.mrb[0].mxu0
  %v1444 = vadd.f32 0.0, %v1443
  %v1445 = vpop.f32.mrb[0].mxu0
  %v1446 = vadd.f32 0.0, %v1445
  %v1447 = vpop.f32.mrb[0].mxu0
  %v1448 = vpop.f32.mrb[0].mxu0
  %1449 = vdwg.mxu0
  %1450 = vmatprep.subr.bf16.mxu0 %v1345
  %1451 = vmatpush1.bf16.msra.mxu0 %v1344
  %1452 = vmatprep.subr.bf16.mxu0 %v1353
  %1453 = vmatpush1.bf16.msra.mxu0 %v1352
  %1454 = vmatprep.subr.bf16.mxu0 %v1361
  %1455 = vmatpush1.bf16.msra.mxu0 %v1360
  %1456 = vmatprep.subr.bf16.mxu0 %v1369
  %1457 = vmatpush1.bf16.msra.mxu0 %v1368
  %1458 = vmatprep.subr.bf16.mxu0 0
  %1459 = vmatpush1.bf16.msra.mxu0 0
  %1460 = vmatprep.subr.bf16.mxu0 0
  %1461 = vmatpush1.bf16.msra.mxu0 0
  %1462 = vmatprep.subr.bf16.mxu0 0
  %1463 = vmatpush1.bf16.msra.mxu0 0
  %1464 = vmatprep.subr.bf16.mxu0 0
  %1465 = vmatpush1.bf16.msra.mxu0 0
  %1466 = vmatprep.subr.bf16.mxu0 0
  %1467 = vmatpush1.bf16.msra.mxu0 0
  %1468 = vmatprep.subr.bf16.mxu0 0
  %1469 = vmatpush1.bf16.msra.mxu0 0
  %1470 = vmatprep.subr.bf16.mxu0 0
  %1471 = vmatpush1.bf16.msra.mxu0 0
  %1472 = vmatprep.subr.bf16.mxu0 0
  %1473 = vmatpush1.bf16.msra.mxu0 0
  %1474 = vmatprep.subr.bf16.mxu0 0
  %1475 = vmatpush1.bf16.msra.mxu0 0
  %1476 = vmatprep.subr.bf16.mxu0 0
  %1477 = vmatpush1.bf16.msra.mxu0 0
  %1478 = vmatprep.subr.bf16.mxu0 0
  %1479 = vmatpush1.bf16.msra.mxu0 0
  %1480 = vmatprep.subr.bf16.mxu0 0
  %1481 = vmatpush1.bf16.msra.mxu0 0
  %1482 = vmatprep.mubr.bf16.mxu0 0
  %1483 = vmatmul.mubr.bf16.gmra.mrb[0].mxu0 %v1407
  %v1484 = vpop.f32.mrb[0].mxu0
  %v1485 = vadd.f32 0.0, %v1484
  %v1486 = vpop.f32.mrb[0].mxu0
  %v1487 = vadd.f32 0.0, %v1486
  %v1488 = vpop.f32.mrb[0].mxu0
  %v1489 = vpop.f32.mrb[0].mxu0
  %1490 = vdwg.mxu0
  %1491 = vmatprep.subr.bf16.mxu0 %v1347
  %1492 = vmatpush1.bf16.msra.mxu0 %v1346
  %1493 = vmatprep.subr.bf16.mxu0 %v1355
  %1494 = vmatpush1.bf16.msra.mxu0 %v1354
  %1495 = vmatprep.subr.bf16.mxu0 %v1363
  %1496 = vmatpush1.bf16.msra.mxu0 %v1362
  %1497 = vmatprep.subr.bf16.mxu0 %v1371
  %1498 = vmatpush1.bf16.msra.mxu0 %v1370
  %1499 = vmatprep.subr.bf16.mxu0 0
  %1500 = vmatpush1.bf16.msra.mxu0 0
  %1501 = vmatprep.subr.bf16.mxu0 0
  %1502 = vmatpush1.bf16.msra.mxu0 0
  %1503 = vmatprep.subr.bf16.mxu0 0
  %1504 = vmatpush1.bf16.msra.mxu0 0
  %1505 = vmatprep.subr.bf16.mxu0 0
  %1506 = vmatpush1.bf16.msra.mxu0 0
  %1507 = vmatprep.subr.bf16.mxu0 0
  %1508 = vmatpush1.bf16.msra.mxu0 0
  %1509 = vmatprep.subr.bf16.mxu0 0
  %1510 = vmatpush1.bf16.msra.mxu0 0
  %1511 = vmatprep.subr.bf16.mxu0 0
  %1512 = vmatpush1.bf16.msra.mxu0 0
  %1513 = vmatprep.subr.bf16.mxu0 0
  %1514 = vmatpush1.bf16.msra.mxu0 0
  %1515 = vmatprep.subr.bf16.mxu0 0
  %1516 = vmatpush1.bf16.msra.mxu0 0
  %1517 = vmatprep.subr.bf16.mxu0 0
  %1518 = vmatpush1.bf16.msra.mxu0 0
  %1519 = vmatprep.subr.bf16.mxu0 0
  %1520 = vmatpush1.bf16.msra.mxu0 0
  %1521 = vmatprep.subr.bf16.mxu0 0
  %1522 = vmatpush1.bf16.msra.mxu0 0
  %1523 = vmatprep.mubr.bf16.mxu0 0
  %1524 = vmatmul.mubr.bf16.gmra.mrb[0].mxu0 %v1407
  %v1525 = vpop.f32.mrb[0].mxu0
  %v1526 = vadd.f32 0.0, %v1525
  %v1527 = vpop.f32.mrb[0].mxu0
  %v1528 = vadd.f32 0.0, %v1527
  %v1529 = vpop.f32.mrb[0].mxu0
  %v1530 = vpop.f32.mrb[0].mxu0
  %1531 = vdwg.mxu0
  %1532 = vmatprep.subr.bf16.mxu0 %v1349
  %1533 = vmatpush1.bf16.msra.mxu0 %v1348
  %1534 = vmatprep.subr.bf16.mxu0 %v1357
  %1535 = vmatpush1.bf16.msra.mxu0 %v1356
  %1536 = vmatprep.subr.bf16.mxu0 %v1365
  %1537 = vmatpush1.bf16.msra.mxu0 %v1364
  %1538 = vmatprep.subr.bf16.mxu0 %v1373
  %1539 = vmatpush1.bf16.msra.mxu0 %v1372
  %1540 = vmatprep.subr.bf16.mxu0 0
  %1541 = vmatpush1.bf16.msra.mxu0 0
  %1542 = vmatprep.subr.bf16.mxu0 0
  %1543 = vmatpush1.bf16.msra.mxu0 0
  %1544 = vmatprep.subr.bf16.mxu0 0
  %1545 = vmatpush1.bf16.msra.mxu0 0
  %1546 = vmatprep.subr.bf16.mxu0 0
  %1547 = vmatpush1.bf16.msra.mxu0 0
  %1548 = vmatprep.subr.bf16.mxu0 0
  %1549 = vmatpush1.bf16.msra.mxu0 0
  %1550 = vmatprep.subr.bf16.mxu0 0
  %1551 = vmatpush1.bf16.msra.mxu0 0
  %1552 = vmatprep.subr.bf16.mxu0 0
  %1553 = vmatpush1.bf16.msra.mxu0 0
  %1554 = vmatprep.subr.bf16.mxu0 0
  %1555 = vmatpush1.bf16.msra.mxu0 0
  %1556 = vmatprep.subr.bf16.mxu0 0
  %1557 = vmatpush1.bf16.msra.mxu0 0
  %1558 = vmatprep.subr.bf16.mxu0 0
  %1559 = vmatpush1.bf16.msra.mxu0 0
  %1560 = vmatprep.subr.bf16.mxu0 0
  %1561 = vmatpush1.bf16.msra.mxu0 0
  %1562 = vmatprep.subr.bf16.mxu0 0
  %1563 = vmatpush1.bf16.msra.mxu0 0
  %1564 = vmatprep.mubr.bf16.mxu0 0
  %1565 = vmatmul.mubr.bf16.gmra.mrb[0].mxu0 %v1407
  %v1566 = vpop.f32.mrb[0].mxu0
  %v1567 = vadd.f32 0.0, %v1566
  %v1568 = vpop.f32.mrb[0].mxu0
  %v1569 = vadd.f32 0.0, %v1568
  %v1570 = vpop.f32.mrb[0].mxu0
  %v1571 = vpop.f32.mrb[0].mxu0
  %1572 = vdwg.mxu0
  %v1573 = vadd.f32 %v1444, %v1446
  %v1574 = vadd.f32 %v1573, %v1485
  %v1575 = vadd.f32 %v1574, %v1487
  %v1576 = vadd.f32 %v1575, %v1526
  %v1577 = vadd.f32 %v1576, %v1528
  %v1578 = vadd.f32 %v1577, %v1567
  %v1579 = vadd.f32 %v1578, %v1569
  %1580 = vadd.xlane.f32.xlu0 %v1579
  %v1581 = vpop.xlane.xlu0 %1580
  %v1582 = vadd.f32 %v1184, %v1581
  %v1583 = vmul.f32 %v1444, %v1444
  %v1584 = vmul.f32 %v1446, %v1446
  %v1585 = vmul.f32 %v1485, %v1485
  %v1586 = vmul.f32 %v1487, %v1487
  %v1587 = vmul.f32 %v1526, %v1526
  %v1588 = vmul.f32 %v1528, %v1528
  %v1589 = vmul.f32 %v1567, %v1567
  %v1590 = vmul.f32 %v1569, %v1569
  %v1591 = vadd.f32 %v1583, %v1584
  %v1592 = vadd.f32 %v1591, %v1585
  %v1593 = vadd.f32 %v1592, %v1586
  %v1594 = vadd.f32 %v1593, %v1587
  %v1595 = vadd.f32 %v1594, %v1588
  %v1596 = vadd.f32 %v1595, %v1589
  %v1597 = vadd.f32 %v1596, %v1590
  %1598 = vadd.xlane.f32.xlu0 %v1597
  %v1599 = vpop.xlane.xlu0 %1598
  %v1600 = vadd.f32 %v1202, %v1599
  %1601 = vst [vmem:[%s4 + $0xc0] sm:$0xff] %v1444
  %1602 = vst [vmem:[%s4 + $0xc8] sm:$0xff] %v1446
  %1603 = vst [vmem:[%s4 + $0xd0] sm:$0xff] %v1485
  %1604 = vst [vmem:[%s4 + $0xd8] sm:$0xff] %v1487
  %1605 = vst [vmem:[%s4 + $0xe0] sm:$0xff] %v1526
  %1606 = vst [vmem:[%s4 + $0xe8] sm:$0xff] %v1528
  %1607 = vst [vmem:[%s4 + $0xf0] sm:$0xff] %v1567
  %1608 = vst [vmem:[%s4 + $0xf8] sm:$0xff] %v1569
  %v1609 = vld [vmem:[%s2] sm:$0xff]
  %v1610 = vld [vmem:[%s3] sm:$0xff]
  %v1611 = vmul.f32 %v1582, 0.00024414063
  %v1612 = vmul.f32 %v1600, 0.00024414063
  %v1613 = vmul.f32 %v1611, %v1611
  %v1614 = vsub.f32 %v1612, %v1613
  %v1615 = vmax.f32 %v1614, 0.0
  %v1616 = vadd.f32 %v1615, 1e-05
  %v1617 = vrsqrt.pop %v1616
  %v1618 = vmul.f32 %v1609, %v1617
  %v1619 = vmul.f32 %v1611, %v1618
  %v1620 = vsub.f32 %v1610, %v1619
  %v1621 = vld [vmem:[%s4] sm:$0xff]
  %v1622 = vld [vmem:[%s4 + $0x8] sm:$0xff]
  %v1623 = vld [vmem:[%s4 + $0x10] sm:$0xff]
  %v1624 = vld [vmem:[%s4 + $0x18] sm:$0xff]
  %v1625 = vld [vmem:[%s4 + $0x20] sm:$0xff]
  %v1626 = vld [vmem:[%s4 + $0x28] sm:$0xff]
  %v1627 = vld [vmem:[%s4 + $0x30] sm:$0xff]
  %v1628 = vld [vmem:[%s4 + $0x38] sm:$0xff]
  %1630 = vset.pattern.permute.xlu0 0
  %1631 = vperm.xlu0 %1630, %v1618
  %v1632 = vpop.permute.xlu0 %1631
  %v1634 = vmul.f32 %v1621, %v1632
  %v1635 = vmul.f32 %v1622, %v1632
  %v1636 = vmul.f32 %v1623, %v1632
  %v1637 = vmul.f32 %v1624, %v1632
  %v1638 = vmul.f32 %v1625, %v1632
  %v1639 = vmul.f32 %v1626, %v1632
  %v1640 = vmul.f32 %v1627, %v1632
  %v1641 = vmul.f32 %v1628, %v1632
  %1643 = vset.pattern.permute.xlu0 0
  %1644 = vperm.xlu0 %1643, %v1620
  %v1645 = vpop.permute.xlu0 %1644
  %v1647 = vadd.f32 %v1634, %v1645
  %v1648 = vadd.f32 %v1635, %v1645
  %v1649 = vadd.f32 %v1636, %v1645
  %v1650 = vadd.f32 %v1637, %v1645
  %v1651 = vadd.f32 %v1638, %v1645
  %v1652 = vadd.f32 %v1639, %v1645
  %v1653 = vadd.f32 %v1640, %v1645
  %v1654 = vadd.f32 %v1641, %v1645
  %vm1655 = vcmp.ge.f32.partialorder %v1647, 0.0
  %vm1656 = vcmp.ge.f32.partialorder %v1648, 0.0
  %vm1657 = vcmp.ge.f32.partialorder %v1649, 0.0
  %vm1658 = vcmp.ge.f32.partialorder %v1650, 0.0
  %vm1659 = vcmp.ge.f32.partialorder %v1651, 0.0
  %vm1660 = vcmp.ge.f32.partialorder %v1652, 0.0
  %vm1661 = vcmp.ge.f32.partialorder %v1653, 0.0
  %vm1662 = vcmp.ge.f32.partialorder %v1654, 0.0
  %v1663 = vmul.f32 %v1647, 0.2
  %v1664 = vmul.f32 %v1648, 0.2
  %v1665 = vmul.f32 %v1649, 0.2
  %v1666 = vmul.f32 %v1650, 0.2
  %v1667 = vmul.f32 %v1651, 0.2
  %v1668 = vmul.f32 %v1652, 0.2
  %v1669 = vmul.f32 %v1653, 0.2
  %v1670 = vmul.f32 %v1654, 0.2
  %v1671 = vsel %vm1655, %v1647, %v1663
  %v1672 = vsel %vm1656, %v1648, %v1664
  %v1673 = vsel %vm1657, %v1649, %v1665
  %v1674 = vsel %vm1658, %v1650, %v1666
  %v1675 = vsel %vm1659, %v1651, %v1667
  %v1676 = vsel %vm1660, %v1652, %v1668
  %v1677 = vsel %vm1661, %v1653, %v1669
  %v1678 = vsel %vm1662, %v1654, %v1670
  %1679 = vst [vmem:[%s4] sm:$0xff] %v1671
  %1680 = vst [vmem:[%s4 + $0x8] sm:$0xff] %v1672
  %1681 = vst [vmem:[%s4 + $0x10] sm:$0xff] %v1673
  %1682 = vst [vmem:[%s4 + $0x18] sm:$0xff] %v1674
  %1683 = vst [vmem:[%s4 + $0x20] sm:$0xff] %v1675
  %1684 = vst [vmem:[%s4 + $0x28] sm:$0xff] %v1676
  %1685 = vst [vmem:[%s4 + $0x30] sm:$0xff] %v1677
  %1686 = vst [vmem:[%s4 + $0x38] sm:$0xff] %v1678
  %v1687 = vld [vmem:[%s4 + $0x40] sm:$0xff]
  %v1688 = vld [vmem:[%s4 + $0x48] sm:$0xff]
  %v1689 = vld [vmem:[%s4 + $0x50] sm:$0xff]
  %v1690 = vld [vmem:[%s4 + $0x58] sm:$0xff]
  %v1691 = vld [vmem:[%s4 + $0x60] sm:$0xff]
  %v1692 = vld [vmem:[%s4 + $0x68] sm:$0xff]
  %v1693 = vld [vmem:[%s4 + $0x70] sm:$0xff]
  %v1694 = vld [vmem:[%s4 + $0x78] sm:$0xff]
  %v1695 = vmul.f32 %v1687, %v1632
  %v1696 = vmul.f32 %v1688, %v1632
  %v1697 = vmul.f32 %v1689, %v1632
  %v1698 = vmul.f32 %v1690, %v1632
  %v1699 = vmul.f32 %v1691, %v1632
  %v1700 = vmul.f32 %v1692, %v1632
  %v1701 = vmul.f32 %v1693, %v1632
  %v1702 = vmul.f32 %v1694, %v1632
  %v1703 = vadd.f32 %v1695, %v1645
  %v1704 = vadd.f32 %v1696, %v1645
  %v1705 = vadd.f32 %v1697, %v1645
  %v1706 = vadd.f32 %v1698, %v1645
  %v1707 = vadd.f32 %v1699, %v1645
  %v1708 = vadd.f32 %v1700, %v1645
  %v1709 = vadd.f32 %v1701, %v1645
  %v1710 = vadd.f32 %v1702, %v1645
  %vm1711 = vcmp.ge.f32.partialorder %v1703, 0.0
  %vm1712 = vcmp.ge.f32.partialorder %v1704, 0.0
  %vm1713 = vcmp.ge.f32.partialorder %v1705, 0.0
  %vm1714 = vcmp.ge.f32.partialorder %v1706, 0.0
  %vm1715 = vcmp.ge.f32.partialorder %v1707, 0.0
  %vm1716 = vcmp.ge.f32.partialorder %v1708, 0.0
  %vm1717 = vcmp.ge.f32.partialorder %v1709, 0.0
  %vm1718 = vcmp.ge.f32.partialorder %v1710, 0.0
  %v1719 = vmul.f32 %v1703, 0.2
  %v1720 = vmul.f32 %v1704, 0.2
  %v1721 = vmul.f32 %v1705, 0.2
  %v1722 = vmul.f32 %v1706, 0.2
  %v1723 = vmul.f32 %v1707, 0.2
  %v1724 = vmul.f32 %v1708, 0.2
  %v1725 = vmul.f32 %v1709, 0.2
  %v1726 = vmul.f32 %v1710, 0.2
  %v1727 = vsel %vm1711, %v1703, %v1719
  %v1728 = vsel %vm1712, %v1704, %v1720
  %v1729 = vsel %vm1713, %v1705, %v1721
  %v1730 = vsel %vm1714, %v1706, %v1722
  %v1731 = vsel %vm1715, %v1707, %v1723
  %v1732 = vsel %vm1716, %v1708, %v1724
  %v1733 = vsel %vm1717, %v1709, %v1725
  %v1734 = vsel %vm1718, %v1710, %v1726
  %1735 = vst [vmem:[%s4 + $0x40] sm:$0xff] %v1727
  %1736 = vst [vmem:[%s4 + $0x48] sm:$0xff] %v1728
  %1737 = vst [vmem:[%s4 + $0x50] sm:$0xff] %v1729
  %1738 = vst [vmem:[%s4 + $0x58] sm:$0xff] %v1730
  %1739 = vst [vmem:[%s4 + $0x60] sm:$0xff] %v1731
  %1740 = vst [vmem:[%s4 + $0x68] sm:$0xff] %v1732
  %1741 = vst [vmem:[%s4 + $0x70] sm:$0xff] %v1733
  %1742 = vst [vmem:[%s4 + $0x78] sm:$0xff] %v1734
  %v1743 = vld [vmem:[%s4 + $0x80] sm:$0xff]
  %v1744 = vld [vmem:[%s4 + $0x88] sm:$0xff]
  %v1745 = vld [vmem:[%s4 + $0x90] sm:$0xff]
  %v1746 = vld [vmem:[%s4 + $0x98] sm:$0xff]
  %v1747 = vld [vmem:[%s4 + $0xa0] sm:$0xff]
  %v1748 = vld [vmem:[%s4 + $0xa8] sm:$0xff]
  %v1749 = vld [vmem:[%s4 + $0xb0] sm:$0xff]
  %v1750 = vld [vmem:[%s4 + $0xb8] sm:$0xff]
  %v1751 = vmul.f32 %v1743, %v1632
  %v1752 = vmul.f32 %v1744, %v1632
  %v1753 = vmul.f32 %v1745, %v1632
  %v1754 = vmul.f32 %v1746, %v1632
  %v1755 = vmul.f32 %v1747, %v1632
  %v1756 = vmul.f32 %v1748, %v1632
  %v1757 = vmul.f32 %v1749, %v1632
  %v1758 = vmul.f32 %v1750, %v1632
  %v1759 = vadd.f32 %v1751, %v1645
  %v1760 = vadd.f32 %v1752, %v1645
  %v1761 = vadd.f32 %v1753, %v1645
  %v1762 = vadd.f32 %v1754, %v1645
  %v1763 = vadd.f32 %v1755, %v1645
  %v1764 = vadd.f32 %v1756, %v1645
  %v1765 = vadd.f32 %v1757, %v1645
  %v1766 = vadd.f32 %v1758, %v1645
  %vm1767 = vcmp.ge.f32.partialorder %v1759, 0.0
  %vm1768 = vcmp.ge.f32.partialorder %v1760, 0.0
  %vm1769 = vcmp.ge.f32.partialorder %v1761, 0.0
  %vm1770 = vcmp.ge.f32.partialorder %v1762, 0.0
  %vm1771 = vcmp.ge.f32.partialorder %v1763, 0.0
  %vm1772 = vcmp.ge.f32.partialorder %v1764, 0.0
  %vm1773 = vcmp.ge.f32.partialorder %v1765, 0.0
  %vm1774 = vcmp.ge.f32.partialorder %v1766, 0.0
  %v1775 = vmul.f32 %v1759, 0.2
  %v1776 = vmul.f32 %v1760, 0.2
  %v1777 = vmul.f32 %v1761, 0.2
  %v1778 = vmul.f32 %v1762, 0.2
  %v1779 = vmul.f32 %v1763, 0.2
  %v1780 = vmul.f32 %v1764, 0.2
  %v1781 = vmul.f32 %v1765, 0.2
  %v1782 = vmul.f32 %v1766, 0.2
  %v1783 = vsel %vm1767, %v1759, %v1775
  %v1784 = vsel %vm1768, %v1760, %v1776
  %v1785 = vsel %vm1769, %v1761, %v1777
  %v1786 = vsel %vm1770, %v1762, %v1778
  %v1787 = vsel %vm1771, %v1763, %v1779
  %v1788 = vsel %vm1772, %v1764, %v1780
  %v1789 = vsel %vm1773, %v1765, %v1781
  %v1790 = vsel %vm1774, %v1766, %v1782
  %1791 = vst [vmem:[%s4 + $0x80] sm:$0xff] %v1783
  %1792 = vst [vmem:[%s4 + $0x88] sm:$0xff] %v1784
  %1793 = vst [vmem:[%s4 + $0x90] sm:$0xff] %v1785
  %1794 = vst [vmem:[%s4 + $0x98] sm:$0xff] %v1786
  %1795 = vst [vmem:[%s4 + $0xa0] sm:$0xff] %v1787
  %1796 = vst [vmem:[%s4 + $0xa8] sm:$0xff] %v1788
  %1797 = vst [vmem:[%s4 + $0xb0] sm:$0xff] %v1789
  %1798 = vst [vmem:[%s4 + $0xb8] sm:$0xff] %v1790
  %v1799 = vld [vmem:[%s4 + $0xc0] sm:$0xff]
  %v1800 = vld [vmem:[%s4 + $0xc8] sm:$0xff]
  %v1801 = vld [vmem:[%s4 + $0xd0] sm:$0xff]
  %v1802 = vld [vmem:[%s4 + $0xd8] sm:$0xff]
  %v1803 = vld [vmem:[%s4 + $0xe0] sm:$0xff]
  %v1804 = vld [vmem:[%s4 + $0xe8] sm:$0xff]
  %v1805 = vld [vmem:[%s4 + $0xf0] sm:$0xff]
  %v1806 = vld [vmem:[%s4 + $0xf8] sm:$0xff]
  %v1807 = vmul.f32 %v1799, %v1632
  %v1808 = vmul.f32 %v1800, %v1632
  %v1809 = vmul.f32 %v1801, %v1632
  %v1810 = vmul.f32 %v1802, %v1632
  %v1811 = vmul.f32 %v1803, %v1632
  %v1812 = vmul.f32 %v1804, %v1632
  %v1813 = vmul.f32 %v1805, %v1632
  %v1814 = vmul.f32 %v1806, %v1632
  %v1815 = vadd.f32 %v1807, %v1645
  %v1816 = vadd.f32 %v1808, %v1645
  %v1817 = vadd.f32 %v1809, %v1645
  %v1818 = vadd.f32 %v1810, %v1645
  %v1819 = vadd.f32 %v1811, %v1645
  %v1820 = vadd.f32 %v1812, %v1645
  %v1821 = vadd.f32 %v1813, %v1645
  %v1822 = vadd.f32 %v1814, %v1645
  %vm1823 = vcmp.ge.f32.partialorder %v1815, 0.0
  %vm1824 = vcmp.ge.f32.partialorder %v1816, 0.0
  %vm1825 = vcmp.ge.f32.partialorder %v1817, 0.0
  %vm1826 = vcmp.ge.f32.partialorder %v1818, 0.0
  %vm1827 = vcmp.ge.f32.partialorder %v1819, 0.0
  %vm1828 = vcmp.ge.f32.partialorder %v1820, 0.0
  %vm1829 = vcmp.ge.f32.partialorder %v1821, 0.0
  %vm1830 = vcmp.ge.f32.partialorder %v1822, 0.0
  %v1831 = vmul.f32 %v1815, 0.2
  %v1832 = vmul.f32 %v1816, 0.2
  %v1833 = vmul.f32 %v1817, 0.2
  %v1834 = vmul.f32 %v1818, 0.2
  %v1835 = vmul.f32 %v1819, 0.2
  %v1836 = vmul.f32 %v1820, 0.2
  %v1837 = vmul.f32 %v1821, 0.2
  %v1838 = vmul.f32 %v1822, 0.2
  %v1839 = vsel %vm1823, %v1815, %v1831
  %v1840 = vsel %vm1824, %v1816, %v1832
  %v1841 = vsel %vm1825, %v1817, %v1833
  %v1842 = vsel %vm1826, %v1818, %v1834
  %v1843 = vsel %vm1827, %v1819, %v1835
  %v1844 = vsel %vm1828, %v1820, %v1836
  %v1845 = vsel %vm1829, %v1821, %v1837
  %v1846 = vsel %vm1830, %v1822, %v1838
  %1847 = vst [vmem:[%s4 + $0xc0] sm:$0xff] %v1839
  %1848 = vst [vmem:[%s4 + $0xc8] sm:$0xff] %v1840
  %1849 = vst [vmem:[%s4 + $0xd0] sm:$0xff] %v1841
  %1850 = vst [vmem:[%s4 + $0xd8] sm:$0xff] %v1842
  %1851 = vst [vmem:[%s4 + $0xe0] sm:$0xff] %v1843
  %1852 = vst [vmem:[%s4 + $0xe8] sm:$0xff] %v1844
  %1853 = vst [vmem:[%s4 + $0xf0] sm:$0xff] %v1845
  %1854 = vst [vmem:[%s4 + $0xf8] sm:$0xff] %v1846
  // Predicated region
  $region18: #{cycle_generator_forward.18} parent=0 // pred_check
    _
  $region19: #{cycle_generator_forward.18} parent=0 // pred_check_branch
    %1856 = sbr.rel (0) target = $region21
  $region20: #{cycle_generator_forward.18} parent=0 // pred_region
    _
  $region21: #{cycle_generator_forward.18} parent=0 // pred_fallthru
    _
  // Predicated region
  $region22: #{cycle_generator_forward.18} parent=0 // pred_check
    _
  $region23: #{cycle_generator_forward.18} parent=0 // pred_check_branch
    %1858 = sbr.rel (0) target = $region25
  $region24: #{cycle_generator_forward.18} parent=0 // pred_region
    _
  $region25: #{cycle_generator_forward.18} parent=0 // pred_fallthru
    _

// kernel: cycle_generator_forward.19
$region0: #{cycle_generator_forward.19}
  #allocation0 [shape = 'u32[]', space=smem, size = 0x4, offset = 0x4, fixed_abs, tag = 'smem constant byte address 0x4 - core index']
  #allocation1 [shape = 'u32[144,128]{1,0:T(1,128)}', space=vmem, size = 0x12000, scoped, tag = 'internal scratch']
  %s0 = inlined_call_operand.vmem [shape: bf16[4,3,32], index: 0, kind: input, shape index: {}]
  %s1 = inlined_call_operand.vmem [shape: bf16[4,32,4096], index: 1, kind: input, shape index: {}]
  %s2 = inlined_call_operand.vmem [shape: f32[3,1], index: 2, kind: input, shape index: {}]
  %s3 = inlined_call_operand.vmem [shape: f32[3,1], index: 3, kind: input, shape index: {}]
  %s4 = inlined_call_operand.vmem [shape: f32[3,16384], index: 4, kind: output, shape index: {}]
  %s5 = sld [smem:[#allocation0]]
  $region26: #{cycle_generator_forward.19} parent=0
    _
  %s7 = ssub.s32 1, %s5
  %s8 = scalar_select 0, %s7, %s5
  // Predicated region
  $region2: #{cycle_generator_forward.19} parent=0 // pred_check
    _
  $region3: #{cycle_generator_forward.19} parent=0 // pred_check_branch
    %10 = sbr.rel (0) target = $region5
  $region4: #{cycle_generator_forward.19} parent=0 // pred_region
    _
  $region5: #{cycle_generator_forward.19} parent=0 // pred_fallthru
    _
  // Predicated region
  $region6: #{cycle_generator_forward.19} parent=0 // pred_check
    _
  $region7: #{cycle_generator_forward.19} parent=0 // pred_check_branch
    %12 = sbr.rel (0) target = $region9
  $region8: #{cycle_generator_forward.19} parent=0 // pred_region
    _
  $region9: #{cycle_generator_forward.19} parent=0 // pred_fallthru
    _
  // Predicated region
  $region10: #{cycle_generator_forward.19} parent=0 // pred_check
    _
  $region11: #{cycle_generator_forward.19} parent=0 // pred_check_branch
    %14 = sbr.rel (0) target = $region13
  $region12: #{cycle_generator_forward.19} parent=0 // pred_region
    _
  $region13: #{cycle_generator_forward.19} parent=0 // pred_fallthru
    _
  // Predicated region
  $region14: #{cycle_generator_forward.19} parent=0 // pred_check
    _
  $region15: #{cycle_generator_forward.19} parent=0 // pred_check_branch
    %16 = sbr.rel (0) target = $region17
  $region16: #{cycle_generator_forward.19} parent=0 // pred_region
    _
  $region17: #{cycle_generator_forward.19} parent=0 // pred_fallthru
    _
  %v18 = vld [vmem:[%s0] sm:$0x3]
  %v19 = vld [vmem:[%s1] sm:$0xff]
  %v20 = vld [vmem:[%s1 + $0x8] sm:$0xff]
  %v21 = vld [vmem:[%s1 + $0x10] sm:$0xff]
  %v22 = vld [vmem:[%s1 + $0x18] sm:$0xff]
  %v23 = vld [vmem:[%s1 + $0x20] sm:$0xff]
  %v24 = vld [vmem:[%s1 + $0x28] sm:$0xff]
  %v25 = vld [vmem:[%s1 + $0x30] sm:$0xff]
  %v26 = vld [vmem:[%s1 + $0x38] sm:$0xff]
  %v27 = vld [vmem:[%s1 + $0x40] sm:$0xff]
  %v28 = vld [vmem:[%s1 + $0x48] sm:$0xff]
  %v29 = vld [vmem:[%s1 + $0x50] sm:$0xff]
  %v30 = vld [vmem:[%s1 + $0x58] sm:$0xff]
  %v31 = vld [vmem:[%s1 + $0x60] sm:$0xff]
  %v32 = vld [vmem:[%s1 + $0x68] sm:$0xff]
  %v33 = vld [vmem:[%s1 + $0x70] sm:$0xff]
  %v34 = vld [vmem:[%s1 + $0x78] sm:$0xff]
  %v35 = vld [vmem:[%s1 + $0x80] sm:$0xff]
  %v36 = vld [vmem:[%s1 + $0x88] sm:$0xff]
  %v37 = vld [vmem:[%s1 + $0x90] sm:$0xff]
  %v38 = vld [vmem:[%s1 + $0x98] sm:$0xff]
  %v39 = vld [vmem:[%s1 + $0xa0] sm:$0xff]
  %v40 = vld [vmem:[%s1 + $0xa8] sm:$0xff]
  %v41 = vld [vmem:[%s1 + $0xb0] sm:$0xff]
  %v42 = vld [vmem:[%s1 + $0xb8] sm:$0xff]
  %v43 = vld [vmem:[%s1 + $0xc0] sm:$0xff]
  %v44 = vld [vmem:[%s1 + $0xc8] sm:$0xff]
  %v45 = vld [vmem:[%s1 + $0xd0] sm:$0xff]
  %v46 = vld [vmem:[%s1 + $0xd8] sm:$0xff]
  %v47 = vld [vmem:[%s1 + $0xe0] sm:$0xff]
  %v48 = vld [vmem:[%s1 + $0xe8] sm:$0xff]
  %v49 = vld [vmem:[%s1 + $0xf0] sm:$0xff]
  %v50 = vld [vmem:[%s1 + $0xf8] sm:$0xff]
  %v51 = vld [vmem:[%s1 + $0x100] sm:$0xff]
  %v52 = vld [vmem:[%s1 + $0x108] sm:$0xff]
  %v53 = vld [vmem:[%s1 + $0x110] sm:$0xff]
  %v54 = vld [vmem:[%s1 + $0x118] sm:$0xff]
  %v55 = vld [vmem:[%s1 + $0x120] sm:$0xff]
  %v56 = vld [vmem:[%s1 + $0x128] sm:$0xff]
  %v57 = vld [vmem:[%s1 + $0x130] sm:$0xff]
  %v58 = vld [vmem:[%s1 + $0x138] sm:$0xff]
  %v59 = vld [vmem:[%s1 + $0x140] sm:$0xff]
  %v60 = vld [vmem:[%s1 + $0x148] sm:$0xff]
  %v61 = vld [vmem:[%s1 + $0x150] sm:$0xff]
  %v62 = vld [vmem:[%s1 + $0x158] sm:$0xff]
  %v63 = vld [vmem:[%s1 + $0x160] sm:$0xff]
  %v64 = vld [vmem:[%s1 + $0x168] sm:$0xff]
  %v65 = vld [vmem:[%s1 + $0x170] sm:$0xff]
  %v66 = vld [vmem:[%s1 + $0x178] sm:$0xff]
  %v67 = vld [vmem:[%s1 + $0x180] sm:$0xff]
  %v68 = vld [vmem:[%s1 + $0x188] sm:$0xff]
  %v69 = vld [vmem:[%s1 + $0x190] sm:$0xff]
  %v70 = vld [vmem:[%s1 + $0x198] sm:$0xff]
  %v71 = vld [vmem:[%s1 + $0x1a0] sm:$0xff]
  %v72 = vld [vmem:[%s1 + $0x1a8] sm:$0xff]
  %v73 = vld [vmem:[%s1 + $0x1b0] sm:$0xff]
  %v74 = vld [vmem:[%s1 + $0x1b8] sm:$0xff]
  %v75 = vld [vmem:[%s1 + $0x1c0] sm:$0xff]
  %v76 = vld [vmem:[%s1 + $0x1c8] sm:$0xff]
  %v77 = vld [vmem:[%s1 + $0x1d0] sm:$0xff]
  %v78 = vld [vmem:[%s1 + $0x1d8] sm:$0xff]
  %v79 = vld [vmem:[%s1 + $0x1e0] sm:$0xff]
  %v80 = vld [vmem:[%s1 + $0x1e8] sm:$0xff]
  %v81 = vld [vmem:[%s1 + $0x1f0] sm:$0xff]
  %v82 = vld [vmem:[%s1 + $0x1f8] sm:$0xff]
  %v147 = vunpack.c.l.b16 %v19
  %v148 = vunpack.c.h.b16 %v19
  %v149 = vunpack.c.l.b16 %v20
  %v150 = vunpack.c.h.b16 %v20
  %v151 = vunpack.c.l.b16 %v21
  %v152 = vunpack.c.h.b16 %v21
  %v153 = vunpack.c.l.b16 %v22
  %v154 = vunpack.c.h.b16 %v22
  %v155 = vunpack.c.l.b16 %v23
  %v156 = vunpack.c.h.b16 %v23
  %v157 = vunpack.c.l.b16 %v24
  %v158 = vunpack.c.h.b16 %v24
  %v159 = vunpack.c.l.b16 %v25
  %v160 = vunpack.c.h.b16 %v25
  %v161 = vunpack.c.l.b16 %v26
  %v162 = vunpack.c.h.b16 %v26
  %v163 = vunpack.c.l.b16 %v27
  %v164 = vunpack.c.h.b16 %v27
  %v165 = vunpack.c.l.b16 %v28
  %v166 = vunpack.c.h.b16 %v28
  %v167 = vunpack.c.l.b16 %v29
  %v168 = vunpack.c.h.b16 %v29
  %v169 = vunpack.c.l.b16 %v30
  %v170 = vunpack.c.h.b16 %v30
  %v171 = vunpack.c.l.b16 %v31
  %v172 = vunpack.c.h.b16 %v31
  %v173 = vunpack.c.l.b16 %v32
  %v174 = vunpack.c.h.b16 %v32
  %v175 = vunpack.c.l.b16 %v33
  %v176 = vunpack.c.h.b16 %v33
  %v177 = vunpack.c.l.b16 %v34
  %v178 = vunpack.c.h.b16 %v34
  %v179 = vunpack.c.l.b16 %v35
  %v180 = vunpack.c.h.b16 %v35
  %v181 = vunpack.c.l.b16 %v36
  %v182 = vunpack.c.h.b16 %v36
  %v183 = vunpack.c.l.b16 %v37
  %v184 = vunpack.c.h.b16 %v37
  %v185 = vunpack.c.l.b16 %v38
  %v186 = vunpack.c.h.b16 %v38
  %v187 = vunpack.c.l.b16 %v39
  %v188 = vunpack.c.h.b16 %v39
  %v189 = vunpack.c.l.b16 %v40
  %v190 = vunpack.c.h.b16 %v40
  %v191 = vunpack.c.l.b16 %v41
  %v192 = vunpack.c.h.b16 %v41
  %v193 = vunpack.c.l.b16 %v42
  %v194 = vunpack.c.h.b16 %v42
  %v195 = vunpack.c.l.b16 %v43
  %v196 = vunpack.c.h.b16 %v43
  %v197 = vunpack.c.l.b16 %v44
  %v198 = vunpack.c.h.b16 %v44
  %v199 = vunpack.c.l.b16 %v45
  %v200 = vunpack.c.h.b16 %v45
  %v201 = vunpack.c.l.b16 %v46
  %v202 = vunpack.c.h.b16 %v46
  %v203 = vunpack.c.l.b16 %v47
  %v204 = vunpack.c.h.b16 %v47
  %v205 = vunpack.c.l.b16 %v48
  %v206 = vunpack.c.h.b16 %v48
  %v207 = vunpack.c.l.b16 %v49
  %v208 = vunpack.c.h.b16 %v49
  %v209 = vunpack.c.l.b16 %v50
  %v210 = vunpack.c.h.b16 %v50
  %v211 = vunpack.c.l.b16 %v51
  %v212 = vunpack.c.h.b16 %v51
  %v213 = vunpack.c.l.b16 %v52
  %v214 = vunpack.c.h.b16 %v52
  %v215 = vunpack.c.l.b16 %v53
  %v216 = vunpack.c.h.b16 %v53
  %v217 = vunpack.c.l.b16 %v54
  %v218 = vunpack.c.h.b16 %v54
  %v219 = vunpack.c.l.b16 %v55
  %v220 = vunpack.c.h.b16 %v55
  %v221 = vunpack.c.l.b16 %v56
  %v222 = vunpack.c.h.b16 %v56
  %v223 = vunpack.c.l.b16 %v57
  %v224 = vunpack.c.h.b16 %v57
  %v225 = vunpack.c.l.b16 %v58
  %v226 = vunpack.c.h.b16 %v58
  %v227 = vunpack.c.l.b16 %v59
  %v228 = vunpack.c.h.b16 %v59
  %v229 = vunpack.c.l.b16 %v60
  %v230 = vunpack.c.h.b16 %v60
  %v231 = vunpack.c.l.b16 %v61
  %v232 = vunpack.c.h.b16 %v61
  %v233 = vunpack.c.l.b16 %v62
  %v234 = vunpack.c.h.b16 %v62
  %v235 = vunpack.c.l.b16 %v63
  %v236 = vunpack.c.h.b16 %v63
  %v237 = vunpack.c.l.b16 %v64
  %v238 = vunpack.c.h.b16 %v64
  %v239 = vunpack.c.l.b16 %v65
  %v240 = vunpack.c.h.b16 %v65
  %v241 = vunpack.c.l.b16 %v66
  %v242 = vunpack.c.h.b16 %v66
  %v243 = vunpack.c.l.b16 %v67
  %v244 = vunpack.c.h.b16 %v67
  %v245 = vunpack.c.l.b16 %v68
  %v246 = vunpack.c.h.b16 %v68
  %v247 = vunpack.c.l.b16 %v69
  %v248 = vunpack.c.h.b16 %v69
  %v249 = vunpack.c.l.b16 %v70
  %v250 = vunpack.c.h.b16 %v70
  %v251 = vunpack.c.l.b16 %v71
  %v252 = vunpack.c.h.b16 %v71
  %v253 = vunpack.c.l.b16 %v72
  %v254 = vunpack.c.h.b16 %v72
  %v255 = vunpack.c.l.b16 %v73
  %v256 = vunpack.c.h.b16 %v73
  %v257 = vunpack.c.l.b16 %v74
  %v258 = vunpack.c.h.b16 %v74
  %v259 = vunpack.c.l.b16 %v75
  %v260 = vunpack.c.h.b16 %v75
  %v261 = vunpack.c.l.b16 %v76
  %v262 = vunpack.c.h.b16 %v76
  %v263 = vunpack.c.l.b16 %v77
  %v264 = vunpack.c.h.b16 %v77
  %v265 = vunpack.c.l.b16 %v78
  %v266 = vunpack.c.h.b16 %v78
  %v267 = vunpack.c.l.b16 %v79
  %v268 = vunpack.c.h.b16 %v79
  %v269 = vunpack.c.l.b16 %v80
  %v270 = vunpack.c.h.b16 %v80
  %v271 = vunpack.c.l.b16 %v81
  %v272 = vunpack.c.h.b16 %v81
  %v273 = vunpack.c.l.b16 %v82
  %v274 = vunpack.c.h.b16 %v82
  %v275 = vpack.c.b16 %v179, %v147
  %v276 = vpack.c.b16 %v180, %v148
  %v277 = vpack.c.b16 %v181, %v149
  %v278 = vpack.c.b16 %v182, %v150
  %v279 = vpack.c.b16 %v183, %v151
  %v280 = vpack.c.b16 %v184, %v152
  %v281 = vpack.c.b16 %v185, %v153
  %v282 = vpack.c.b16 %v186, %v154
  %v283 = vpack.c.b16 %v187, %v155
  %v284 = vpack.c.b16 %v188, %v156
  %v285 = vpack.c.b16 %v189, %v157
  %v286 = vpack.c.b16 %v190, %v158
  %v287 = vpack.c.b16 %v191, %v159
  %v288 = vpack.c.b16 %v192, %v160
  %v289 = vpack.c.b16 %v193, %v161
  %v290 = vpack.c.b16 %v194, %v162
  %v291 = vpack.c.b16 %v195, %v163
  %v292 = vpack.c.b16 %v196, %v164
  %v293 = vpack.c.b16 %v197, %v165
  %v294 = vpack.c.b16 %v198, %v166
  %v295 = vpack.c.b16 %v199, %v167
  %v296 = vpack.c.b16 %v200, %v168
  %v297 = vpack.c.b16 %v201, %v169
  %v298 = vpack.c.b16 %v202, %v170
  %v299 = vpack.c.b16 %v203, %v171
  %v300 = vpack.c.b16 %v204, %v172
  %v301 = vpack.c.b16 %v205, %v173
  %v302 = vpack.c.b16 %v206, %v174
  %v303 = vpack.c.b16 %v207, %v175
  %v304 = vpack.c.b16 %v208, %v176
  %v305 = vpack.c.b16 %v209, %v177
  %v306 = vpack.c.b16 %v210, %v178
  %v307 = vpack.c.b16 %v243, %v211
  %v308 = vpack.c.b16 %v244, %v212
  %v309 = vpack.c.b16 %v245, %v213
  %v310 = vpack.c.b16 %v246, %v214
  %v311 = vpack.c.b16 %v247, %v215
  %v312 = vpack.c.b16 %v248, %v216
  %v313 = vpack.c.b16 %v249, %v217
  %v314 = vpack.c.b16 %v250, %v218
  %v315 = vpack.c.b16 %v251, %v219
  %v316 = vpack.c.b16 %v252, %v220
  %v317 = vpack.c.b16 %v253, %v221
  %v318 = vpack.c.b16 %v254, %v222
  %v319 = vpack.c.b16 %v255, %v223
  %v320 = vpack.c.b16 %v256, %v224
  %v321 = vpack.c.b16 %v257, %v225
  %v322 = vpack.c.b16 %v258, %v226
  %v323 = vpack.c.b16 %v259, %v227
  %v324 = vpack.c.b16 %v260, %v228
  %v325 = vpack.c.b16 %v261, %v229
  %v326 = vpack.c.b16 %v262, %v230
  %v327 = vpack.c.b16 %v263, %v231
  %v328 = vpack.c.b16 %v264, %v232
  %v329 = vpack.c.b16 %v265, %v233
  %v330 = vpack.c.b16 %v266, %v234
  %v331 = vpack.c.b16 %v267, %v235
  %v332 = vpack.c.b16 %v268, %v236
  %v333 = vpack.c.b16 %v269, %v237
  %v334 = vpack.c.b16 %v270, %v238
  %v335 = vpack.c.b16 %v271, %v239
  %v336 = vpack.c.b16 %v272, %v240
  %v337 = vpack.c.b16 %v273, %v241
  %v338 = vpack.c.b16 %v274, %v242
  %vm403 = vcmask 261120
  %v405 = vsel %vm403, %v18, 0
  %407 = vmatprep.subr.bf16.mxu0 %v276
  %408 = vmatpush1.bf16.msra.mxu0 %v275
  %409 = vmatprep.subr.bf16.mxu0 %v308
  %410 = vmatpush1.bf16.msra.mxu0 %v307
  %411 = vmatprep.subr.bf16.mxu0 0
  %412 = vmatpush1.bf16.msra.mxu0 0
  %413 = vmatprep.subr.bf16.mxu0 0
  %414 = vmatpush1.bf16.msra.mxu0 0
  %415 = vmatprep.subr.bf16.mxu0 0
  %416 = vmatpush1.bf16.msra.mxu0 0
  %417 = vmatprep.subr.bf16.mxu0 0
  %418 = vmatpush1.bf16.msra.mxu0 0
  %419 = vmatprep.subr.bf16.mxu0 0
  %420 = vmatpush1.bf16.msra.mxu0 0
  %421 = vmatprep.subr.bf16.mxu0 0
  %422 = vmatpush1.bf16.msra.mxu0 0
  %423 = vmatprep.subr.bf16.mxu0 0
  %424 = vmatpush1.bf16.msra.mxu0 0
  %425 = vmatprep.subr.bf16.mxu0 0
  %426 = vmatpush1.bf16.msra.mxu0 0
  %427 = vmatprep.subr.bf16.mxu0 0
  %428 = vmatpush1.bf16.msra.mxu0 0
  %429 = vmatprep.subr.bf16.mxu0 0
  %430 = vmatpush1.bf16.msra.mxu0 0
  %431 = vmatprep.subr.bf16.mxu0 0
  %432 = vmatpush1.bf16.msra.mxu0 0
  %433 = vmatprep.subr.bf16.mxu0 0
  %434 = vmatpush1.bf16.msra.mxu0 0
  %435 = vmatprep.subr.bf16.mxu0 0
  %436 = vmatpush1.bf16.msra.mxu0 0
  %437 = vmatprep.subr.bf16.mxu0 0
  %438 = vmatpush1.bf16.msra.mxu0 0
  %439 = vmatprep.mubr.bf16.mxu0 0
  %440 = vmatmul.mubr.bf16.gmra.mrb[0].mxu0 %v405
  %v441 = vpop.f32.mrb[0].mxu0
  %v442 = vadd.f32 0.0, %v441
  %v443 = vpop.f32.mrb[0].mxu0
  %v444 = vadd.f32 0.0, %v443
  %v445 = vpop.f32.mrb[0].mxu0
  %v446 = vpop.f32.mrb[0].mxu0
  %447 = vdwg.mxu0
  %448 = vmatprep.subr.bf16.mxu0 %v278
  %449 = vmatpush1.bf16.msra.mxu0 %v277
  %450 = vmatprep.subr.bf16.mxu0 %v310
  %451 = vmatpush1.bf16.msra.mxu0 %v309
  %452 = vmatprep.subr.bf16.mxu0 0
  %453 = vmatpush1.bf16.msra.mxu0 0
  %454 = vmatprep.subr.bf16.mxu0 0
  %455 = vmatpush1.bf16.msra.mxu0 0
  %456 = vmatprep.subr.bf16.mxu0 0
  %457 = vmatpush1.bf16.msra.mxu0 0
  %458 = vmatprep.subr.bf16.mxu0 0
  %459 = vmatpush1.bf16.msra.mxu0 0
  %460 = vmatprep.subr.bf16.mxu0 0
  %461 = vmatpush1.bf16.msra.mxu0 0
  %462 = vmatprep.subr.bf16.mxu0 0
  %463 = vmatpush1.bf16.msra.mxu0 0
  %464 = vmatprep.subr.bf16.mxu0 0
  %465 = vmatpush1.bf16.msra.mxu0 0
  %466 = vmatprep.subr.bf16.mxu0 0
  %467 = vmatpush1.bf16.msra.mxu0 0
  %468 = vmatprep.subr.bf16.mxu0 0
  %469 = vmatpush1.bf16.msra.mxu0 0
  %470 = vmatprep.subr.bf16.mxu0 0
  %471 = vmatpush1.bf16.msra.mxu0 0
  %472 = vmatprep.subr.bf16.mxu0 0
  %473 = vmatpush1.bf16.msra.mxu0 0
  %474 = vmatprep.subr.bf16.mxu0 0
  %475 = vmatpush1.bf16.msra.mxu0 0
  %476 = vmatprep.subr.bf16.mxu0 0
  %477 = vmatpush1.bf16.msra.mxu0 0
  %478 = vmatprep.subr.bf16.mxu0 0
  %479 = vmatpush1.bf16.msra.mxu0 0
  %480 = vmatprep.mubr.bf16.mxu0 0
  %481 = vmatmul.mubr.bf16.gmra.mrb[0].mxu0 %v405
  %v482 = vpop.f32.mrb[0].mxu0
  %v483 = vadd.f32 0.0, %v482
  %v484 = vpop.f32.mrb[0].mxu0
  %v485 = vadd.f32 0.0, %v484
  %v486 = vpop.f32.mrb[0].mxu0
  %v487 = vpop.f32.mrb[0].mxu0
  %488 = vdwg.mxu0
  %489 = vmatprep.subr.bf16.mxu0 %v280
  %490 = vmatpush1.bf16.msra.mxu0 %v279
  %491 = vmatprep.subr.bf16.mxu0 %v312
  %492 = vmatpush1.bf16.msra.mxu0 %v311
  %493 = vmatprep.subr.bf16.mxu0 0
  %494 = vmatpush1.bf16.msra.mxu0 0
  %495 = vmatprep.subr.bf16.mxu0 0
  %496 = vmatpush1.bf16.msra.mxu0 0
  %497 = vmatprep.subr.bf16.mxu0 0
  %498 = vmatpush1.bf16.msra.mxu0 0
  %499 = vmatprep.subr.bf16.mxu0 0
  %500 = vmatpush1.bf16.msra.mxu0 0
  %501 = vmatprep.subr.bf16.mxu0 0
  %502 = vmatpush1.bf16.msra.mxu0 0
  %503 = vmatprep.subr.bf16.mxu0 0
  %504 = vmatpush1.bf16.msra.mxu0 0
  %505 = vmatprep.subr.bf16.mxu0 0
  %506 = vmatpush1.bf16.msra.mxu0 0
  %507 = vmatprep.subr.bf16.mxu0 0
  %508 = vmatpush1.bf16.msra.mxu0 0
  %509 = vmatprep.subr.bf16.mxu0 0
  %510 = vmatpush1.bf16.msra.mxu0 0
  %511 = vmatprep.subr.bf16.mxu0 0
  %512 = vmatpush1.bf16.msra.mxu0 0
  %513 = vmatprep.subr.bf16.mxu0 0
  %514 = vmatpush1.bf16.msra.mxu0 0
  %515 = vmatprep.subr.bf16.mxu0 0
  %516 = vmatpush1.bf16.msra.mxu0 0
  %517 = vmatprep.subr.bf16.mxu0 0
  %518 = vmatpush1.bf16.msra.mxu0 0
  %519 = vmatprep.subr.bf16.mxu0 0
  %520 = vmatpush1.bf16.msra.mxu0 0
  %521 = vmatprep.mubr.bf16.mxu0 0
  %522 = vmatmul.mubr.bf16.gmra.mrb[0].mxu0 %v405
  %v523 = vpop.f32.mrb[0].mxu0
  %v524 = vadd.f32 0.0, %v523
  %v525 = vpop.f32.mrb[0].mxu0
  %v526 = vadd.f32 0.0, %v525
  %v527 = vpop.f32.mrb[0].mxu0
  %v528 = vpop.f32.mrb[0].mxu0
  %529 = vdwg.mxu0
  %530 = vmatprep.subr.bf16.mxu0 %v282
  %531 = vmatpush1.bf16.msra.mxu0 %v281
  %532 = vmatprep.subr.bf16.mxu0 %v314
  %533 = vmatpush1.bf16.msra.mxu0 %v313
  %534 = vmatprep.subr.bf16.mxu0 0
  %535 = vmatpush1.bf16.msra.mxu0 0
  %536 = vmatprep.subr.bf16.mxu0 0
  %537 = vmatpush1.bf16.msra.mxu0 0
  %538 = vmatprep.subr.bf16.mxu0 0
  %539 = vmatpush1.bf16.msra.mxu0 0
  %540 = vmatprep.subr.bf16.mxu0 0
  %541 = vmatpush1.bf16.msra.mxu0 0
  %542 = vmatprep.subr.bf16.mxu0 0
  %543 = vmatpush1.bf16.msra.mxu0 0
  %544 = vmatprep.subr.bf16.mxu0 0
  %545 = vmatpush1.bf16.msra.mxu0 0
  %546 = vmatprep.subr.bf16.mxu0 0
  %547 = vmatpush1.bf16.msra.mxu0 0
  %548 = vmatprep.subr.bf16.mxu0 0
  %549 = vmatpush1.bf16.msra.mxu0 0
  %550 = vmatprep.subr.bf16.mxu0 0
  %551 = vmatpush1.bf16.msra.mxu0 0
  %552 = vmatprep.subr.bf16.mxu0 0
  %553 = vmatpush1.bf16.msra.mxu0 0
  %554 = vmatprep.subr.bf16.mxu0 0
  %555 = vmatpush1.bf16.msra.mxu0 0
  %556 = vmatprep.subr.bf16.mxu0 0
  %557 = vmatpush1.bf16.msra.mxu0 0
  %558 = vmatprep.subr.bf16.mxu0 0
  %559 = vmatpush1.bf16.msra.mxu0 0
  %560 = vmatprep.subr.bf16.mxu0 0
  %561 = vmatpush1.bf16.msra.mxu0 0
  %562 = vmatprep.mubr.bf16.mxu0 0
  %563 = vmatmul.mubr.bf16.gmra.mrb[0].mxu0 %v405
  %v564 = vpop.f32.mrb[0].mxu0
  %v565 = vadd.f32 0.0, %v564
  %v566 = vpop.f32.mrb[0].mxu0
  %v567 = vadd.f32 0.0, %v566
  %v568 = vpop.f32.mrb[0].mxu0
  %v569 = vpop.f32.mrb[0].mxu0
  %570 = vdwg.mxu0
  %571 = vmatprep.subr.bf16.mxu0 %v284
  %572 = vmatpush1.bf16.msra.mxu0 %v283
  %573 = vmatprep.subr.bf16.mxu0 %v316
  %574 = vmatpush1.bf16.msra.mxu0 %v315
  %575 = vmatprep.subr.bf16.mxu0 0
  %576 = vmatpush1.bf16.msra.mxu0 0
  %577 = vmatprep.subr.bf16.mxu0 0
  %578 = vmatpush1.bf16.msra.mxu0 0
  %579 = vmatprep.subr.bf16.mxu0 0
  %580 = vmatpush1.bf16.msra.mxu0 0
  %581 = vmatprep.subr.bf16.mxu0 0
  %582 = vmatpush1.bf16.msra.mxu0 0
  %583 = vmatprep.subr.bf16.mxu0 0
  %584 = vmatpush1.bf16.msra.mxu0 0
  %585 = vmatprep.subr.bf16.mxu0 0
  %586 = vmatpush1.bf16.msra.mxu0 0
  %587 = vmatprep.subr.bf16.mxu0 0
  %588 = vmatpush1.bf16.msra.mxu0 0
  %589 = vmatprep.subr.bf16.mxu0 0
  %590 = vmatpush1.bf16.msra.mxu0 0
  %591 = vmatprep.subr.bf16.mxu0 0
  %592 = vmatpush1.bf16.msra.mxu0 0
  %593 = vmatprep.subr.bf16.mxu0 0
  %594 = vmatpush1.bf16.msra.mxu0 0
  %595 = vmatprep.subr.bf16.mxu0 0
  %596 = vmatpush1.bf16.msra.mxu0 0
  %597 = vmatprep.subr.bf16.mxu0 0
  %598 = vmatpush1.bf16.msra.mxu0 0
  %599 = vmatprep.subr.bf16.mxu0 0
  %600 = vmatpush1.bf16.msra.mxu0 0
  %601 = vmatprep.subr.bf16.mxu0 0
  %602 = vmatpush1.bf16.msra.mxu0 0
  %603 = vmatprep.mubr.bf16.mxu0 0
  %604 = vmatmul.mubr.bf16.gmra.mrb[0].mxu0 %v405
  %v605 = vpop.f32.mrb[0].mxu0
  %v606 = vadd.f32 0.0, %v605
  %v607 = vpop.f32.mrb[0].mxu0
  %v608 = vadd.f32 0.0, %v607
  %v609 = vpop.f32.mrb[0].mxu0
  %v610 = vpop.f32.mrb[0].mxu0
  %611 = vdwg.mxu0
  %612 = vmatprep.subr.bf16.mxu0 %v286
  %613 = vmatpush1.bf16.msra.mxu0 %v285
  %614 = vmatprep.subr.bf16.mxu0 %v318
  %615 = vmatpush1.bf16.msra.mxu0 %v317
  %616 = vmatprep.subr.bf16.mxu0 0
  %617 = vmatpush1.bf16.msra.mxu0 0
  %618 = vmatprep.subr.bf16.mxu0 0
  %619 = vmatpush1.bf16.msra.mxu0 0
  %620 = vmatprep.subr.bf16.mxu0 0
  %621 = vmatpush1.bf16.msra.mxu0 0
  %622 = vmatprep.subr.bf16.mxu0 0
  %623 = vmatpush1.bf16.msra.mxu0 0
  %624 = vmatprep.subr.bf16.mxu0 0
  %625 = vmatpush1.bf16.msra.mxu0 0
  %626 = vmatprep.subr.bf16.mxu0 0
  %627 = vmatpush1.bf16.msra.mxu0 0
  %628 = vmatprep.subr.bf16.mxu0 0
  %629 = vmatpush1.bf16.msra.mxu0 0
  %630 = vmatprep.subr.bf16.mxu0 0
  %631 = vmatpush1.bf16.msra.mxu0 0
  %632 = vmatprep.subr.bf16.mxu0 0
  %633 = vmatpush1.bf16.msra.mxu0 0
  %634 = vmatprep.subr.bf16.mxu0 0
  %635 = vmatpush1.bf16.msra.mxu0 0
  %636 = vmatprep.subr.bf16.mxu0 0
  %637 = vmatpush1.bf16.msra.mxu0 0
  %638 = vmatprep.subr.bf16.mxu0 0
  %639 = vmatpush1.bf16.msra.mxu0 0
  %640 = vmatprep.subr.bf16.mxu0 0
  %641 = vmatpush1.bf16.msra.mxu0 0
  %642 = vmatprep.subr.bf16.mxu0 0
  %643 = vmatpush1.bf16.msra.mxu0 0
  %644 = vmatprep.mubr.bf16.mxu0 0
  %645 = vmatmul.mubr.bf16.gmra.mrb[0].mxu0 %v405
  %v646 = vpop.f32.mrb[0].mxu0
  %v647 = vadd.f32 0.0, %v646
  %v648 = vpop.f32.mrb[0].mxu0
  %v649 = vadd.f32 0.0, %v648
  %v650 = vpop.f32.mrb[0].mxu0
  %v651 = vpop.f32.mrb[0].mxu0
  %652 = vdwg.mxu0
  %653 = vmatprep.subr.bf16.mxu0 %v288
  %654 = vmatpush1.bf16.msra.mxu0 %v287
  %655 = vmatprep.subr.bf16.mxu0 %v320
  %656 = vmatpush1.bf16.msra.mxu0 %v319
  %657 = vmatprep.subr.bf16.mxu0 0
  %658 = vmatpush1.bf16.msra.mxu0 0
  %659 = vmatprep.subr.bf16.mxu0 0
  %660 = vmatpush1.bf16.msra.mxu0 0
  %661 = vmatprep.subr.bf16.mxu0 0
  %662 = vmatpush1.bf16.msra.mxu0 0
  %663 = vmatprep.subr.bf16.mxu0 0
  %664 = vmatpush1.bf16.msra.mxu0 0
  %665 = vmatprep.subr.bf16.mxu0 0
  %666 = vmatpush1.bf16.msra.mxu0 0
  %667 = vmatprep.subr.bf16.mxu0 0
  %668 = vmatpush1.bf16.msra.mxu0 0
  %669 = vmatprep.subr.bf16.mxu0 0
  %670 = vmatpush1.bf16.msra.mxu0 0
  %671 = vmatprep.subr.bf16.mxu0 0
  %672 = vmatpush1.bf16.msra.mxu0 0
  %673 = vmatprep.subr.bf16.mxu0 0
  %674 = vmatpush1.bf16.msra.mxu0 0
  %675 = vmatprep.subr.bf16.mxu0 0
  %676 = vmatpush1.bf16.msra.mxu0 0
  %677 = vmatprep.subr.bf16.mxu0 0
  %678 = vmatpush1.bf16.msra.mxu0 0
  %679 = vmatprep.subr.bf16.mxu0 0
  %680 = vmatpush1.bf16.msra.mxu0 0
  %681 = vmatprep.subr.bf16.mxu0 0
  %682 = vmatpush1.bf16.msra.mxu0 0
  %683 = vmatprep.subr.bf16.mxu0 0
  %684 = vmatpush1.bf16.msra.mxu0 0
  %685 = vmatprep.mubr.bf16.mxu0 0
  %686 = vmatmul.mubr.bf16.gmra.mrb[0].mxu0 %v405
  %v687 = vpop.f32.mrb[0].mxu0
  %v688 = vadd.f32 0.0, %v687
  %v689 = vpop.f32.mrb[0].mxu0
  %v690 = vadd.f32 0.0, %v689
  %v691 = vpop.f32.mrb[0].mxu0
  %v692 = vpop.f32.mrb[0].mxu0
  %693 = vdwg.mxu0
  %694 = vmatprep.subr.bf16.mxu0 %v290
  %695 = vmatpush1.bf16.msra.mxu0 %v289
  %696 = vmatprep.subr.bf16.mxu0 %v322
  %697 = vmatpush1.bf16.msra.mxu0 %v321
  %698 = vmatprep.subr.bf16.mxu0 0
  %699 = vmatpush1.bf16.msra.mxu0 0
  %700 = vmatprep.subr.bf16.mxu0 0
  %701 = vmatpush1.bf16.msra.mxu0 0
  %702 = vmatprep.subr.bf16.mxu0 0
  %703 = vmatpush1.bf16.msra.mxu0 0
  %704 = vmatprep.subr.bf16.mxu0 0
  %705 = vmatpush1.bf16.msra.mxu0 0
  %706 = vmatprep.subr.bf16.mxu0 0
  %707 = vmatpush1.bf16.msra.mxu0 0
  %708 = vmatprep.subr.bf16.mxu0 0
  %709 = vmatpush1.bf16.msra.mxu0 0
  %710 = vmatprep.subr.bf16.mxu0 0
  %711 = vmatpush1.bf16.msra.mxu0 0
  %712 = vmatprep.subr.bf16.mxu0 0
  %713 = vmatpush1.bf16.msra.mxu0 0
  %714 = vmatprep.subr.bf16.mxu0 0
  %715 = vmatpush1.bf16.msra.mxu0 0
  %716 = vmatprep.subr.bf16.mxu0 0
  %717 = vmatpush1.bf16.msra.mxu0 0
  %718 = vmatprep.subr.bf16.mxu0 0
  %719 = vmatpush1.bf16.msra.mxu0 0
  %720 = vmatprep.subr.bf16.mxu0 0
  %721 = vmatpush1.bf16.msra.mxu0 0
  %722 = vmatprep.subr.bf16.mxu0 0
  %723 = vmatpush1.bf16.msra.mxu0 0
  %724 = vmatprep.subr.bf16.mxu0 0
  %725 = vmatpush1.bf16.msra.mxu0 0
  %726 = vmatprep.mubr.bf16.mxu0 0
  %727 = vmatmul.mubr.bf16.gmra.mrb[0].mxu0 %v405
  %v728 = vpop.f32.mrb[0].mxu0
  %v729 = vadd.f32 0.0, %v728
  %v730 = vpop.f32.mrb[0].mxu0
  %v731 = vadd.f32 0.0, %v730
  %v732 = vpop.f32.mrb[0].mxu0
  %v733 = vpop.f32.mrb[0].mxu0
  %734 = vdwg.mxu0
  %735 = vmatprep.subr.bf16.mxu0 %v292
  %736 = vmatpush1.bf16.msra.mxu0 %v291
  %737 = vmatprep.subr.bf16.mxu0 %v324
  %738 = vmatpush1.bf16.msra.mxu0 %v323
  %739 = vmatprep.subr.bf16.mxu0 0
  %740 = vmatpush1.bf16.msra.mxu0 0
  %741 = vmatprep.subr.bf16.mxu0 0
  %742 = vmatpush1.bf16.msra.mxu0 0
  %743 = vmatprep.subr.bf16.mxu0 0
  %744 = vmatpush1.bf16.msra.mxu0 0
  %745 = vmatprep.subr.bf16.mxu0 0
  %746 = vmatpush1.bf16.msra.mxu0 0
  %747 = vmatprep.subr.bf16.mxu0 0
  %748 = vmatpush1.bf16.msra.mxu0 0
  %749 = vmatprep.subr.bf16.mxu0 0
  %750 = vmatpush1.bf16.msra.mxu0 0
  %751 = vmatprep.subr.bf16.mxu0 0
  %752 = vmatpush1.bf16.msra.mxu0 0
  %753 = vmatprep.subr.bf16.mxu0 0
  %754 = vmatpush1.bf16.msra.mxu0 0
  %755 = vmatprep.subr.bf16.mxu0 0
  %756 = vmatpush1.bf16.msra.mxu0 0
  %757 = vmatprep.subr.bf16.mxu0 0
  %758 = vmatpush1.bf16.msra.mxu0 0
  %759 = vmatprep.subr.bf16.mxu0 0
  %760 = vmatpush1.bf16.msra.mxu0 0
  %761 = vmatprep.subr.bf16.mxu0 0
  %762 = vmatpush1.bf16.msra.mxu0 0
  %763 = vmatprep.subr.bf16.mxu0 0
  %764 = vmatpush1.bf16.msra.mxu0 0
  %765 = vmatprep.subr.bf16.mxu0 0
  %766 = vmatpush1.bf16.msra.mxu0 0
  %767 = vmatprep.mubr.bf16.mxu0 0
  %768 = vmatmul.mubr.bf16.gmra.mrb[0].mxu0 %v405
  %v769 = vpop.f32.mrb[0].mxu0
  %v770 = vadd.f32 0.0, %v769
  %v771 = vpop.f32.mrb[0].mxu0
  %v772 = vadd.f32 0.0, %v771
  %v773 = vpop.f32.mrb[0].mxu0
  %v774 = vpop.f32.mrb[0].mxu0
  %775 = vdwg.mxu0
  %776 = vmatprep.subr.bf16.mxu0 %v294
  %777 = vmatpush1.bf16.msra.mxu0 %v293
  %778 = vmatprep.subr.bf16.mxu0 %v326
  %779 = vmatpush1.bf16.msra.mxu0 %v325
  %780 = vmatprep.subr.bf16.mxu0 0
  %781 = vmatpush1.bf16.msra.mxu0 0
  %782 = vmatprep.subr.bf16.mxu0 0
  %783 = vmatpush1.bf16.msra.mxu0 0
  %784 = vmatprep.subr.bf16.mxu0 0
  %785 = vmatpush1.bf16.msra.mxu0 0
  %786 = vmatprep.subr.bf16.mxu0 0
  %787 = vmatpush1.bf16.msra.mxu0 0
  %788 = vmatprep.subr.bf16.mxu0 0
  %789 = vmatpush1.bf16.msra.mxu0 0
  %790 = vmatprep.subr.bf16.mxu0 0
  %791 = vmatpush1.bf16.msra.mxu0 0
  %792 = vmatprep.subr.bf16.mxu0 0
  %793 = vmatpush1.bf16.msra.mxu0 0
  %794 = vmatprep.subr.bf16.mxu0 0
  %795 = vmatpush1.bf16.msra.mxu0 0
  %796 = vmatprep.subr.bf16.mxu0 0
  %797 = vmatpush1.bf16.msra.mxu0 0
  %798 = vmatprep.subr.bf16.mxu0 0
  %799 = vmatpush1.bf16.msra.mxu0 0
  %800 = vmatprep.subr.bf16.mxu0 0
  %801 = vmatpush1.bf16.msra.mxu0 0
  %802 = vmatprep.subr.bf16.mxu0 0
  %803 = vmatpush1.bf16.msra.mxu0 0
  %804 = vmatprep.subr.bf16.mxu0 0
  %805 = vmatpush1.bf16.msra.mxu0 0
  %806 = vmatprep.subr.bf16.mxu0 0
  %807 = vmatpush1.bf16.msra.mxu0 0
  %808 = vmatprep.mubr.bf16.mxu0 0
  %809 = vmatmul.mubr.bf16.gmra.mrb[0].mxu0 %v405
  %v810 = vpop.f32.mrb[0].mxu0
  %v811 = vadd.f32 0.0, %v810
  %v812 = vpop.f32.mrb[0].mxu0
  %v813 = vadd.f32 0.0, %v812
  %v814 = vpop.f32.mrb[0].mxu0
  %v815 = vpop.f32.mrb[0].mxu0
  %816 = vdwg.mxu0
  %817 = vmatprep.subr.bf16.mxu0 %v296
  %818 = vmatpush1.bf16.msra.mxu0 %v295
  %819 = vmatprep.subr.bf16.mxu0 %v328
  %820 = vmatpush1.bf16.msra.mxu0 %v327
  %821 = vmatprep.subr.bf16.mxu0 0
  %822 = vmatpush1.bf16.msra.mxu0 0
  %823 = vmatprep.subr.bf16.mxu0 0
  %824 = vmatpush1.bf16.msra.mxu0 0
  %825 = vmatprep.subr.bf16.mxu0 0
  %826 = vmatpush1.bf16.msra.mxu0 0
  %827 = vmatprep.subr.bf16.mxu0 0
  %828 = vmatpush1.bf16.msra.mxu0 0
  %829 = vmatprep.subr.bf16.mxu0 0
  %830 = vmatpush1.bf16.msra.mxu0 0
  %831 = vmatprep.subr.bf16.mxu0 0
  %832 = vmatpush1.bf16.msra.mxu0 0
  %833 = vmatprep.subr.bf16.mxu0 0
  %834 = vmatpush1.bf16.msra.mxu0 0
  %835 = vmatprep.subr.bf16.mxu0 0
  %836 = vmatpush1.bf16.msra.mxu0 0
  %837 = vmatprep.subr.bf16.mxu0 0
  %838 = vmatpush1.bf16.msra.mxu0 0
  %839 = vmatprep.subr.bf16.mxu0 0
  %840 = vmatpush1.bf16.msra.mxu0 0
  %841 = vmatprep.subr.bf16.mxu0 0
  %842 = vmatpush1.bf16.msra.mxu0 0
  %843 = vmatprep.subr.bf16.mxu0 0
  %844 = vmatpush1.bf16.msra.mxu0 0
  %845 = vmatprep.subr.bf16.mxu0 0
  %846 = vmatpush1.bf16.msra.mxu0 0
  %847 = vmatprep.subr.bf16.mxu0 0
  %848 = vmatpush1.bf16.msra.mxu0 0
  %849 = vmatprep.mubr.bf16.mxu0 0
  %850 = vmatmul.mubr.bf16.gmra.mrb[0].mxu0 %v405
  %v851 = vpop.f32.mrb[0].mxu0
  %v852 = vadd.f32 0.0, %v851
  %v853 = vpop.f32.mrb[0].mxu0
  %v854 = vadd.f32 0.0, %v853
  %v855 = vpop.f32.mrb[0].mxu0
  %v856 = vpop.f32.mrb[0].mxu0
  %857 = vdwg.mxu0
  %858 = vmatprep.subr.bf16.mxu0 %v298
  %859 = vmatpush1.bf16.msra.mxu0 %v297
  %860 = vmatprep.subr.bf16.mxu0 %v330
  %861 = vmatpush1.bf16.msra.mxu0 %v329
  %862 = vmatprep.subr.bf16.mxu0 0
  %863 = vmatpush1.bf16.msra.mxu0 0
  %864 = vmatprep.subr.bf16.mxu0 0
  %865 = vmatpush1.bf16.msra.mxu0 0
  %866 = vmatprep.subr.bf16.mxu0 0
  %867 = vmatpush1.bf16.msra.mxu0 0
  %868 = vmatprep.subr.bf16.mxu0 0
  %869 = vmatpush1.bf16.msra.mxu0 0
  %870 = vmatprep.subr.bf16.mxu0 0
  %871 = vmatpush1.bf16.msra.mxu0 0
  %872 = vmatprep.subr.bf16.mxu0 0
  %873 = vmatpush1.bf16.msra.mxu0 0
  %874 = vmatprep.subr.bf16.mxu0 0
  %875 = vmatpush1.bf16.msra.mxu0 0
  %876 = vmatprep.subr.bf16.mxu0 0
  %877 = vmatpush1.bf16.msra.mxu0 0
  %878 = vmatprep.subr.bf16.mxu0 0
  %879 = vmatpush1.bf16.msra.mxu0 0
  %880 = vmatprep.subr.bf16.mxu0 0
  %881 = vmatpush1.bf16.msra.mxu0 0
  %882 = vmatprep.subr.bf16.mxu0 0
  %883 = vmatpush1.bf16.msra.mxu0 0
  %884 = vmatprep.subr.bf16.mxu0 0
  %885 = vmatpush1.bf16.msra.mxu0 0
  %886 = vmatprep.subr.bf16.mxu0 0
  %887 = vmatpush1.bf16.msra.mxu0 0
  %888 = vmatprep.subr.bf16.mxu0 0
  %889 = vmatpush1.bf16.msra.mxu0 0
  %890 = vmatprep.mubr.bf16.mxu0 0
  %891 = vmatmul.mubr.bf16.gmra.mrb[0].mxu0 %v405
  %v892 = vpop.f32.mrb[0].mxu0
  %v893 = vadd.f32 0.0, %v892
  %v894 = vpop.f32.mrb[0].mxu0
  %v895 = vadd.f32 0.0, %v894
  %v896 = vpop.f32.mrb[0].mxu0
  %v897 = vpop.f32.mrb[0].mxu0
  %898 = vdwg.mxu0
  %899 = vmatprep.subr.bf16.mxu0 %v300
  %900 = vmatpush1.bf16.msra.mxu0 %v299
  %901 = vmatprep.subr.bf16.mxu0 %v332
  %902 = vmatpush1.bf16.msra.mxu0 %v331
  %903 = vmatprep.subr.bf16.mxu0 0
  %904 = vmatpush1.bf16.msra.mxu0 0
  %905 = vmatprep.subr.bf16.mxu0 0
  %906 = vmatpush1.bf16.msra.mxu0 0
  %907 = vmatprep.subr.bf16.mxu0 0
  %908 = vmatpush1.bf16.msra.mxu0 0
  %909 = vmatprep.subr.bf16.mxu0 0
  %910 = vmatpush1.bf16.msra.mxu0 0
  %911 = vmatprep.subr.bf16.mxu0 0
  %912 = vmatpush1.bf16.msra.mxu0 0
  %913 = vmatprep.subr.bf16.mxu0 0
  %914 = vmatpush1.bf16.msra.mxu0 0
  %915 = vmatprep.subr.bf16.mxu0 0
  %916 = vmatpush1.bf16.msra.mxu0 0
  %917 = vmatprep.subr.bf16.mxu0 0
  %918 = vmatpush1.bf16.msra.mxu0 0
  %919 = vmatprep.subr.bf16.mxu0 0
  %920 = vmatpush1.bf16.msra.mxu0 0
  %921 = vmatprep.subr.bf16.mxu0 0
  %922 = vmatpush1.bf16.msra.mxu0 0
  %923 = vmatprep.subr.bf16.mxu0 0
  %924 = vmatpush1.bf16.msra.mxu0 0
  %925 = vmatprep.subr.bf16.mxu0 0
  %926 = vmatpush1.bf16.msra.mxu0 0
  %927 = vmatprep.subr.bf16.mxu0 0
  %928 = vmatpush1.bf16.msra.mxu0 0
  %929 = vmatprep.subr.bf16.mxu0 0
  %930 = vmatpush1.bf16.msra.mxu0 0
  %931 = vmatprep.mubr.bf16.mxu0 0
  %932 = vmatmul.mubr.bf16.gmra.mrb[0].mxu0 %v405
  %v933 = vpop.f32.mrb[0].mxu0
  %v934 = vadd.f32 0.0, %v933
  %v935 = vpop.f32.mrb[0].mxu0
  %v936 = vadd.f32 0.0, %v935
  %v937 = vpop.f32.mrb[0].mxu0
  %v938 = vpop.f32.mrb[0].mxu0
  %939 = vdwg.mxu0
  %940 = vmatprep.subr.bf16.mxu0 %v302
  %941 = vmatpush1.bf16.msra.mxu0 %v301
  %942 = vmatprep.subr.bf16.mxu0 %v334
  %943 = vmatpush1.bf16.msra.mxu0 %v333
  %944 = vmatprep.subr.bf16.mxu0 0
  %945 = vmatpush1.bf16.msra.mxu0 0
  %946 = vmatprep.subr.bf16.mxu0 0
  %947 = vmatpush1.bf16.msra.mxu0 0
  %948 = vmatprep.subr.bf16.mxu0 0
  %949 = vmatpush1.bf16.msra.mxu0 0
  %950 = vmatprep.subr.bf16.mxu0 0
  %951 = vmatpush1.bf16.msra.mxu0 0
  %952 = vmatprep.subr.bf16.mxu0 0
  %953 = vmatpush1.bf16.msra.mxu0 0
  %954 = vmatprep.subr.bf16.mxu0 0
  %955 = vmatpush1.bf16.msra.mxu0 0
  %956 = vmatprep.subr.bf16.mxu0 0
  %957 = vmatpush1.bf16.msra.mxu0 0
  %958 = vmatprep.subr.bf16.mxu0 0
  %959 = vmatpush1.bf16.msra.mxu0 0
  %960 = vmatprep.subr.bf16.mxu0 0
  %961 = vmatpush1.bf16.msra.mxu0 0
  %962 = vmatprep.subr.bf16.mxu0 0
  %963 = vmatpush1.bf16.msra.mxu0 0
  %964 = vmatprep.subr.bf16.mxu0 0
  %965 = vmatpush1.bf16.msra.mxu0 0
  %966 = vmatprep.subr.bf16.mxu0 0
  %967 = vmatpush1.bf16.msra.mxu0 0
  %968 = vmatprep.subr.bf16.mxu0 0
  %969 = vmatpush1.bf16.msra.mxu0 0
  %970 = vmatprep.subr.bf16.mxu0 0
  %971 = vmatpush1.bf16.msra.mxu0 0
  %972 = vmatprep.mubr.bf16.mxu0 0
  %973 = vmatmul.mubr.bf16.gmra.mrb[0].mxu0 %v405
  %v974 = vpop.f32.mrb[0].mxu0
  %v975 = vadd.f32 0.0, %v974
  %v976 = vpop.f32.mrb[0].mxu0
  %v977 = vadd.f32 0.0, %v976
  %v978 = vpop.f32.mrb[0].mxu0
  %v979 = vpop.f32.mrb[0].mxu0
  %980 = vdwg.mxu0
  %981 = vmatprep.subr.bf16.mxu0 %v304
  %982 = vmatpush1.bf16.msra.mxu0 %v303
  %983 = vmatprep.subr.bf16.mxu0 %v336
  %984 = vmatpush1.bf16.msra.mxu0 %v335
  %985 = vmatprep.subr.bf16.mxu0 0
  %986 = vmatpush1.bf16.msra.mxu0 0
  %987 = vmatprep.subr.bf16.mxu0 0
  %988 = vmatpush1.bf16.msra.mxu0 0
  %989 = vmatprep.subr.bf16.mxu0 0
  %990 = vmatpush1.bf16.msra.mxu0 0
  %991 = vmatprep.subr.bf16.mxu0 0
  %992 = vmatpush1.bf16.msra.mxu0 0
  %993 = vmatprep.subr.bf16.mxu0 0
  %994 = vmatpush1.bf16.msra.mxu0 0
  %995 = vmatprep.subr.bf16.mxu0 0
  %996 = vmatpush1.bf16.msra.mxu0 0
  %997 = vmatprep.subr.bf16.mxu0 0
  %998 = vmatpush1.bf16.msra.mxu0 0
  %999 = vmatprep.subr.bf16.mxu0 0
  %1000 = vmatpush1.bf16.msra.mxu0 0
  %1001 = vmatprep.subr.bf16.mxu0 0
  %1002 = vmatpush1.bf16.msra.mxu0 0
  %1003 = vmatprep.subr.bf16.mxu0 0
  %1004 = vmatpush1.bf16.msra.mxu0 0
  %1005 = vmatprep.subr.bf16.mxu0 0
  %1006 = vmatpush1.bf16.msra.mxu0 0
  %1007 = vmatprep.subr.bf16.mxu0 0
  %1008 = vmatpush1.bf16.msra.mxu0 0
  %1009 = vmatprep.subr.bf16.mxu0 0
  %1010 = vmatpush1.bf16.msra.mxu0 0
  %1011 = vmatprep.subr.bf16.mxu0 0
  %1012 = vmatpush1.bf16.msra.mxu0 0
  %1013 = vmatprep.mubr.bf16.mxu0 0
  %1014 = vmatmul.mubr.bf16.gmra.mrb[0].mxu0 %v405
  %v1015 = vpop.f32.mrb[0].mxu0
  %v1016 = vadd.f32 0.0, %v1015
  %v1017 = vpop.f32.mrb[0].mxu0
  %v1018 = vadd.f32 0.0, %v1017
  %v1019 = vpop.f32.mrb[0].mxu0
  %v1020 = vpop.f32.mrb[0].mxu0
  %1021 = vdwg.mxu0
  %1022 = vmatprep.subr.bf16.mxu0 %v306
  %1023 = vmatpush1.bf16.msra.mxu0 %v305
  %1024 = vmatprep.subr.bf16.mxu0 %v338
  %1025 = vmatpush1.bf16.msra.mxu0 %v337
  %1026 = vmatprep.subr.bf16.mxu0 0
  %1027 = vmatpush1.bf16.msra.mxu0 0
  %1028 = vmatprep.subr.bf16.mxu0 0
  %1029 = vmatpush1.bf16.msra.mxu0 0
  %1030 = vmatprep.subr.bf16.mxu0 0
  %1031 = vmatpush1.bf16.msra.mxu0 0
  %1032 = vmatprep.subr.bf16.mxu0 0
  %1033 = vmatpush1.bf16.msra.mxu0 0
  %1034 = vmatprep.subr.bf16.mxu0 0
  %1035 = vmatpush1.bf16.msra.mxu0 0
  %1036 = vmatprep.subr.bf16.mxu0 0
  %1037 = vmatpush1.bf16.msra.mxu0 0
  %1038 = vmatprep.subr.bf16.mxu0 0
  %1039 = vmatpush1.bf16.msra.mxu0 0
  %1040 = vmatprep.subr.bf16.mxu0 0
  %1041 = vmatpush1.bf16.msra.mxu0 0
  %1042 = vmatprep.subr.bf16.mxu0 0
  %1043 = vmatpush1.bf16.msra.mxu0 0
  %1044 = vmatprep.subr.bf16.mxu0 0
  %1045 = vmatpush1.bf16.msra.mxu0 0
  %1046 = vmatprep.subr.bf16.mxu0 0
  %1047 = vmatpush1.bf16.msra.mxu0 0
  %1048 = vmatprep.subr.bf16.mxu0 0
  %1049 = vmatpush1.bf16.msra.mxu0 0
  %1050 = vmatprep.subr.bf16.mxu0 0
  %1051 = vmatpush1.bf16.msra.mxu0 0
  %1052 = vmatprep.subr.bf16.mxu0 0
  %1053 = vmatpush1.bf16.msra.mxu0 0
  %1054 = vmatprep.mubr.bf16.mxu0 0
  %1055 = vmatmul.mubr.bf16.gmra.mrb[0].mxu0 %v405
  %v1056 = vpop.f32.mrb[0].mxu0
  %v1057 = vadd.f32 0.0, %v1056
  %v1058 = vpop.f32.mrb[0].mxu0
  %v1059 = vadd.f32 0.0, %v1058
  %v1060 = vpop.f32.mrb[0].mxu0
  %v1061 = vpop.f32.mrb[0].mxu0
  %1062 = vdwg.mxu0
  %vm1063 = vcmask 1042432
  %v1064 = vsel %vm1063, %v442, 0.0
  %v1065 = vsel %vm1063, %v444, 0.0
  %v1066 = vadd.f32 %v1064, %v1065
  %v1067 = vsel %vm1063, %v483, 0.0
  %v1068 = vadd.f32 %v1066, %v1067
  %v1069 = vsel %vm1063, %v485, 0.0
  %v1070 = vadd.f32 %v1068, %v1069
  %v1071 = vsel %vm1063, %v524, 0.0
  %v1072 = vadd.f32 %v1070, %v1071
  %v1073 = vsel %vm1063, %v526, 0.0
  %v1074 = vadd.f32 %v1072, %v1073
  %v1075 = vsel %vm1063, %v565, 0.0
  %v1076 = vadd.f32 %v1074, %v1075
  %v1077 = vsel %vm1063, %v567, 0.0
  %v1078 = vadd.f32 %v1076, %v1077
  %v1079 = vsel %vm1063, %v606, 0.0
  %v1080 = vadd.f32 %v1078, %v1079
  %v1081 = vsel %vm1063, %v608, 0.0
  %v1082 = vadd.f32 %v1080, %v1081
  %v1083 = vsel %vm1063, %v647, 0.0
  %v1084 = vadd.f32 %v1082, %v1083
  %v1085 = vsel %vm1063, %v649, 0.0
  %v1086 = vadd.f32 %v1084, %v1085
  %v1087 = vsel %vm1063, %v688, 0.0
  %v1088 = vadd.f32 %v1086, %v1087
  %v1089 = vsel %vm1063, %v690, 0.0
  %v1090 = vadd.f32 %v1088, %v1089
  %v1091 = vsel %vm1063, %v729, 0.0
  %v1092 = vadd.f32 %v1090, %v1091
  %v1093 = vsel %vm1063, %v731, 0.0
  %v1094 = vadd.f32 %v1092, %v1093
  %v1095 = vsel %vm1063, %v770, 0.0
  %v1096 = vadd.f32 %v1094, %v1095
  %v1097 = vsel %vm1063, %v772, 0.0
  %v1098 = vadd.f32 %v1096, %v1097
  %v1099 = vsel %vm1063, %v811, 0.0
  %v1100 = vadd.f32 %v1098, %v1099
  %v1101 = vsel %vm1063, %v813, 0.0
  %v1102 = vadd.f32 %v1100, %v1101
  %v1103 = vsel %vm1063, %v852, 0.0
  %v1104 = vadd.f32 %v1102, %v1103
  %v1105 = vsel %vm1063, %v854, 0.0
  %v1106 = vadd.f32 %v1104, %v1105
  %v1107 = vsel %vm1063, %v893, 0.0
  %v1108 = vadd.f32 %v1106, %v1107
  %v1109 = vsel %vm1063, %v895, 0.0
  %v1110 = vadd.f32 %v1108, %v1109
  %v1111 = vsel %vm1063, %v934, 0.0
  %v1112 = vadd.f32 %v1110, %v1111
  %v1113 = vsel %vm1063, %v936, 0.0
  %v1114 = vadd.f32 %v1112, %v1113
  %v1115 = vsel %vm1063, %v975, 0.0
  %v1116 = vadd.f32 %v1114, %v1115
  %v1117 = vsel %vm1063, %v977, 0.0
  %v1118 = vadd.f32 %v1116, %v1117
  %v1119 = vsel %vm1063, %v1016, 0.0
  %v1120 = vadd.f32 %v1118, %v1119
  %v1121 = vsel %vm1063, %v1018, 0.0
  %v1122 = vadd.f32 %v1120, %v1121
  %v1123 = vsel %vm1063, %v1057, 0.0
  %v1124 = vadd.f32 %v1122, %v1123
  %v1125 = vsel %vm1063, %v1059, 0.0
  %v1126 = vadd.f32 %v1124, %v1125
  %1127 = vadd.xlane.f32.xlu0 %v1126
  %v1128 = vpop.xlane.xlu0 %1127
  %v1129 = vadd.f32 %v1128, 0.0
  %v1130 = vmul.f32 %v442, %v442
  %v1131 = vmul.f32 %v444, %v444
  %v1132 = vmul.f32 %v483, %v483
  %v1133 = vmul.f32 %v485, %v485
  %v1134 = vmul.f32 %v524, %v524
  %v1135 = vmul.f32 %v526, %v526
  %v1136 = vmul.f32 %v565, %v565
  %v1137 = vmul.f32 %v567, %v567
  %v1138 = vmul.f32 %v606, %v606
  %v1139 = vmul.f32 %v608, %v608
  %v1140 = vmul.f32 %v647, %v647
  %v1141 = vmul.f32 %v649, %v649
  %v1142 = vmul.f32 %v688, %v688
  %v1143 = vmul.f32 %v690, %v690
  %v1144 = vmul.f32 %v729, %v729
  %v1145 = vmul.f32 %v731, %v731
  %v1146 = vmul.f32 %v770, %v770
  %v1147 = vmul.f32 %v772, %v772
  %v1148 = vmul.f32 %v811, %v811
  %v1149 = vmul.f32 %v813, %v813
  %v1150 = vmul.f32 %v852, %v852
  %v1151 = vmul.f32 %v854, %v854
  %v1152 = vmul.f32 %v893, %v893
  %v1153 = vmul.f32 %v895, %v895
  %v1154 = vmul.f32 %v934, %v934
  %v1155 = vmul.f32 %v936, %v936
  %v1156 = vmul.f32 %v975, %v975
  %v1157 = vmul.f32 %v977, %v977
  %v1158 = vmul.f32 %v1016, %v1016
  %v1159 = vmul.f32 %v1018, %v1018
  %v1160 = vmul.f32 %v1057, %v1057
  %v1161 = vmul.f32 %v1059, %v1059
  %v1162 = vsel %vm1063, %v1130, 0.0
  %v1163 = vsel %vm1063, %v1131, 0.0
  %v1164 = vadd.f32 %v1162, %v1163
  %v1165 = vsel %vm1063, %v1132, 0.0
  %v1166 = vadd.f32 %v1164, %v1165
  %v1167 = vsel %vm1063, %v1133, 0.0
  %v1168 = vadd.f32 %v1166, %v1167
  %v1169 = vsel %vm1063, %v1134, 0.0
  %v1170 = vadd.f32 %v1168, %v1169
  %v1171 = vsel %vm1063, %v1135, 0.0
  %v1172 = vadd.f32 %v1170, %v1171
  %v1173 = vsel %vm1063, %v1136, 0.0
  %v1174 = vadd.f32 %v1172, %v1173
  %v1175 = vsel %vm1063, %v1137, 0.0
  %v1176 = vadd.f32 %v1174, %v1175
  %v1177 = vsel %vm1063, %v1138, 0.0
  %v1178 = vadd.f32 %v1176, %v1177
  %v1179 = vsel %vm1063, %v1139, 0.0
  %v1180 = vadd.f32 %v1178, %v1179
  %v1181 = vsel %vm1063, %v1140, 0.0
  %v1182 = vadd.f32 %v1180, %v1181
  %v1183 = vsel %vm1063, %v1141, 0.0
  %v1184 = vadd.f32 %v1182, %v1183
  %v1185 = vsel %vm1063, %v1142, 0.0
  %v1186 = vadd.f32 %v1184, %v1185
  %v1187 = vsel %vm1063, %v1143, 0.0
  %v1188 = vadd.f32 %v1186, %v1187
  %v1189 = vsel %vm1063, %v1144, 0.0
  %v1190 = vadd.f32 %v1188, %v1189
  %v1191 = vsel %vm1063, %v1145, 0.0
  %v1192 = vadd.f32 %v1190, %v1191
  %v1193 = vsel %vm1063, %v1146, 0.0
  %v1194 = vadd.f32 %v1192, %v1193
  %v1195 = vsel %vm1063, %v1147, 0.0
  %v1196 = vadd.f32 %v1194, %v1195
  %v1197 = vsel %vm1063, %v1148, 0.0
  %v1198 = vadd.f32 %v1196, %v1197
  %v1199 = vsel %vm1063, %v1149, 0.0
  %v1200 = vadd.f32 %v1198, %v1199
  %v1201 = vsel %vm1063, %v1150, 0.0
  %v1202 = vadd.f32 %v1200, %v1201
  %v1203 = vsel %vm1063, %v1151, 0.0
  %v1204 = vadd.f32 %v1202, %v1203
  %v1205 = vsel %vm1063, %v1152, 0.0
  %v1206 = vadd.f32 %v1204, %v1205
  %v1207 = vsel %vm1063, %v1153, 0.0
  %v1208 = vadd.f32 %v1206, %v1207
  %v1209 = vsel %vm1063, %v1154, 0.0
  %v1210 = vadd.f32 %v1208, %v1209
  %v1211 = vsel %vm1063, %v1155, 0.0
  %v1212 = vadd.f32 %v1210, %v1211
  %v1213 = vsel %vm1063, %v1156, 0.0
  %v1214 = vadd.f32 %v1212, %v1213
  %v1215 = vsel %vm1063, %v1157, 0.0
  %v1216 = vadd.f32 %v1214, %v1215
  %v1217 = vsel %vm1063, %v1158, 0.0
  %v1218 = vadd.f32 %v1216, %v1217
  %v1219 = vsel %vm1063, %v1159, 0.0
  %v1220 = vadd.f32 %v1218, %v1219
  %v1221 = vsel %vm1063, %v1160, 0.0
  %v1222 = vadd.f32 %v1220, %v1221
  %v1223 = vsel %vm1063, %v1161, 0.0
  %v1224 = vadd.f32 %v1222, %v1223
  %1225 = vadd.xlane.f32.xlu0 %v1224
  %v1226 = vpop.xlane.xlu0 %1225
  %v1227 = vadd.f32 %v1226, 0.0
  %v1260 = vcombine.low %v442, %v444
  %v1261 = vcombine.low %v483, %v485
  %v1262 = vcombine.low %v524, %v526
  %v1263 = vcombine.low %v565, %v567
  %v1264 = vcombine.low %v606, %v608
  %v1265 = vcombine.low %v647, %v649
  %v1266 = vcombine.low %v688, %v690
  %v1267 = vcombine.low %v729, %v731
  %v1268 = vcombine.low %v770, %v772
  %v1269 = vcombine.low %v811, %v813
  %v1270 = vcombine.low %v852, %v854
  %v1271 = vcombine.low %v893, %v895
  %v1272 = vcombine.low %v934, %v936
  %v1273 = vcombine.low %v975, %v977
  %v1274 = vcombine.low %v1016, %v1018
  %v1275 = vcombine.low %v1057, %v1059
  %1292 = vst [vmem:[%s4] sm:$0x77] %v1260
  %1293 = vst [vmem:[%s4 + $0x8] sm:$0x77] %v1261
  %1294 = vst [vmem:[%s4 + $0x10] sm:$0x77] %v1262
  %1295 = vst [vmem:[%s4 + $0x18] sm:$0x77] %v1263
  %1296 = vst [vmem:[%s4 + $0x20] sm:$0x77] %v1264
  %1297 = vst [vmem:[%s4 + $0x28] sm:$0x77] %v1265
  %1298 = vst [vmem:[%s4 + $0x30] sm:$0x77] %v1266
  %1299 = vst [vmem:[%s4 + $0x38] sm:$0x77] %v1267
  %1300 = vst [vmem:[%s4 + $0x40] sm:$0x77] %v1268
  %1301 = vst [vmem:[%s4 + $0x48] sm:$0x77] %v1269
  %1302 = vst [vmem:[%s4 + $0x50] sm:$0x77] %v1270
  %1303 = vst [vmem:[%s4 + $0x58] sm:$0x77] %v1271
  %1304 = vst [vmem:[%s4 + $0x60] sm:$0x77] %v1272
  %1305 = vst [vmem:[%s4 + $0x68] sm:$0x77] %v1273
  %1306 = vst [vmem:[%s4 + $0x70] sm:$0x77] %v1274
  %1307 = vst [vmem:[%s4 + $0x78] sm:$0x77] %v1275
  %s1308 = scalar_lea.vmem %s0, 2
  %v1309 = vld [vmem:[%s1308] sm:$0x3]
  %s1310 = scalar_lea.vmem %s1, 512
  %v1311 = vld [vmem:[%s1310] sm:$0xff]
  %v1312 = vld [vmem:[%s1310 + $0x8] sm:$0xff]
  %v1313 = vld [vmem:[%s1310 + $0x10] sm:$0xff]
  %v1314 = vld [vmem:[%s1310 + $0x18] sm:$0xff]
  %v1315 = vld [vmem:[%s1310 + $0x20] sm:$0xff]
  %v1316 = vld [vmem:[%s1310 + $0x28] sm:$0xff]
  %v1317 = vld [vmem:[%s1310 + $0x30] sm:$0xff]
  %v1318 = vld [vmem:[%s1310 + $0x38] sm:$0xff]
  %v1319 = vld [vmem:[%s1310 + $0x40] sm:$0xff]
  %v1320 = vld [vmem:[%s1310 + $0x48] sm:$0xff]
  %v1321 = vld [vmem:[%s1310 + $0x50] sm:$0xff]
  %v1322 = vld [vmem:[%s1310 + $0x58] sm:$0xff]
  %v1323 = vld [vmem:[%s1310 + $0x60] sm:$0xff]
  %v1324 = vld [vmem:[%s1310 + $0x68] sm:$0xff]
  %v1325 = vld [vmem:[%s1310 + $0x70] sm:$0xff]
  %v1326 = vld [vmem:[%s1310 + $0x78] sm:$0xff]
  %v1327 = vld [vmem:[%s1310 + $0x80] sm:$0xff]
  %v1328 = vld [vmem:[%s1310 + $0x88] sm:$0xff]
  %v1329 = vld [vmem:[%s1310 + $0x90] sm:$0xff]
  %v1330 = vld [vmem:[%s1310 + $0x98] sm:$0xff]
  %v1331 = vld [vmem:[%s1310 + $0xa0] sm:$0xff]
  %v1332 = vld [vmem:[%s1310 + $0xa8] sm:$0xff]
  %v1333 = vld [vmem:[%s1310 + $0xb0] sm:$0xff]
  %v1334 = vld [vmem:[%s1310 + $0xb8] sm:$0xff]
  %v1335 = vld [vmem:[%s1310 + $0xc0] sm:$0xff]
  %v1336 = vld [vmem:[%s1310 + $0xc8] sm:$0xff]
  %v1337 = vld [vmem:[%s1310 + $0xd0] sm:$0xff]
  %v1338 = vld [vmem:[%s1310 + $0xd8] sm:$0xff]
  %v1339 = vld [vmem:[%s1310 + $0xe0] sm:$0xff]
  %v1340 = vld [vmem:[%s1310 + $0xe8] sm:$0xff]
  %v1341 = vld [vmem:[%s1310 + $0xf0] sm:$0xff]
  %v1342 = vld [vmem:[%s1310 + $0xf8] sm:$0xff]
  %v1343 = vld [vmem:[%s1310 + $0x100] sm:$0xff]
  %v1344 = vld [vmem:[%s1310 + $0x108] sm:$0xff]
  %v1345 = vld [vmem:[%s1310 + $0x110] sm:$0xff]
  %v1346 = vld [vmem:[%s1310 + $0x118] sm:$0xff]
  %v1347 = vld [vmem:[%s1310 + $0x120] sm:$0xff]
  %v1348 = vld [vmem:[%s1310 + $0x128] sm:$0xff]
  %v1349 = vld [vmem:[%s1310 + $0x130] sm:$0xff]
  %v1350 = vld [vmem:[%s1310 + $0x138] sm:$0xff]
  %v1351 = vld [vmem:[%s1310 + $0x140] sm:$0xff]
  %v1352 = vld [vmem:[%s1310 + $0x148] sm:$0xff]
  %v1353 = vld [vmem:[%s1310 + $0x150] sm:$0xff]
  %v1354 = vld [vmem:[%s1310 + $0x158] sm:$0xff]
  %v1355 = vld [vmem:[%s1310 + $0x160] sm:$0xff]
  %v1356 = vld [vmem:[%s1310 + $0x168] sm:$0xff]
  %v1357 = vld [vmem:[%s1310 + $0x170] sm:$0xff]
  %v1358 = vld [vmem:[%s1310 + $0x178] sm:$0xff]
  %v1359 = vld [vmem:[%s1310 + $0x180] sm:$0xff]
  %v1360 = vld [vmem:[%s1310 + $0x188] sm:$0xff]
  %v1361 = vld [vmem:[%s1310 + $0x190] sm:$0xff]
  %v1362 = vld [vmem:[%s1310 + $0x198] sm:$0xff]
  %v1363 = vld [vmem:[%s1310 + $0x1a0] sm:$0xff]
  %v1364 = vld [vmem:[%s1310 + $0x1a8] sm:$0xff]
  %v1365 = vld [vmem:[%s1310 + $0x1b0] sm:$0xff]
  %v1366 = vld [vmem:[%s1310 + $0x1b8] sm:$0xff]
  %v1367 = vld [vmem:[%s1310 + $0x1c0] sm:$0xff]
  %v1368 = vld [vmem:[%s1310 + $0x1c8] sm:$0xff]
  %v1369 = vld [vmem:[%s1310 + $0x1d0] sm:$0xff]
  %v1370 = vld [vmem:[%s1310 + $0x1d8] sm:$0xff]
  %v1371 = vld [vmem:[%s1310 + $0x1e0] sm:$0xff]
  %v1372 = vld [vmem:[%s1310 + $0x1e8] sm:$0xff]
  %v1373 = vld [vmem:[%s1310 + $0x1f0] sm:$0xff]
  %v1374 = vld [vmem:[%s1310 + $0x1f8] sm:$0xff]
  %v1439 = vunpack.c.l.b16 %v1311
  %v1440 = vunpack.c.h.b16 %v1311
  %v1441 = vunpack.c.l.b16 %v1312
  %v1442 = vunpack.c.h.b16 %v1312
  %v1443 = vunpack.c.l.b16 %v1313
  %v1444 = vunpack.c.h.b16 %v1313
  %v1445 = vunpack.c.l.b16 %v1314
  %v1446 = vunpack.c.h.b16 %v1314
  %v1447 = vunpack.c.l.b16 %v1315
  %v1448 = vunpack.c.h.b16 %v1315
  %v1449 = vunpack.c.l.b16 %v1316
  %v1450 = vunpack.c.h.b16 %v1316
  %v1451 = vunpack.c.l.b16 %v1317
  %v1452 = vunpack.c.h.b16 %v1317
  %v1453 = vunpack.c.l.b16 %v1318
  %v1454 = vunpack.c.h.b16 %v1318
  %v1455 = vunpack.c.l.b16 %v1319
  %v1456 = vunpack.c.h.b16 %v1319
  %v1457 = vunpack.c.l.b16 %v1320
  %v1458 = vunpack.c.h.b16 %v1320
  %v1459 = vunpack.c.l.b16 %v1321
  %v1460 = vunpack.c.h.b16 %v1321
  %v1461 = vunpack.c.l.b16 %v1322
  %v1462 = vunpack.c.h.b16 %v1322
  %v1463 = vunpack.c.l.b16 %v1323
  %v1464 = vunpack.c.h.b16 %v1323
  %v1465 = vunpack.c.l.b16 %v1324
  %v1466 = vunpack.c.h.b16 %v1324
  %v1467 = vunpack.c.l.b16 %v1325
  %v1468 = vunpack.c.h.b16 %v1325
  %v1469 = vunpack.c.l.b16 %v1326
  %v1470 = vunpack.c.h.b16 %v1326
  %v1471 = vunpack.c.l.b16 %v1327
  %v1472 = vunpack.c.h.b16 %v1327
  %v1473 = vunpack.c.l.b16 %v1328
  %v1474 = vunpack.c.h.b16 %v1328
  %v1475 = vunpack.c.l.b16 %v1329
  %v1476 = vunpack.c.h.b16 %v1329
  %v1477 = vunpack.c.l.b16 %v1330
  %v1478 = vunpack.c.h.b16 %v1330
  %v1479 = vunpack.c.l.b16 %v1331
  %v1480 = vunpack.c.h.b16 %v1331
  %v1481 = vunpack.c.l.b16 %v1332
  %v1482 = vunpack.c.h.b16 %v1332
  %v1483 = vunpack.c.l.b16 %v1333
  %v1484 = vunpack.c.h.b16 %v1333
  %v1485 = vunpack.c.l.b16 %v1334
  %v1486 = vunpack.c.h.b16 %v1334
  %v1487 = vunpack.c.l.b16 %v1335
  %v1488 = vunpack.c.h.b16 %v1335
  %v1489 = vunpack.c.l.b16 %v1336
  %v1490 = vunpack.c.h.b16 %v1336
  %v1491 = vunpack.c.l.b16 %v1337
  %v1492 = vunpack.c.h.b16 %v1337
  %v1493 = vunpack.c.l.b16 %v1338
  %v1494 = vunpack.c.h.b16 %v1338
  %v1495 = vunpack.c.l.b16 %v1339
  %v1496 = vunpack.c.h.b16 %v1339
  %v1497 = vunpack.c.l.b16 %v1340
  %v1498 = vunpack.c.h.b16 %v1340
  %v1499 = vunpack.c.l.b16 %v1341
  %v1500 = vunpack.c.h.b16 %v1341
  %v1501 = vunpack.c.l.b16 %v1342
  %v1502 = vunpack.c.h.b16 %v1342
  %v1503 = vunpack.c.l.b16 %v1343
  %v1504 = vunpack.c.h.b16 %v1343
  %v1505 = vunpack.c.l.b16 %v1344
  %v1506 = vunpack.c.h.b16 %v1344
  %v1507 = vunpack.c.l.b16 %v1345
  %v1508 = vunpack.c.h.b16 %v1345
  %v1509 = vunpack.c.l.b16 %v1346
  %v1510 = vunpack.c.h.b16 %v1346
  %v1511 = vunpack.c.l.b16 %v1347
  %v1512 = vunpack.c.h.b16 %v1347
  %v1513 = vunpack.c.l.b16 %v1348
  %v1514 = vunpack.c.h.b16 %v1348
  %v1515 = vunpack.c.l.b16 %v1349
  %v1516 = vunpack.c.h.b16 %v1349
  %v1517 = vunpack.c.l.b16 %v1350
  %v1518 = vunpack.c.h.b16 %v1350
  %v1519 = vunpack.c.l.b16 %v1351
  %v1520 = vunpack.c.h.b16 %v1351
  %v1521 = vunpack.c.l.b16 %v1352
  %v1522 = vunpack.c.h.b16 %v1352
  %v1523 = vunpack.c.l.b16 %v1353
  %v1524 = vunpack.c.h.b16 %v1353
  %v1525 = vunpack.c.l.b16 %v1354
  %v1526 = vunpack.c.h.b16 %v1354
  %v1527 = vunpack.c.l.b16 %v1355
  %v1528 = vunpack.c.h.b16 %v1355
  %v1529 = vunpack.c.l.b16 %v1356
  %v1530 = vunpack.c.h.b16 %v1356
  %v1531 = vunpack.c.l.b16 %v1357
  %v1532 = vunpack.c.h.b16 %v1357
  %v1533 = vunpack.c.l.b16 %v1358
  %v1534 = vunpack.c.h.b16 %v1358
  %v1535 = vunpack.c.l.b16 %v1359
  %v1536 = vunpack.c.h.b16 %v1359
  %v1537 = vunpack.c.l.b16 %v1360
  %v1538 = vunpack.c.h.b16 %v1360
  %v1539 = vunpack.c.l.b16 %v1361
  %v1540 = vunpack.c.h.b16 %v1361
  %v1541 = vunpack.c.l.b16 %v1362
  %v1542 = vunpack.c.h.b16 %v1362
  %v1543 = vunpack.c.l.b16 %v1363
  %v1544 = vunpack.c.h.b16 %v1363
  %v1545 = vunpack.c.l.b16 %v1364
  %v1546 = vunpack.c.h.b16 %v1364
  %v1547 = vunpack.c.l.b16 %v1365
  %v1548 = vunpack.c.h.b16 %v1365
  %v1549 = vunpack.c.l.b16 %v1366
  %v1550 = vunpack.c.h.b16 %v1366
  %v1551 = vunpack.c.l.b16 %v1367
  %v1552 = vunpack.c.h.b16 %v1367
  %v1553 = vunpack.c.l.b16 %v1368
  %v1554 = vunpack.c.h.b16 %v1368
  %v1555 = vunpack.c.l.b16 %v1369
  %v1556 = vunpack.c.h.b16 %v1369
  %v1557 = vunpack.c.l.b16 %v1370
  %v1558 = vunpack.c.h.b16 %v1370
  %v1559 = vunpack.c.l.b16 %v1371
  %v1560 = vunpack.c.h.b16 %v1371
  %v1561 = vunpack.c.l.b16 %v1372
  %v1562 = vunpack.c.h.b16 %v1372
  %v1563 = vunpack.c.l.b16 %v1373
  %v1564 = vunpack.c.h.b16 %v1373
  %v1565 = vunpack.c.l.b16 %v1374
  %v1566 = vunpack.c.h.b16 %v1374
  %v1567 = vpack.c.b16 %v1471, %v1439
  %v1568 = vpack.c.b16 %v1472, %v1440
  %v1569 = vpack.c.b16 %v1473, %v1441
  %v1570 = vpack.c.b16 %v1474, %v1442
  %v1571 = vpack.c.b16 %v1475, %v1443
  %v1572 = vpack.c.b16 %v1476, %v1444
  %v1573 = vpack.c.b16 %v1477, %v1445
  %v1574 = vpack.c.b16 %v1478, %v1446
  %v1575 = vpack.c.b16 %v1479, %v1447
  %v1576 = vpack.c.b16 %v1480, %v1448
  %v1577 = vpack.c.b16 %v1481, %v1449
  %v1578 = vpack.c.b16 %v1482, %v1450
  %v1579 = vpack.c.b16 %v1483, %v1451
  %v1580 = vpack.c.b16 %v1484, %v1452
  %v1581 = vpack.c.b16 %v1485, %v1453
  %v1582 = vpack.c.b16 %v1486, %v1454
  %v1583 = vpack.c.b16 %v1487, %v1455
  %v1584 = vpack.c.b16 %v1488, %v1456
  %v1585 = vpack.c.b16 %v1489, %v1457
  %v1586 = vpack.c.b16 %v1490, %v1458
  %v1587 = vpack.c.b16 %v1491, %v1459
  %v1588 = vpack.c.b16 %v1492, %v1460
  %v1589 = vpack.c.b16 %v1493, %v1461
  %v1590 = vpack.c.b16 %v1494, %v1462
  %v1591 = vpack.c.b16 %v1495, %v1463
  %v1592 = vpack.c.b16 %v1496, %v1464
  %v1593 = vpack.c.b16 %v1497, %v1465
  %v1594 = vpack.c.b16 %v1498, %v1466
  %v1595 = vpack.c.b16 %v1499, %v1467
  %v1596 = vpack.c.b16 %v1500, %v1468
  %v1597 = vpack.c.b16 %v1501, %v1469
  %v1598 = vpack.c.b16 %v1502, %v1470
  %v1599 = vpack.c.b16 %v1535, %v1503
  %v1600 = vpack.c.b16 %v1536, %v1504
  %v1601 = vpack.c.b16 %v1537, %v1505
  %v1602 = vpack.c.b16 %v1538, %v1506
  %v1603 = vpack.c.b16 %v1539, %v1507
  %v1604 = vpack.c.b16 %v1540, %v1508
  %v1605 = vpack.c.b16 %v1541, %v1509
  %v1606 = vpack.c.b16 %v1542, %v1510
  %v1607 = vpack.c.b16 %v1543, %v1511
  %v1608 = vpack.c.b16 %v1544, %v1512
  %v1609 = vpack.c.b16 %v1545, %v1513
  %v1610 = vpack.c.b16 %v1546, %v1514
  %v1611 = vpack.c.b16 %v1547, %v1515
  %v1612 = vpack.c.b16 %v1548, %v1516
  %v1613 = vpack.c.b16 %v1549, %v1517
  %v1614 = vpack.c.b16 %v1550, %v1518
  %v1615 = vpack.c.b16 %v1551, %v1519
  %v1616 = vpack.c.b16 %v1552, %v1520
  %v1617 = vpack.c.b16 %v1553, %v1521
  %v1618 = vpack.c.b16 %v1554, %v1522
  %v1619 = vpack.c.b16 %v1555, %v1523
  %v1620 = vpack.c.b16 %v1556, %v1524
  %v1621 = vpack.c.b16 %v1557, %v1525
  %v1622 = vpack.c.b16 %v1558, %v1526
  %v1623 = vpack.c.b16 %v1559, %v1527
  %v1624 = vpack.c.b16 %v1560, %v1528
  %v1625 = vpack.c.b16 %v1561, %v1529
  %v1626 = vpack.c.b16 %v1562, %v1530
  %v1627 = vpack.c.b16 %v1563, %v1531
  %v1628 = vpack.c.b16 %v1564, %v1532
  %v1629 = vpack.c.b16 %v1565, %v1533
  %v1630 = vpack.c.b16 %v1566, %v1534
  %v1696 = vsel %vm403, %v1309, 0
  %1698 = vmatprep.subr.bf16.mxu0 %v1568
  %1699 = vmatpush1.bf16.msra.mxu0 %v1567
  %1700 = vmatprep.subr.bf16.mxu0 %v1600
  %1701 = vmatpush1.bf16.msra.mxu0 %v1599
  %1702 = vmatprep.subr.bf16.mxu0 0
  %1703 = vmatpush1.bf16.msra.mxu0 0
  %1704 = vmatprep.subr.bf16.mxu0 0
  %1705 = vmatpush1.bf16.msra.mxu0 0
  %1706 = vmatprep.subr.bf16.mxu0 0
  %1707 = vmatpush1.bf16.msra.mxu0 0
  %1708 = vmatprep.subr.bf16.mxu0 0
  %1709 = vmatpush1.bf16.msra.mxu0 0
  %1710 = vmatprep.subr.bf16.mxu0 0
  %1711 = vmatpush1.bf16.msra.mxu0 0
  %1712 = vmatprep.subr.bf16.mxu0 0
  %1713 = vmatpush1.bf16.msra.mxu0 0
  %1714 = vmatprep.subr.bf16.mxu0 0
  %1715 = vmatpush1.bf16.msra.mxu0 0
  %1716 = vmatprep.subr.bf16.mxu0 0
  %1717 = vmatpush1.bf16.msra.mxu0 0
  %1718 = vmatprep.subr.bf16.mxu0 0
  %1719 = vmatpush1.bf16.msra.mxu0 0
  %1720 = vmatprep.subr.bf16.mxu0 0
  %1721 = vmatpush1.bf16.msra.mxu0 0
  %1722 = vmatprep.subr.bf16.mxu0 0
  %1723 = vmatpush1.bf16.msra.mxu0 0
  %1724 = vmatprep.subr.bf16.mxu0 0
  %1725 = vmatpush1.bf16.msra.mxu0 0
  %1726 = vmatprep.subr.bf16.mxu0 0
  %1727 = vmatpush1.bf16.msra.mxu0 0
  %1728 = vmatprep.subr.bf16.mxu0 0
  %1729 = vmatpush1.bf16.msra.mxu0 0
  %1730 = vmatprep.mubr.bf16.mxu0 0
  %1731 = vmatmul.mubr.bf16.gmra.mrb[0].mxu0 %v1696
  %v1732 = vpop.f32.mrb[0].mxu0
  %v1733 = vadd.f32 0.0, %v1732
  %v1734 = vpop.f32.mrb[0].mxu0
  %v1735 = vadd.f32 0.0, %v1734
  %v1736 = vpop.f32.mrb[0].mxu0
  %v1737 = vpop.f32.mrb[0].mxu0
  %1738 = vdwg.mxu0
  %1739 = vmatprep.subr.bf16.mxu0 %v1570
  %1740 = vmatpush1.bf16.msra.mxu0 %v1569
  %1741 = vmatprep.subr.bf16.mxu0 %v1602
  %1742 = vmatpush1.bf16.msra.mxu0 %v1601
  %1743 = vmatprep.subr.bf16.mxu0 0
  %1744 = vmatpush1.bf16.msra.mxu0 0
  %1745 = vmatprep.subr.bf16.mxu0 0
  %1746 = vmatpush1.bf16.msra.mxu0 0
  %1747 = vmatprep.subr.bf16.mxu0 0
  %1748 = vmatpush1.bf16.msra.mxu0 0
  %1749 = vmatprep.subr.bf16.mxu0 0
  %1750 = vmatpush1.bf16.msra.mxu0 0
  %1751 = vmatprep.subr.bf16.mxu0 0
  %1752 = vmatpush1.bf16.msra.mxu0 0
  %1753 = vmatprep.subr.bf16.mxu0 0
  %1754 = vmatpush1.bf16.msra.mxu0 0
  %1755 = vmatprep.subr.bf16.mxu0 0
  %1756 = vmatpush1.bf16.msra.mxu0 0
  %1757 = vmatprep.subr.bf16.mxu0 0
  %1758 = vmatpush1.bf16.msra.mxu0 0
  %1759 = vmatprep.subr.bf16.mxu0 0
  %1760 = vmatpush1.bf16.msra.mxu0 0
  %1761 = vmatprep.subr.bf16.mxu0 0
  %1762 = vmatpush1.bf16.msra.mxu0 0
  %1763 = vmatprep.subr.bf16.mxu0 0
  %1764 = vmatpush1.bf16.msra.mxu0 0
  %1765 = vmatprep.subr.bf16.mxu0 0
  %1766 = vmatpush1.bf16.msra.mxu0 0
  %1767 = vmatprep.subr.bf16.mxu0 0
  %1768 = vmatpush1.bf16.msra.mxu0 0
  %1769 = vmatprep.subr.bf16.mxu0 0
  %1770 = vmatpush1.bf16.msra.mxu0 0
  %1771 = vmatprep.mubr.bf16.mxu0 0
  %1772 = vmatmul.mubr.bf16.gmra.mrb[0].mxu0 %v1696
  %v1773 = vpop.f32.mrb[0].mxu0
  %v1774 = vadd.f32 0.0, %v1773
  %v1775 = vpop.f32.mrb[0].mxu0
  %v1776 = vadd.f32 0.0, %v1775
  %v1777 = vpop.f32.mrb[0].mxu0
  %v1778 = vpop.f32.mrb[0].mxu0
  %1779 = vdwg.mxu0
  %1780 = vmatprep.subr.bf16.mxu0 %v1572
  %1781 = vmatpush1.bf16.msra.mxu0 %v1571
  %1782 = vmatprep.subr.bf16.mxu0 %v1604
  %1783 = vmatpush1.bf16.msra.mxu0 %v1603
  %1784 = vmatprep.subr.bf16.mxu0 0
  %1785 = vmatpush1.bf16.msra.mxu0 0
  %1786 = vmatprep.subr.bf16.mxu0 0
  %1787 = vmatpush1.bf16.msra.mxu0 0
  %1788 = vmatprep.subr.bf16.mxu0 0
  %1789 = vmatpush1.bf16.msra.mxu0 0
  %1790 = vmatprep.subr.bf16.mxu0 0
  %1791 = vmatpush1.bf16.msra.mxu0 0
  %1792 = vmatprep.subr.bf16.mxu0 0
  %1793 = vmatpush1.bf16.msra.mxu0 0
  %1794 = vmatprep.subr.bf16.mxu0 0
  %1795 = vmatpush1.bf16.msra.mxu0 0
  %1796 = vmatprep.subr.bf16.mxu0 0
  %1797 = vmatpush1.bf16.msra.mxu0 0
  %1798 = vmatprep.subr.bf16.mxu0 0
  %1799 = vmatpush1.bf16.msra.mxu0 0
  %1800 = vmatprep.subr.bf16.mxu0 0
  %1801 = vmatpush1.bf16.msra.mxu0 0
  %1802 = vmatprep.subr.bf16.mxu0 0
  %1803 = vmatpush1.bf16.msra.mxu0 0
  %1804 = vmatprep.subr.bf16.mxu0 0
  %1805 = vmatpush1.bf16.msra.mxu0 0
  %1806 = vmatprep.subr.bf16.mxu0 0
  %1807 = vmatpush1.bf16.msra.mxu0 0
  %1808 = vmatprep.subr.bf16.mxu0 0
  %1809 = vmatpush1.bf16.msra.mxu0 0
  %1810 = vmatprep.subr.bf16.mxu0 0
  %1811 = vmatpush1.bf16.msra.mxu0 0
  %1812 = vmatprep.mubr.bf16.mxu0 0
  %1813 = vmatmul.mubr.bf16.gmra.mrb[0].mxu0 %v1696
  %v1814 = vpop.f32.mrb[0].mxu0
  %v1815 = vadd.f32 0.0, %v1814
  %v1816 = vpop.f32.mrb[0].mxu0
  %v1817 = vadd.f32 0.0, %v1816
  %v1818 = vpop.f32.mrb[0].mxu0
  %v1819 = vpop.f32.mrb[0].mxu0
  %1820 = vdwg.mxu0
  %1821 = vmatprep.subr.bf16.mxu0 %v1574
  %1822 = vmatpush1.bf16.msra.mxu0 %v1573
  %1823 = vmatprep.subr.bf16.mxu0 %v1606
  %1824 = vmatpush1.bf16.msra.mxu0 %v1605
  %1825 = vmatprep.subr.bf16.mxu0 0
  %1826 = vmatpush1.bf16.msra.mxu0 0
  %1827 = vmatprep.subr.bf16.mxu0 0
  %1828 = vmatpush1.bf16.msra.mxu0 0
  %1829 = vmatprep.subr.bf16.mxu0 0
  %1830 = vmatpush1.bf16.msra.mxu0 0
  %1831 = vmatprep.subr.bf16.mxu0 0
  %1832 = vmatpush1.bf16.msra.mxu0 0
  %1833 = vmatprep.subr.bf16.mxu0 0
  %1834 = vmatpush1.bf16.msra.mxu0 0
  %1835 = vmatprep.subr.bf16.mxu0 0
  %1836 = vmatpush1.bf16.msra.mxu0 0
  %1837 = vmatprep.subr.bf16.mxu0 0
  %1838 = vmatpush1.bf16.msra.mxu0 0
  %1839 = vmatprep.subr.bf16.mxu0 0
  %1840 = vmatpush1.bf16.msra.mxu0 0
  %1841 = vmatprep.subr.bf16.mxu0 0
  %1842 = vmatpush1.bf16.msra.mxu0 0
  %1843 = vmatprep.subr.bf16.mxu0 0
  %1844 = vmatpush1.bf16.msra.mxu0 0
  %1845 = vmatprep.subr.bf16.mxu0 0
  %1846 = vmatpush1.bf16.msra.mxu0 0
  %1847 = vmatprep.subr.bf16.mxu0 0
  %1848 = vmatpush1.bf16.msra.mxu0 0
  %1849 = vmatprep.subr.bf16.mxu0 0
  %1850 = vmatpush1.bf16.msra.mxu0 0
  %1851 = vmatprep.subr.bf16.mxu0 0
  %1852 = vmatpush1.bf16.msra.mxu0 0
  %1853 = vmatprep.mubr.bf16.mxu0 0
  %1854 = vmatmul.mubr.bf16.gmra.mrb[0].mxu0 %v1696
  %v1855 = vpop.f32.mrb[0].mxu0
  %v1856 = vadd.f32 0.0, %v1855
  %v1857 = vpop.f32.mrb[0].mxu0
  %v1858 = vadd.f32 0.0, %v1857
  %v1859 = vpop.f32.mrb[0].mxu0
  %v1860 = vpop.f32.mrb[0].mxu0
  %1861 = vdwg.mxu0
  %1862 = vmatprep.subr.bf16.mxu0 %v1576
  %1863 = vmatpush1.bf16.msra.mxu0 %v1575
  %1864 = vmatprep.subr.bf16.mxu0 %v1608
  %1865 = vmatpush1.bf16.msra.mxu0 %v1607
  %1866 = vmatprep.subr.bf16.mxu0 0
  %1867 = vmatpush1.bf16.msra.mxu0 0
  %1868 = vmatprep.subr.bf16.mxu0 0
  %1869 = vmatpush1.bf16.msra.mxu0 0
  %1870 = vmatprep.subr.bf16.mxu0 0
  %1871 = vmatpush1.bf16.msra.mxu0 0
  %1872 = vmatprep.subr.bf16.mxu0 0
  %1873 = vmatpush1.bf16.msra.mxu0 0
  %1874 = vmatprep.subr.bf16.mxu0 0
  %1875 = vmatpush1.bf16.msra.mxu0 0
  %1876 = vmatprep.subr.bf16.mxu0 0
  %1877 = vmatpush1.bf16.msra.mxu0 0
  %1878 = vmatprep.subr.bf16.mxu0 0
  %1879 = vmatpush1.bf16.msra.mxu0 0
  %1880 = vmatprep.subr.bf16.mxu0 0
  %1881 = vmatpush1.bf16.msra.mxu0 0
  %1882 = vmatprep.subr.bf16.mxu0 0
  %1883 = vmatpush1.bf16.msra.mxu0 0
  %1884 = vmatprep.subr.bf16.mxu0 0
  %1885 = vmatpush1.bf16.msra.mxu0 0
  %1886 = vmatprep.subr.bf16.mxu0 0
  %1887 = vmatpush1.bf16.msra.mxu0 0
  %1888 = vmatprep.subr.bf16.mxu0 0
  %1889 = vmatpush1.bf16.msra.mxu0 0
  %1890 = vmatprep.subr.bf16.mxu0 0
  %1891 = vmatpush1.bf16.msra.mxu0 0
  %1892 = vmatprep.subr.bf16.mxu0 0
  %1893 = vmatpush1.bf16.msra.mxu0 0
  %1894 = vmatprep.mubr.bf16.mxu0 0
  %1895 = vmatmul.mubr.bf16.gmra.mrb[0].mxu0 %v1696
  %v1896 = vpop.f32.mrb[0].mxu0
  %v1897 = vadd.f32 0.0, %v1896
  %v1898 = vpop.f32.mrb[0].mxu0
  %v1899 = vadd.f32 0.0, %v1898
  %v1900 = vpop.f32.mrb[0].mxu0
  %v1901 = vpop.f32.mrb[0].mxu0
  %1902 = vdwg.mxu0
  %1903 = vmatprep.subr.bf16.mxu0 %v1578
  %1904 = vmatpush1.bf16.msra.mxu0 %v1577
  %1905 = vmatprep.subr.bf16.mxu0 %v1610
  %1906 = vmatpush1.bf16.msra.mxu0 %v1609
  %1907 = vmatprep.subr.bf16.mxu0 0
  %1908 = vmatpush1.bf16.msra.mxu0 0
  %1909 = vmatprep.subr.bf16.mxu0 0
  %1910 = vmatpush1.bf16.msra.mxu0 0
  %1911 = vmatprep.subr.bf16.mxu0 0
  %1912 = vmatpush1.bf16.msra.mxu0 0
  %1913 = vmatprep.subr.bf16.mxu0 0
  %1914 = vmatpush1.bf16.msra.mxu0 0
  %1915 = vmatprep.subr.bf16.mxu0 0
  %1916 = vmatpush1.bf16.msra.mxu0 0
  %1917 = vmatprep.subr.bf16.mxu0 0
  %1918 = vmatpush1.bf16.msra.mxu0 0
  %1919 = vmatprep.subr.bf16.mxu0 0
  %1920 = vmatpush1.bf16.msra.mxu0 0
  %1921 = vmatprep.subr.bf16.mxu0 0
  %1922 = vmatpush1.bf16.msra.mxu0 0
  %1923 = vmatprep.subr.bf16.mxu0 0
  %1924 = vmatpush1.bf16.msra.mxu0 0
  %1925 = vmatprep.subr.bf16.mxu0 0
  %1926 = vmatpush1.bf16.msra.mxu0 0
  %1927 = vmatprep.subr.bf16.mxu0 0
  %1928 = vmatpush1.bf16.msra.mxu0 0
  %1929 = vmatprep.subr.bf16.mxu0 0
  %1930 = vmatpush1.bf16.msra.mxu0 0
  %1931 = vmatprep.subr.bf16.mxu0 0
  %1932 = vmatpush1.bf16.msra.mxu0 0
  %1933 = vmatprep.subr.bf16.mxu0 0
  %1934 = vmatpush1.bf16.msra.mxu0 0
  %1935 = vmatprep.mubr.bf16.mxu0 0
  %1936 = vmatmul.mubr.bf16.gmra.mrb[0].mxu0 %v1696
  %v1937 = vpop.f32.mrb[0].mxu0
  %v1938 = vadd.f32 0.0, %v1937
  %v1939 = vpop.f32.mrb[0].mxu0
  %v1940 = vadd.f32 0.0, %v1939
  %v1941 = vpop.f32.mrb[0].mxu0
  %v1942 = vpop.f32.mrb[0].mxu0
  %1943 = vdwg.mxu0
  %1944 = vmatprep.subr.bf16.mxu0 %v1580
  %1945 = vmatpush1.bf16.msra.mxu0 %v1579
  %1946 = vmatprep.subr.bf16.mxu0 %v1612
  %1947 = vmatpush1.bf16.msra.mxu0 %v1611
  %1948 = vmatprep.subr.bf16.mxu0 0
  %1949 = vmatpush1.bf16.msra.mxu0 0
  %1950 = vmatprep.subr.bf16.mxu0 0
  %1951 = vmatpush1.bf16.msra.mxu0 0
  %1952 = vmatprep.subr.bf16.mxu0 0
  %1953 = vmatpush1.bf16.msra.mxu0 0
  %1954 = vmatprep.subr.bf16.mxu0 0
  %1955 = vmatpush1.bf16.msra.mxu0 0
  %1956 = vmatprep.subr.bf16.mxu0 0
  %1957 = vmatpush1.bf16.msra.mxu0 0
  %1958 = vmatprep.subr.bf16.mxu0 0
  %1959 = vmatpush1.bf16.msra.mxu0 0
  %1960 = vmatprep.subr.bf16.mxu0 0
  %1961 = vmatpush1.bf16.msra.mxu0 0
  %1962 = vmatprep.subr.bf16.mxu0 0
  %1963 = vmatpush1.bf16.msra.mxu0 0
  %1964 = vmatprep.subr.bf16.mxu0 0
  %1965 = vmatpush1.bf16.msra.mxu0 0
  %1966 = vmatprep.subr.bf16.mxu0 0
  %1967 = vmatpush1.bf16.msra.mxu0 0
  %1968 = vmatprep.subr.bf16.mxu0 0
  %1969 = vmatpush1.bf16.msra.mxu0 0
  %1970 = vmatprep.subr.bf16.mxu0 0
  %1971 = vmatpush1.bf16.msra.mxu0 0
  %1972 = vmatprep.subr.bf16.mxu0 0
  %1973 = vmatpush1.bf16.msra.mxu0 0
  %1974 = vmatprep.subr.bf16.mxu0 0
  %1975 = vmatpush1.bf16.msra.mxu0 0
  %1976 = vmatprep.mubr.bf16.mxu0 0
  %1977 = vmatmul.mubr.bf16.gmra.mrb[0].mxu0 %v1696
  %v1978 = vpop.f32.mrb[0].mxu0
  %v1979 = vadd.f32 0.0, %v1978
  %v1980 = vpop.f32.mrb[0].mxu0
  %v1981 = vadd.f32 0.0, %v1980
  %v1982 = vpop.f32.mrb[0].mxu0
  %v1983 = vpop.f32.mrb[0].mxu0
  %1984 = vdwg.mxu0
  %1985 = vmatprep.subr.bf16.mxu0 %v1582
  %1986 = vmatpush1.bf16.msra.mxu0 %v1581
  %1987 = vmatprep.subr.bf16.mxu0 %v1614
  %1988 = vmatpush1.bf16.msra.mxu0 %v1613
  %1989 = vmatprep.subr.bf16.mxu0 0
  %1990 = vmatpush1.bf16.msra.mxu0 0
  %1991 = vmatprep.subr.bf16.mxu0 0
  %1992 = vmatpush1.bf16.msra.mxu0 0
  %1993 = vmatprep.subr.bf16.mxu0 0
  %1994 = vmatpush1.bf16.msra.mxu0 0
  %1995 = vmatprep.subr.bf16.mxu0 0
  %1996 = vmatpush1.bf16.msra.mxu0 0
  %1997 = vmatprep.subr.bf16.mxu0 0
  %1998 = vmatpush1.bf16.msra.mxu0 0
  %1999 = vmatprep.subr.bf16.mxu0 0
  %2000 = vmatpush1.bf16.msra.mxu0 0
  %2001 = vmatprep.subr.bf16.mxu0 0
  %2002 = vmatpush1.bf16.msra.mxu0 0
  %2003 = vmatprep.subr.bf16.mxu0 0
  %2004 = vmatpush1.bf16.msra.mxu0 0
  %2005 = vmatprep.subr.bf16.mxu0 0
  %2006 = vmatpush1.bf16.msra.mxu0 0
  %2007 = vmatprep.subr.bf16.mxu0 0
  %2008 = vmatpush1.bf16.msra.mxu0 0
  %2009 = vmatprep.subr.bf16.mxu0 0
  %2010 = vmatpush1.bf16.msra.mxu0 0
  %2011 = vmatprep.subr.bf16.mxu0 0
  %2012 = vmatpush1.bf16.msra.mxu0 0
  %2013 = vmatprep.subr.bf16.mxu0 0
  %2014 = vmatpush1.bf16.msra.mxu0 0
  %2015 = vmatprep.subr.bf16.mxu0 0
  %2016 = vmatpush1.bf16.msra.mxu0 0
  %2017 = vmatprep.mubr.bf16.mxu0 0
  %2018 = vmatmul.mubr.bf16.gmra.mrb[0].mxu0 %v1696
  %v2019 = vpop.f32.mrb[0].mxu0
  %v2020 = vadd.f32 0.0, %v2019
  %v2021 = vpop.f32.mrb[0].mxu0
  %v2022 = vadd.f32 0.0, %v2021
  %v2023 = vpop.f32.mrb[0].mxu0
  %v2024 = vpop.f32.mrb[0].mxu0
  %2025 = vdwg.mxu0
  %2026 = vmatprep.subr.bf16.mxu0 %v1584
  %2027 = vmatpush1.bf16.msra.mxu0 %v1583
  %2028 = vmatprep.subr.bf16.mxu0 %v1616
  %2029 = vmatpush1.bf16.msra.mxu0 %v1615
  %2030 = vmatprep.subr.bf16.mxu0 0
  %2031 = vmatpush1.bf16.msra.mxu0 0
  %2032 = vmatprep.subr.bf16.mxu0 0
  %2033 = vmatpush1.bf16.msra.mxu0 0
  %2034 = vmatprep.subr.bf16.mxu0 0
  %2035 = vmatpush1.bf16.msra.mxu0 0
  %2036 = vmatprep.subr.bf16.mxu0 0
  %2037 = vmatpush1.bf16.msra.mxu0 0
  %2038 = vmatprep.subr.bf16.mxu0 0
  %2039 = vmatpush1.bf16.msra.mxu0 0
  %2040 = vmatprep.subr.bf16.mxu0 0
  %2041 = vmatpush1.bf16.msra.mxu0 0
  %2042 = vmatprep.subr.bf16.mxu0 0
  %2043 = vmatpush1.bf16.msra.mxu0 0
  %2044 = vmatprep.subr.bf16.mxu0 0
  %2045 = vmatpush1.bf16.msra.mxu0 0
  %2046 = vmatprep.subr.bf16.mxu0 0
  %2047 = vmatpush1.bf16.msra.mxu0 0
  %2048 = vmatprep.subr.bf16.mxu0 0
  %2049 = vmatpush1.bf16.msra.mxu0 0
  %2050 = vmatprep.subr.bf16.mxu0 0
  %2051 = vmatpush1.bf16.msra.mxu0 0
  %2052 = vmatprep.subr.bf16.mxu0 0
  %2053 = vmatpush1.bf16.msra.mxu0 0
  %2054 = vmatprep.subr.bf16.mxu0 0
  %2055 = vmatpush1.bf16.msra.mxu0 0
  %2056 = vmatprep.subr.bf16.mxu0 0
  %2057 = vmatpush1.bf16.msra.mxu0 0
  %2058 = vmatprep.mubr.bf16.mxu0 0
  %2059 = vmatmul.mubr.bf16.gmra.mrb[0].mxu0 %v1696
  %v2060 = vpop.f32.mrb[0].mxu0
  %v2061 = vadd.f32 0.0, %v2060
  %v2062 = vpop.f32.mrb[0].mxu0
  %v2063 = vadd.f32 0.0, %v2062
  %v2064 = vpop.f32.mrb[0].mxu0
  %v2065 = vpop.f32.mrb[0].mxu0
  %2066 = vdwg.mxu0
  %2067 = vmatprep.subr.bf16.mxu0 %v1586
  %2068 = vmatpush1.bf16.msra.mxu0 %v1585
  %2069 = vmatprep.subr.bf16.mxu0 %v1618
  %2070 = vmatpush1.bf16.msra.mxu0 %v1617
  %2071 = vmatprep.subr.bf16.mxu0 0
  %2072 = vmatpush1.bf16.msra.mxu0 0
  %2073 = vmatprep.subr.bf16.mxu0 0
  %2074 = vmatpush1.bf16.msra.mxu0 0
  %2075 = vmatprep.subr.bf16.mxu0 0
  %2076 = vmatpush1.bf16.msra.mxu0 0
  %2077 = vmatprep.subr.bf16.mxu0 0
  %2078 = vmatpush1.bf16.msra.mxu0 0
  %2079 = vmatprep.subr.bf16.mxu0 0
  %2080 = vmatpush1.bf16.msra.mxu0 0
  %2081 = vmatprep.subr.bf16.mxu0 0
  %2082 = vmatpush1.bf16.msra.mxu0 0
  %2083 = vmatprep.subr.bf16.mxu0 0
  %2084 = vmatpush1.bf16.msra.mxu0 0
  %2085 = vmatprep.subr.bf16.mxu0 0
  %2086 = vmatpush1.bf16.msra.mxu0 0
  %2087 = vmatprep.subr.bf16.mxu0 0
  %2088 = vmatpush1.bf16.msra.mxu0 0
  %2089 = vmatprep.subr.bf16.mxu0 0
  %2090 = vmatpush1.bf16.msra.mxu0 0
  %2091 = vmatprep.subr.bf16.mxu0 0
  %2092 = vmatpush1.bf16.msra.mxu0 0
  %2093 = vmatprep.subr.bf16.mxu0 0
  %2094 = vmatpush1.bf16.msra.mxu0 0
  %2095 = vmatprep.subr.bf16.mxu0 0
  %2096 = vmatpush1.bf16.msra.mxu0 0
  %2097 = vmatprep.subr.bf16.mxu0 0
  %2098 = vmatpush1.bf16.msra.mxu0 0
  %2099 = vmatprep.mubr.bf16.mxu0 0
  %2100 = vmatmul.mubr.bf16.gmra.mrb[0].mxu0 %v1696
  %v2101 = vpop.f32.mrb[0].mxu0
  %v2102 = vadd.f32 0.0, %v2101
  %v2103 = vpop.f32.mrb[0].mxu0
  %v2104 = vadd.f32 0.0, %v2103
  %v2105 = vpop.f32.mrb[0].mxu0
  %v2106 = vpop.f32.mrb[0].mxu0
  %2107 = vdwg.mxu0
  %2108 = vmatprep.subr.bf16.mxu0 %v1588
  %2109 = vmatpush1.bf16.msra.mxu0 %v1587
  %2110 = vmatprep.subr.bf16.mxu0 %v1620
  %2111 = vmatpush1.bf16.msra.mxu0 %v1619
  %2112 = vmatprep.subr.bf16.mxu0 0
  %2113 = vmatpush1.bf16.msra.mxu0 0
  %2114 = vmatprep.subr.bf16.mxu0 0
  %2115 = vmatpush1.bf16.msra.mxu0 0
  %2116 = vmatprep.subr.bf16.mxu0 0
  %2117 = vmatpush1.bf16.msra.mxu0 0
  %2118 = vmatprep.subr.bf16.mxu0 0
  %2119 = vmatpush1.bf16.msra.mxu0 0
  %2120 = vmatprep.subr.bf16.mxu0 0
  %2121 = vmatpush1.bf16.msra.mxu0 0
  %2122 = vmatprep.subr.bf16.mxu0 0
  %2123 = vmatpush1.bf16.msra.mxu0 0
  %2124 = vmatprep.subr.bf16.mxu0 0
  %2125 = vmatpush1.bf16.msra.mxu0 0
  %2126 = vmatprep.subr.bf16.mxu0 0
  %2127 = vmatpush1.bf16.msra.mxu0 0
  %2128 = vmatprep.subr.bf16.mxu0 0
  %2129 = vmatpush1.bf16.msra.mxu0 0
  %2130 = vmatprep.subr.bf16.mxu0 0
  %2131 = vmatpush1.bf16.msra.mxu0 0
  %2132 = vmatprep.subr.bf16.mxu0 0
  %2133 = vmatpush1.bf16.msra.mxu0 0
  %2134 = vmatprep.subr.bf16.mxu0 0
  %2135 = vmatpush1.bf16.msra.mxu0 0
  %2136 = vmatprep.subr.bf16.mxu0 0
  %2137 = vmatpush1.bf16.msra.mxu0 0
  %2138 = vmatprep.subr.bf16.mxu0 0
  %2139 = vmatpush1.bf16.msra.mxu0 0
  %2140 = vmatprep.mubr.bf16.mxu0 0
  %2141 = vmatmul.mubr.bf16.gmra.mrb[0].mxu0 %v1696
  %v2142 = vpop.f32.mrb[0].mxu0
  %v2143 = vadd.f32 0.0, %v2142
  %v2144 = vpop.f32.mrb[0].mxu0
  %v2145 = vadd.f32 0.0, %v2144
  %v2146 = vpop.f32.mrb[0].mxu0
  %v2147 = vpop.f32.mrb[0].mxu0
  %2148 = vdwg.mxu0
  %2149 = vmatprep.subr.bf16.mxu0 %v1590
  %2150 = vmatpush1.bf16.msra.mxu0 %v1589
  %2151 = vmatprep.subr.bf16.mxu0 %v1622
  %2152 = vmatpush1.bf16.msra.mxu0 %v1621
  %2153 = vmatprep.subr.bf16.mxu0 0
  %2154 = vmatpush1.bf16.msra.mxu0 0
  %2155 = vmatprep.subr.bf16.mxu0 0
  %2156 = vmatpush1.bf16.msra.mxu0 0
  %2157 = vmatprep.subr.bf16.mxu0 0
  %2158 = vmatpush1.bf16.msra.mxu0 0
  %2159 = vmatprep.subr.bf16.mxu0 0
  %2160 = vmatpush1.bf16.msra.mxu0 0
  %2161 = vmatprep.subr.bf16.mxu0 0
  %2162 = vmatpush1.bf16.msra.mxu0 0
  %2163 = vmatprep.subr.bf16.mxu0 0
  %2164 = vmatpush1.bf16.msra.mxu0 0
  %2165 = vmatprep.subr.bf16.mxu0 0
  %2166 = vmatpush1.bf16.msra.mxu0 0
  %2167 = vmatprep.subr.bf16.mxu0 0
  %2168 = vmatpush1.bf16.msra.mxu0 0
  %2169 = vmatprep.subr.bf16.mxu0 0
  %2170 = vmatpush1.bf16.msra.mxu0 0
  %2171 = vmatprep.subr.bf16.mxu0 0
  %2172 = vmatpush1.bf16.msra.mxu0 0
  %2173 = vmatprep.subr.bf16.mxu0 0
  %2174 = vmatpush1.bf16.msra.mxu0 0
  %2175 = vmatprep.subr.bf16.mxu0 0
  %2176 = vmatpush1.bf16.msra.mxu0 0
  %2177 = vmatprep.subr.bf16.mxu0 0
  %2178 = vmatpush1.bf16.msra.mxu0 0
  %2179 = vmatprep.subr.bf16.mxu0 0
  %2180 = vmatpush1.bf16.msra.mxu0 0
  %2181 = vmatprep.mubr.bf16.mxu0 0
  %2182 = vmatmul.mubr.bf16.gmra.mrb[0].mxu0 %v1696
  %v2183 = vpop.f32.mrb[0].mxu0
  %v2184 = vadd.f32 0.0, %v2183
  %v2185 = vpop.f32.mrb[0].mxu0
  %v2186 = vadd.f32 0.0, %v2185
  %v2187 = vpop.f32.mrb[0].mxu0
  %v2188 = vpop.f32.mrb[0].mxu0
  %2189 = vdwg.mxu0
  %2190 = vmatprep.subr.bf16.mxu0 %v1592
  %2191 = vmatpush1.bf16.msra.mxu0 %v1591
  %2192 = vmatprep.subr.bf16.mxu0 %v1624
  %2193 = vmatpush1.bf16.msra.mxu0 %v1623
  %2194 = vmatprep.subr.bf16.mxu0 0
  %2195 = vmatpush1.bf16.msra.mxu0 0
  %2196 = vmatprep.subr.bf16.mxu0 0
  %2197 = vmatpush1.bf16.msra.mxu0 0
  %2198 = vmatprep.subr.bf16.mxu0 0
  %2199 = vmatpush1.bf16.msra.mxu0 0
  %2200 = vmatprep.subr.bf16.mxu0 0
  %2201 = vmatpush1.bf16.msra.mxu0 0
  %2202 = vmatprep.subr.bf16.mxu0 0
  %2203 = vmatpush1.bf16.msra.mxu0 0
  %2204 = vmatprep.subr.bf16.mxu0 0
  %2205 = vmatpush1.bf16.msra.mxu0 0
  %2206 = vmatprep.subr.bf16.mxu0 0
  %2207 = vmatpush1.bf16.msra.mxu0 0
  %2208 = vmatprep.subr.bf16.mxu0 0
  %2209 = vmatpush1.bf16.msra.mxu0 0
  %2210 = vmatprep.subr.bf16.mxu0 0
  %2211 = vmatpush1.bf16.msra.mxu0 0
  %2212 = vmatprep.subr.bf16.mxu0 0
  %2213 = vmatpush1.bf16.msra.mxu0 0
  %2214 = vmatprep.subr.bf16.mxu0 0
  %2215 = vmatpush1.bf16.msra.mxu0 0
  %2216 = vmatprep.subr.bf16.mxu0 0
  %2217 = vmatpush1.bf16.msra.mxu0 0
  %2218 = vmatprep.subr.bf16.mxu0 0
  %2219 = vmatpush1.bf16.msra.mxu0 0
  %2220 = vmatprep.subr.bf16.mxu0 0
  %2221 = vmatpush1.bf16.msra.mxu0 0
  %2222 = vmatprep.mubr.bf16.mxu0 0
  %2223 = vmatmul.mubr.bf16.gmra.mrb[0].mxu0 %v1696
  %v2224 = vpop.f32.mrb[0].mxu0
  %v2225 = vadd.f32 0.0, %v2224
  %v2226 = vpop.f32.mrb[0].mxu0
  %v2227 = vadd.f32 0.0, %v2226
  %v2228 = vpop.f32.mrb[0].mxu0
  %v2229 = vpop.f32.mrb[0].mxu0
  %2230 = vdwg.mxu0
  %2231 = vmatprep.subr.bf16.mxu0 %v1594
  %2232 = vmatpush1.bf16.msra.mxu0 %v1593
  %2233 = vmatprep.subr.bf16.mxu0 %v1626
  %2234 = vmatpush1.bf16.msra.mxu0 %v1625
  %2235 = vmatprep.subr.bf16.mxu0 0
  %2236 = vmatpush1.bf16.msra.mxu0 0
  %2237 = vmatprep.subr.bf16.mxu0 0
  %2238 = vmatpush1.bf16.msra.mxu0 0
  %2239 = vmatprep.subr.bf16.mxu0 0
  %2240 = vmatpush1.bf16.msra.mxu0 0
  %2241 = vmatprep.subr.bf16.mxu0 0
  %2242 = vmatpush1.bf16.msra.mxu0 0
  %2243 = vmatprep.subr.bf16.mxu0 0
  %2244 = vmatpush1.bf16.msra.mxu0 0
  %2245 = vmatprep.subr.bf16.mxu0 0
  %2246 = vmatpush1.bf16.msra.mxu0 0
  %2247 = vmatprep.subr.bf16.mxu0 0
  %2248 = vmatpush1.bf16.msra.mxu0 0
  %2249 = vmatprep.subr.bf16.mxu0 0
  %2250 = vmatpush1.bf16.msra.mxu0 0
  %2251 = vmatprep.subr.bf16.mxu0 0
  %2252 = vmatpush1.bf16.msra.mxu0 0
  %2253 = vmatprep.subr.bf16.mxu0 0
  %2254 = vmatpush1.bf16.msra.mxu0 0
  %2255 = vmatprep.subr.bf16.mxu0 0
  %2256 = vmatpush1.bf16.msra.mxu0 0
  %2257 = vmatprep.subr.bf16.mxu0 0
  %2258 = vmatpush1.bf16.msra.mxu0 0
  %2259 = vmatprep.subr.bf16.mxu0 0
  %2260 = vmatpush1.bf16.msra.mxu0 0
  %2261 = vmatprep.subr.bf16.mxu0 0
  %2262 = vmatpush1.bf16.msra.mxu0 0
  %2263 = vmatprep.mubr.bf16.mxu0 0
  %2264 = vmatmul.mubr.bf16.gmra.mrb[0].mxu0 %v1696
  %v2265 = vpop.f32.mrb[0].mxu0
  %v2266 = vadd.f32 0.0, %v2265
  %v2267 = vpop.f32.mrb[0].mxu0
  %v2268 = vadd.f32 0.0, %v2267
  %v2269 = vpop.f32.mrb[0].mxu0
  %v2270 = vpop.f32.mrb[0].mxu0
  %2271 = vdwg.mxu0
  %2272 = vmatprep.subr.bf16.mxu0 %v1596
  %2273 = vmatpush1.bf16.msra.mxu0 %v1595
  %2274 = vmatprep.subr.bf16.mxu0 %v1628
  %2275 = vmatpush1.bf16.msra.mxu0 %v1627
  %2276 = vmatprep.subr.bf16.mxu0 0
  %2277 = vmatpush1.bf16.msra.mxu0 0
  %2278 = vmatprep.subr.bf16.mxu0 0
  %2279 = vmatpush1.bf16.msra.mxu0 0
  %2280 = vmatprep.subr.bf16.mxu0 0
  %2281 = vmatpush1.bf16.msra.mxu0 0
  %2282 = vmatprep.subr.bf16.mxu0 0
  %2283 = vmatpush1.bf16.msra.mxu0 0
  %2284 = vmatprep.subr.bf16.mxu0 0
  %2285 = vmatpush1.bf16.msra.mxu0 0
  %2286 = vmatprep.subr.bf16.mxu0 0
  %2287 = vmatpush1.bf16.msra.mxu0 0
  %2288 = vmatprep.subr.bf16.mxu0 0
  %2289 = vmatpush1.bf16.msra.mxu0 0
  %2290 = vmatprep.subr.bf16.mxu0 0
  %2291 = vmatpush1.bf16.msra.mxu0 0
  %2292 = vmatprep.subr.bf16.mxu0 0
  %2293 = vmatpush1.bf16.msra.mxu0 0
  %2294 = vmatprep.subr.bf16.mxu0 0
  %2295 = vmatpush1.bf16.msra.mxu0 0
  %2296 = vmatprep.subr.bf16.mxu0 0
  %2297 = vmatpush1.bf16.msra.mxu0 0
  %2298 = vmatprep.subr.bf16.mxu0 0
  %2299 = vmatpush1.bf16.msra.mxu0 0
  %2300 = vmatprep.subr.bf16.mxu0 0
  %2301 = vmatpush1.bf16.msra.mxu0 0
  %2302 = vmatprep.subr.bf16.mxu0 0
  %2303 = vmatpush1.bf16.msra.mxu0 0
  %2304 = vmatprep.mubr.bf16.mxu0 0
  %2305 = vmatmul.mubr.bf16.gmra.mrb[0].mxu0 %v1696
  %v2306 = vpop.f32.mrb[0].mxu0
  %v2307 = vadd.f32 0.0, %v2306
  %v2308 = vpop.f32.mrb[0].mxu0
  %v2309 = vadd.f32 0.0, %v2308
  %v2310 = vpop.f32.mrb[0].mxu0
  %v2311 = vpop.f32.mrb[0].mxu0
  %2312 = vdwg.mxu0
  %2313 = vmatprep.subr.bf16.mxu0 %v1598
  %2314 = vmatpush1.bf16.msra.mxu0 %v1597
  %2315 = vmatprep.subr.bf16.mxu0 %v1630
  %2316 = vmatpush1.bf16.msra.mxu0 %v1629
  %2317 = vmatprep.subr.bf16.mxu0 0
  %2318 = vmatpush1.bf16.msra.mxu0 0
  %2319 = vmatprep.subr.bf16.mxu0 0
  %2320 = vmatpush1.bf16.msra.mxu0 0
  %2321 = vmatprep.subr.bf16.mxu0 0
  %2322 = vmatpush1.bf16.msra.mxu0 0
  %2323 = vmatprep.subr.bf16.mxu0 0
  %2324 = vmatpush1.bf16.msra.mxu0 0
  %2325 = vmatprep.subr.bf16.mxu0 0
  %2326 = vmatpush1.bf16.msra.mxu0 0
  %2327 = vmatprep.subr.bf16.mxu0 0
  %2328 = vmatpush1.bf16.msra.mxu0 0
  %2329 = vmatprep.subr.bf16.mxu0 0
  %2330 = vmatpush1.bf16.msra.mxu0 0
  %2331 = vmatprep.subr.bf16.mxu0 0
  %2332 = vmatpush1.bf16.msra.mxu0 0
  %2333 = vmatprep.subr.bf16.mxu0 0
  %2334 = vmatpush1.bf16.msra.mxu0 0
  %2335 = vmatprep.subr.bf16.mxu0 0
  %2336 = vmatpush1.bf16.msra.mxu0 0
  %2337 = vmatprep.subr.bf16.mxu0 0
  %2338 = vmatpush1.bf16.msra.mxu0 0
  %2339 = vmatprep.subr.bf16.mxu0 0
  %2340 = vmatpush1.bf16.msra.mxu0 0
  %2341 = vmatprep.subr.bf16.mxu0 0
  %2342 = vmatpush1.bf16.msra.mxu0 0
  %2343 = vmatprep.subr.bf16.mxu0 0
  %2344 = vmatpush1.bf16.msra.mxu0 0
  %2345 = vmatprep.mubr.bf16.mxu0 0
  %2346 = vmatmul.mubr.bf16.gmra.mrb[0].mxu0 %v1696
  %v2347 = vpop.f32.mrb[0].mxu0
  %v2348 = vadd.f32 0.0, %v2347
  %v2349 = vpop.f32.mrb[0].mxu0
  %v2350 = vadd.f32 0.0, %v2349
  %v2351 = vpop.f32.mrb[0].mxu0
  %v2352 = vpop.f32.mrb[0].mxu0
  %2353 = vdwg.mxu0
  %v2354 = vsel %vm1063, %v1733, 0.0
  %v2355 = vsel %vm1063, %v1735, 0.0
  %v2356 = vadd.f32 %v2354, %v2355
  %v2357 = vsel %vm1063, %v1774, 0.0
  %v2358 = vadd.f32 %v2356, %v2357
  %v2359 = vsel %vm1063, %v1776, 0.0
  %v2360 = vadd.f32 %v2358, %v2359
  %v2361 = vsel %vm1063, %v1815, 0.0
  %v2362 = vadd.f32 %v2360, %v2361
  %v2363 = vsel %vm1063, %v1817, 0.0
  %v2364 = vadd.f32 %v2362, %v2363
  %v2365 = vsel %vm1063, %v1856, 0.0
  %v2366 = vadd.f32 %v2364, %v2365
  %v2367 = vsel %vm1063, %v1858, 0.0
  %v2368 = vadd.f32 %v2366, %v2367
  %v2369 = vsel %vm1063, %v1897, 0.0
  %v2370 = vadd.f32 %v2368, %v2369
  %v2371 = vsel %vm1063, %v1899, 0.0
  %v2372 = vadd.f32 %v2370, %v2371
  %v2373 = vsel %vm1063, %v1938, 0.0
  %v2374 = vadd.f32 %v2372, %v2373
  %v2375 = vsel %vm1063, %v1940, 0.0
  %v2376 = vadd.f32 %v2374, %v2375
  %v2377 = vsel %vm1063, %v1979, 0.0
  %v2378 = vadd.f32 %v2376, %v2377
  %v2379 = vsel %vm1063, %v1981, 0.0
  %v2380 = vadd.f32 %v2378, %v2379
  %v2381 = vsel %vm1063, %v2020, 0.0
  %v2382 = vadd.f32 %v2380, %v2381
  %v2383 = vsel %vm1063, %v2022, 0.0
  %v2384 = vadd.f32 %v2382, %v2383
  %v2385 = vsel %vm1063, %v2061, 0.0
  %v2386 = vadd.f32 %v2384, %v2385
  %v2387 = vsel %vm1063, %v2063, 0.0
  %v2388 = vadd.f32 %v2386, %v2387
  %v2389 = vsel %vm1063, %v2102, 0.0
  %v2390 = vadd.f32 %v2388, %v2389
  %v2391 = vsel %vm1063, %v2104, 0.0
  %v2392 = vadd.f32 %v2390, %v2391
  %v2393 = vsel %vm1063, %v2143, 0.0
  %v2394 = vadd.f32 %v2392, %v2393
  %v2395 = vsel %vm1063, %v2145, 0.0
  %v2396 = vadd.f32 %v2394, %v2395
  %v2397 = vsel %vm1063, %v2184, 0.0
  %v2398 = vadd.f32 %v2396, %v2397
  %v2399 = vsel %vm1063, %v2186, 0.0
  %v2400 = vadd.f32 %v2398, %v2399
  %v2401 = vsel %vm1063, %v2225, 0.0
  %v2402 = vadd.f32 %v2400, %v2401
  %v2403 = vsel %vm1063, %v2227, 0.0
  %v2404 = vadd.f32 %v2402, %v2403
  %v2405 = vsel %vm1063, %v2266, 0.0
  %v2406 = vadd.f32 %v2404, %v2405
  %v2407 = vsel %vm1063, %v2268, 0.0
  %v2408 = vadd.f32 %v2406, %v2407
  %v2409 = vsel %vm1063, %v2307, 0.0
  %v2410 = vadd.f32 %v2408, %v2409
  %v2411 = vsel %vm1063, %v2309, 0.0
  %v2412 = vadd.f32 %v2410, %v2411
  %v2413 = vsel %vm1063, %v2348, 0.0
  %v2414 = vadd.f32 %v2412, %v2413
  %v2415 = vsel %vm1063, %v2350, 0.0
  %v2416 = vadd.f32 %v2414, %v2415
  %2417 = vadd.xlane.f32.xlu0 %v2416
  %v2418 = vpop.xlane.xlu0 %2417
  %v2419 = vadd.f32 %v1129, %v2418
  %v2420 = vmul.f32 %v1733, %v1733
  %v2421 = vmul.f32 %v1735, %v1735
  %v2422 = vmul.f32 %v1774, %v1774
  %v2423 = vmul.f32 %v1776, %v1776
  %v2424 = vmul.f32 %v1815, %v1815
  %v2425 = vmul.f32 %v1817, %v1817
  %v2426 = vmul.f32 %v1856, %v1856
  %v2427 = vmul.f32 %v1858, %v1858
  %v2428 = vmul.f32 %v1897, %v1897
  %v2429 = vmul.f32 %v1899, %v1899
  %v2430 = vmul.f32 %v1938, %v1938
  %v2431 = vmul.f32 %v1940, %v1940
  %v2432 = vmul.f32 %v1979, %v1979
  %v2433 = vmul.f32 %v1981, %v1981
  %v2434 = vmul.f32 %v2020, %v2020
  %v2435 = vmul.f32 %v2022, %v2022
  %v2436 = vmul.f32 %v2061, %v2061
  %v2437 = vmul.f32 %v2063, %v2063
  %v2438 = vmul.f32 %v2102, %v2102
  %v2439 = vmul.f32 %v2104, %v2104
  %v2440 = vmul.f32 %v2143, %v2143
  %v2441 = vmul.f32 %v2145, %v2145
  %v2442 = vmul.f32 %v2184, %v2184
  %v2443 = vmul.f32 %v2186, %v2186
  %v2444 = vmul.f32 %v2225, %v2225
  %v2445 = vmul.f32 %v2227, %v2227
  %v2446 = vmul.f32 %v2266, %v2266
  %v2447 = vmul.f32 %v2268, %v2268
  %v2448 = vmul.f32 %v2307, %v2307
  %v2449 = vmul.f32 %v2309, %v2309
  %v2450 = vmul.f32 %v2348, %v2348
  %v2451 = vmul.f32 %v2350, %v2350
  %v2452 = vsel %vm1063, %v2420, 0.0
  %v2453 = vsel %vm1063, %v2421, 0.0
  %v2454 = vadd.f32 %v2452, %v2453
  %v2455 = vsel %vm1063, %v2422, 0.0
  %v2456 = vadd.f32 %v2454, %v2455
  %v2457 = vsel %vm1063, %v2423, 0.0
  %v2458 = vadd.f32 %v2456, %v2457
  %v2459 = vsel %vm1063, %v2424, 0.0
  %v2460 = vadd.f32 %v2458, %v2459
  %v2461 = vsel %vm1063, %v2425, 0.0
  %v2462 = vadd.f32 %v2460, %v2461
  %v2463 = vsel %vm1063, %v2426, 0.0
  %v2464 = vadd.f32 %v2462, %v2463
  %v2465 = vsel %vm1063, %v2427, 0.0
  %v2466 = vadd.f32 %v2464, %v2465
  %v2467 = vsel %vm1063, %v2428, 0.0
  %v2468 = vadd.f32 %v2466, %v2467
  %v2469 = vsel %vm1063, %v2429, 0.0
  %v2470 = vadd.f32 %v2468, %v2469
  %v2471 = vsel %vm1063, %v2430, 0.0
  %v2472 = vadd.f32 %v2470, %v2471
  %v2473 = vsel %vm1063, %v2431, 0.0
  %v2474 = vadd.f32 %v2472, %v2473
  %v2475 = vsel %vm1063, %v2432, 0.0
  %v2476 = vadd.f32 %v2474, %v2475
  %v2477 = vsel %vm1063, %v2433, 0.0
  %v2478 = vadd.f32 %v2476, %v2477
  %v2479 = vsel %vm1063, %v2434, 0.0
  %v2480 = vadd.f32 %v2478, %v2479
  %v2481 = vsel %vm1063, %v2435, 0.0
  %v2482 = vadd.f32 %v2480, %v2481
  %v2483 = vsel %vm1063, %v2436, 0.0
  %v2484 = vadd.f32 %v2482, %v2483
  %v2485 = vsel %vm1063, %v2437, 0.0
  %v2486 = vadd.f32 %v2484, %v2485
  %v2487 = vsel %vm1063, %v2438, 0.0
  %v2488 = vadd.f32 %v2486, %v2487
  %v2489 = vsel %vm1063, %v2439, 0.0
  %v2490 = vadd.f32 %v2488, %v2489
  %v2491 = vsel %vm1063, %v2440, 0.0
  %v2492 = vadd.f32 %v2490, %v2491
  %v2493 = vsel %vm1063, %v2441, 0.0
  %v2494 = vadd.f32 %v2492, %v2493
  %v2495 = vsel %vm1063, %v2442, 0.0
  %v2496 = vadd.f32 %v2494, %v2495
  %v2497 = vsel %vm1063, %v2443, 0.0
  %v2498 = vadd.f32 %v2496, %v2497
  %v2499 = vsel %vm1063, %v2444, 0.0
  %v2500 = vadd.f32 %v2498, %v2499
  %v2501 = vsel %vm1063, %v2445, 0.0
  %v2502 = vadd.f32 %v2500, %v2501
  %v2503 = vsel %vm1063, %v2446, 0.0
  %v2504 = vadd.f32 %v2502, %v2503
  %v2505 = vsel %vm1063, %v2447, 0.0
  %v2506 = vadd.f32 %v2504, %v2505
  %v2507 = vsel %vm1063, %v2448, 0.0
  %v2508 = vadd.f32 %v2506, %v2507
  %v2509 = vsel %vm1063, %v2449, 0.0
  %v2510 = vadd.f32 %v2508, %v2509
  %v2511 = vsel %vm1063, %v2450, 0.0
  %v2512 = vadd.f32 %v2510, %v2511
  %v2513 = vsel %vm1063, %v2451, 0.0
  %v2514 = vadd.f32 %v2512, %v2513
  %2515 = vadd.xlane.f32.xlu0 %v2514
  %v2516 = vpop.xlane.xlu0 %2515
  %v2517 = vadd.f32 %v1227, %v2516
  %v2550 = vcombine.low %v1733, %v1735
  %v2551 = vcombine.low %v1774, %v1776
  %v2552 = vcombine.low %v1815, %v1817
  %v2553 = vcombine.low %v1856, %v1858
  %v2554 = vcombine.low %v1897, %v1899
  %v2555 = vcombine.low %v1938, %v1940
  %v2556 = vcombine.low %v1979, %v1981
  %v2557 = vcombine.low %v2020, %v2022
  %v2558 = vcombine.low %v2061, %v2063
  %v2559 = vcombine.low %v2102, %v2104
  %v2560 = vcombine.low %v2143, %v2145
  %v2561 = vcombine.low %v2184, %v2186
  %v2562 = vcombine.low %v2225, %v2227
  %v2563 = vcombine.low %v2266, %v2268
  %v2564 = vcombine.low %v2307, %v2309
  %v2565 = vcombine.low %v2348, %v2350
  %2582 = vst [vmem:[%s4 + $0x80] sm:$0x77] %v2550
  %2583 = vst [vmem:[%s4 + $0x88] sm:$0x77] %v2551
  %2584 = vst [vmem:[%s4 + $0x90] sm:$0x77] %v2552
  %2585 = vst [vmem:[%s4 + $0x98] sm:$0x77] %v2553
  %2586 = vst [vmem:[%s4 + $0xa0] sm:$0x77] %v2554
  %2587 = vst [vmem:[%s4 + $0xa8] sm:$0x77] %v2555
  %2588 = vst [vmem:[%s4 + $0xb0] sm:$0x77] %v2556
  %2589 = vst [vmem:[%s4 + $0xb8] sm:$0x77] %v2557
  %2590 = vst [vmem:[%s4 + $0xc0] sm:$0x77] %v2558
  %2591 = vst [vmem:[%s4 + $0xc8] sm:$0x77] %v2559
  %2592 = vst [vmem:[%s4 + $0xd0] sm:$0x77] %v2560
  %2593 = vst [vmem:[%s4 + $0xd8] sm:$0x77] %v2561
  %2594 = vst [vmem:[%s4 + $0xe0] sm:$0x77] %v2562
  %2595 = vst [vmem:[%s4 + $0xe8] sm:$0x77] %v2563
  %2596 = vst [vmem:[%s4 + $0xf0] sm:$0x77] %v2564
  %2597 = vst [vmem:[%s4 + $0xf8] sm:$0x77] %v2565
  %s2598 = scalar_lea.vmem %s0, 4
  %v2599 = vld [vmem:[%s2598] sm:$0x3]
  %s2600 = scalar_lea.vmem %s1, 1024
  %v2601 = vld [vmem:[%s2600] sm:$0xff]
  %v2602 = vld [vmem:[%s2600 + $0x8] sm:$0xff]
  %v2603 = vld [vmem:[%s2600 + $0x10] sm:$0xff]
  %v2604 = vld [vmem:[%s2600 + $0x18] sm:$0xff]
  %v2605 = vld [vmem:[%s2600 + $0x20] sm:$0xff]
  %v2606 = vld [vmem:[%s2600 + $0x28] sm:$0xff]
  %v2607 = vld [vmem:[%s2600 + $0x30] sm:$0xff]
  %v2608 = vld [vmem:[%s2600 + $0x38] sm:$0xff]
  %v2609 = vld [vmem:[%s2600 + $0x40] sm:$0xff]
  %v2610 = vld [vmem:[%s2600 + $0x48] sm:$0xff]
  %v2611 = vld [vmem:[%s2600 + $0x50] sm:$0xff]
  %v2612 = vld [vmem:[%s2600 + $0x58] sm:$0xff]
  %v2613 = vld [vmem:[%s2600 + $0x60] sm:$0xff]
  %v2614 = vld [vmem:[%s2600 + $0x68] sm:$0xff]
  %v2615 = vld [vmem:[%s2600 + $0x70] sm:$0xff]
  %v2616 = vld [vmem:[%s2600 + $0x78] sm:$0xff]
  %v2617 = vld [vmem:[%s2600 + $0x80] sm:$0xff]
  %v2618 = vld [vmem:[%s2600 + $0x88] sm:$0xff]
  %v2619 = vld [vmem:[%s2600 + $0x90] sm:$0xff]
  %v2620 = vld [vmem:[%s2600 + $0x98] sm:$0xff]
  %v2621 = vld [vmem:[%s2600 + $0xa0] sm:$0xff]
  %v2622 = vld [vmem:[%s2600 + $0xa8] sm:$0xff]
  %v2623 = vld [vmem:[%s2600 + $0xb0] sm:$0xff]
  %v2624 = vld [vmem:[%s2600 + $0xb8] sm:$0xff]
  %v2625 = vld [vmem:[%s2600 + $0xc0] sm:$0xff]
  %v2626 = vld [vmem:[%s2600 + $0xc8] sm:$0xff]
  %v2627 = vld [vmem:[%s2600 + $0xd0] sm:$0xff]
  %v2628 = vld [vmem:[%s2600 + $0xd8] sm:$0xff]
  %v2629 = vld [vmem:[%s2600 + $0xe0] sm:$0xff]
  %v2630 = vld [vmem:[%s2600 + $0xe8] sm:$0xff]
  %v2631 = vld [vmem:[%s2600 + $0xf0] sm:$0xff]
  %v2632 = vld [vmem:[%s2600 + $0xf8] sm:$0xff]
  %v2633 = vld [vmem:[%s2600 + $0x100] sm:$0xff]
  %v2634 = vld [vmem:[%s2600 + $0x108] sm:$0xff]
  %v2635 = vld [vmem:[%s2600 + $0x110] sm:$0xff]
  %v2636 = vld [vmem:[%s2600 + $0x118] sm:$0xff]
  %v2637 = vld [vmem:[%s2600 + $0x120] sm:$0xff]
  %v2638 = vld [vmem:[%s2600 + $0x128] sm:$0xff]
  %v2639 = vld [vmem:[%s2600 + $0x130] sm:$0xff]
  %v2640 = vld [vmem:[%s2600 + $0x138] sm:$0xff]
  %v2641 = vld [vmem:[%s2600 + $0x140] sm:$0xff]
  %v2642 = vld [vmem:[%s2600 + $0x148] sm:$0xff]
  %v2643 = vld [vmem:[%s2600 + $0x150] sm:$0xff]
  %v2644 = vld [vmem:[%s2600 + $0x158] sm:$0xff]
  %v2645 = vld [vmem:[%s2600 + $0x160] sm:$0xff]
  %v2646 = vld [vmem:[%s2600 + $0x168] sm:$0xff]
  %v2647 = vld [vmem:[%s2600 + $0x170] sm:$0xff]
  %v2648 = vld [vmem:[%s2600 + $0x178] sm:$0xff]
  %v2649 = vld [vmem:[%s2600 + $0x180] sm:$0xff]
  %v2650 = vld [vmem:[%s2600 + $0x188] sm:$0xff]
  %v2651 = vld [vmem:[%s2600 + $0x190] sm:$0xff]
  %v2652 = vld [vmem:[%s2600 + $0x198] sm:$0xff]
  %v2653 = vld [vmem:[%s2600 + $0x1a0] sm:$0xff]
  %v2654 = vld [vmem:[%s2600 + $0x1a8] sm:$0xff]
  %v2655 = vld [vmem:[%s2600 + $0x1b0] sm:$0xff]
  %v2656 = vld [vmem:[%s2600 + $0x1b8] sm:$0xff]
  %v2657 = vld [vmem:[%s2600 + $0x1c0] sm:$0xff]
  %v2658 = vld [vmem:[%s2600 + $0x1c8] sm:$0xff]
  %v2659 = vld [vmem:[%s2600 + $0x1d0] sm:$0xff]
  %v2660 = vld [vmem:[%s2600 + $0x1d8] sm:$0xff]
  %v2661 = vld [vmem:[%s2600 + $0x1e0] sm:$0xff]
  %v2662 = vld [vmem:[%s2600 + $0x1e8] sm:$0xff]
  %v2663 = vld [vmem:[%s2600 + $0x1f0] sm:$0xff]
  %v2664 = vld [vmem:[%s2600 + $0x1f8] sm:$0xff]
  %v2729 = vunpack.c.l.b16 %v2601
  %v2730 = vunpack.c.h.b16 %v2601
  %v2731 = vunpack.c.l.b16 %v2602
  %v2732 = vunpack.c.h.b16 %v2602
  %v2733 = vunpack.c.l.b16 %v2603
  %v2734 = vunpack.c.h.b16 %v2603
  %v2735 = vunpack.c.l.b16 %v2604
  %v2736 = vunpack.c.h.b16 %v2604
  %v2737 = vunpack.c.l.b16 %v2605
  %v2738 = vunpack.c.h.b16 %v2605
  %v2739 = vunpack.c.l.b16 %v2606
  %v2740 = vunpack.c.h.b16 %v2606
  %v2741 = vunpack.c.l.b16 %v2607
  %v2742 = vunpack.c.h.b16 %v2607
  %v2743 = vunpack.c.l.b16 %v2608
  %v2744 = vunpack.c.h.b16 %v2608
  %v2745 = vunpack.c.l.b16 %v2609
  %v2746 = vunpack.c.h.b16 %v2609
  %v2747 = vunpack.c.l.b16 %v2610
  %v2748 = vunpack.c.h.b16 %v2610
  %v2749 = vunpack.c.l.b16 %v2611
  %v2750 = vunpack.c.h.b16 %v2611
  %v2751 = vunpack.c.l.b16 %v2612
  %v2752 = vunpack.c.h.b16 %v2612
  %v2753 = vunpack.c.l.b16 %v2613
  %v2754 = vunpack.c.h.b16 %v2613
  %v2755 = vunpack.c.l.b16 %v2614
  %v2756 = vunpack.c.h.b16 %v2614
  %v2757 = vunpack.c.l.b16 %v2615
  %v2758 = vunpack.c.h.b16 %v2615
  %v2759 = vunpack.c.l.b16 %v2616
  %v2760 = vunpack.c.h.b16 %v2616
  %v2761 = vunpack.c.l.b16 %v2617
  %v2762 = vunpack.c.h.b16 %v2617
  %v2763 = vunpack.c.l.b16 %v2618
  %v2764 = vunpack.c.h.b16 %v2618
  %v2765 = vunpack.c.l.b16 %v2619
  %v2766 = vunpack.c.h.b16 %v2619
  %v2767 = vunpack.c.l.b16 %v2620
  %v2768 = vunpack.c.h.b16 %v2620
  %v2769 = vunpack.c.l.b16 %v2621
  %v2770 = vunpack.c.h.b16 %v2621
  %v2771 = vunpack.c.l.b16 %v2622
  %v2772 = vunpack.c.h.b16 %v2622
  %v2773 = vunpack.c.l.b16 %v2623
  %v2774 = vunpack.c.h.b16 %v2623
  %v2775 = vunpack.c.l.b16 %v2624
  %v2776 = vunpack.c.h.b16 %v2624
  %v2777 = vunpack.c.l.b16 %v2625
  %v2778 = vunpack.c.h.b16 %v2625
  %v2779 = vunpack.c.l.b16 %v2626
  %v2780 = vunpack.c.h.b16 %v2626
  %v2781 = vunpack.c.l.b16 %v2627
  %v2782 = vunpack.c.h.b16 %v2627
  %v2783 = vunpack.c.l.b16 %v2628
  %v2784 = vunpack.c.h.b16 %v2628
  %v2785 = vunpack.c.l.b16 %v2629
  %v2786 = vunpack.c.h.b16 %v2629
  %v2787 = vunpack.c.l.b16 %v2630
  %v2788 = vunpack.c.h.b16 %v2630
  %v2789 = vunpack.c.l.b16 %v2631
  %v2790 = vunpack.c.h.b16 %v2631
  %v2791 = vunpack.c.l.b16 %v2632
  %v2792 = vunpack.c.h.b16 %v2632
  %v2793 = vunpack.c.l.b16 %v2633
  %v2794 = vunpack.c.h.b16 %v2633
  %v2795 = vunpack.c.l.b16 %v2634
  %v2796 = vunpack.c.h.b16 %v2634
  %v2797 = vunpack.c.l.b16 %v2635
  %v2798 = vunpack.c.h.b16 %v2635
  %v2799 = vunpack.c.l.b16 %v2636
  %v2800 = vunpack.c.h.b16 %v2636
  %v2801 = vunpack.c.l.b16 %v2637
  %v2802 = vunpack.c.h.b16 %v2637
  %v2803 = vunpack.c.l.b16 %v2638
  %v2804 = vunpack.c.h.b16 %v2638
  %v2805 = vunpack.c.l.b16 %v2639
  %v2806 = vunpack.c.h.b16 %v2639
  %v2807 = vunpack.c.l.b16 %v2640
  %v2808 = vunpack.c.h.b16 %v2640
  %v2809 = vunpack.c.l.b16 %v2641
  %v2810 = vunpack.c.h.b16 %v2641
  %v2811 = vunpack.c.l.b16 %v2642
  %v2812 = vunpack.c.h.b16 %v2642
  %v2813 = vunpack.c.l.b16 %v2643
  %v2814 = vunpack.c.h.b16 %v2643
  %v2815 = vunpack.c.l.b16 %v2644
  %v2816 = vunpack.c.h.b16 %v2644
  %v2817 = vunpack.c.l.b16 %v2645
  %v2818 = vunpack.c.h.b16 %v2645
  %v2819 = vunpack.c.l.b16 %v2646
  %v2820 = vunpack.c.h.b16 %v2646
  %v2821 = vunpack.c.l.b16 %v2647
  %v2822 = vunpack.c.h.b16 %v2647
  %v2823 = vunpack.c.l.b16 %v2648
  %v2824 = vunpack.c.h.b16 %v2648
  %v2825 = vunpack.c.l.b16 %v2649
  %v2826 = vunpack.c.h.b16 %v2649
  %v2827 = vunpack.c.l.b16 %v2650
  %v2828 = vunpack.c.h.b16 %v2650
  %v2829 = vunpack.c.l.b16 %v2651
  %v2830 = vunpack.c.h.b16 %v2651
  %v2831 = vunpack.c.l.b16 %v2652
  %v2832 = vunpack.c.h.b16 %v2652
  %v2833 = vunpack.c.l.b16 %v2653
  %v2834 = vunpack.c.h.b16 %v2653
  %v2835 = vunpack.c.l.b16 %v2654
  %v2836 = vunpack.c.h.b16 %v2654
  %v2837 = vunpack.c.l.b16 %v2655
  %v2838 = vunpack.c.h.b16 %v2655
  %v2839 = vunpack.c.l.b16 %v2656
  %v2840 = vunpack.c.h.b16 %v2656
  %v2841 = vunpack.c.l.b16 %v2657
  %v2842 = vunpack.c.h.b16 %v2657
  %v2843 = vunpack.c.l.b16 %v2658
  %v2844 = vunpack.c.h.b16 %v2658
  %v2845 = vunpack.c.l.b16 %v2659
  %v2846 = vunpack.c.h.b16 %v2659
  %v2847 = vunpack.c.l.b16 %v2660
  %v2848 = vunpack.c.h.b16 %v2660
  %v2849 = vunpack.c.l.b16 %v2661
  %v2850 = vunpack.c.h.b16 %v2661
  %v2851 = vunpack.c.l.b16 %v2662
  %v2852 = vunpack.c.h.b16 %v2662
  %v2853 = vunpack.c.l.b16 %v2663
  %v2854 = vunpack.c.h.b16 %v2663
  %v2855 = vunpack.c.l.b16 %v2664
  %v2856 = vunpack.c.h.b16 %v2664
  %v2857 = vpack.c.b16 %v2761, %v2729
  %v2858 = vpack.c.b16 %v2762, %v2730
  %v2859 = vpack.c.b16 %v2763, %v2731
  %v2860 = vpack.c.b16 %v2764, %v2732
  %v2861 = vpack.c.b16 %v2765, %v2733
  %v2862 = vpack.c.b16 %v2766, %v2734
  %v2863 = vpack.c.b16 %v2767, %v2735
  %v2864 = vpack.c.b16 %v2768, %v2736
  %v2865 = vpack.c.b16 %v2769, %v2737
  %v2866 = vpack.c.b16 %v2770, %v2738
  %v2867 = vpack.c.b16 %v2771, %v2739
  %v2868 = vpack.c.b16 %v2772, %v2740
  %v2869 = vpack.c.b16 %v2773, %v2741
  %v2870 = vpack.c.b16 %v2774, %v2742
  %v2871 = vpack.c.b16 %v2775, %v2743
  %v2872 = vpack.c.b16 %v2776, %v2744
  %v2873 = vpack.c.b16 %v2777, %v2745
  %v2874 = vpack.c.b16 %v2778, %v2746
  %v2875 = vpack.c.b16 %v2779, %v2747
  %v2876 = vpack.c.b16 %v2780, %v2748
  %v2877 = vpack.c.b16 %v2781, %v2749
  %v2878 = vpack.c.b16 %v2782, %v2750
  %v2879 = vpack.c.b16 %v2783, %v2751
  %v2880 = vpack.c.b16 %v2784, %v2752
  %v2881 = vpack.c.b16 %v2785, %v2753
  %v2882 = vpack.c.b16 %v2786, %v2754
  %v2883 = vpack.c.b16 %v2787, %v2755
  %v2884 = vpack.c.b16 %v2788, %v2756
  %v2885 = vpack.c.b16 %v2789, %v2757
  %v2886 = vpack.c.b16 %v2790, %v2758
  %v2887 = vpack.c.b16 %v2791, %v2759
  %v2888 = vpack.c.b16 %v2792, %v2760
  %v2889 = vpack.c.b16 %v2825, %v2793
  %v2890 = vpack.c.b16 %v2826, %v2794
  %v2891 = vpack.c.b16 %v2827, %v2795
  %v2892 = vpack.c.b16 %v2828, %v2796
  %v2893 = vpack.c.b16 %v2829, %v2797
  %v2894 = vpack.c.b16 %v2830, %v2798
  %v2895 = vpack.c.b16 %v2831, %v2799
  %v2896 = vpack.c.b16 %v2832, %v2800
  %v2897 = vpack.c.b16 %v2833, %v2801
  %v2898 = vpack.c.b16 %v2834, %v2802
  %v2899 = vpack.c.b16 %v2835, %v2803
  %v2900 = vpack.c.b16 %v2836, %v2804
  %v2901 = vpack.c.b16 %v2837, %v2805
  %v2902 = vpack.c.b16 %v2838, %v2806
  %v2903 = vpack.c.b16 %v2839, %v2807
  %v2904 = vpack.c.b16 %v2840, %v2808
  %v2905 = vpack.c.b16 %v2841, %v2809
  %v2906 = vpack.c.b16 %v2842, %v2810
  %v2907 = vpack.c.b16 %v2843, %v2811
  %v2908 = vpack.c.b16 %v2844, %v2812
  %v2909 = vpack.c.b16 %v2845, %v2813
  %v2910 = vpack.c.b16 %v2846, %v2814
  %v2911 = vpack.c.b16 %v2847, %v2815
  %v2912 = vpack.c.b16 %v2848, %v2816
  %v2913 = vpack.c.b16 %v2849, %v2817
  %v2914 = vpack.c.b16 %v2850, %v2818
  %v2915 = vpack.c.b16 %v2851, %v2819
  %v2916 = vpack.c.b16 %v2852, %v2820
  %v2917 = vpack.c.b16 %v2853, %v2821
  %v2918 = vpack.c.b16 %v2854, %v2822
  %v2919 = vpack.c.b16 %v2855, %v2823
  %v2920 = vpack.c.b16 %v2856, %v2824
  %v2986 = vsel %vm403, %v2599, 0
  %2988 = vmatprep.subr.bf16.mxu0 %v2858
  %2989 = vmatpush1.bf16.msra.mxu0 %v2857
  %2990 = vmatprep.subr.bf16.mxu0 %v2890
  %2991 = vmatpush1.bf16.msra.mxu0 %v2889
  %2992 = vmatprep.subr.bf16.mxu0 0
  %2993 = vmatpush1.bf16.msra.mxu0 0
  %2994 = vmatprep.subr.bf16.mxu0 0
  %2995 = vmatpush1.bf16.msra.mxu0 0
  %2996 = vmatprep.subr.bf16.mxu0 0
  %2997 = vmatpush1.bf16.msra.mxu0 0
  %2998 = vmatprep.subr.bf16.mxu0 0
  %2999 = vmatpush1.bf16.msra.mxu0 0
  %3000 = vmatprep.subr.bf16.mxu0 0
  %3001 = vmatpush1.bf16.msra.mxu0 0
  %3002 = vmatprep.subr.bf16.mxu0 0
  %3003 = vmatpush1.bf16.msra.mxu0 0
  %3004 = vmatprep.subr.bf16.mxu0 0
  %3005 = vmatpush1.bf16.msra.mxu0 0
  %3006 = vmatprep.subr.bf16.mxu0 0
  %3007 = vmatpush1.bf16.msra.mxu0 0
  %3008 = vmatprep.subr.bf16.mxu0 0
  %3009 = vmatpush1.bf16.msra.mxu0 0
  %3010 = vmatprep.subr.bf16.mxu0 0
  %3011 = vmatpush1.bf16.msra.mxu0 0
  %3012 = vmatprep.subr.bf16.mxu0 0
  %3013 = vmatpush1.bf16.msra.mxu0 0
  %3014 = vmatprep.subr.bf16.mxu0 0
  %3015 = vmatpush1.bf16.msra.mxu0 0
  %3016 = vmatprep.subr.bf16.mxu0 0
  %3017 = vmatpush1.bf16.msra.mxu0 0
  %3018 = vmatprep.subr.bf16.mxu0 0
  %3019 = vmatpush1.bf16.msra.mxu0 0
  %3020 = vmatprep.mubr.bf16.mxu0 0
  %3021 = vmatmul.mubr.bf16.gmra.mrb[0].mxu0 %v2986
  %v3022 = vpop.f32.mrb[0].mxu0
  %v3023 = vadd.f32 0.0, %v3022
  %v3024 = vpop.f32.mrb[0].mxu0
  %v3025 = vadd.f32 0.0, %v3024
  %v3026 = vpop.f32.mrb[0].mxu0
  %v3027 = vpop.f32.mrb[0].mxu0
  %3028 = vdwg.mxu0
  %3029 = vmatprep.subr.bf16.mxu0 %v2860
  %3030 = vmatpush1.bf16.msra.mxu0 %v2859
  %3031 = vmatprep.subr.bf16.mxu0 %v2892
  %3032 = vmatpush1.bf16.msra.mxu0 %v2891
  %3033 = vmatprep.subr.bf16.mxu0 0
  %3034 = vmatpush1.bf16.msra.mxu0 0
  %3035 = vmatprep.subr.bf16.mxu0 0
  %3036 = vmatpush1.bf16.msra.mxu0 0
  %3037 = vmatprep.subr.bf16.mxu0 0
  %3038 = vmatpush1.bf16.msra.mxu0 0
  %3039 = vmatprep.subr.bf16.mxu0 0
  %3040 = vmatpush1.bf16.msra.mxu0 0
  %3041 = vmatprep.subr.bf16.mxu0 0
  %3042 = vmatpush1.bf16.msra.mxu0 0
  %3043 = vmatprep.subr.bf16.mxu0 0
  %3044 = vmatpush1.bf16.msra.mxu0 0
  %3045 = vmatprep.subr.bf16.mxu0 0
  %3046 = vmatpush1.bf16.msra.mxu0 0
  %3047 = vmatprep.subr.bf16.mxu0 0
  %3048 = vmatpush1.bf16.msra.mxu0 0
  %3049 = vmatprep.subr.bf16.mxu0 0
  %3050 = vmatpush1.bf16.msra.mxu0 0
  %3051 = vmatprep.subr.bf16.mxu0 0
  %3052 = vmatpush1.bf16.msra.mxu0 0
  %3053 = vmatprep.subr.bf16.mxu0 0
  %3054 = vmatpush1.bf16.msra.mxu0 0
  %3055 = vmatprep.subr.bf16.mxu0 0
  %3056 = vmatpush1.bf16.msra.mxu0 0
  %3057 = vmatprep.subr.bf16.mxu0 0
  %3058 = vmatpush1.bf16.msra.mxu0 0
  %3059 = vmatprep.subr.bf16.mxu0 0
  %3060 = vmatpush1.bf16.msra.mxu0 0
  %3061 = vmatprep.mubr.bf16.mxu0 0
  %3062 = vmatmul.mubr.bf16.gmra.mrb[0].mxu0 %v2986
  %v3063 = vpop.f32.mrb[0].mxu0
  %v3064 = vadd.f32 0.0, %v3063
  %v3065 = vpop.f32.mrb[0].mxu0
  %v3066 = vadd.f32 0.0, %v3065
  %v3067 = vpop.f32.mrb[0].mxu0
  %v3068 = vpop.f32.mrb[0].mxu0
  %3069 = vdwg.mxu0
  %3070 = vmatprep.subr.bf16.mxu0 %v2862
  %3071 = vmatpush1.bf16.msra.mxu0 %v2861
  %3072 = vmatprep.subr.bf16.mxu0 %v2894
  %3073 = vmatpush1.bf16.msra.mxu0 %v2893
  %3074 = vmatprep.subr.bf16.mxu0 0
  %3075 = vmatpush1.bf16.msra.mxu0 0
  %3076 = vmatprep.subr.bf16.mxu0 0
  %3077 = vmatpush1.bf16.msra.mxu0 0
  %3078 = vmatprep.subr.bf16.mxu0 0
  %3079 = vmatpush1.bf16.msra.mxu0 0
  %3080 = vmatprep.subr.bf16.mxu0 0
  %3081 = vmatpush1.bf16.msra.mxu0 0
  %3082 = vmatprep.subr.bf16.mxu0 0
  %3083 = vmatpush1.bf16.msra.mxu0 0
  %3084 = vmatprep.subr.bf16.mxu0 0
  %3085 = vmatpush1.bf16.msra.mxu0 0
  %3086 = vmatprep.subr.bf16.mxu0 0
  %3087 = vmatpush1.bf16.msra.mxu0 0
  %3088 = vmatprep.subr.bf16.mxu0 0
  %3089 = vmatpush1.bf16.msra.mxu0 0
  %3090 = vmatprep.subr.bf16.mxu0 0
  %3091 = vmatpush1.bf16.msra.mxu0 0
  %3092 = vmatprep.subr.bf16.mxu0 0
  %3093 = vmatpush1.bf16.msra.mxu0 0
  %3094 = vmatprep.subr.bf16.mxu0 0
  %3095 = vmatpush1.bf16.msra.mxu0 0
  %3096 = vmatprep.subr.bf16.mxu0 0
  %3097 = vmatpush1.bf16.msra.mxu0 0
  %3098 = vmatprep.subr.bf16.mxu0 0
  %3099 = vmatpush1.bf16.msra.mxu0 0
  %3100 = vmatprep.subr.bf16.mxu0 0
  %3101 = vmatpush1.bf16.msra.mxu0 0
  %3102 = vmatprep.mubr.bf16.mxu0 0
  %3103 = vmatmul.mubr.bf16.gmra.mrb[0].mxu0 %v2986
  %v3104 = vpop.f32.mrb[0].mxu0
  %v3105 = vadd.f32 0.0, %v3104
  %v3106 = vpop.f32.mrb[0].mxu0
  %v3107 = vadd.f32 0.0, %v3106
  %v3108 = vpop.f32.mrb[0].mxu0
  %v3109 = vpop.f32.mrb[0].mxu0
  %3110 = vdwg.mxu0
  %3111 = vmatprep.subr.bf16.mxu0 %v2864
  %3112 = vmatpush1.bf16.msra.mxu0 %v2863
  %3113 = vmatprep.subr.bf16.mxu0 %v2896
  %3114 = vmatpush1.bf16.msra.mxu0 %v2895
  %3115 = vmatprep.subr.bf16.mxu0 0
  %3116 = vmatpush1.bf16.msra.mxu0 0
  %3117 = vmatprep.subr.bf16.mxu0 0
  %3118 = vmatpush1.bf16.msra.mxu0 0
  %3119 = vmatprep.subr.bf16.mxu0 0
  %3120 = vmatpush1.bf16.msra.mxu0 0
  %3121 = vmatprep.subr.bf16.mxu0 0
  %3122 = vmatpush1.bf16.msra.mxu0 0
  %3123 = vmatprep.subr.bf16.mxu0 0
  %3124 = vmatpush1.bf16.msra.mxu0 0
  %3125 = vmatprep.subr.bf16.mxu0 0
  %3126 = vmatpush1.bf16.msra.mxu0 0
  %3127 = vmatprep.subr.bf16.mxu0 0
  %3128 = vmatpush1.bf16.msra.mxu0 0
  %3129 = vmatprep.subr.bf16.mxu0 0
  %3130 = vmatpush1.bf16.msra.mxu0 0
  %3131 = vmatprep.subr.bf16.mxu0 0
  %3132 = vmatpush1.bf16.msra.mxu0 0
  %3133 = vmatprep.subr.bf16.mxu0 0
  %3134 = vmatpush1.bf16.msra.mxu0 0
  %3135 = vmatprep.subr.bf16.mxu0 0
  %3136 = vmatpush1.bf16.msra.mxu0 0
  %3137 = vmatprep.subr.bf16.mxu0 0
  %3138 = vmatpush1.bf16.msra.mxu0 0
  %3139 = vmatprep.subr.bf16.mxu0 0
  %3140 = vmatpush1.bf16.msra.mxu0 0
  %3141 = vmatprep.subr.bf16.mxu0 0
  %3142 = vmatpush1.bf16.msra.mxu0 0
  %3143 = vmatprep.mubr.bf16.mxu0 0
  %3144 = vmatmul.mubr.bf16.gmra.mrb[0].mxu0 %v2986
  %v3145 = vpop.f32.mrb[0].mxu0
  %v3146 = vadd.f32 0.0, %v3145
  %v3147 = vpop.f32.mrb[0].mxu0
  %v3148 = vadd.f32 0.0, %v3147
  %v3149 = vpop.f32.mrb[0].mxu0
  %v3150 = vpop.f32.mrb[0].mxu0
  %3151 = vdwg.mxu0
  %3152 = vmatprep.subr.bf16.mxu0 %v2866
  %3153 = vmatpush1.bf16.msra.mxu0 %v2865
  %3154 = vmatprep.subr.bf16.mxu0 %v2898
  %3155 = vmatpush1.bf16.msra.mxu0 %v2897
  %3156 = vmatprep.subr.bf16.mxu0 0
  %3157 = vmatpush1.bf16.msra.mxu0 0
  %3158 = vmatprep.subr.bf16.mxu0 0
  %3159 = vmatpush1.bf16.msra.mxu0 0
  %3160 = vmatprep.subr.bf16.mxu0 0
  %3161 = vmatpush1.bf16.msra.mxu0 0
  %3162 = vmatprep.subr.bf16.mxu0 0
  %3163 = vmatpush1.bf16.msra.mxu0 0
  %3164 = vmatprep.subr.bf16.mxu0 0
  %3165 = vmatpush1.bf16.msra.mxu0 0
  %3166 = vmatprep.subr.bf16.mxu0 0
  %3167 = vmatpush1.bf16.msra.mxu0 0
  %3168 = vmatprep.subr.bf16.mxu0 0
  %3169 = vmatpush1.bf16.msra.mxu0 0
  %3170 = vmatprep.subr.bf16.mxu0 0
  %3171 = vmatpush1.bf16.msra.mxu0 0
  %3172 = vmatprep.subr.bf16.mxu0 0
  %3173 = vmatpush1.bf16.msra.mxu0 0
  %3174 = vmatprep.subr.bf16.mxu0 0
  %3175 = vmatpush1.bf16.msra.mxu0 0
  %3176 = vmatprep.subr.bf16.mxu0 0
  %3177 = vmatpush1.bf16.msra.mxu0 0
  %3178 = vmatprep.subr.bf16.mxu0 0
  %3179 = vmatpush1.bf16.msra.mxu0 0
  %3180 = vmatprep.subr.bf16.mxu0 0
  %3181 = vmatpush1.bf16.msra.mxu0 0
  %3182 = vmatprep.subr.bf16.mxu0 0
  %3183 = vmatpush1.bf16.msra.mxu0 0
  %3184 = vmatprep.mubr.bf16.mxu0 0
  %3185 = vmatmul.mubr.bf16.gmra.mrb[0].mxu0 %v2986
  %v3186 = vpop.f32.mrb[0].mxu0
  %v3187 = vadd.f32 0.0, %v3186
  %v3188 = vpop.f32.mrb[0].mxu0
  %v3189 = vadd.f32 0.0, %v3188
  %v3190 = vpop.f32.mrb[0].mxu0
  %v3191 = vpop.f32.mrb[0].mxu0
  %3192 = vdwg.mxu0
  %3193 = vmatprep.subr.bf16.mxu0 %v2868
  %3194 = vmatpush1.bf16.msra.mxu0 %v2867
  %3195 = vmatprep.subr.bf16.mxu0 %v2900
  %3196 = vmatpush1.bf16.msra.mxu0 %v2899
  %3197 = vmatprep.subr.bf16.mxu0 0
  %3198 = vmatpush1.bf16.msra.mxu0 0
  %3199 = vmatprep.subr.bf16.mxu0 0
  %3200 = vmatpush1.bf16.msra.mxu0 0
  %3201 = vmatprep.subr.bf16.mxu0 0
  %3202 = vmatpush1.bf16.msra.mxu0 0
  %3203 = vmatprep.subr.bf16.mxu0 0
  %3204 = vmatpush1.bf16.msra.mxu0 0
  %3205 = vmatprep.subr.bf16.mxu0 0
  %3206 = vmatpush1.bf16.msra.mxu0 0
  %3207 = vmatprep.subr.bf16.mxu0 0
  %3208 = vmatpush1.bf16.msra.mxu0 0
  %3209 = vmatprep.subr.bf16.mxu0 0
  %3210 = vmatpush1.bf16.msra.mxu0 0
  %3211 = vmatprep.subr.bf16.mxu0 0
  %3212 = vmatpush1.bf16.msra.mxu0 0
  %3213 = vmatprep.subr.bf16.mxu0 0
  %3214 = vmatpush1.bf16.msra.mxu0 0
  %3215 = vmatprep.subr.bf16.mxu0 0
  %3216 = vmatpush1.bf16.msra.mxu0 0
  %3217 = vmatprep.subr.bf16.mxu0 0
  %3218 = vmatpush1.bf16.msra.mxu0 0
  %3219 = vmatprep.subr.bf16.mxu0 0
  %3220 = vmatpush1.bf16.msra.mxu0 0
  %3221 = vmatprep.subr.bf16.mxu0 0
  %3222 = vmatpush1.bf16.msra.mxu0 0
  %3223 = vmatprep.subr.bf16.mxu0 0
  %3224 = vmatpush1.bf16.msra.mxu0 0
  %3225 = vmatprep.mubr.bf16.mxu0 0
  %3226 = vmatmul.mubr.bf16.gmra.mrb[0].mxu0 %v2986
  %v3227 = vpop.f32.mrb[0].mxu0
  %v3228 = vadd.f32 0.0, %v3227
  %v3229 = vpop.f32.mrb[0].mxu0
  %v3230 = vadd.f32 0.0, %v3229
  %v3231 = vpop.f32.mrb[0].mxu0
  %v3232 = vpop.f32.mrb[0].mxu0
  %3233 = vdwg.mxu0
  %3234 = vmatprep.subr.bf16.mxu0 %v2870
  %3235 = vmatpush1.bf16.msra.mxu0 %v2869
  %3236 = vmatprep.subr.bf16.mxu0 %v2902
  %3237 = vmatpush1.bf16.msra.mxu0 %v2901
  %3238 = vmatprep.subr.bf16.mxu0 0
  %3239 = vmatpush1.bf16.msra.mxu0 0
  %3240 = vmatprep.subr.bf16.mxu0 0
  %3241 = vmatpush1.bf16.msra.mxu0 0
  %3242 = vmatprep.subr.bf16.mxu0 0
  %3243 = vmatpush1.bf16.msra.mxu0 0
  %3244 = vmatprep.subr.bf16.mxu0 0
  %3245 = vmatpush1.bf16.msra.mxu0 0
  %3246 = vmatprep.subr.bf16.mxu0 0
  %3247 = vmatpush1.bf16.msra.mxu0 0
  %3248 = vmatprep.subr.bf16.mxu0 0
  %3249 = vmatpush1.bf16.msra.mxu0 0
  %3250 = vmatprep.subr.bf16.mxu0 0
  %3251 = vmatpush1.bf16.msra.mxu0 0
  %3252 = vmatprep.subr.bf16.mxu0 0
  %3253 = vmatpush1.bf16.msra.mxu0 0
  %3254 = vmatprep.subr.bf16.mxu0 0
  %3255 = vmatpush1.bf16.msra.mxu0 0
  %3256 = vmatprep.subr.bf16.mxu0 0
  %3257 = vmatpush1.bf16.msra.mxu0 0
  %3258 = vmatprep.subr.bf16.mxu0 0
  %3259 = vmatpush1.bf16.msra.mxu0 0
  %3260 = vmatprep.subr.bf16.mxu0 0
  %3261 = vmatpush1.bf16.msra.mxu0 0
  %3262 = vmatprep.subr.bf16.mxu0 0
  %3263 = vmatpush1.bf16.msra.mxu0 0
  %3264 = vmatprep.subr.bf16.mxu0 0
  %3265 = vmatpush1.bf16.msra.mxu0 0
  %3266 = vmatprep.mubr.bf16.mxu0 0
  %3267 = vmatmul.mubr.bf16.gmra.mrb[0].mxu0 %v2986
  %v3268 = vpop.f32.mrb[0].mxu0
  %v3269 = vadd.f32 0.0, %v3268
  %v3270 = vpop.f32.mrb[0].mxu0
  %v3271 = vadd.f32 0.0, %v3270
  %v3272 = vpop.f32.mrb[0].mxu0
  %v3273 = vpop.f32.mrb[0].mxu0
  %3274 = vdwg.mxu0
  %3275 = vmatprep.subr.bf16.mxu0 %v2872
  %3276 = vmatpush1.bf16.msra.mxu0 %v2871
  %3277 = vmatprep.subr.bf16.mxu0 %v2904
  %3278 = vmatpush1.bf16.msra.mxu0 %v2903
  %3279 = vmatprep.subr.bf16.mxu0 0
  %3280 = vmatpush1.bf16.msra.mxu0 0
  %3281 = vmatprep.subr.bf16.mxu0 0
  %3282 = vmatpush1.bf16.msra.mxu0 0
  %3283 = vmatprep.subr.bf16.mxu0 0
  %3284 = vmatpush1.bf16.msra.mxu0 0
  %3285 = vmatprep.subr.bf16.mxu0 0
  %3286 = vmatpush1.bf16.msra.mxu0 0
  %3287 = vmatprep.subr.bf16.mxu0 0
  %3288 = vmatpush1.bf16.msra.mxu0 0
  %3289 = vmatprep.subr.bf16.mxu0 0
  %3290 = vmatpush1.bf16.msra.mxu0 0
  %3291 = vmatprep.subr.bf16.mxu0 0
  %3292 = vmatpush1.bf16.msra.mxu0 0
  %3293 = vmatprep.subr.bf16.mxu0 0
  %3294 = vmatpush1.bf16.msra.mxu0 0
  %3295 = vmatprep.subr.bf16.mxu0 0
  %3296 = vmatpush1.bf16.msra.mxu0 0
  %3297 = vmatprep.subr.bf16.mxu0 0
  %3298 = vmatpush1.bf16.msra.mxu0 0
  %3299 = vmatprep.subr.bf16.mxu0 0
  %3300 = vmatpush1.bf16.msra.mxu0 0
  %3301 = vmatprep.subr.bf16.mxu0 0
  %3302 = vmatpush1.bf16.msra.mxu0 0
  %3303 = vmatprep.subr.bf16.mxu0 0
  %3304 = vmatpush1.bf16.msra.mxu0 0
  %3305 = vmatprep.subr.bf16.mxu0 0
  %3306 = vmatpush1.bf16.msra.mxu0 0
  %3307 = vmatprep.mubr.bf16.mxu0 0
  %3308 = vmatmul.mubr.bf16.gmra.mrb[0].mxu0 %v2986
  %v3309 = vpop.f32.mrb[0].mxu0
  %v3310 = vadd.f32 0.0, %v3309
  %v3311 = vpop.f32.mrb[0].mxu0
  %v3312 = vadd.f32 0.0, %v3311
  %v3313 = vpop.f32.mrb[0].mxu0
  %v3314 = vpop.f32.mrb[0].mxu0
  %3315 = vdwg.mxu0
  %3316 = vmatprep.subr.bf16.mxu0 %v2874
  %3317 = vmatpush1.bf16.msra.mxu0 %v2873
  %3318 = vmatprep.subr.bf16.mxu0 %v2906
  %3319 = vmatpush1.bf16.msra.mxu0 %v2905
  %3320 = vmatprep.subr.bf16.mxu0 0
  %3321 = vmatpush1.bf16.msra.mxu0 0
  %3322 = vmatprep.subr.bf16.mxu0 0
  %3323 = vmatpush1.bf16.msra.mxu0 0
  %3324 = vmatprep.subr.bf16.mxu0 0
  %3325 = vmatpush1.bf16.msra.mxu0 0
  %3326 = vmatprep.subr.bf16.mxu0 0
  %3327 = vmatpush1.bf16.msra.mxu0 0
  %3328 = vmatprep.subr.bf16.mxu0 0
  %3329 = vmatpush1.bf16.msra.mxu0 0
  %3330 = vmatprep.subr.bf16.mxu0 0
  %3331 = vmatpush1.bf16.msra.mxu0 0
  %3332 = vmatprep.subr.bf16.mxu0 0
  %3333 = vmatpush1.bf16.msra.mxu0 0
  %3334 = vmatprep.subr.bf16.mxu0 0
  %3335 = vmatpush1.bf16.msra.mxu0 0
  %3336 = vmatprep.subr.bf16.mxu0 0
  %3337 = vmatpush1.bf16.msra.mxu0 0
  %3338 = vmatprep.subr.bf16.mxu0 0
  %3339 = vmatpush1.bf16.msra.mxu0 0
  %3340 = vmatprep.subr.bf16.mxu0 0
  %3341 = vmatpush1.bf16.msra.mxu0 0
  %3342 = vmatprep.subr.bf16.mxu0 0
  %3343 = vmatpush1.bf16.msra.mxu0 0
  %3344 = vmatprep.subr.bf16.mxu0 0
  %3345 = vmatpush1.bf16.msra.mxu0 0
  %3346 = vmatprep.subr.bf16.mxu0 0
  %3347 = vmatpush1.bf16.msra.mxu0 0
  %3348 = vmatprep.mubr.bf16.mxu0 0
  %3349 = vmatmul.mubr.bf16.gmra.mrb[0].mxu0 %v2986
  %v3350 = vpop.f32.mrb[0].mxu0
  %v3351 = vadd.f32 0.0, %v3350
  %v3352 = vpop.f32.mrb[0].mxu0
  %v3353 = vadd.f32 0.0, %v3352
  %v3354 = vpop.f32.mrb[0].mxu0
  %v3355 = vpop.f32.mrb[0].mxu0
  %3356 = vdwg.mxu0
  %3357 = vmatprep.subr.bf16.mxu0 %v2876
  %3358 = vmatpush1.bf16.msra.mxu0 %v2875
  %3359 = vmatprep.subr.bf16.mxu0 %v2908
  %3360 = vmatpush1.bf16.msra.mxu0 %v2907
  %3361 = vmatprep.subr.bf16.mxu0 0
  %3362 = vmatpush1.bf16.msra.mxu0 0
  %3363 = vmatprep.subr.bf16.mxu0 0
  %3364 = vmatpush1.bf16.msra.mxu0 0
  %3365 = vmatprep.subr.bf16.mxu0 0
  %3366 = vmatpush1.bf16.msra.mxu0 0
  %3367 = vmatprep.subr.bf16.mxu0 0
  %3368 = vmatpush1.bf16.msra.mxu0 0
  %3369 = vmatprep.subr.bf16.mxu0 0
  %3370 = vmatpush1.bf16.msra.mxu0 0
  %3371 = vmatprep.subr.bf16.mxu0 0
  %3372 = vmatpush1.bf16.msra.mxu0 0
  %3373 = vmatprep.subr.bf16.mxu0 0
  %3374 = vmatpush1.bf16.msra.mxu0 0
  %3375 = vmatprep.subr.bf16.mxu0 0
  %3376 = vmatpush1.bf16.msra.mxu0 0
  %3377 = vmatprep.subr.bf16.mxu0 0
  %3378 = vmatpush1.bf16.msra.mxu0 0
  %3379 = vmatprep.subr.bf16.mxu0 0
  %3380 = vmatpush1.bf16.msra.mxu0 0
  %3381 = vmatprep.subr.bf16.mxu0 0
  %3382 = vmatpush1.bf16.msra.mxu0 0
  %3383 = vmatprep.subr.bf16.mxu0 0
  %3384 = vmatpush1.bf16.msra.mxu0 0
  %3385 = vmatprep.subr.bf16.mxu0 0
  %3386 = vmatpush1.bf16.msra.mxu0 0
  %3387 = vmatprep.subr.bf16.mxu0 0
  %3388 = vmatpush1.bf16.msra.mxu0 0
  %3389 = vmatprep.mubr.bf16.mxu0 0
  %3390 = vmatmul.mubr.bf16.gmra.mrb[0].mxu0 %v2986
  %v3391 = vpop.f32.mrb[0].mxu0
  %v3392 = vadd.f32 0.0, %v3391
  %v3393 = vpop.f32.mrb[0].mxu0
  %v3394 = vadd.f32 0.0, %v3393
  %v3395 = vpop.f32.mrb[0].mxu0
  %v3396 = vpop.f32.mrb[0].mxu0
  %3397 = vdwg.mxu0
  %3398 = vmatprep.subr.bf16.mxu0 %v2878
  %3399 = vmatpush1.bf16.msra.mxu0 %v2877
  %3400 = vmatprep.subr.bf16.mxu0 %v2910
  %3401 = vmatpush1.bf16.msra.mxu0 %v2909
  %3402 = vmatprep.subr.bf16.mxu0 0
  %3403 = vmatpush1.bf16.msra.mxu0 0
  %3404 = vmatprep.subr.bf16.mxu0 0
  %3405 = vmatpush1.bf16.msra.mxu0 0
  %3406 = vmatprep.subr.bf16.mxu0 0
  %3407 = vmatpush1.bf16.msra.mxu0 0
  %3408 = vmatprep.subr.bf16.mxu0 0
  %3409 = vmatpush1.bf16.msra.mxu0 0
  %3410 = vmatprep.subr.bf16.mxu0 0
  %3411 = vmatpush1.bf16.msra.mxu0 0
  %3412 = vmatprep.subr.bf16.mxu0 0
  %3413 = vmatpush1.bf16.msra.mxu0 0
  %3414 = vmatprep.subr.bf16.mxu0 0
  %3415 = vmatpush1.bf16.msra.mxu0 0
  %3416 = vmatprep.subr.bf16.mxu0 0
  %3417 = vmatpush1.bf16.msra.mxu0 0
  %3418 = vmatprep.subr.bf16.mxu0 0
  %3419 = vmatpush1.bf16.msra.mxu0 0
  %3420 = vmatprep.subr.bf16.mxu0 0
  %3421 = vmatpush1.bf16.msra.mxu0 0
  %3422 = vmatprep.subr.bf16.mxu0 0
  %3423 = vmatpush1.bf16.msra.mxu0 0
  %3424 = vmatprep.subr.bf16.mxu0 0
  %3425 = vmatpush1.bf16.msra.mxu0 0
  %3426 = vmatprep.subr.bf16.mxu0 0
  %3427 = vmatpush1.bf16.msra.mxu0 0
  %3428 = vmatprep.subr.bf16.mxu0 0
  %3429 = vmatpush1.bf16.msra.mxu0 0
  %3430 = vmatprep.mubr.bf16.mxu0 0
  %3431 = vmatmul.mubr.bf16.gmra.mrb[0].mxu0 %v2986
  %v3432 = vpop.f32.mrb[0].mxu0
  %v3433 = vadd.f32 0.0, %v3432
  %v3434 = vpop.f32.mrb[0].mxu0
  %v3435 = vadd.f32 0.0, %v3434
  %v3436 = vpop.f32.mrb[0].mxu0
  %v3437 = vpop.f32.mrb[0].mxu0
  %3438 = vdwg.mxu0
  %3439 = vmatprep.subr.bf16.mxu0 %v2880
  %3440 = vmatpush1.bf16.msra.mxu0 %v2879
  %3441 = vmatprep.subr.bf16.mxu0 %v2912
  %3442 = vmatpush1.bf16.msra.mxu0 %v2911
  %3443 = vmatprep.subr.bf16.mxu0 0
  %3444 = vmatpush1.bf16.msra.mxu0 0
  %3445 = vmatprep.subr.bf16.mxu0 0
  %3446 = vmatpush1.bf16.msra.mxu0 0
  %3447 = vmatprep.subr.bf16.mxu0 0
  %3448 = vmatpush1.bf16.msra.mxu0 0
  %3449 = vmatprep.subr.bf16.mxu0 0
  %3450 = vmatpush1.bf16.msra.mxu0 0
  %3451 = vmatprep.subr.bf16.mxu0 0
  %3452 = vmatpush1.bf16.msra.mxu0 0
  %3453 = vmatprep.subr.bf16.mxu0 0
  %3454 = vmatpush1.bf16.msra.mxu0 0
  %3455 = vmatprep.subr.bf16.mxu0 0
  %3456 = vmatpush1.bf16.msra.mxu0 0
  %3457 = vmatprep.subr.bf16.mxu0 0
  %3458 = vmatpush1.bf16.msra.mxu0 0
  %3459 = vmatprep.subr.bf16.mxu0 0
  %3460 = vmatpush1.bf16.msra.mxu0 0
  %3461 = vmatprep.subr.bf16.mxu0 0
  %3462 = vmatpush1.bf16.msra.mxu0 0
  %3463 = vmatprep.subr.bf16.mxu0 0
  %3464 = vmatpush1.bf16.msra.mxu0 0
  %3465 = vmatprep.subr.bf16.mxu0 0
  %3466 = vmatpush1.bf16.msra.mxu0 0
  %3467 = vmatprep.subr.bf16.mxu0 0
  %3468 = vmatpush1.bf16.msra.mxu0 0
  %3469 = vmatprep.subr.bf16.mxu0 0
  %3470 = vmatpush1.bf16.msra.mxu0 0
  %3471 = vmatprep.mubr.bf16.mxu0 0
  %3472 = vmatmul.mubr.bf16.gmra.mrb[0].mxu0 %v2986
  %v3473 = vpop.f32.mrb[0].mxu0
  %v3474 = vadd.f32 0.0, %v3473
  %v3475 = vpop.f32.mrb[0].mxu0
  %v3476 = vadd.f32 0.0, %v3475
  %v3477 = vpop.f32.mrb[0].mxu0
  %v3478 = vpop.f32.mrb[0].mxu0
  %3479 = vdwg.mxu0
  %3480 = vmatprep.subr.bf16.mxu0 %v2882
  %3481 = vmatpush1.bf16.msra.mxu0 %v2881
  %3482 = vmatprep.subr.bf16.mxu0 %v2914
  %3483 = vmatpush1.bf16.msra.mxu0 %v2913
  %3484 = vmatprep.subr.bf16.mxu0 0
  %3485 = vmatpush1.bf16.msra.mxu0 0
  %3486 = vmatprep.subr.bf16.mxu0 0
  %3487 = vmatpush1.bf16.msra.mxu0 0
  %3488 = vmatprep.subr.bf16.mxu0 0
  %3489 = vmatpush1.bf16.msra.mxu0 0
  %3490 = vmatprep.subr.bf16.mxu0 0
  %3491 = vmatpush1.bf16.msra.mxu0 0
  %3492 = vmatprep.subr.bf16.mxu0 0
  %3493 = vmatpush1.bf16.msra.mxu0 0
  %3494 = vmatprep.subr.bf16.mxu0 0
  %3495 = vmatpush1.bf16.msra.mxu0 0
  %3496 = vmatprep.subr.bf16.mxu0 0
  %3497 = vmatpush1.bf16.msra.mxu0 0
  %3498 = vmatprep.subr.bf16.mxu0 0
  %3499 = vmatpush1.bf16.msra.mxu0 0
  %3500 = vmatprep.subr.bf16.mxu0 0
  %3501 = vmatpush1.bf16.msra.mxu0 0
  %3502 = vmatprep.subr.bf16.mxu0 0
  %3503 = vmatpush1.bf16.msra.mxu0 0
  %3504 = vmatprep.subr.bf16.mxu0 0
  %3505 = vmatpush1.bf16.msra.mxu0 0
  %3506 = vmatprep.subr.bf16.mxu0 0
  %3507 = vmatpush1.bf16.msra.mxu0 0
  %3508 = vmatprep.subr.bf16.mxu0 0
  %3509 = vmatpush1.bf16.msra.mxu0 0
  %3510 = vmatprep.subr.bf16.mxu0 0
  %3511 = vmatpush1.bf16.msra.mxu0 0
  %3512 = vmatprep.mubr.bf16.mxu0 0
  %3513 = vmatmul.mubr.bf16.gmra.mrb[0].mxu0 %v2986
  %v3514 = vpop.f32.mrb[0].mxu0
  %v3515 = vadd.f32 0.0, %v3514
  %v3516 = vpop.f32.mrb[0].mxu0
  %v3517 = vadd.f32 0.0, %v3516
  %v3518 = vpop.f32.mrb[0].mxu0
  %v3519 = vpop.f32.mrb[0].mxu0
  %3520 = vdwg.mxu0
  %3521 = vmatprep.subr.bf16.mxu0 %v2884
  %3522 = vmatpush1.bf16.msra.mxu0 %v2883
  %3523 = vmatprep.subr.bf16.mxu0 %v2916
  %3524 = vmatpush1.bf16.msra.mxu0 %v2915
  %3525 = vmatprep.subr.bf16.mxu0 0
  %3526 = vmatpush1.bf16.msra.mxu0 0
  %3527 = vmatprep.subr.bf16.mxu0 0
  %3528 = vmatpush1.bf16.msra.mxu0 0
  %3529 = vmatprep.subr.bf16.mxu0 0
  %3530 = vmatpush1.bf16.msra.mxu0 0
  %3531 = vmatprep.subr.bf16.mxu0 0
  %3532 = vmatpush1.bf16.msra.mxu0 0
  %3533 = vmatprep.subr.bf16.mxu0 0
  %3534 = vmatpush1.bf16.msra.mxu0 0
  %3535 = vmatprep.subr.bf16.mxu0 0
  %3536 = vmatpush1.bf16.msra.mxu0 0
  %3537 = vmatprep.subr.bf16.mxu0 0
  %3538 = vmatpush1.bf16.msra.mxu0 0
  %3539 = vmatprep.subr.bf16.mxu0 0
  %3540 = vmatpush1.bf16.msra.mxu0 0
  %3541 = vmatprep.subr.bf16.mxu0 0
  %3542 = vmatpush1.bf16.msra.mxu0 0
  %3543 = vmatprep.subr.bf16.mxu0 0
  %3544 = vmatpush1.bf16.msra.mxu0 0
  %3545 = vmatprep.subr.bf16.mxu0 0
  %3546 = vmatpush1.bf16.msra.mxu0 0
  %3547 = vmatprep.subr.bf16.mxu0 0
  %3548 = vmatpush1.bf16.msra.mxu0 0
  %3549 = vmatprep.subr.bf16.mxu0 0
  %3550 = vmatpush1.bf16.msra.mxu0 0
  %3551 = vmatprep.subr.bf16.mxu0 0
  %3552 = vmatpush1.bf16.msra.mxu0 0
  %3553 = vmatprep.mubr.bf16.mxu0 0
  %3554 = vmatmul.mubr.bf16.gmra.mrb[0].mxu0 %v2986
  %v3555 = vpop.f32.mrb[0].mxu0
  %v3556 = vadd.f32 0.0, %v3555
  %v3557 = vpop.f32.mrb[0].mxu0
  %v3558 = vadd.f32 0.0, %v3557
  %v3559 = vpop.f32.mrb[0].mxu0
  %v3560 = vpop.f32.mrb[0].mxu0
  %3561 = vdwg.mxu0
  %3562 = vmatprep.subr.bf16.mxu0 %v2886
  %3563 = vmatpush1.bf16.msra.mxu0 %v2885
  %3564 = vmatprep.subr.bf16.mxu0 %v2918
  %3565 = vmatpush1.bf16.msra.mxu0 %v2917
  %3566 = vmatprep.subr.bf16.mxu0 0
  %3567 = vmatpush1.bf16.msra.mxu0 0
  %3568 = vmatprep.subr.bf16.mxu0 0
  %3569 = vmatpush1.bf16.msra.mxu0 0
  %3570 = vmatprep.subr.bf16.mxu0 0
  %3571 = vmatpush1.bf16.msra.mxu0 0
  %3572 = vmatprep.subr.bf16.mxu0 0
  %3573 = vmatpush1.bf16.msra.mxu0 0
  %3574 = vmatprep.subr.bf16.mxu0 0
  %3575 = vmatpush1.bf16.msra.mxu0 0
  %3576 = vmatprep.subr.bf16.mxu0 0
  %3577 = vmatpush1.bf16.msra.mxu0 0
  %3578 = vmatprep.subr.bf16.mxu0 0
  %3579 = vmatpush1.bf16.msra.mxu0 0
  %3580 = vmatprep.subr.bf16.mxu0 0
  %3581 = vmatpush1.bf16.msra.mxu0 0
  %3582 = vmatprep.subr.bf16.mxu0 0
  %3583 = vmatpush1.bf16.msra.mxu0 0
  %3584 = vmatprep.subr.bf16.mxu0 0
  %3585 = vmatpush1.bf16.msra.mxu0 0
  %3586 = vmatprep.subr.bf16.mxu0 0
  %3587 = vmatpush1.bf16.msra.mxu0 0
  %3588 = vmatprep.subr.bf16.mxu0 0
  %3589 = vmatpush1.bf16.msra.mxu0 0
  %3590 = vmatprep.subr.bf16.mxu0 0
  %3591 = vmatpush1.bf16.msra.mxu0 0
  %3592 = vmatprep.subr.bf16.mxu0 0
  %3593 = vmatpush1.bf16.msra.mxu0 0
  %3594 = vmatprep.mubr.bf16.mxu0 0
  %3595 = vmatmul.mubr.bf16.gmra.mrb[0].mxu0 %v2986
  %v3596 = vpop.f32.mrb[0].mxu0
  %v3597 = vadd.f32 0.0, %v3596
  %v3598 = vpop.f32.mrb[0].mxu0
  %v3599 = vadd.f32 0.0, %v3598
  %v3600 = vpop.f32.mrb[0].mxu0
  %v3601 = vpop.f32.mrb[0].mxu0
  %3602 = vdwg.mxu0
  %3603 = vmatprep.subr.bf16.mxu0 %v2888
  %3604 = vmatpush1.bf16.msra.mxu0 %v2887
  %3605 = vmatprep.subr.bf16.mxu0 %v2920
  %3606 = vmatpush1.bf16.msra.mxu0 %v2919
  %3607 = vmatprep.subr.bf16.mxu0 0
  %3608 = vmatpush1.bf16.msra.mxu0 0
  %3609 = vmatprep.subr.bf16.mxu0 0
  %3610 = vmatpush1.bf16.msra.mxu0 0
  %3611 = vmatprep.subr.bf16.mxu0 0
  %3612 = vmatpush1.bf16.msra.mxu0 0
  %3613 = vmatprep.subr.bf16.mxu0 0
  %3614 = vmatpush1.bf16.msra.mxu0 0
  %3615 = vmatprep.subr.bf16.mxu0 0
  %3616 = vmatpush1.bf16.msra.mxu0 0
  %3617 = vmatprep.subr.bf16.mxu0 0
  %3618 = vmatpush1.bf16.msra.mxu0 0
  %3619 = vmatprep.subr.bf16.mxu0 0
  %3620 = vmatpush1.bf16.msra.mxu0 0
  %3621 = vmatprep.subr.bf16.mxu0 0
  %3622 = vmatpush1.bf16.msra.mxu0 0
  %3623 = vmatprep.subr.bf16.mxu0 0
  %3624 = vmatpush1.bf16.msra.mxu0 0
  %3625 = vmatprep.subr.bf16.mxu0 0
  %3626 = vmatpush1.bf16.msra.mxu0 0
  %3627 = vmatprep.subr.bf16.mxu0 0
  %3628 = vmatpush1.bf16.msra.mxu0 0
  %3629 = vmatprep.subr.bf16.mxu0 0
  %3630 = vmatpush1.bf16.msra.mxu0 0
  %3631 = vmatprep.subr.bf16.mxu0 0
  %3632 = vmatpush1.bf16.msra.mxu0 0
  %3633 = vmatprep.subr.bf16.mxu0 0
  %3634 = vmatpush1.bf16.msra.mxu0 0
  %3635 = vmatprep.mubr.bf16.mxu0 0
  %3636 = vmatmul.mubr.bf16.gmra.mrb[0].mxu0 %v2986
  %v3637 = vpop.f32.mrb[0].mxu0
  %v3638 = vadd.f32 0.0, %v3637
  %v3639 = vpop.f32.mrb[0].mxu0
  %v3640 = vadd.f32 0.0, %v3639
  %v3641 = vpop.f32.mrb[0].mxu0
  %v3642 = vpop.f32.mrb[0].mxu0
  %3643 = vdwg.mxu0
  %v3644 = vsel %vm1063, %v3023, 0.0
  %v3645 = vsel %vm1063, %v3025, 0.0
  %v3646 = vadd.f32 %v3644, %v3645
  %v3647 = vsel %vm1063, %v3064, 0.0
  %v3648 = vadd.f32 %v3646, %v3647
  %v3649 = vsel %vm1063, %v3066, 0.0
  %v3650 = vadd.f32 %v3648, %v3649
  %v3651 = vsel %vm1063, %v3105, 0.0
  %v3652 = vadd.f32 %v3650, %v3651
  %v3653 = vsel %vm1063, %v3107, 0.0
  %v3654 = vadd.f32 %v3652, %v3653
  %v3655 = vsel %vm1063, %v3146, 0.0
  %v3656 = vadd.f32 %v3654, %v3655
  %v3657 = vsel %vm1063, %v3148, 0.0
  %v3658 = vadd.f32 %v3656, %v3657
  %v3659 = vsel %vm1063, %v3187, 0.0
  %v3660 = vadd.f32 %v3658, %v3659
  %v3661 = vsel %vm1063, %v3189, 0.0
  %v3662 = vadd.f32 %v3660, %v3661
  %v3663 = vsel %vm1063, %v3228, 0.0
  %v3664 = vadd.f32 %v3662, %v3663
  %v3665 = vsel %vm1063, %v3230, 0.0
  %v3666 = vadd.f32 %v3664, %v3665
  %v3667 = vsel %vm1063, %v3269, 0.0
  %v3668 = vadd.f32 %v3666, %v3667
  %v3669 = vsel %vm1063, %v3271, 0.0
  %v3670 = vadd.f32 %v3668, %v3669
  %v3671 = vsel %vm1063, %v3310, 0.0
  %v3672 = vadd.f32 %v3670, %v3671
  %v3673 = vsel %vm1063, %v3312, 0.0
  %v3674 = vadd.f32 %v3672, %v3673
  %v3675 = vsel %vm1063, %v3351, 0.0
  %v3676 = vadd.f32 %v3674, %v3675
  %v3677 = vsel %vm1063, %v3353, 0.0
  %v3678 = vadd.f32 %v3676, %v3677
  %v3679 = vsel %vm1063, %v3392, 0.0
  %v3680 = vadd.f32 %v3678, %v3679
  %v3681 = vsel %vm1063, %v3394, 0.0
  %v3682 = vadd.f32 %v3680, %v3681
  %v3683 = vsel %vm1063, %v3433, 0.0
  %v3684 = vadd.f32 %v3682, %v3683
  %v3685 = vsel %vm1063, %v3435, 0.0
  %v3686 = vadd.f32 %v3684, %v3685
  %v3687 = vsel %vm1063, %v3474, 0.0
  %v3688 = vadd.f32 %v3686, %v3687
  %v3689 = vsel %vm1063, %v3476, 0.0
  %v3690 = vadd.f32 %v3688, %v3689
  %v3691 = vsel %vm1063, %v3515, 0.0
  %v3692 = vadd.f32 %v3690, %v3691
  %v3693 = vsel %vm1063, %v3517, 0.0
  %v3694 = vadd.f32 %v3692, %v3693
  %v3695 = vsel %vm1063, %v3556, 0.0
  %v3696 = vadd.f32 %v3694, %v3695
  %v3697 = vsel %vm1063, %v3558, 0.0
  %v3698 = vadd.f32 %v3696, %v3697
  %v3699 = vsel %vm1063, %v3597, 0.0
  %v3700 = vadd.f32 %v3698, %v3699
  %v3701 = vsel %vm1063, %v3599, 0.0
  %v3702 = vadd.f32 %v3700, %v3701
  %v3703 = vsel %vm1063, %v3638, 0.0
  %v3704 = vadd.f32 %v3702, %v3703
  %v3705 = vsel %vm1063, %v3640, 0.0
  %v3706 = vadd.f32 %v3704, %v3705
  %3707 = vadd.xlane.f32.xlu0 %v3706
  %v3708 = vpop.xlane.xlu0 %3707
  %v3709 = vadd.f32 %v2419, %v3708
  %v3710 = vmul.f32 %v3023, %v3023
  %v3711 = vmul.f32 %v3025, %v3025
  %v3712 = vmul.f32 %v3064, %v3064
  %v3713 = vmul.f32 %v3066, %v3066
  %v3714 = vmul.f32 %v3105, %v3105
  %v3715 = vmul.f32 %v3107, %v3107
  %v3716 = vmul.f32 %v3146, %v3146
  %v3717 = vmul.f32 %v3148, %v3148
  %v3718 = vmul.f32 %v3187, %v3187
  %v3719 = vmul.f32 %v3189, %v3189
  %v3720 = vmul.f32 %v3228, %v3228
  %v3721 = vmul.f32 %v3230, %v3230
  %v3722 = vmul.f32 %v3269, %v3269
  %v3723 = vmul.f32 %v3271, %v3271
  %v3724 = vmul.f32 %v3310, %v3310
  %v3725 = vmul.f32 %v3312, %v3312
  %v3726 = vmul.f32 %v3351, %v3351
  %v3727 = vmul.f32 %v3353, %v3353
  %v3728 = vmul.f32 %v3392, %v3392
  %v3729 = vmul.f32 %v3394, %v3394
  %v3730 = vmul.f32 %v3433, %v3433
  %v3731 = vmul.f32 %v3435, %v3435
  %v3732 = vmul.f32 %v3474, %v3474
  %v3733 = vmul.f32 %v3476, %v3476
  %v3734 = vmul.f32 %v3515, %v3515
  %v3735 = vmul.f32 %v3517, %v3517
  %v3736 = vmul.f32 %v3556, %v3556
  %v3737 = vmul.f32 %v3558, %v3558
  %v3738 = vmul.f32 %v3597, %v3597
  %v3739 = vmul.f32 %v3599, %v3599
  %v3740 = vmul.f32 %v3638, %v3638
  %v3741 = vmul.f32 %v3640, %v3640
  %v3742 = vsel %vm1063, %v3710, 0.0
  %v3743 = vsel %vm1063, %v3711, 0.0
  %v3744 = vadd.f32 %v3742, %v3743
  %v3745 = vsel %vm1063, %v3712, 0.0
  %v3746 = vadd.f32 %v3744, %v3745
  %v3747 = vsel %vm1063, %v3713, 0.0
  %v3748 = vadd.f32 %v3746, %v3747
  %v3749 = vsel %vm1063, %v3714, 0.0
  %v3750 = vadd.f32 %v3748, %v3749
  %v3751 = vsel %vm1063, %v3715, 0.0
  %v3752 = vadd.f32 %v3750, %v3751
  %v3753 = vsel %vm1063, %v3716, 0.0
  %v3754 = vadd.f32 %v3752, %v3753
  %v3755 = vsel %vm1063, %v3717, 0.0
  %v3756 = vadd.f32 %v3754, %v3755
  %v3757 = vsel %vm1063, %v3718, 0.0
  %v3758 = vadd.f32 %v3756, %v3757
  %v3759 = vsel %vm1063, %v3719, 0.0
  %v3760 = vadd.f32 %v3758, %v3759
  %v3761 = vsel %vm1063, %v3720, 0.0
  %v3762 = vadd.f32 %v3760, %v3761
  %v3763 = vsel %vm1063, %v3721, 0.0
  %v3764 = vadd.f32 %v3762, %v3763
  %v3765 = vsel %vm1063, %v3722, 0.0
  %v3766 = vadd.f32 %v3764, %v3765
  %v3767 = vsel %vm1063, %v3723, 0.0
  %v3768 = vadd.f32 %v3766, %v3767
  %v3769 = vsel %vm1063, %v3724, 0.0
  %v3770 = vadd.f32 %v3768, %v3769
  %v3771 = vsel %vm1063, %v3725, 0.0
  %v3772 = vadd.f32 %v3770, %v3771
  %v3773 = vsel %vm1063, %v3726, 0.0
  %v3774 = vadd.f32 %v3772, %v3773
  %v3775 = vsel %vm1063, %v3727, 0.0
  %v3776 = vadd.f32 %v3774, %v3775
  %v3777 = vsel %vm1063, %v3728, 0.0
  %v3778 = vadd.f32 %v3776, %v3777
  %v3779 = vsel %vm1063, %v3729, 0.0
  %v3780 = vadd.f32 %v3778, %v3779
  %v3781 = vsel %vm1063, %v3730, 0.0
  %v3782 = vadd.f32 %v3780, %v3781
  %v3783 = vsel %vm1063, %v3731, 0.0
  %v3784 = vadd.f32 %v3782, %v3783
  %v3785 = vsel %vm1063, %v3732, 0.0
  %v3786 = vadd.f32 %v3784, %v3785
  %v3787 = vsel %vm1063, %v3733, 0.0
  %v3788 = vadd.f32 %v3786, %v3787
  %v3789 = vsel %vm1063, %v3734, 0.0
  %v3790 = vadd.f32 %v3788, %v3789
  %v3791 = vsel %vm1063, %v3735, 0.0
  %v3792 = vadd.f32 %v3790, %v3791
  %v3793 = vsel %vm1063, %v3736, 0.0
  %v3794 = vadd.f32 %v3792, %v3793
  %v3795 = vsel %vm1063, %v3737, 0.0
  %v3796 = vadd.f32 %v3794, %v3795
  %v3797 = vsel %vm1063, %v3738, 0.0
  %v3798 = vadd.f32 %v3796, %v3797
  %v3799 = vsel %vm1063, %v3739, 0.0
  %v3800 = vadd.f32 %v3798, %v3799
  %v3801 = vsel %vm1063, %v3740, 0.0
  %v3802 = vadd.f32 %v3800, %v3801
  %v3803 = vsel %vm1063, %v3741, 0.0
  %v3804 = vadd.f32 %v3802, %v3803
  %3805 = vadd.xlane.f32.xlu0 %v3804
  %v3806 = vpop.xlane.xlu0 %3805
  %v3807 = vadd.f32 %v2517, %v3806
  %v3840 = vcombine.low %v3023, %v3025
  %v3841 = vcombine.low %v3064, %v3066
  %v3842 = vcombine.low %v3105, %v3107
  %v3843 = vcombine.low %v3146, %v3148
  %v3844 = vcombine.low %v3187, %v3189
  %v3845 = vcombine.low %v3228, %v3230
  %v3846 = vcombine.low %v3269, %v3271
  %v3847 = vcombine.low %v3310, %v3312
  %v3848 = vcombine.low %v3351, %v3353
  %v3849 = vcombine.low %v3392, %v3394
  %v3850 = vcombine.low %v3433, %v3435
  %v3851 = vcombine.low %v3474, %v3476
  %v3852 = vcombine.low %v3515, %v3517
  %v3853 = vcombine.low %v3556, %v3558
  %v3854 = vcombine.low %v3597, %v3599
  %v3855 = vcombine.low %v3638, %v3640
  %3872 = vst [vmem:[%s4 + $0x100] sm:$0x77] %v3840
  %3873 = vst [vmem:[%s4 + $0x108] sm:$0x77] %v3841
  %3874 = vst [vmem:[%s4 + $0x110] sm:$0x77] %v3842
  %3875 = vst [vmem:[%s4 + $0x118] sm:$0x77] %v3843
  %3876 = vst [vmem:[%s4 + $0x120] sm:$0x77] %v3844
  %3877 = vst [vmem:[%s4 + $0x128] sm:$0x77] %v3845
  %3878 = vst [vmem:[%s4 + $0x130] sm:$0x77] %v3846
  %3879 = vst [vmem:[%s4 + $0x138] sm:$0x77] %v3847
  %3880 = vst [vmem:[%s4 + $0x140] sm:$0x77] %v3848
  %3881 = vst [vmem:[%s4 + $0x148] sm:$0x77] %v3849
  %3882 = vst [vmem:[%s4 + $0x150] sm:$0x77] %v3850
  %3883 = vst [vmem:[%s4 + $0x158] sm:$0x77] %v3851
  %3884 = vst [vmem:[%s4 + $0x160] sm:$0x77] %v3852
  %3885 = vst [vmem:[%s4 + $0x168] sm:$0x77] %v3853
  %3886 = vst [vmem:[%s4 + $0x170] sm:$0x77] %v3854
  %3887 = vst [vmem:[%s4 + $0x178] sm:$0x77] %v3855
  %s3888 = scalar_lea.vmem %s0, 6
  %v3889 = vld [vmem:[%s3888] sm:$0x3]
  %s3890 = scalar_lea.vmem %s1, 1536
  %v3891 = vld [vmem:[%s3890] sm:$0xff]
  %v3892 = vld [vmem:[%s3890 + $0x8] sm:$0xff]
  %v3893 = vld [vmem:[%s3890 + $0x10] sm:$0xff]
  %v3894 = vld [vmem:[%s3890 + $0x18] sm:$0xff]
  %v3895 = vld [vmem:[%s3890 + $0x20] sm:$0xff]
  %v3896 = vld [vmem:[%s3890 + $0x28] sm:$0xff]
  %v3897 = vld [vmem:[%s3890 + $0x30] sm:$0xff]
  %v3898 = vld [vmem:[%s3890 + $0x38] sm:$0xff]
  %v3899 = vld [vmem:[%s3890 + $0x40] sm:$0xff]
  %v3900 = vld [vmem:[%s3890 + $0x48] sm:$0xff]
  %v3901 = vld [vmem:[%s3890 + $0x50] sm:$0xff]
  %v3902 = vld [vmem:[%s3890 + $0x58] sm:$0xff]
  %v3903 = vld [vmem:[%s3890 + $0x60] sm:$0xff]
  %v3904 = vld [vmem:[%s3890 + $0x68] sm:$0xff]
  %v3905 = vld [vmem:[%s3890 + $0x70] sm:$0xff]
  %v3906 = vld [vmem:[%s3890 + $0x78] sm:$0xff]
  %v3907 = vld [vmem:[%s3890 + $0x80] sm:$0xff]
  %v3908 = vld [vmem:[%s3890 + $0x88] sm:$0xff]
  %v3909 = vld [vmem:[%s3890 + $0x90] sm:$0xff]
  %v3910 = vld [vmem:[%s3890 + $0x98] sm:$0xff]
  %v3911 = vld [vmem:[%s3890 + $0xa0] sm:$0xff]
  %v3912 = vld [vmem:[%s3890 + $0xa8] sm:$0xff]
  %v3913 = vld [vmem:[%s3890 + $0xb0] sm:$0xff]
  %v3914 = vld [vmem:[%s3890 + $0xb8] sm:$0xff]
  %v3915 = vld [vmem:[%s3890 + $0xc0] sm:$0xff]
  %v3916 = vld [vmem:[%s3890 + $0xc8] sm:$0xff]
  %v3917 = vld [vmem:[%s3890 + $0xd0] sm:$0xff]
  %v3918 = vld [vmem:[%s3890 + $0xd8] sm:$0xff]
  %v3919 = vld [vmem:[%s3890 + $0xe0] sm:$0xff]
  %v3920 = vld [vmem:[%s3890 + $0xe8] sm:$0xff]
  %v3921 = vld [vmem:[%s3890 + $0xf0] sm:$0xff]
  %v3922 = vld [vmem:[%s3890 + $0xf8] sm:$0xff]
  %v3923 = vld [vmem:[%s3890 + $0x100] sm:$0xff]
  %v3924 = vld [vmem:[%s3890 + $0x108] sm:$0xff]
  %v3925 = vld [vmem:[%s3890 + $0x110] sm:$0xff]
  %v3926 = vld [vmem:[%s3890 + $0x118] sm:$0xff]
  %v3927 = vld [vmem:[%s3890 + $0x120] sm:$0xff]
  %v3928 = vld [vmem:[%s3890 + $0x128] sm:$0xff]
  %v3929 = vld [vmem:[%s3890 + $0x130] sm:$0xff]
  %v3930 = vld [vmem:[%s3890 + $0x138] sm:$0xff]
  %v3931 = vld [vmem:[%s3890 + $0x140] sm:$0xff]
  %v3932 = vld [vmem:[%s3890 + $0x148] sm:$0xff]
  %v3933 = vld [vmem:[%s3890 + $0x150] sm:$0xff]
  %v3934 = vld [vmem:[%s3890 + $0x158] sm:$0xff]
  %v3935 = vld [vmem:[%s3890 + $0x160] sm:$0xff]
  %v3936 = vld [vmem:[%s3890 + $0x168] sm:$0xff]
  %v3937 = vld [vmem:[%s3890 + $0x170] sm:$0xff]
  %v3938 = vld [vmem:[%s3890 + $0x178] sm:$0xff]
  %v3939 = vld [vmem:[%s3890 + $0x180] sm:$0xff]
  %v3940 = vld [vmem:[%s3890 + $0x188] sm:$0xff]
  %v3941 = vld [vmem:[%s3890 + $0x190] sm:$0xff]
  %v3942 = vld [vmem:[%s3890 + $0x198] sm:$0xff]
  %v3943 = vld [vmem:[%s3890 + $0x1a0] sm:$0xff]
  %v3944 = vld [vmem:[%s3890 + $0x1a8] sm:$0xff]
  %v3945 = vld [vmem:[%s3890 + $0x1b0] sm:$0xff]
  %v3946 = vld [vmem:[%s3890 + $0x1b8] sm:$0xff]
  %v3947 = vld [vmem:[%s3890 + $0x1c0] sm:$0xff]
  %v3948 = vld [vmem:[%s3890 + $0x1c8] sm:$0xff]
  %v3949 = vld [vmem:[%s3890 + $0x1d0] sm:$0xff]
  %v3950 = vld [vmem:[%s3890 + $0x1d8] sm:$0xff]
  %v3951 = vld [vmem:[%s3890 + $0x1e0] sm:$0xff]
  %v3952 = vld [vmem:[%s3890 + $0x1e8] sm:$0xff]
  %v3953 = vld [vmem:[%s3890 + $0x1f0] sm:$0xff]
  %v3954 = vld [vmem:[%s3890 + $0x1f8] sm:$0xff]
  %v4019 = vunpack.c.l.b16 %v3891
  %v4020 = vunpack.c.h.b16 %v3891
  %v4021 = vunpack.c.l.b16 %v3892
  %v4022 = vunpack.c.h.b16 %v3892
  %v4023 = vunpack.c.l.b16 %v3893
  %v4024 = vunpack.c.h.b16 %v3893
  %v4025 = vunpack.c.l.b16 %v3894
  %v4026 = vunpack.c.h.b16 %v3894
  %v4027 = vunpack.c.l.b16 %v3895
  %v4028 = vunpack.c.h.b16 %v3895
  %v4029 = vunpack.c.l.b16 %v3896
  %v4030 = vunpack.c.h.b16 %v3896
  %v4031 = vunpack.c.l.b16 %v3897
  %v4032 = vunpack.c.h.b16 %v3897
  %v4033 = vunpack.c.l.b16 %v3898
  %v4034 = vunpack.c.h.b16 %v3898
  %v4035 = vunpack.c.l.b16 %v3899
  %v4036 = vunpack.c.h.b16 %v3899
  %v4037 = vunpack.c.l.b16 %v3900
  %v4038 = vunpack.c.h.b16 %v3900
  %v4039 = vunpack.c.l.b16 %v3901
  %v4040 = vunpack.c.h.b16 %v3901
  %v4041 = vunpack.c.l.b16 %v3902
  %v4042 = vunpack.c.h.b16 %v3902
  %v4043 = vunpack.c.l.b16 %v3903
  %v4044 = vunpack.c.h.b16 %v3903
  %v4045 = vunpack.c.l.b16 %v3904
  %v4046 = vunpack.c.h.b16 %v3904
  %v4047 = vunpack.c.l.b16 %v3905
  %v4048 = vunpack.c.h.b16 %v3905
  %v4049 = vunpack.c.l.b16 %v3906
  %v4050 = vunpack.c.h.b16 %v3906
  %v4051 = vunpack.c.l.b16 %v3907
  %v4052 = vunpack.c.h.b16 %v3907
  %v4053 = vunpack.c.l.b16 %v3908
  %v4054 = vunpack.c.h.b16 %v3908
  %v4055 = vunpack.c.l.b16 %v3909
  %v4056 = vunpack.c.h.b16 %v3909
  %v4057 = vunpack.c.l.b16 %v3910
  %v4058 = vunpack.c.h.b16 %v3910
  %v4059 = vunpack.c.l.b16 %v3911
  %v4060 = vunpack.c.h.b16 %v3911
  %v4061 = vunpack.c.l.b16 %v3912
  %v4062 = vunpack.c.h.b16 %v3912
  %v4063 = vunpack.c.l.b16 %v3913
  %v4064 = vunpack.c.h.b16 %v3913
  %v4065 = vunpack.c.l.b16 %v3914
  %v4066 = vunpack.c.h.b16 %v3914
  %v4067 = vunpack.c.l.b16 %v3915
  %v4068 = vunpack.c.h.b16 %v3915
  %v4069 = vunpack.c.l.b16 %v3916
  %v4070 = vunpack.c.h.b16 %v3916
  %v4071 = vunpack.c.l.b16 %v3917
  %v4072 = vunpack.c.h.b16 %v3917
  %v4073 = vunpack.c.l.b16 %v3918
  %v4074 = vunpack.c.h.b16 %v3918
  %v4075 = vunpack.c.l.b16 %v3919
  %v4076 = vunpack.c.h.b16 %v3919
  %v4077 = vunpack.c.l.b16 %v3920
  %v4078 = vunpack.c.h.b16 %v3920
  %v4079 = vunpack.c.l.b16 %v3921
  %v4080 = vunpack.c.h.b16 %v3921
  %v4081 = vunpack.c.l.b16 %v3922
  %v4082 = vunpack.c.h.b16 %v3922
  %v4083 = vunpack.c.l.b16 %v3923
  %v4084 = vunpack.c.h.b16 %v3923
  %v4085 = vunpack.c.l.b16 %v3924
  %v4086 = vunpack.c.h.b16 %v3924
  %v4087 = vunpack.c.l.b16 %v3925
  %v4088 = vunpack.c.h.b16 %v3925
  %v4089 = vunpack.c.l.b16 %v3926
  %v4090 = vunpack.c.h.b16 %v3926
  %v4091 = vunpack.c.l.b16 %v3927
  %v4092 = vunpack.c.h.b16 %v3927
  %v4093 = vunpack.c.l.b16 %v3928
  %v4094 = vunpack.c.h.b16 %v3928
  %v4095 = vunpack.c.l.b16 %v3929
  %v4096 = vunpack.c.h.b16 %v3929
  %v4097 = vunpack.c.l.b16 %v3930
  %v4098 = vunpack.c.h.b16 %v3930
  %v4099 = vunpack.c.l.b16 %v3931
  %v4100 = vunpack.c.h.b16 %v3931
  %v4101 = vunpack.c.l.b16 %v3932
  %v4102 = vunpack.c.h.b16 %v3932
  %v4103 = vunpack.c.l.b16 %v3933
  %v4104 = vunpack.c.h.b16 %v3933
  %v4105 = vunpack.c.l.b16 %v3934
  %v4106 = vunpack.c.h.b16 %v3934
  %v4107 = vunpack.c.l.b16 %v3935
  %v4108 = vunpack.c.h.b16 %v3935
  %v4109 = vunpack.c.l.b16 %v3936
  %v4110 = vunpack.c.h.b16 %v3936
  %v4111 = vunpack.c.l.b16 %v3937
  %v4112 = vunpack.c.h.b16 %v3937
  %v4113 = vunpack.c.l.b16 %v3938
  %v4114 = vunpack.c.h.b16 %v3938
  %v4115 = vunpack.c.l.b16 %v3939
  %v4116 = vunpack.c.h.b16 %v3939
  %v4117 = vunpack.c.l.b16 %v3940
  %v4118 = vunpack.c.h.b16 %v3940
  %v4119 = vunpack.c.l.b16 %v3941
  %v4120 = vunpack.c.h.b16 %v3941
  %v4121 = vunpack.c.l.b16 %v3942
  %v4122 = vunpack.c.h.b16 %v3942
  %v4123 = vunpack.c.l.b16 %v3943
  %v4124 = vunpack.c.h.b16 %v3943
  %v4125 = vunpack.c.l.b16 %v3944
  %v4126 = vunpack.c.h.b16 %v3944
  %v4127 = vunpack.c.l.b16 %v3945
  %v4128 = vunpack.c.h.b16 %v3945
  %v4129 = vunpack.c.l.b16 %v3946
  %v4130 = vunpack.c.h.b16 %v3946
  %v4131 = vunpack.c.l.b16 %v3947
  %v4132 = vunpack.c.h.b16 %v3947
  %v4133 = vunpack.c.l.b16 %v3948
  %v4134 = vunpack.c.h.b16 %v3948
  %v4135 = vunpack.c.l.b16 %v3949
  %v4136 = vunpack.c.h.b16 %v3949
  %v4137 = vunpack.c.l.b16 %v3950
  %v4138 = vunpack.c.h.b16 %v3950
  %v4139 = vunpack.c.l.b16 %v3951
  %v4140 = vunpack.c.h.b16 %v3951
  %v4141 = vunpack.c.l.b16 %v3952
  %v4142 = vunpack.c.h.b16 %v3952
  %v4143 = vunpack.c.l.b16 %v3953
  %v4144 = vunpack.c.h.b16 %v3953
  %v4145 = vunpack.c.l.b16 %v3954
  %v4146 = vunpack.c.h.b16 %v3954
  %v4147 = vpack.c.b16 %v4051, %v4019
  %v4148 = vpack.c.b16 %v4052, %v4020
  %v4149 = vpack.c.b16 %v4053, %v4021
  %v4150 = vpack.c.b16 %v4054, %v4022
  %v4151 = vpack.c.b16 %v4055, %v4023
  %v4152 = vpack.c.b16 %v4056, %v4024
  %v4153 = vpack.c.b16 %v4057, %v4025
  %v4154 = vpack.c.b16 %v4058, %v4026
  %v4155 = vpack.c.b16 %v4059, %v4027
  %v4156 = vpack.c.b16 %v4060, %v4028
  %v4157 = vpack.c.b16 %v4061, %v4029
  %v4158 = vpack.c.b16 %v4062, %v4030
  %v4159 = vpack.c.b16 %v4063, %v4031
  %v4160 = vpack.c.b16 %v4064, %v4032
  %v4161 = vpack.c.b16 %v4065, %v4033
  %v4162 = vpack.c.b16 %v4066, %v4034
  %v4163 = vpack.c.b16 %v4067, %v4035
  %v4164 = vpack.c.b16 %v4068, %v4036
  %v4165 = vpack.c.b16 %v4069, %v4037
  %v4166 = vpack.c.b16 %v4070, %v4038
  %v4167 = vpack.c.b16 %v4071, %v4039
  %v4168 = vpack.c.b16 %v4072, %v4040
  %v4169 = vpack.c.b16 %v4073, %v4041
  %v4170 = vpack.c.b16 %v4074, %v4042
  %v4171 = vpack.c.b16 %v4075, %v4043
  %v4172 = vpack.c.b16 %v4076, %v4044
  %v4173 = vpack.c.b16 %v4077, %v4045
  %v4174 = vpack.c.b16 %v4078, %v4046
  %v4175 = vpack.c.b16 %v4079, %v4047
  %v4176 = vpack.c.b16 %v4080, %v4048
  %v4177 = vpack.c.b16 %v4081, %v4049
  %v4178 = vpack.c.b16 %v4082, %v4050
  %v4179 = vpack.c.b16 %v4115, %v4083
  %v4180 = vpack.c.b16 %v4116, %v4084
  %v4181 = vpack.c.b16 %v4117, %v4085
  %v4182 = vpack.c.b16 %v4118, %v4086
  %v4183 = vpack.c.b16 %v4119, %v4087
  %v4184 = vpack.c.b16 %v4120, %v4088
  %v4185 = vpack.c.b16 %v4121, %v4089
  %v4186 = vpack.c.b16 %v4122, %v4090
  %v4187 = vpack.c.b16 %v4123, %v4091
  %v4188 = vpack.c.b16 %v4124, %v4092
  %v4189 = vpack.c.b16 %v4125, %v4093
  %v4190 = vpack.c.b16 %v4126, %v4094
  %v4191 = vpack.c.b16 %v4127, %v4095
  %v4192 = vpack.c.b16 %v4128, %v4096
  %v4193 = vpack.c.b16 %v4129, %v4097
  %v4194 = vpack.c.b16 %v4130, %v4098
  %v4195 = vpack.c.b16 %v4131, %v4099
  %v4196 = vpack.c.b16 %v4132, %v4100
  %v4197 = vpack.c.b16 %v4133, %v4101
  %v4198 = vpack.c.b16 %v4134, %v4102
  %v4199 = vpack.c.b16 %v4135, %v4103
  %v4200 = vpack.c.b16 %v4136, %v4104
  %v4201 = vpack.c.b16 %v4137, %v4105
  %v4202 = vpack.c.b16 %v4138, %v4106
  %v4203 = vpack.c.b16 %v4139, %v4107
  %v4204 = vpack.c.b16 %v4140, %v4108
  %v4205 = vpack.c.b16 %v4141, %v4109
  %v4206 = vpack.c.b16 %v4142, %v4110
  %v4207 = vpack.c.b16 %v4143, %v4111
  %v4208 = vpack.c.b16 %v4144, %v4112
  %v4209 = vpack.c.b16 %v4145, %v4113
  %v4210 = vpack.c.b16 %v4146, %v4114
  %v4276 = vsel %vm403, %v3889, 0
  %4278 = vmatprep.subr.bf16.mxu0 %v4148
  %4279 = vmatpush1.bf16.msra.mxu0 %v4147
  %4280 = vmatprep.subr.bf16.mxu0 %v4180
  %4281 = vmatpush1.bf16.msra.mxu0 %v4179
  %4282 = vmatprep.subr.bf16.mxu0 0
  %4283 = vmatpush1.bf16.msra.mxu0 0
  %4284 = vmatprep.subr.bf16.mxu0 0
  %4285 = vmatpush1.bf16.msra.mxu0 0
  %4286 = vmatprep.subr.bf16.mxu0 0
  %4287 = vmatpush1.bf16.msra.mxu0 0
  %4288 = vmatprep.subr.bf16.mxu0 0
  %4289 = vmatpush1.bf16.msra.mxu0 0
  %4290 = vmatprep.subr.bf16.mxu0 0
  %4291 = vmatpush1.bf16.msra.mxu0 0
  %4292 = vmatprep.subr.bf16.mxu0 0
  %4293 = vmatpush1.bf16.msra.mxu0 0
  %4294 = vmatprep.subr.bf16.mxu0 0
  %4295 = vmatpush1.bf16.msra.mxu0 0
  %4296 = vmatprep.subr.bf16.mxu0 0
  %4297 = vmatpush1.bf16.msra.mxu0 0
  %4298 = vmatprep.subr.bf16.mxu0 0
  %4299 = vmatpush1.bf16.msra.mxu0 0
  %4300 = vmatprep.subr.bf16.mxu0 0
  %4301 = vmatpush1.bf16.msra.mxu0 0
  %4302 = vmatprep.subr.bf16.mxu0 0
  %4303 = vmatpush1.bf16.msra.mxu0 0
  %4304 = vmatprep.subr.bf16.mxu0 0
  %4305 = vmatpush1.bf16.msra.mxu0 0
  %4306 = vmatprep.subr.bf16.mxu0 0
  %4307 = vmatpush1.bf16.msra.mxu0 0
  %4308 = vmatprep.subr.bf16.mxu0 0
  %4309 = vmatpush1.bf16.msra.mxu0 0
  %4310 = vmatprep.mubr.bf16.mxu0 0
  %4311 = vmatmul.mubr.bf16.gmra.mrb[0].mxu0 %v4276
  %v4312 = vpop.f32.mrb[0].mxu0
  %v4313 = vadd.f32 0.0, %v4312
  %v4314 = vpop.f32.mrb[0].mxu0
  %v4315 = vadd.f32 0.0, %v4314
  %v4316 = vpop.f32.mrb[0].mxu0
  %v4317 = vpop.f32.mrb[0].mxu0
  %4318 = vdwg.mxu0
  %4319 = vmatprep.subr.bf16.mxu0 %v4150
  %4320 = vmatpush1.bf16.msra.mxu0 %v4149
  %4321 = vmatprep.subr.bf16.mxu0 %v4182
  %4322 = vmatpush1.bf16.msra.mxu0 %v4181
  %4323 = vmatprep.subr.bf16.mxu0 0
  %4324 = vmatpush1.bf16.msra.mxu0 0
  %4325 = vmatprep.subr.bf16.mxu0 0
  %4326 = vmatpush1.bf16.msra.mxu0 0
  %4327 = vmatprep.subr.bf16.mxu0 0
  %4328 = vmatpush1.bf16.msra.mxu0 0
  %4329 = vmatprep.subr.bf16.mxu0 0
  %4330 = vmatpush1.bf16.msra.mxu0 0
  %4331 = vmatprep.subr.bf16.mxu0 0
  %4332 = vmatpush1.bf16.msra.mxu0 0
  %4333 = vmatprep.subr.bf16.mxu0 0
  %4334 = vmatpush1.bf16.msra.mxu0 0
  %4335 = vmatprep.subr.bf16.mxu0 0
  %4336 = vmatpush1.bf16.msra.mxu0 0
  %4337 = vmatprep.subr.bf16.mxu0 0
  %4338 = vmatpush1.bf16.msra.mxu0 0
  %4339 = vmatprep.subr.bf16.mxu0 0
  %4340 = vmatpush1.bf16.msra.mxu0 0
  %4341 = vmatprep.subr.bf16.mxu0 0
  %4342 = vmatpush1.bf16.msra.mxu0 0
  %4343 = vmatprep.subr.bf16.mxu0 0
  %4344 = vmatpush1.bf16.msra.mxu0 0
  %4345 = vmatprep.subr.bf16.mxu0 0
  %4346 = vmatpush1.bf16.msra.mxu0 0
  %4347 = vmatprep.subr.bf16.mxu0 0
  %4348 = vmatpush1.bf16.msra.mxu0 0
  %4349 = vmatprep.subr.bf16.mxu0 0
  %4350 = vmatpush1.bf16.msra.mxu0 0
  %4351 = vmatprep.mubr.bf16.mxu0 0
  %4352 = vmatmul.mubr.bf16.gmra.mrb[0].mxu0 %v4276
  %v4353 = vpop.f32.mrb[0].mxu0
  %v4354 = vadd.f32 0.0, %v4353
  %v4355 = vpop.f32.mrb[0].mxu0
  %v4356 = vadd.f32 0.0, %v4355
  %v4357 = vpop.f32.mrb[0].mxu0
  %v4358 = vpop.f32.mrb[0].mxu0
  %4359 = vdwg.mxu0
  %4360 = vmatprep.subr.bf16.mxu0 %v4152
  %4361 = vmatpush1.bf16.msra.mxu0 %v4151
  %4362 = vmatprep.subr.bf16.mxu0 %v4184
  %4363 = vmatpush1.bf16.msra.mxu0 %v4183
  %4364 = vmatprep.subr.bf16.mxu0 0
  %4365 = vmatpush1.bf16.msra.mxu0 0
  %4366 = vmatprep.subr.bf16.mxu0 0
  %4367 = vmatpush1.bf16.msra.mxu0 0
  %4368 = vmatprep.subr.bf16.mxu0 0
  %4369 = vmatpush1.bf16.msra.mxu0 0
  %4370 = vmatprep.subr.bf16.mxu0 0
  %4371 = vmatpush1.bf16.msra.mxu0 0
  %4372 = vmatprep.subr.bf16.mxu0 0
  %4373 = vmatpush1.bf16.msra.mxu0 0
  %4374 = vmatprep.subr.bf16.mxu0 0
  %4375 = vmatpush1.bf16.msra.mxu0 0
  %4376 = vmatprep.subr.bf16.mxu0 0
  %4377 = vmatpush1.bf16.msra.mxu0 0
  %4378 = vmatprep.subr.bf16.mxu0 0
  %4379 = vmatpush1.bf16.msra.mxu0 0
  %4380 = vmatprep.subr.bf16.mxu0 0
  %4381 = vmatpush1.bf16.msra.mxu0 0
  %4382 = vmatprep.subr.bf16.mxu0 0
  %4383 = vmatpush1.bf16.msra.mxu0 0
  %4384 = vmatprep.subr.bf16.mxu0 0
  %4385 = vmatpush1.bf16.msra.mxu0 0
  %4386 = vmatprep.subr.bf16.mxu0 0
  %4387 = vmatpush1.bf16.msra.mxu0 0
  %4388 = vmatprep.subr.bf16.mxu0 0
  %4389 = vmatpush1.bf16.msra.mxu0 0
  %4390 = vmatprep.subr.bf16.mxu0 0
  %4391 = vmatpush1.bf16.msra.mxu0 0
  %4392 = vmatprep.mubr.bf16.mxu0 0
  %4393 = vmatmul.mubr.bf16.gmra.mrb[0].mxu0 %v4276
  %v4394 = vpop.f32.mrb[0].mxu0
  %v4395 = vadd.f32 0.0, %v4394
  %v4396 = vpop.f32.mrb[0].mxu0
  %v4397 = vadd.f32 0.0, %v4396
  %v4398 = vpop.f32.mrb[0].mxu0
  %v4399 = vpop.f32.mrb[0].mxu0
  %4400 = vdwg.mxu0
  %4401 = vmatprep.subr.bf16.mxu0 %v4154
  %4402 = vmatpush1.bf16.msra.mxu0 %v4153
  %4403 = vmatprep.subr.bf16.mxu0 %v4186
  %4404 = vmatpush1.bf16.msra.mxu0 %v4185
  %4405 = vmatprep.subr.bf16.mxu0 0
  %4406 = vmatpush1.bf16.msra.mxu0 0
  %4407 = vmatprep.subr.bf16.mxu0 0
  %4408 = vmatpush1.bf16.msra.mxu0 0
  %4409 = vmatprep.subr.bf16.mxu0 0
  %4410 = vmatpush1.bf16.msra.mxu0 0
  %4411 = vmatprep.subr.bf16.mxu0 0
  %4412 = vmatpush1.bf16.msra.mxu0 0
  %4413 = vmatprep.subr.bf16.mxu0 0
  %4414 = vmatpush1.bf16.msra.mxu0 0
  %4415 = vmatprep.subr.bf16.mxu0 0
  %4416 = vmatpush1.bf16.msra.mxu0 0
  %4417 = vmatprep.subr.bf16.mxu0 0
  %4418 = vmatpush1.bf16.msra.mxu0 0
  %4419 = vmatprep.subr.bf16.mxu0 0
  %4420 = vmatpush1.bf16.msra.mxu0 0
  %4421 = vmatprep.subr.bf16.mxu0 0
  %4422 = vmatpush1.bf16.msra.mxu0 0
  %4423 = vmatprep.subr.bf16.mxu0 0
  %4424 = vmatpush1.bf16.msra.mxu0 0
  %4425 = vmatprep.subr.bf16.mxu0 0
  %4426 = vmatpush1.bf16.msra.mxu0 0
  %4427 = vmatprep.subr.bf16.mxu0 0
  %4428 = vmatpush1.bf16.msra.mxu0 0
  %4429 = vmatprep.subr.bf16.mxu0 0
  %4430 = vmatpush1.bf16.msra.mxu0 0
  %4431 = vmatprep.subr.bf16.mxu0 0
  %4432 = vmatpush1.bf16.msra.mxu0 0
  %4433 = vmatprep.mubr.bf16.mxu0 0
  %4434 = vmatmul.mubr.bf16.gmra.mrb[0].mxu0 %v4276
  %v4435 = vpop.f32.mrb[0].mxu0
  %v4436 = vadd.f32 0.0, %v4435
  %v4437 = vpop.f32.mrb[0].mxu0
  %v4438 = vadd.f32 0.0, %v4437
  %v4439 = vpop.f32.mrb[0].mxu0
  %v4440 = vpop.f32.mrb[0].mxu0
  %4441 = vdwg.mxu0
  %4442 = vmatprep.subr.bf16.mxu0 %v4156
  %4443 = vmatpush1.bf16.msra.mxu0 %v4155
  %4444 = vmatprep.subr.bf16.mxu0 %v4188
  %4445 = vmatpush1.bf16.msra.mxu0 %v4187
  %4446 = vmatprep.subr.bf16.mxu0 0
  %4447 = vmatpush1.bf16.msra.mxu0 0
  %4448 = vmatprep.subr.bf16.mxu0 0
  %4449 = vmatpush1.bf16.msra.mxu0 0
  %4450 = vmatprep.subr.bf16.mxu0 0
  %4451 = vmatpush1.bf16.msra.mxu0 0
  %4452 = vmatprep.subr.bf16.mxu0 0
  %4453 = vmatpush1.bf16.msra.mxu0 0
  %4454 = vmatprep.subr.bf16.mxu0 0
  %4455 = vmatpush1.bf16.msra.mxu0 0
  %4456 = vmatprep.subr.bf16.mxu0 0
  %4457 = vmatpush1.bf16.msra.mxu0 0
  %4458 = vmatprep.subr.bf16.mxu0 0
  %4459 = vmatpush1.bf16.msra.mxu0 0
  %4460 = vmatprep.subr.bf16.mxu0 0
  %4461 = vmatpush1.bf16.msra.mxu0 0
  %4462 = vmatprep.subr.bf16.mxu0 0
  %4463 = vmatpush1.bf16.msra.mxu0 0
  %4464 = vmatprep.subr.bf16.mxu0 0
  %4465 = vmatpush1.bf16.msra.mxu0 0
  %4466 = vmatprep.subr.bf16.mxu0 0
  %4467 = vmatpush1.bf16.msra.mxu0 0
  %4468 = vmatprep.subr.bf16.mxu0 0
  %4469 = vmatpush1.bf16.msra.mxu0 0
  %4470 = vmatprep.subr.bf16.mxu0 0
  %4471 = vmatpush1.bf16.msra.mxu0 0
  %4472 = vmatprep.subr.bf16.mxu0 0
  %4473 = vmatpush1.bf16.msra.mxu0 0
  %4474 = vmatprep.mubr.bf16.mxu0 0
  %4475 = vmatmul.mubr.bf16.gmra.mrb[0].mxu0 %v4276
  %v4476 = vpop.f32.mrb[0].mxu0
  %v4477 = vadd.f32 0.0, %v4476
  %v4478 = vpop.f32.mrb[0].mxu0
  %v4479 = vadd.f32 0.0, %v4478
  %v4480 = vpop.f32.mrb[0].mxu0
  %v4481 = vpop.f32.mrb[0].mxu0
  %4482 = vdwg.mxu0
  %4483 = vmatprep.subr.bf16.mxu0 %v4158
  %4484 = vmatpush1.bf16.msra.mxu0 %v4157
  %4485 = vmatprep.subr.bf16.mxu0 %v4190
  %4486 = vmatpush1.bf16.msra.mxu0 %v4189
  %4487 = vmatprep.subr.bf16.mxu0 0
  %4488 = vmatpush1.bf16.msra.mxu0 0
  %4489 = vmatprep.subr.bf16.mxu0 0
  %4490 = vmatpush1.bf16.msra.mxu0 0
  %4491 = vmatprep.subr.bf16.mxu0 0
  %4492 = vmatpush1.bf16.msra.mxu0 0
  %4493 = vmatprep.subr.bf16.mxu0 0
  %4494 = vmatpush1.bf16.msra.mxu0 0
  %4495 = vmatprep.subr.bf16.mxu0 0
  %4496 = vmatpush1.bf16.msra.mxu0 0
  %4497 = vmatprep.subr.bf16.mxu0 0
  %4498 = vmatpush1.bf16.msra.mxu0 0
  %4499 = vmatprep.subr.bf16.mxu0 0
  %4500 = vmatpush1.bf16.msra.mxu0 0
  %4501 = vmatprep.subr.bf16.mxu0 0
  %4502 = vmatpush1.bf16.msra.mxu0 0
  %4503 = vmatprep.subr.bf16.mxu0 0
  %4504 = vmatpush1.bf16.msra.mxu0 0
  %4505 = vmatprep.subr.bf16.mxu0 0
  %4506 = vmatpush1.bf16.msra.mxu0 0
  %4507 = vmatprep.subr.bf16.mxu0 0
  %4508 = vmatpush1.bf16.msra.mxu0 0
  %4509 = vmatprep.subr.bf16.mxu0 0
  %4510 = vmatpush1.bf16.msra.mxu0 0
  %4511 = vmatprep.subr.bf16.mxu0 0
  %4512 = vmatpush1.bf16.msra.mxu0 0
  %4513 = vmatprep.subr.bf16.mxu0 0
  %4514 = vmatpush1.bf16.msra.mxu0 0
  %4515 = vmatprep.mubr.bf16.mxu0 0
  %4516 = vmatmul.mubr.bf16.gmra.mrb[0].mxu0 %v4276
  %v4517 = vpop.f32.mrb[0].mxu0
  %v4518 = vadd.f32 0.0, %v4517
  %v4519 = vpop.f32.mrb[0].mxu0
  %v4520 = vadd.f32 0.0, %v4519
  %v4521 = vpop.f32.mrb[0].mxu0
  %v4522 = vpop.f32.mrb[0].mxu0
  %4523 = vdwg.mxu0
  %4524 = vmatprep.subr.bf16.mxu0 %v4160
  %4525 = vmatpush1.bf16.msra.mxu0 %v4159
  %4526 = vmatprep.subr.bf16.mxu0 %v4192
  %4527 = vmatpush1.bf16.msra.mxu0 %v4191
  %4528 = vmatprep.subr.bf16.mxu0 0
  %4529 = vmatpush1.bf16.msra.mxu0 0
  %4530 = vmatprep.subr.bf16.mxu0 0
  %4531 = vmatpush1.bf16.msra.mxu0 0
  %4532 = vmatprep.subr.bf16.mxu0 0
  %4533 = vmatpush1.bf16.msra.mxu0 0
  %4534 = vmatprep.subr.bf16.mxu0 0
  %4535 = vmatpush1.bf16.msra.mxu0 0
  %4536 = vmatprep.subr.bf16.mxu0 0
  %4537 = vmatpush1.bf16.msra.mxu0 0
  %4538 = vmatprep.subr.bf16.mxu0 0
  %4539 = vmatpush1.bf16.msra.mxu0 0
  %4540 = vmatprep.subr.bf16.mxu0 0
  %4541 = vmatpush1.bf16.msra.mxu0 0
  %4542 = vmatprep.subr.bf16.mxu0 0
  %4543 = vmatpush1.bf16.msra.mxu0 0
  %4544 = vmatprep.subr.bf16.mxu0 0
  %4545 = vmatpush1.bf16.msra.mxu0 0
  %4546 = vmatprep.subr.bf16.mxu0 0
  %4547 = vmatpush1.bf16.msra.mxu0 0
  %4548 = vmatprep.subr.bf16.mxu0 0
  %4549 = vmatpush1.bf16.msra.mxu0 0
  %4550 = vmatprep.subr.bf16.mxu0 0
  %4551 = vmatpush1.bf16.msra.mxu0 0
  %4552 = vmatprep.subr.bf16.mxu0 0
  %4553 = vmatpush1.bf16.msra.mxu0 0
  %4554 = vmatprep.subr.bf16.mxu0 0
  %4555 = vmatpush1.bf16.msra.mxu0 0
  %4556 = vmatprep.mubr.bf16.mxu0 0
  %4557 = vmatmul.mubr.bf16.gmra.mrb[0].mxu0 %v4276
  %v4558 = vpop.f32.mrb[0].mxu0
  %v4559 = vadd.f32 0.0, %v4558
  %v4560 = vpop.f32.mrb[0].mxu0
  %v4561 = vadd.f32 0.0, %v4560
  %v4562 = vpop.f32.mrb[0].mxu0
  %v4563 = vpop.f32.mrb[0].mxu0
  %4564 = vdwg.mxu0
  %4565 = vmatprep.subr.bf16.mxu0 %v4162
  %4566 = vmatpush1.bf16.msra.mxu0 %v4161
  %4567 = vmatprep.subr.bf16.mxu0 %v4194
  %4568 = vmatpush1.bf16.msra.mxu0 %v4193
  %4569 = vmatprep.subr.bf16.mxu0 0
  %4570 = vmatpush1.bf16.msra.mxu0 0
  %4571 = vmatprep.subr.bf16.mxu0 0
  %4572 = vmatpush1.bf16.msra.mxu0 0
  %4573 = vmatprep.subr.bf16.mxu0 0
  %4574 = vmatpush1.bf16.msra.mxu0 0
  %4575 = vmatprep.subr.bf16.mxu0 0
  %4576 = vmatpush1.bf16.msra.mxu0 0
  %4577 = vmatprep.subr.bf16.mxu0 0
  %4578 = vmatpush1.bf16.msra.mxu0 0
  %4579 = vmatprep.subr.bf16.mxu0 0
  %4580 = vmatpush1.bf16.msra.mxu0 0
  %4581 = vmatprep.subr.bf16.mxu0 0
  %4582 = vmatpush1.bf16.msra.mxu0 0
  %4583 = vmatprep.subr.bf16.mxu0 0
  %4584 = vmatpush1.bf16.msra.mxu0 0
  %4585 = vmatprep.subr.bf16.mxu0 0
  %4586 = vmatpush1.bf16.msra.mxu0 0
  %4587 = vmatprep.subr.bf16.mxu0 0
  %4588 = vmatpush1.bf16.msra.mxu0 0
  %4589 = vmatprep.subr.bf16.mxu0 0
  %4590 = vmatpush1.bf16.msra.mxu0 0
  %4591 = vmatprep.subr.bf16.mxu0 0
  %4592 = vmatpush1.bf16.msra.mxu0 0
  %4593 = vmatprep.subr.bf16.mxu0 0
  %4594 = vmatpush1.bf16.msra.mxu0 0
  %4595 = vmatprep.subr.bf16.mxu0 0
  %4596 = vmatpush1.bf16.msra.mxu0 0
  %4597 = vmatprep.mubr.bf16.mxu0 0
  %4598 = vmatmul.mubr.bf16.gmra.mrb[0].mxu0 %v4276
  %v4599 = vpop.f32.mrb[0].mxu0
  %v4600 = vadd.f32 0.0, %v4599
  %v4601 = vpop.f32.mrb[0].mxu0
  %v4602 = vadd.f32 0.0, %v4601
  %v4603 = vpop.f32.mrb[0].mxu0
  %v4604 = vpop.f32.mrb[0].mxu0
  %4605 = vdwg.mxu0
  %4606 = vmatprep.subr.bf16.mxu0 %v4164
  %4607 = vmatpush1.bf16.msra.mxu0 %v4163
  %4608 = vmatprep.subr.bf16.mxu0 %v4196
  %4609 = vmatpush1.bf16.msra.mxu0 %v4195
  %4610 = vmatprep.subr.bf16.mxu0 0
  %4611 = vmatpush1.bf16.msra.mxu0 0
  %4612 = vmatprep.subr.bf16.mxu0 0
  %4613 = vmatpush1.bf16.msra.mxu0 0
  %4614 = vmatprep.subr.bf16.mxu0 0
  %4615 = vmatpush1.bf16.msra.mxu0 0
  %4616 = vmatprep.subr.bf16.mxu0 0
  %4617 = vmatpush1.bf16.msra.mxu0 0
  %4618 = vmatprep.subr.bf16.mxu0 0
  %4619 = vmatpush1.bf16.msra.mxu0 0
  %4620 = vmatprep.subr.bf16.mxu0 0
  %4621 = vmatpush1.bf16.msra.mxu0 0
  %4622 = vmatprep.subr.bf16.mxu0 0
  %4623 = vmatpush1.bf16.msra.mxu0 0
  %4624 = vmatprep.subr.bf16.mxu0 0
  %4625 = vmatpush1.bf16.msra.mxu0 0
  %4626 = vmatprep.subr.bf16.mxu0 0
  %4627 = vmatpush1.bf16.msra.mxu0 0
  %4628 = vmatprep.subr.bf16.mxu0 0
  %4629 = vmatpush1.bf16.msra.mxu0 0
  %4630 = vmatprep.subr.bf16.mxu0 0
  %4631 = vmatpush1.bf16.msra.mxu0 0
  %4632 = vmatprep.subr.bf16.mxu0 0
  %4633 = vmatpush1.bf16.msra.mxu0 0
  %4634 = vmatprep.subr.bf16.mxu0 0
  %4635 = vmatpush1.bf16.msra.mxu0 0
  %4636 = vmatprep.subr.bf16.mxu0 0
  %4637 = vmatpush1.bf16.msra.mxu0 0
  %4638 = vmatprep.mubr.bf16.mxu0 0
  %4639 = vmatmul.mubr.bf16.gmra.mrb[0].mxu0 %v4276
  %v4640 = vpop.f32.mrb[0].mxu0
  %v4641 = vadd.f32 0.0, %v4640
  %v4642 = vpop.f32.mrb[0].mxu0
  %v4643 = vadd.f32 0.0, %v4642
  %v4644 = vpop.f32.mrb[0].mxu0
  %v4645 = vpop.f32.mrb[0].mxu0
  %4646 = vdwg.mxu0
  %4647 = vmatprep.subr.bf16.mxu0 %v4166
  %4648 = vmatpush1.bf16.msra.mxu0 %v4165
  %4649 = vmatprep.subr.bf16.mxu0 %v4198
  %4650 = vmatpush1.bf16.msra.mxu0 %v4197
  %4651 = vmatprep.subr.bf16.mxu0 0
  %4652 = vmatpush1.bf16.msra.mxu0 0
  %4653 = vmatprep.subr.bf16.mxu0 0
  %4654 = vmatpush1.bf16.msra.mxu0 0
  %4655 = vmatprep.subr.bf16.mxu0 0
  %4656 = vmatpush1.bf16.msra.mxu0 0
  %4657 = vmatprep.subr.bf16.mxu0 0
  %4658 = vmatpush1.bf16.msra.mxu0 0
  %4659 = vmatprep.subr.bf16.mxu0 0
  %4660 = vmatpush1.bf16.msra.mxu0 0
  %4661 = vmatprep.subr.bf16.mxu0 0
  %4662 = vmatpush1.bf16.msra.mxu0 0
  %4663 = vmatprep.subr.bf16.mxu0 0
  %4664 = vmatpush1.bf16.msra.mxu0 0
  %4665 = vmatprep.subr.bf16.mxu0 0
  %4666 = vmatpush1.bf16.msra.mxu0 0
  %4667 = vmatprep.subr.bf16.mxu0 0
  %4668 = vmatpush1.bf16.msra.mxu0 0
  %4669 = vmatprep.subr.bf16.mxu0 0
  %4670 = vmatpush1.bf16.msra.mxu0 0
  %4671 = vmatprep.subr.bf16.mxu0 0
  %4672 = vmatpush1.bf16.msra.mxu0 0
  %4673 = vmatprep.subr.bf16.mxu0 0
  %4674 = vmatpush1.bf16.msra.mxu0 0
  %4675 = vmatprep.subr.bf16.mxu0 0
  %4676 = vmatpush1.bf16.msra.mxu0 0
  %4677 = vmatprep.subr.bf16.mxu0 0
  %4678 = vmatpush1.bf16.msra.mxu0 0
  %4679 = vmatprep.mubr.bf16.mxu0 0
  %4680 = vmatmul.mubr.bf16.gmra.mrb[0].mxu0 %v4276
  %v4681 = vpop.f32.mrb[0].mxu0
  %v4682 = vadd.f32 0.0, %v4681
  %v4683 = vpop.f32.mrb[0].mxu0
  %v4684 = vadd.f32 0.0, %v4683
  %v4685 = vpop.f32.mrb[0].mxu0
  %v4686 = vpop.f32.mrb[0].mxu0
  %4687 = vdwg.mxu0
  %4688 = vmatprep.subr.bf16.mxu0 %v4168
  %4689 = vmatpush1.bf16.msra.mxu0 %v4167
  %4690 = vmatprep.subr.bf16.mxu0 %v4200
  %4691 = vmatpush1.bf16.msra.mxu0 %v4199
  %4692 = vmatprep.subr.bf16.mxu0 0
  %4693 = vmatpush1.bf16.msra.mxu0 0
  %4694 = vmatprep.subr.bf16.mxu0 0
  %4695 = vmatpush1.bf16.msra.mxu0 0
  %4696 = vmatprep.subr.bf16.mxu0 0
  %4697 = vmatpush1.bf16.msra.mxu0 0
  %4698 = vmatprep.subr.bf16.mxu0 0
  %4699 = vmatpush1.bf16.msra.mxu0 0
  %4700 = vmatprep.subr.bf16.mxu0 0
  %4701 = vmatpush1.bf16.msra.mxu0 0
  %4702 = vmatprep.subr.bf16.mxu0 0
  %4703 = vmatpush1.bf16.msra.mxu0 0
  %4704 = vmatprep.subr.bf16.mxu0 0
  %4705 = vmatpush1.bf16.msra.mxu0 0
  %4706 = vmatprep.subr.bf16.mxu0 0
  %4707 = vmatpush1.bf16.msra.mxu0 0
  %4708 = vmatprep.subr.bf16.mxu0 0
  %4709 = vmatpush1.bf16.msra.mxu0 0
  %4710 = vmatprep.subr.bf16.mxu0 0
  %4711 = vmatpush1.bf16.msra.mxu0 0
  %4712 = vmatprep.subr.bf16.mxu0 0
  %4713 = vmatpush1.bf16.msra.mxu0 0
  %4714 = vmatprep.subr.bf16.mxu0 0
  %4715 = vmatpush1.bf16.msra.mxu0 0
  %4716 = vmatprep.subr.bf16.mxu0 0
  %4717 = vmatpush1.bf16.msra.mxu0 0
  %4718 = vmatprep.subr.bf16.mxu0 0
  %4719 = vmatpush1.bf16.msra.mxu0 0
  %4720 = vmatprep.mubr.bf16.mxu0 0
  %4721 = vmatmul.mubr.bf16.gmra.mrb[0].mxu0 %v4276
  %v4722 = vpop.f32.mrb[0].mxu0
  %v4723 = vadd.f32 0.0, %v4722
  %v4724 = vpop.f32.mrb[0].mxu0
  %v4725 = vadd.f32 0.0, %v4724
  %v4726 = vpop.f32.mrb[0].mxu0
  %v4727 = vpop.f32.mrb[0].mxu0
  %4728 = vdwg.mxu0
  %4729 = vmatprep.subr.bf16.mxu0 %v4170
  %4730 = vmatpush1.bf16.msra.mxu0 %v4169
  %4731 = vmatprep.subr.bf16.mxu0 %v4202
  %4732 = vmatpush1.bf16.msra.mxu0 %v4201
  %4733 = vmatprep.subr.bf16.mxu0 0
  %4734 = vmatpush1.bf16.msra.mxu0 0
  %4735 = vmatprep.subr.bf16.mxu0 0
  %4736 = vmatpush1.bf16.msra.mxu0 0
  %4737 = vmatprep.subr.bf16.mxu0 0
  %4738 = vmatpush1.bf16.msra.mxu0 0
  %4739 = vmatprep.subr.bf16.mxu0 0
  %4740 = vmatpush1.bf16.msra.mxu0 0
  %4741 = vmatprep.subr.bf16.mxu0 0
  %4742 = vmatpush1.bf16.msra.mxu0 0
  %4743 = vmatprep.subr.bf16.mxu0 0
  %4744 = vmatpush1.bf16.msra.mxu0 0
  %4745 = vmatprep.subr.bf16.mxu0 0
  %4746 = vmatpush1.bf16.msra.mxu0 0
  %4747 = vmatprep.subr.bf16.mxu0 0
  %4748 = vmatpush1.bf16.msra.mxu0 0
  %4749 = vmatprep.subr.bf16.mxu0 0
  %4750 = vmatpush1.bf16.msra.mxu0 0
  %4751 = vmatprep.subr.bf16.mxu0 0
  %4752 = vmatpush1.bf16.msra.mxu0 0
  %4753 = vmatprep.subr.bf16.mxu0 0
  %4754 = vmatpush1.bf16.msra.mxu0 0
  %4755 = vmatprep.subr.bf16.mxu0 0
  %4756 = vmatpush1.bf16.msra.mxu0 0
  %4757 = vmatprep.subr.bf16.mxu0 0
  %4758 = vmatpush1.bf16.msra.mxu0 0
  %4759 = vmatprep.subr.bf16.mxu0 0
  %4760 = vmatpush1.bf16.msra.mxu0 0
  %4761 = vmatprep.mubr.bf16.mxu0 0
  %4762 = vmatmul.mubr.bf16.gmra.mrb[0].mxu0 %v4276
  %v4763 = vpop.f32.mrb[0].mxu0
  %v4764 = vadd.f32 0.0, %v4763
  %v4765 = vpop.f32.mrb[0].mxu0
  %v4766 = vadd.f32 0.0, %v4765
  %v4767 = vpop.f32.mrb[0].mxu0
  %v4768 = vpop.f32.mrb[0].mxu0
  %4769 = vdwg.mxu0
  %4770 = vmatprep.subr.bf16.mxu0 %v4172
  %4771 = vmatpush1.bf16.msra.mxu0 %v4171
  %4772 = vmatprep.subr.bf16.mxu0 %v4204
  %4773 = vmatpush1.bf16.msra.mxu0 %v4203
  %4774 = vmatprep.subr.bf16.mxu0 0
  %4775 = vmatpush1.bf16.msra.mxu0 0
  %4776 = vmatprep.subr.bf16.mxu0 0
  %4777 = vmatpush1.bf16.msra.mxu0 0
  %4778 = vmatprep.subr.bf16.mxu0 0
  %4779 = vmatpush1.bf16.msra.mxu0 0
  %4780 = vmatprep.subr.bf16.mxu0 0
  %4781 = vmatpush1.bf16.msra.mxu0 0
  %4782 = vmatprep.subr.bf16.mxu0 0
  %4783 = vmatpush1.bf16.msra.mxu0 0
  %4784 = vmatprep.subr.bf16.mxu0 0
  %4785 = vmatpush1.bf16.msra.mxu0 0
  %4786 = vmatprep.subr.bf16.mxu0 0
  %4787 = vmatpush1.bf16.msra.mxu0 0
  %4788 = vmatprep.subr.bf16.mxu0 0
  %4789 = vmatpush1.bf16.msra.mxu0 0
  %4790 = vmatprep.subr.bf16.mxu0 0
  %4791 = vmatpush1.bf16.msra.mxu0 0
  %4792 = vmatprep.subr.bf16.mxu0 0
  %4793 = vmatpush1.bf16.msra.mxu0 0
  %4794 = vmatprep.subr.bf16.mxu0 0
  %4795 = vmatpush1.bf16.msra.mxu0 0
  %4796 = vmatprep.subr.bf16.mxu0 0
  %4797 = vmatpush1.bf16.msra.mxu0 0
  %4798 = vmatprep.subr.bf16.mxu0 0
  %4799 = vmatpush1.bf16.msra.mxu0 0
  %4800 = vmatprep.subr.bf16.mxu0 0
  %4801 = vmatpush1.bf16.msra.mxu0 0
  %4802 = vmatprep.mubr.bf16.mxu0 0
  %4803 = vmatmul.mubr.bf16.gmra.mrb[0].mxu0 %v4276
  %v4804 = vpop.f32.mrb[0].mxu0
  %v4805 = vadd.f32 0.0, %v4804
  %v4806 = vpop.f32.mrb[0].mxu0
  %v4807 = vadd.f32 0.0, %v4806
  %v4808 = vpop.f32.mrb[0].mxu0
  %v4809 = vpop.f32.mrb[0].mxu0
  %4810 = vdwg.mxu0
  %4811 = vmatprep.subr.bf16.mxu0 %v4174
  %4812 = vmatpush1.bf16.msra.mxu0 %v4173
  %4813 = vmatprep.subr.bf16.mxu0 %v4206
  %4814 = vmatpush1.bf16.msra.mxu0 %v4205
  %4815 = vmatprep.subr.bf16.mxu0 0
  %4816 = vmatpush1.bf16.msra.mxu0 0
  %4817 = vmatprep.subr.bf16.mxu0 0
  %4818 = vmatpush1.bf16.msra.mxu0 0
  %4819 = vmatprep.subr.bf16.mxu0 0
  %4820 = vmatpush1.bf16.msra.mxu0 0
  %4821 = vmatprep.subr.bf16.mxu0 0
  %4822 = vmatpush1.bf16.msra.mxu0 0
  %4823 = vmatprep.subr.bf16.mxu0 0
  %4824 = vmatpush1.bf16.msra.mxu0 0
  %4825 = vmatprep.subr.bf16.mxu0 0
  %4826 = vmatpush1.bf16.msra.mxu0 0
  %4827 = vmatprep.subr.bf16.mxu0 0
  %4828 = vmatpush1.bf16.msra.mxu0 0
  %4829 = vmatprep.subr.bf16.mxu0 0
  %4830 = vmatpush1.bf16.msra.mxu0 0
  %4831 = vmatprep.subr.bf16.mxu0 0
  %4832 = vmatpush1.bf16.msra.mxu0 0
  %4833 = vmatprep.subr.bf16.mxu0 0
  %4834 = vmatpush1.bf16.msra.mxu0 0
  %4835 = vmatprep.subr.bf16.mxu0 0
  %4836 = vmatpush1.bf16.msra.mxu0 0
  %4837 = vmatprep.subr.bf16.mxu0 0
  %4838 = vmatpush1.bf16.msra.mxu0 0
  %4839 = vmatprep.subr.bf16.mxu0 0
  %4840 = vmatpush1.bf16.msra.mxu0 0
  %4841 = vmatprep.subr.bf16.mxu0 0
  %4842 = vmatpush1.bf16.msra.mxu0 0
  %4843 = vmatprep.mubr.bf16.mxu0 0
  %4844 = vmatmul.mubr.bf16.gmra.mrb[0].mxu0 %v4276
  %v4845 = vpop.f32.mrb[0].mxu0
  %v4846 = vadd.f32 0.0, %v4845
  %v4847 = vpop.f32.mrb[0].mxu0
  %v4848 = vadd.f32 0.0, %v4847
  %v4849 = vpop.f32.mrb[0].mxu0
  %v4850 = vpop.f32.mrb[0].mxu0
  %4851 = vdwg.mxu0
  %4852 = vmatprep.subr.bf16.mxu0 %v4176
  %4853 = vmatpush1.bf16.msra.mxu0 %v4175
  %4854 = vmatprep.subr.bf16.mxu0 %v4208
  %4855 = vmatpush1.bf16.msra.mxu0 %v4207
  %4856 = vmatprep.subr.bf16.mxu0 0
  %4857 = vmatpush1.bf16.msra.mxu0 0
  %4858 = vmatprep.subr.bf16.mxu0 0
  %4859 = vmatpush1.bf16.msra.mxu0 0
  %4860 = vmatprep.subr.bf16.mxu0 0
  %4861 = vmatpush1.bf16.msra.mxu0 0
  %4862 = vmatprep.subr.bf16.mxu0 0
  %4863 = vmatpush1.bf16.msra.mxu0 0
  %4864 = vmatprep.subr.bf16.mxu0 0
  %4865 = vmatpush1.bf16.msra.mxu0 0
  %4866 = vmatprep.subr.bf16.mxu0 0
  %4867 = vmatpush1.bf16.msra.mxu0 0
  %4868 = vmatprep.subr.bf16.mxu0 0
  %4869 = vmatpush1.bf16.msra.mxu0 0
  %4870 = vmatprep.subr.bf16.mxu0 0
  %4871 = vmatpush1.bf16.msra.mxu0 0
  %4872 = vmatprep.subr.bf16.mxu0 0
  %4873 = vmatpush1.bf16.msra.mxu0 0
  %4874 = vmatprep.subr.bf16.mxu0 0
  %4875 = vmatpush1.bf16.msra.mxu0 0
  %4876 = vmatprep.subr.bf16.mxu0 0
  %4877 = vmatpush1.bf16.msra.mxu0 0
  %4878 = vmatprep.subr.bf16.mxu0 0
  %4879 = vmatpush1.bf16.msra.mxu0 0
  %4880 = vmatprep.subr.bf16.mxu0 0
  %4881 = vmatpush1.bf16.msra.mxu0 0
  %4882 = vmatprep.subr.bf16.mxu0 0
  %4883 = vmatpush1.bf16.msra.mxu0 0
  %4884 = vmatprep.mubr.bf16.mxu0 0
  %4885 = vmatmul.mubr.bf16.gmra.mrb[0].mxu0 %v4276
  %v4886 = vpop.f32.mrb[0].mxu0
  %v4887 = vadd.f32 0.0, %v4886
  %v4888 = vpop.f32.mrb[0].mxu0
  %v4889 = vadd.f32 0.0, %v4888
  %v4890 = vpop.f32.mrb[0].mxu0
  %v4891 = vpop.f32.mrb[0].mxu0
  %4892 = vdwg.mxu0
  %4893 = vmatprep.subr.bf16.mxu0 %v4178
  %4894 = vmatpush1.bf16.msra.mxu0 %v4177
  %4895 = vmatprep.subr.bf16.mxu0 %v4210
  %4896 = vmatpush1.bf16.msra.mxu0 %v4209
  %4897 = vmatprep.subr.bf16.mxu0 0
  %4898 = vmatpush1.bf16.msra.mxu0 0
  %4899 = vmatprep.subr.bf16.mxu0 0
  %4900 = vmatpush1.bf16.msra.mxu0 0
  %4901 = vmatprep.subr.bf16.mxu0 0
  %4902 = vmatpush1.bf16.msra.mxu0 0
  %4903 = vmatprep.subr.bf16.mxu0 0
  %4904 = vmatpush1.bf16.msra.mxu0 0
  %4905 = vmatprep.subr.bf16.mxu0 0
  %4906 = vmatpush1.bf16.msra.mxu0 0
  %4907 = vmatprep.subr.bf16.mxu0 0
  %4908 = vmatpush1.bf16.msra.mxu0 0
  %4909 = vmatprep.subr.bf16.mxu0 0
  %4910 = vmatpush1.bf16.msra.mxu0 0
  %4911 = vmatprep.subr.bf16.mxu0 0
  %4912 = vmatpush1.bf16.msra.mxu0 0
  %4913 = vmatprep.subr.bf16.mxu0 0
  %4914 = vmatpush1.bf16.msra.mxu0 0
  %4915 = vmatprep.subr.bf16.mxu0 0
  %4916 = vmatpush1.bf16.msra.mxu0 0
  %4917 = vmatprep.subr.bf16.mxu0 0
  %4918 = vmatpush1.bf16.msra.mxu0 0
  %4919 = vmatprep.subr.bf16.mxu0 0
  %4920 = vmatpush1.bf16.msra.mxu0 0
  %4921 = vmatprep.subr.bf16.mxu0 0
  %4922 = vmatpush1.bf16.msra.mxu0 0
  %4923 = vmatprep.subr.bf16.mxu0 0
  %4924 = vmatpush1.bf16.msra.mxu0 0
  %4925 = vmatprep.mubr.bf16.mxu0 0
  %4926 = vmatmul.mubr.bf16.gmra.mrb[0].mxu0 %v4276
  %v4927 = vpop.f32.mrb[0].mxu0
  %v4928 = vadd.f32 0.0, %v4927
  %v4929 = vpop.f32.mrb[0].mxu0
  %v4930 = vadd.f32 0.0, %v4929
  %v4931 = vpop.f32.mrb[0].mxu0
  %v4932 = vpop.f32.mrb[0].mxu0
  %4933 = vdwg.mxu0
  %v4934 = vsel %vm1063, %v4313, 0.0
  %v4935 = vsel %vm1063, %v4315, 0.0
  %v4936 = vadd.f32 %v4934, %v4935
  %v4937 = vsel %vm1063, %v4354, 0.0
  %v4938 = vadd.f32 %v4936, %v4937
  %v4939 = vsel %vm1063, %v4356, 0.0
  %v4940 = vadd.f32 %v4938, %v4939
  %v4941 = vsel %vm1063, %v4395, 0.0
  %v4942 = vadd.f32 %v4940, %v4941
  %v4943 = vsel %vm1063, %v4397, 0.0
  %v4944 = vadd.f32 %v4942, %v4943
  %v4945 = vsel %vm1063, %v4436, 0.0
  %v4946 = vadd.f32 %v4944, %v4945
  %v4947 = vsel %vm1063, %v4438, 0.0
  %v4948 = vadd.f32 %v4946, %v4947
  %v4949 = vsel %vm1063, %v4477, 0.0
  %v4950 = vadd.f32 %v4948, %v4949
  %v4951 = vsel %vm1063, %v4479, 0.0
  %v4952 = vadd.f32 %v4950, %v4951
  %v4953 = vsel %vm1063, %v4518, 0.0
  %v4954 = vadd.f32 %v4952, %v4953
  %v4955 = vsel %vm1063, %v4520, 0.0
  %v4956 = vadd.f32 %v4954, %v4955
  %v4957 = vsel %vm1063, %v4559, 0.0
  %v4958 = vadd.f32 %v4956, %v4957
  %v4959 = vsel %vm1063, %v4561, 0.0
  %v4960 = vadd.f32 %v4958, %v4959
  %v4961 = vsel %vm1063, %v4600, 0.0
  %v4962 = vadd.f32 %v4960, %v4961
  %v4963 = vsel %vm1063, %v4602, 0.0
  %v4964 = vadd.f32 %v4962, %v4963
  %v4965 = vsel %vm1063, %v4641, 0.0
  %v4966 = vadd.f32 %v4964, %v4965
  %v4967 = vsel %vm1063, %v4643, 0.0
  %v4968 = vadd.f32 %v4966, %v4967
  %v4969 = vsel %vm1063, %v4682, 0.0
  %v4970 = vadd.f32 %v4968, %v4969
  %v4971 = vsel %vm1063, %v4684, 0.0
  %v4972 = vadd.f32 %v4970, %v4971
  %v4973 = vsel %vm1063, %v4723, 0.0
  %v4974 = vadd.f32 %v4972, %v4973
  %v4975 = vsel %vm1063, %v4725, 0.0
  %v4976 = vadd.f32 %v4974, %v4975
  %v4977 = vsel %vm1063, %v4764, 0.0
  %v4978 = vadd.f32 %v4976, %v4977
  %v4979 = vsel %vm1063, %v4766, 0.0
  %v4980 = vadd.f32 %v4978, %v4979
  %v4981 = vsel %vm1063, %v4805, 0.0
  %v4982 = vadd.f32 %v4980, %v4981
  %v4983 = vsel %vm1063, %v4807, 0.0
  %v4984 = vadd.f32 %v4982, %v4983
  %v4985 = vsel %vm1063, %v4846, 0.0
  %v4986 = vadd.f32 %v4984, %v4985
  %v4987 = vsel %vm1063, %v4848, 0.0
  %v4988 = vadd.f32 %v4986, %v4987
  %v4989 = vsel %vm1063, %v4887, 0.0
  %v4990 = vadd.f32 %v4988, %v4989
  %v4991 = vsel %vm1063, %v4889, 0.0
  %v4992 = vadd.f32 %v4990, %v4991
  %v4993 = vsel %vm1063, %v4928, 0.0
  %v4994 = vadd.f32 %v4992, %v4993
  %v4995 = vsel %vm1063, %v4930, 0.0
  %v4996 = vadd.f32 %v4994, %v4995
  %4997 = vadd.xlane.f32.xlu0 %v4996
  %v4998 = vpop.xlane.xlu0 %4997
  %v4999 = vadd.f32 %v3709, %v4998
  %v5000 = vmul.f32 %v4313, %v4313
  %v5001 = vmul.f32 %v4315, %v4315
  %v5002 = vmul.f32 %v4354, %v4354
  %v5003 = vmul.f32 %v4356, %v4356
  %v5004 = vmul.f32 %v4395, %v4395
  %v5005 = vmul.f32 %v4397, %v4397
  %v5006 = vmul.f32 %v4436, %v4436
  %v5007 = vmul.f32 %v4438, %v4438
  %v5008 = vmul.f32 %v4477, %v4477
  %v5009 = vmul.f32 %v4479, %v4479
  %v5010 = vmul.f32 %v4518, %v4518
  %v5011 = vmul.f32 %v4520, %v4520
  %v5012 = vmul.f32 %v4559, %v4559
  %v5013 = vmul.f32 %v4561, %v4561
  %v5014 = vmul.f32 %v4600, %v4600
  %v5015 = vmul.f32 %v4602, %v4602
  %v5016 = vmul.f32 %v4641, %v4641
  %v5017 = vmul.f32 %v4643, %v4643
  %v5018 = vmul.f32 %v4682, %v4682
  %v5019 = vmul.f32 %v4684, %v4684
  %v5020 = vmul.f32 %v4723, %v4723
  %v5021 = vmul.f32 %v4725, %v4725
  %v5022 = vmul.f32 %v4764, %v4764
  %v5023 = vmul.f32 %v4766, %v4766
  %v5024 = vmul.f32 %v4805, %v4805
  %v5025 = vmul.f32 %v4807, %v4807
  %v5026 = vmul.f32 %v4846, %v4846
  %v5027 = vmul.f32 %v4848, %v4848
  %v5028 = vmul.f32 %v4887, %v4887
  %v5029 = vmul.f32 %v4889, %v4889
  %v5030 = vmul.f32 %v4928, %v4928
  %v5031 = vmul.f32 %v4930, %v4930
  %v5032 = vsel %vm1063, %v5000, 0.0
  %v5033 = vsel %vm1063, %v5001, 0.0
  %v5034 = vadd.f32 %v5032, %v5033
  %v5035 = vsel %vm1063, %v5002, 0.0
  %v5036 = vadd.f32 %v5034, %v5035
  %v5037 = vsel %vm1063, %v5003, 0.0
  %v5038 = vadd.f32 %v5036, %v5037
  %v5039 = vsel %vm1063, %v5004, 0.0
  %v5040 = vadd.f32 %v5038, %v5039
  %v5041 = vsel %vm1063, %v5005, 0.0
  %v5042 = vadd.f32 %v5040, %v5041
  %v5043 = vsel %vm1063, %v5006, 0.0
  %v5044 = vadd.f32 %v5042, %v5043
  %v5045 = vsel %vm1063, %v5007, 0.0
  %v5046 = vadd.f32 %v5044, %v5045
  %v5047 = vsel %vm1063, %v5008, 0.0
  %v5048 = vadd.f32 %v5046, %v5047
  %v5049 = vsel %vm1063, %v5009, 0.0
  %v5050 = vadd.f32 %v5048, %v5049
  %v5051 = vsel %vm1063, %v5010, 0.0
  %v5052 = vadd.f32 %v5050, %v5051
  %v5053 = vsel %vm1063, %v5011, 0.0
  %v5054 = vadd.f32 %v5052, %v5053
  %v5055 = vsel %vm1063, %v5012, 0.0
  %v5056 = vadd.f32 %v5054, %v5055
  %v5057 = vsel %vm1063, %v5013, 0.0
  %v5058 = vadd.f32 %v5056, %v5057
  %v5059 = vsel %vm1063, %v5014, 0.0
  %v5060 = vadd.f32 %v5058, %v5059
  %v5061 = vsel %vm1063, %v5015, 0.0
  %v5062 = vadd.f32 %v5060, %v5061
  %v5063 = vsel %vm1063, %v5016, 0.0
  %v5064 = vadd.f32 %v5062, %v5063
  %v5065 = vsel %vm1063, %v5017, 0.0
  %v5066 = vadd.f32 %v5064, %v5065
  %v5067 = vsel %vm1063, %v5018, 0.0
  %v5068 = vadd.f32 %v5066, %v5067
  %v5069 = vsel %vm1063, %v5019, 0.0
  %v5070 = vadd.f32 %v5068, %v5069
  %v5071 = vsel %vm1063, %v5020, 0.0
  %v5072 = vadd.f32 %v5070, %v5071
  %v5073 = vsel %vm1063, %v5021, 0.0
  %v5074 = vadd.f32 %v5072, %v5073
  %v5075 = vsel %vm1063, %v5022, 0.0
  %v5076 = vadd.f32 %v5074, %v5075
  %v5077 = vsel %vm1063, %v5023, 0.0
  %v5078 = vadd.f32 %v5076, %v5077
  %v5079 = vsel %vm1063, %v5024, 0.0
  %v5080 = vadd.f32 %v5078, %v5079
  %v5081 = vsel %vm1063, %v5025, 0.0
  %v5082 = vadd.f32 %v5080, %v5081
  %v5083 = vsel %vm1063, %v5026, 0.0
  %v5084 = vadd.f32 %v5082, %v5083
  %v5085 = vsel %vm1063, %v5027, 0.0
  %v5086 = vadd.f32 %v5084, %v5085
  %v5087 = vsel %vm1063, %v5028, 0.0
  %v5088 = vadd.f32 %v5086, %v5087
  %v5089 = vsel %vm1063, %v5029, 0.0
  %v5090 = vadd.f32 %v5088, %v5089
  %v5091 = vsel %vm1063, %v5030, 0.0
  %v5092 = vadd.f32 %v5090, %v5091
  %v5093 = vsel %vm1063, %v5031, 0.0
  %v5094 = vadd.f32 %v5092, %v5093
  %5095 = vadd.xlane.f32.xlu0 %v5094
  %v5096 = vpop.xlane.xlu0 %5095
  %v5097 = vadd.f32 %v3807, %v5096
  %v5130 = vcombine.low %v4313, %v4315
  %v5131 = vcombine.low %v4354, %v4356
  %v5132 = vcombine.low %v4395, %v4397
  %v5133 = vcombine.low %v4436, %v4438
  %v5134 = vcombine.low %v4477, %v4479
  %v5135 = vcombine.low %v4518, %v4520
  %v5136 = vcombine.low %v4559, %v4561
  %v5137 = vcombine.low %v4600, %v4602
  %v5138 = vcombine.low %v4641, %v4643
  %v5139 = vcombine.low %v4682, %v4684
  %v5140 = vcombine.low %v4723, %v4725
  %v5141 = vcombine.low %v4764, %v4766
  %v5142 = vcombine.low %v4805, %v4807
  %v5143 = vcombine.low %v4846, %v4848
  %v5144 = vcombine.low %v4887, %v4889
  %v5145 = vcombine.low %v4928, %v4930
  %5162 = vst [vmem:[%s4 + $0x180] sm:$0x77] %v5130
  %5163 = vst [vmem:[%s4 + $0x188] sm:$0x77] %v5131
  %5164 = vst [vmem:[%s4 + $0x190] sm:$0x77] %v5132
  %5165 = vst [vmem:[%s4 + $0x198] sm:$0x77] %v5133
  %5166 = vst [vmem:[%s4 + $0x1a0] sm:$0x77] %v5134
  %5167 = vst [vmem:[%s4 + $0x1a8] sm:$0x77] %v5135
  %5168 = vst [vmem:[%s4 + $0x1b0] sm:$0x77] %v5136
  %5169 = vst [vmem:[%s4 + $0x1b8] sm:$0x77] %v5137
  %5170 = vst [vmem:[%s4 + $0x1c0] sm:$0x77] %v5138
  %5171 = vst [vmem:[%s4 + $0x1c8] sm:$0x77] %v5139
  %5172 = vst [vmem:[%s4 + $0x1d0] sm:$0x77] %v5140
  %5173 = vst [vmem:[%s4 + $0x1d8] sm:$0x77] %v5141
  %5174 = vst [vmem:[%s4 + $0x1e0] sm:$0x77] %v5142
  %5175 = vst [vmem:[%s4 + $0x1e8] sm:$0x77] %v5143
  %5176 = vst [vmem:[%s4 + $0x1f0] sm:$0x77] %v5144
  %5177 = vst [vmem:[%s4 + $0x1f8] sm:$0x77] %v5145
  %v5178 = vld [vmem:[%s2] sm:$0x7]
  %v5179 = vld [vmem:[%s3] sm:$0x7]
  %v5180 = vmul.f32 %v4999, 6.1035156e-05
  %v5181 = vmul.f32 %v5097, 6.1035156e-05
  %v5182 = vmul.f32 %v5180, %v5180
  %v5183 = vsub.f32 %v5181, %v5182
  %v5184 = vmax.f32 %v5183, 0.0
  %v5185 = vadd.f32 %v5184, 1e-05
  %v5186 = vrsqrt.pop %v5185
  %v5187 = vmul.f32 %v5178, %v5186
  %v5188 = vmul.f32 %v5180, %v5187
  %v5189 = vsub.f32 %v5179, %v5188
  %v5190 = vld [vmem:[%s4] sm:$0x77]
  %v5191 = vld [vmem:[%s4 + $0x8] sm:$0x77]
  %v5192 = vld [vmem:[%s4 + $0x10] sm:$0x77]
  %v5193 = vld [vmem:[%s4 + $0x18] sm:$0x77]
  %v5194 = vld [vmem:[%s4 + $0x20] sm:$0x77]
  %v5195 = vld [vmem:[%s4 + $0x28] sm:$0x77]
  %v5196 = vld [vmem:[%s4 + $0x30] sm:$0x77]
  %v5197 = vld [vmem:[%s4 + $0x38] sm:$0x77]
  %v5198 = vld [vmem:[%s4 + $0x40] sm:$0x77]
  %v5199 = vld [vmem:[%s4 + $0x48] sm:$0x77]
  %v5200 = vld [vmem:[%s4 + $0x50] sm:$0x77]
  %v5201 = vld [vmem:[%s4 + $0x58] sm:$0x77]
  %v5202 = vld [vmem:[%s4 + $0x60] sm:$0x77]
  %v5203 = vld [vmem:[%s4 + $0x68] sm:$0x77]
  %v5204 = vld [vmem:[%s4 + $0x70] sm:$0x77]
  %v5205 = vld [vmem:[%s4 + $0x78] sm:$0x77]
  %5207 = vset.pattern.permute.xlu0 0
  %5208 = vperm.xlu0 %5207, %v5187
  %v5209 = vpop.permute.xlu0 %5208
  %v5211 = vunpack.c.l.s4 839922192
  %v5212 = vunpack.c.0.s8 %v5211
  %v5213 = vlaneseq
  %v5214 = vshrl.u32 %v5213, 7
  %v5215 = vsub.s32 %v5212, %v5214
  %v5216 = vrot.slane %v5209, %v5215
  %v5218 = vmul.f32 %v5190, %v5216
  %v5219 = vmul.f32 %v5191, %v5216
  %v5220 = vmul.f32 %v5192, %v5216
  %v5221 = vmul.f32 %v5193, %v5216
  %v5222 = vmul.f32 %v5194, %v5216
  %v5223 = vmul.f32 %v5195, %v5216
  %v5224 = vmul.f32 %v5196, %v5216
  %v5225 = vmul.f32 %v5197, %v5216
  %v5226 = vmul.f32 %v5198, %v5216
  %v5227 = vmul.f32 %v5199, %v5216
  %v5228 = vmul.f32 %v5200, %v5216
  %v5229 = vmul.f32 %v5201, %v5216
  %v5230 = vmul.f32 %v5202, %v5216
  %v5231 = vmul.f32 %v5203, %v5216
  %v5232 = vmul.f32 %v5204, %v5216
  %v5233 = vmul.f32 %v5205, %v5216
  %5235 = vset.pattern.permute.xlu0 0
  %5236 = vperm.xlu0 %5235, %v5189
  %v5237 = vpop.permute.xlu0 %5236
  %v5239 = vunpack.c.l.s4 839922192
  %v5240 = vunpack.c.0.s8 %v5239
  %v5241 = vlaneseq
  %v5242 = vshrl.u32 %v5241, 7
  %v5243 = vsub.s32 %v5240, %v5242
  %v5244 = vrot.slane %v5237, %v5243
  %v5246 = vadd.f32 %v5218, %v5244
  %v5247 = vadd.f32 %v5219, %v5244
  %v5248 = vadd.f32 %v5220, %v5244
  %v5249 = vadd.f32 %v5221, %v5244
  %v5250 = vadd.f32 %v5222, %v5244
  %v5251 = vadd.f32 %v5223, %v5244
  %v5252 = vadd.f32 %v5224, %v5244
  %v5253 = vadd.f32 %v5225, %v5244
  %v5254 = vadd.f32 %v5226, %v5244
  %v5255 = vadd.f32 %v5227, %v5244
  %v5256 = vadd.f32 %v5228, %v5244
  %v5257 = vadd.f32 %v5229, %v5244
  %v5258 = vadd.f32 %v5230, %v5244
  %v5259 = vadd.f32 %v5231, %v5244
  %v5260 = vadd.f32 %v5232, %v5244
  %v5261 = vadd.f32 %v5233, %v5244
  %v5262 = vtanh.pop %v5246
  %v5263 = vtanh.pop %v5247
  %v5264 = vtanh.pop %v5248
  %v5265 = vtanh.pop %v5249
  %v5266 = vtanh.pop %v5250
  %v5267 = vtanh.pop %v5251
  %v5268 = vtanh.pop %v5252
  %v5269 = vtanh.pop %v5253
  %v5270 = vtanh.pop %v5254
  %v5271 = vtanh.pop %v5255
  %v5272 = vtanh.pop %v5256
  %v5273 = vtanh.pop %v5257
  %v5274 = vtanh.pop %v5258
  %v5275 = vtanh.pop %v5259
  %v5276 = vtanh.pop %v5260
  %v5277 = vtanh.pop %v5261
  %5278 = vst [vmem:[%s4] sm:$0x77] %v5262
  %5279 = vst [vmem:[%s4 + $0x8] sm:$0x77] %v5263
  %5280 = vst [vmem:[%s4 + $0x10] sm:$0x77] %v5264
  %5281 = vst [vmem:[%s4 + $0x18] sm:$0x77] %v5265
  %5282 = vst [vmem:[%s4 + $0x20] sm:$0x77] %v5266
  %5283 = vst [vmem:[%s4 + $0x28] sm:$0x77] %v5267
  %5284 = vst [vmem:[%s4 + $0x30] sm:$0x77] %v5268
  %5285 = vst [vmem:[%s4 + $0x38] sm:$0x77] %v5269
  %5286 = vst [vmem:[%s4 + $0x40] sm:$0x77] %v5270
  %5287 = vst [vmem:[%s4 + $0x48] sm:$0x77] %v5271
  %5288 = vst [vmem:[%s4 + $0x50] sm:$0x77] %v5272
  %5289 = vst [vmem:[%s4 + $0x58] sm:$0x77] %v5273
  %5290 = vst [vmem:[%s4 + $0x60] sm:$0x77] %v5274
  %5291 = vst [vmem:[%s4 + $0x68] sm:$0x77] %v5275
  %5292 = vst [vmem:[%s4 + $0x70] sm:$0x77] %v5276
  %5293 = vst [vmem:[%s4 + $0x78] sm:$0x77] %v5277
  %v5294 = vld [vmem:[%s4 + $0x80] sm:$0x77]
  %v5295 = vld [vmem:[%s4 + $0x88] sm:$0x77]
  %v5296 = vld [vmem:[%s4 + $0x90] sm:$0x77]
  %v5297 = vld [vmem:[%s4 + $0x98] sm:$0x77]
  %v5298 = vld [vmem:[%s4 + $0xa0] sm:$0x77]
  %v5299 = vld [vmem:[%s4 + $0xa8] sm:$0x77]
  %v5300 = vld [vmem:[%s4 + $0xb0] sm:$0x77]
  %v5301 = vld [vmem:[%s4 + $0xb8] sm:$0x77]
  %v5302 = vld [vmem:[%s4 + $0xc0] sm:$0x77]
  %v5303 = vld [vmem:[%s4 + $0xc8] sm:$0x77]
  %v5304 = vld [vmem:[%s4 + $0xd0] sm:$0x77]
  %v5305 = vld [vmem:[%s4 + $0xd8] sm:$0x77]
  %v5306 = vld [vmem:[%s4 + $0xe0] sm:$0x77]
  %v5307 = vld [vmem:[%s4 + $0xe8] sm:$0x77]
  %v5308 = vld [vmem:[%s4 + $0xf0] sm:$0x77]
  %v5309 = vld [vmem:[%s4 + $0xf8] sm:$0x77]
  %v5310 = vmul.f32 %v5294, %v5216
  %v5311 = vmul.f32 %v5295, %v5216
  %v5312 = vmul.f32 %v5296, %v5216
  %v5313 = vmul.f32 %v5297, %v5216
  %v5314 = vmul.f32 %v5298, %v5216
  %v5315 = vmul.f32 %v5299, %v5216
  %v5316 = vmul.f32 %v5300, %v5216
  %v5317 = vmul.f32 %v5301, %v5216
  %v5318 = vmul.f32 %v5302, %v5216
  %v5319 = vmul.f32 %v5303, %v5216
  %v5320 = vmul.f32 %v5304, %v5216
  %v5321 = vmul.f32 %v5305, %v5216
  %v5322 = vmul.f32 %v5306, %v5216
  %v5323 = vmul.f32 %v5307, %v5216
  %v5324 = vmul.f32 %v5308, %v5216
  %v5325 = vmul.f32 %v5309, %v5216
  %v5326 = vadd.f32 %v5310, %v5244
  %v5327 = vadd.f32 %v5311, %v5244
  %v5328 = vadd.f32 %v5312, %v5244
  %v5329 = vadd.f32 %v5313, %v5244
  %v5330 = vadd.f32 %v5314, %v5244
  %v5331 = vadd.f32 %v5315, %v5244
  %v5332 = vadd.f32 %v5316, %v5244
  %v5333 = vadd.f32 %v5317, %v5244
  %v5334 = vadd.f32 %v5318, %v5244
  %v5335 = vadd.f32 %v5319, %v5244
  %v5336 = vadd.f32 %v5320, %v5244
  %v5337 = vadd.f32 %v5321, %v5244
  %v5338 = vadd.f32 %v5322, %v5244
  %v5339 = vadd.f32 %v5323, %v5244
  %v5340 = vadd.f32 %v5324, %v5244
  %v5341 = vadd.f32 %v5325, %v5244
  %v5342 = vtanh.pop %v5326
  %v5343 = vtanh.pop %v5327
  %v5344 = vtanh.pop %v5328
  %v5345 = vtanh.pop %v5329
  %v5346 = vtanh.pop %v5330
  %v5347 = vtanh.pop %v5331
  %v5348 = vtanh.pop %v5332
  %v5349 = vtanh.pop %v5333
  %v5350 = vtanh.pop %v5334
  %v5351 = vtanh.pop %v5335
  %v5352 = vtanh.pop %v5336
  %v5353 = vtanh.pop %v5337
  %v5354 = vtanh.pop %v5338
  %v5355 = vtanh.pop %v5339
  %v5356 = vtanh.pop %v5340
  %v5357 = vtanh.pop %v5341
  %5358 = vst [vmem:[%s4 + $0x80] sm:$0x77] %v5342
  %5359 = vst [vmem:[%s4 + $0x88] sm:$0x77] %v5343
  %5360 = vst [vmem:[%s4 + $0x90] sm:$0x77] %v5344
  %5361 = vst [vmem:[%s4 + $0x98] sm:$0x77] %v5345
  %5362 = vst [vmem:[%s4 + $0xa0] sm:$0x77] %v5346
  %5363 = vst [vmem:[%s4 + $0xa8] sm:$0x77] %v5347
  %5364 = vst [vmem:[%s4 + $0xb0] sm:$0x77] %v5348
  %5365 = vst [vmem:[%s4 + $0xb8] sm:$0x77] %v5349
  %5366 = vst [vmem:[%s4 + $0xc0] sm:$0x77] %v5350
  %5367 = vst [vmem:[%s4 + $0xc8] sm:$0x77] %v5351
  %5368 = vst [vmem:[%s4 + $0xd0] sm:$0x77] %v5352
  %5369 = vst [vmem:[%s4 + $0xd8] sm:$0x77] %v5353
  %5370 = vst [vmem:[%s4 + $0xe0] sm:$0x77] %v5354
  %5371 = vst [vmem:[%s4 + $0xe8] sm:$0x77] %v5355
  %5372 = vst [vmem:[%s4 + $0xf0] sm:$0x77] %v5356
  %5373 = vst [vmem:[%s4 + $0xf8] sm:$0x77] %v5357
  %v5374 = vld [vmem:[%s4 + $0x100] sm:$0x77]
  %v5375 = vld [vmem:[%s4 + $0x108] sm:$0x77]
  %v5376 = vld [vmem:[%s4 + $0x110] sm:$0x77]
  %v5377 = vld [vmem:[%s4 + $0x118] sm:$0x77]
  %v5378 = vld [vmem:[%s4 + $0x120] sm:$0x77]
  %v5379 = vld [vmem:[%s4 + $0x128] sm:$0x77]
  %v5380 = vld [vmem:[%s4 + $0x130] sm:$0x77]
  %v5381 = vld [vmem:[%s4 + $0x138] sm:$0x77]
  %v5382 = vld [vmem:[%s4 + $0x140] sm:$0x77]
  %v5383 = vld [vmem:[%s4 + $0x148] sm:$0x77]
  %v5384 = vld [vmem:[%s4 + $0x150] sm:$0x77]
  %v5385 = vld [vmem:[%s4 + $0x158] sm:$0x77]
  %v5386 = vld [vmem:[%s4 + $0x160] sm:$0x77]
  %v5387 = vld [vmem:[%s4 + $0x168] sm:$0x77]
  %v5388 = vld [vmem:[%s4 + $0x170] sm:$0x77]
  %v5389 = vld [vmem:[%s4 + $0x178] sm:$0x77]
  %v5390 = vmul.f32 %v5374, %v5216
  %v5391 = vmul.f32 %v5375, %v5216
  %v5392 = vmul.f32 %v5376, %v5216
  %v5393 = vmul.f32 %v5377, %v5216
  %v5394 = vmul.f32 %v5378, %v5216
  %v5395 = vmul.f32 %v5379, %v5216
  %v5396 = vmul.f32 %v5380, %v5216
  %v5397 = vmul.f32 %v5381, %v5216
  %v5398 = vmul.f32 %v5382, %v5216
  %v5399 = vmul.f32 %v5383, %v5216
  %v5400 = vmul.f32 %v5384, %v5216
  %v5401 = vmul.f32 %v5385, %v5216
  %v5402 = vmul.f32 %v5386, %v5216
  %v5403 = vmul.f32 %v5387, %v5216
  %v5404 = vmul.f32 %v5388, %v5216
  %v5405 = vmul.f32 %v5389, %v5216
  %v5406 = vadd.f32 %v5390, %v5244
  %v5407 = vadd.f32 %v5391, %v5244
  %v5408 = vadd.f32 %v5392, %v5244
  %v5409 = vadd.f32 %v5393, %v5244
  %v5410 = vadd.f32 %v5394, %v5244
  %v5411 = vadd.f32 %v5395, %v5244
  %v5412 = vadd.f32 %v5396, %v5244
  %v5413 = vadd.f32 %v5397, %v5244
  %v5414 = vadd.f32 %v5398, %v5244
  %v5415 = vadd.f32 %v5399, %v5244
  %v5416 = vadd.f32 %v5400, %v5244
  %v5417 = vadd.f32 %v5401, %v5244
  %v5418 = vadd.f32 %v5402, %v5244
  %v5419 = vadd.f32 %v5403, %v5244
  %v5420 = vadd.f32 %v5404, %v5244
  %v5421 = vadd.f32 %v5405, %v5244
  %v5422 = vtanh.pop %v5406
  %v5423 = vtanh.pop %v5407
  %v5424 = vtanh.pop %v5408
  %v5425 = vtanh.pop %v5409
  %v5426 = vtanh.pop %v5410
  %v5427 = vtanh.pop %v5411
  %v5428 = vtanh.pop %v5412
  %v5429 = vtanh.pop %v5413
  %v5430 = vtanh.pop %v5414
  %v5431 = vtanh.pop %v5415
  %v5432 = vtanh.pop %v5416
  %v5433 = vtanh.pop %v5417
  %v5434 = vtanh.pop %v5418
  %v5435 = vtanh.pop %v5419
  %v5436 = vtanh.pop %v5420
  %v5437 = vtanh.pop %v5421
  %5438 = vst [vmem:[%s4 + $0x100] sm:$0x77] %v5422
  %5439 = vst [vmem:[%s4 + $0x108] sm:$0x77] %v5423
  %5440 = vst [vmem:[%s4 + $0x110] sm:$0x77] %v5424
  %5441 = vst [vmem:[%s4 + $0x118] sm:$0x77] %v5425
  %5442 = vst [vmem:[%s4 + $0x120] sm:$0x77] %v5426
  %5443 = vst [vmem:[%s4 + $0x128] sm:$0x77] %v5427
  %5444 = vst [vmem:[%s4 + $0x130] sm:$0x77] %v5428
  %5445 = vst [vmem:[%s4 + $0x138] sm:$0x77] %v5429
  %5446 = vst [vmem:[%s4 + $0x140] sm:$0x77] %v5430
  %5447 = vst [vmem:[%s4 + $0x148] sm:$0x77] %v5431
  %5448 = vst [vmem:[%s4 + $0x150] sm:$0x77] %v5432
  %5449 = vst [vmem:[%s4 + $0x158] sm:$0x77] %v5433
  %5450 = vst [vmem:[%s4 + $0x160] sm:$0x77] %v5434
  %5451 = vst [vmem:[%s4 + $0x168] sm:$0x77] %v5435
  %5452 = vst [vmem:[%s4 + $0x170] sm:$0x77] %v5436
  %5453 = vst [vmem:[%s4 + $0x178] sm:$0x77] %v5437
  %v5454 = vld [vmem:[%s4 + $0x180] sm:$0x77]
  %v5455 = vld [vmem:[%s4 + $0x188] sm:$0x77]
  %v5456 = vld [vmem:[%s4 + $0x190] sm:$0x77]
  %v5457 = vld [vmem:[%s4 + $0x198] sm:$0x77]
  %v5458 = vld [vmem:[%s4 + $0x1a0] sm:$0x77]
  %v5459 = vld [vmem:[%s4 + $0x1a8] sm:$0x77]
  %v5460 = vld [vmem:[%s4 + $0x1b0] sm:$0x77]
  %v5461 = vld [vmem:[%s4 + $0x1b8] sm:$0x77]
  %v5462 = vld [vmem:[%s4 + $0x1c0] sm:$0x77]
  %v5463 = vld [vmem:[%s4 + $0x1c8] sm:$0x77]
  %v5464 = vld [vmem:[%s4 + $0x1d0] sm:$0x77]
  %v5465 = vld [vmem:[%s4 + $0x1d8] sm:$0x77]
  %v5466 = vld [vmem:[%s4 + $0x1e0] sm:$0x77]
  %v5467 = vld [vmem:[%s4 + $0x1e8] sm:$0x77]
  %v5468 = vld [vmem:[%s4 + $0x1f0] sm:$0x77]
  %v5469 = vld [vmem:[%s4 + $0x1f8] sm:$0x77]
  %v5470 = vmul.f32 %v5454, %v5216
  %v5471 = vmul.f32 %v5455, %v5216
  %v5472 = vmul.f32 %v5456, %v5216
  %v5473 = vmul.f32 %v5457, %v5216
  %v5474 = vmul.f32 %v5458, %v5216
  %v5475 = vmul.f32 %v5459, %v5216
  %v5476 = vmul.f32 %v5460, %v5216
  %v5477 = vmul.f32 %v5461, %v5216
  %v5478 = vmul.f32 %v5462, %v5216
  %v5479 = vmul.f32 %v5463, %v5216
  %v5480 = vmul.f32 %v5464, %v5216
  %v5481 = vmul.f32 %v5465, %v5216
  %v5482 = vmul.f32 %v5466, %v5216
  %v5483 = vmul.f32 %v5467, %v5216
  %v5484 = vmul.f32 %v5468, %v5216
  %v5485 = vmul.f32 %v5469, %v5216
  %v5486 = vadd.f32 %v5470, %v5244
  %v5487 = vadd.f32 %v5471, %v5244
  %v5488 = vadd.f32 %v5472, %v5244
  %v5489 = vadd.f32 %v5473, %v5244
  %v5490 = vadd.f32 %v5474, %v5244
  %v5491 = vadd.f32 %v5475, %v5244
  %v5492 = vadd.f32 %v5476, %v5244
  %v5493 = vadd.f32 %v5477, %v5244
  %v5494 = vadd.f32 %v5478, %v5244
  %v5495 = vadd.f32 %v5479, %v5244
  %v5496 = vadd.f32 %v5480, %v5244
  %v5497 = vadd.f32 %v5481, %v5244
  %v5498 = vadd.f32 %v5482, %v5244
  %v5499 = vadd.f32 %v5483, %v5244
  %v5500 = vadd.f32 %v5484, %v5244
  %v5501 = vadd.f32 %v5485, %v5244
  %v5502 = vtanh.pop %v5486
  %v5503 = vtanh.pop %v5487
  %v5504 = vtanh.pop %v5488
  %v5505 = vtanh.pop %v5489
  %v5506 = vtanh.pop %v5490
  %v5507 = vtanh.pop %v5491
  %v5508 = vtanh.pop %v5492
  %v5509 = vtanh.pop %v5493
  %v5510 = vtanh.pop %v5494
  %v5511 = vtanh.pop %v5495
  %v5512 = vtanh.pop %v5496
  %v5513 = vtanh.pop %v5497
  %v5514 = vtanh.pop %v5498
  %v5515 = vtanh.pop %v5499
  %v5516 = vtanh.pop %v5500
  %v5517 = vtanh.pop %v5501
  %5518 = vst [vmem:[%s4 + $0x180] sm:$0x77] %v5502
  %5519 = vst [vmem:[%s4 + $0x188] sm:$0x77] %v5503
  %5520 = vst [vmem:[%s4 + $0x190] sm:$0x77] %v5504
  %5521 = vst [vmem:[%s4 + $0x198] sm:$0x77] %v5505
  %5522 = vst [vmem:[%s4 + $0x1a0] sm:$0x77] %v5506
  %5523 = vst [vmem:[%s4 + $0x1a8] sm:$0x77] %v5507
  %5524 = vst [vmem:[%s4 + $0x1b0] sm:$0x77] %v5508
  %5525 = vst [vmem:[%s4 + $0x1b8] sm:$0x77] %v5509
  %5526 = vst [vmem:[%s4 + $0x1c0] sm:$0x77] %v5510
  %5527 = vst [vmem:[%s4 + $0x1c8] sm:$0x77] %v5511
  %5528 = vst [vmem:[%s4 + $0x1d0] sm:$0x77] %v5512
  %5529 = vst [vmem:[%s4 + $0x1d8] sm:$0x77] %v5513
  %5530 = vst [vmem:[%s4 + $0x1e0] sm:$0x77] %v5514
  %5531 = vst [vmem:[%s4 + $0x1e8] sm:$0x77] %v5515
  %5532 = vst [vmem:[%s4 + $0x1f0] sm:$0x77] %v5516
  %5533 = vst [vmem:[%s4 + $0x1f8] sm:$0x77] %v5517
  // Predicated region
  $region18: #{cycle_generator_forward.19} parent=0 // pred_check
    _
  $region19: #{cycle_generator_forward.19} parent=0 // pred_check_branch
    %5535 = sbr.rel (0) target = $region21
  $region20: #{cycle_generator_forward.19} parent=0 // pred_region
    _
  $region21: #{cycle_generator_forward.19} parent=0 // pred_fallthru
    _
  // Predicated region
  $region22: #{cycle_generator_forward.19} parent=0 // pred_check
    _
  $region23: #{cycle_generator_forward.19} parent=0 // pred_check_branch
    %5537 = sbr.rel (0) target = $region25
  $region24: #{cycle_generator_forward.19} parent=0 // pred_region
    _
  $region25: #{cycle_generator_forward.19} parent=0 // pred_fallthru
    _

</llo_original>
